<compile_context>
chip_gen: v6e
topology: v6e:2x2x1
jax: 0.10.0
libtpu: 0.0.40
codegen_flags: <defaults>
</compile_context>

<pallas_src>
import functools

import jax
import jax.numpy as jnp
from jax import lax
from jax.experimental import pallas as pl
from jax.experimental.pallas import tpu as pltpu

BN_EPS = 1e-5
# Set to jnp.bfloat16 for 2x MXU throughput on v6e/v7x (looser numerics vs f32 reference).
MATMUL_DTYPE = jnp.float32


def _dot(a, b):
    """a @ b on the MXU with f32 accumulation."""
    return lax.dot_general(a.astype(MATMUL_DTYPE), b.astype(MATMUL_DTYPE),
                           (((1,), (0,)), ((), ())),
                           preferred_element_type=jnp.float32)


def _dot_t(a, b):
    """a @ b.T (contract last dim of both) without materializing the transpose."""
    return lax.dot_general(a.astype(MATMUL_DTYPE), b.astype(MATMUL_DTYPE),
                           (((1,), (1,)), ((), ())),
                           preferred_element_type=jnp.float32)


# --------------------------- fused attention-block kernel --------------------

def _make_attn_kernel(HW, C, num_heads, key_dim, d, use_act):
    nh_kd = num_heads * key_dim

    def kernel(x_ref, wqkv_ref, bqkv_ref, wp_ref, bp_ref, o_ref):
        x = x_ref[0].astype(jnp.float32)                       # (HW, C)
        wqkv = wqkv_ref[...].astype(jnp.float32)               # (C, 2*nh_kd + dh)
        bqkv = bqkv_ref[...].astype(jnp.float32)               # (1, 2*nh_kd + dh)
        wp = wp_ref[...].astype(jnp.float32)                   # (dh, C)
        bp = bp_ref[...].astype(jnp.float32)                   # (1, C)

        # Fused q/k/v 1x1 conv (+folded BN): one MXU matmul, x read once.
        qkv = _dot(x, wqkv) + bqkv                             # (HW, 2*nh_kd + dh)

        # Residual + projection bias/BN shift; per-head projections accumulate on top.
        acc = x + bp                                           # (HW, C)
        for h in range(num_heads):
            qh = qkv[:, h * key_dim:(h + 1) * key_dim]                       # (HW, kd)
            kh = qkv[:, nh_kd + h * key_dim: nh_kd + (h + 1) * key_dim]      # (HW, kd)
            vh = qkv[:, 2 * nh_kd + h * d: 2 * nh_kd + (h + 1) * d]          # (HW, d)

            s = _dot_t(qh, kh)                                 # (HW, HW); no 1/sqrt(kd) scale: matches module spec
            s = s - jnp.max(s, axis=-1, keepdims=True)
            p = jnp.exp(s)
            p = p * pl.reciprocal(jnp.sum(p, axis=-1, keepdims=True), approx=False)
            oh = _dot(p, vh)                                   # (HW, d)
            if use_act:
                oh = jnp.maximum(oh, 0.0)                      # 'ACN' projection: pre-activation
            acc = acc + _dot(oh, wp[h * d:(h + 1) * d, :])     # project this head's slice
        o_ref[0] = acc.astype(o_ref.dtype)

    return kernel


def _attention_block(x_tok, kp, *, num_heads, key_dim, d, use_act):
    B, HW, C = x_tok.shape
    dh = d * num_heads
    qkv_w = 2 * num_heads * key_dim + dh
    kernel = _make_attn_kernel(HW, C, num_heads, key_dim, d, use_act)
    return pl.pallas_call(
        kernel,
        out_shape=jax.ShapeDtypeStruct((B, HW, C), jnp.float32),
        grid=(B,),
        in_specs=[
            pl.BlockSpec((1, HW, C), lambda b: (b, 0, 0)),
            pl.BlockSpec((C, qkv_w), lambda b: (0, 0)),
            pl.BlockSpec((1, qkv_w), lambda b: (0, 0)),
            pl.BlockSpec((dh, C), lambda b: (0, 0)),
            pl.BlockSpec((1, C), lambda b: (0, 0)),
        ],
        out_specs=pl.BlockSpec((1, HW, C), lambda b: (b, 0, 0)),
        compiler_params=pltpu.CompilerParams(
            dimension_semantics=("parallel",)),   # sharded across v7x's 2 TensorCores
    )(x_tok, kp['wqkv'], kp['bqkv'], kp['wp'], kp['bp'])


# --------------------------- fused feed-forward kernel -----------------------

def _make_ffn_kernel(H, W, C, hidden, use_act):
    Hp, Wp = H + 2, W + 2

    def kernel(x1p_ref, cmask_ref, w1_ref, b1_ref, wdw_ref, bdw_ref,
               w2_ref, b2_ref, o_ref):
        x1p = x1p_ref[0].astype(jnp.float32)                   # (Hp, Wp, C), 1-px zero border
        cmask = cmask_ref[...].astype(jnp.float32)             # (Wp, 1), zero at border cols
        w1 = w1_ref[...].astype(jnp.float32)                   # (C, hidden)
        b1 = b1_ref[...].astype(jnp.float32)                   # (1, hidden)
        wdw = wdw_ref[...].astype(jnp.float32)                 # (3, 3, hidden)
        bdw = bdw_ref[...].astype(jnp.float32)                 # (1, hidden)
        w2 = w2_ref[...].astype(jnp.float32)                   # (hidden, C)
        b2 = b2_ref[...].astype(jnp.float32)                   # (1, C)

        # 1x1 preconv (+folded BN) evaluated per padded row; the zero halo of the
        # depthwise conv is enforced by zero border rows and column masking, so the
        # (hidden)-wide activation never leaves VMEM.
        zero_row = jnp.zeros((Wp, hidden), jnp.float32)
        h1_rows = [zero_row]
        for i in range(1, Hp - 1):
            r = _dot(x1p[i], w1) + b1                          # (Wp, hidden)
            h1_rows.append(r * cmask)
        h1_rows.append(zero_row)

        # 3x3 depthwise conv (+bias/BN, ReLU) + 1x1 postconv (+folded BN) + residual,
        # one output row at a time (shifted-slice accumulation, VMEM resident).
        for i in range(H):
            acc = jnp.zeros((W, hidden), jnp.float32)
            for di in range(3):
                row = h1_rows[i + di]                          # (Wp, hidden)
                for dj in range(3):
                    acc = acc + row[dj:dj + W, :] * wdw[di, dj][None, :]
            acc = acc + bdw
            if use_act:
                acc = jnp.maximum(acc, 0.0)
            x1_row = x1p[i + 1, 1:W + 1, :]                    # residual row (W, C)
            out_row = x1_row + _dot(acc, w2) + b2              # (W, C)
            o_ref[0, i, :, :] = out_row.astype(o_ref.dtype)

    return kernel


def _ffn_block(x1p, col_mask, kp, *, H, W, use_act):
    B = x1p.shape[0]
    C = x1p.shape[-1]
    hidden = kp['w1'].shape[1]
    Hp, Wp = H + 2, W + 2
    kernel = _make_ffn_kernel(H, W, C, hidden, use_act)
    return pl.pallas_call(
        kernel,
        out_shape=jax.ShapeDtypeStruct((B, H, W, C), jnp.float32),
        grid=(B,),
        in_specs=[
            pl.BlockSpec((1, Hp, Wp, C), lambda b: (b, 0, 0, 0)),
            pl.BlockSpec((Wp, 1), lambda b: (0, 0)),
            pl.BlockSpec((C, hidden), lambda b: (0, 0)),
            pl.BlockSpec((1, hidden), lambda b: (0, 0)),
            pl.BlockSpec((3, 3, hidden), lambda b: (0, 0, 0)),
            pl.BlockSpec((1, hidden), lambda b: (0, 0)),
            pl.BlockSpec((hidden, C), lambda b: (0, 0)),
            pl.BlockSpec((1, C), lambda b: (0, 0)),
        ],
        out_specs=pl.BlockSpec((1, H, W, C), lambda b: (b, 0, 0, 0)),
        compiler_params=pltpu.CompilerParams(
            dimension_semantics=("parallel",)),
    )(x1p, col_mask, kp['w1'], kp['b1'], kp['wdw'], kp['bdw'], kp['w2'], kp['b2'])


# --------------------------- forward (kernel path) ---------------------------

@functools.partial(jax.jit,
                   static_argnames=("key_dim", "num_heads", "attn_ratio", "use_act"))
def semantics_extractor_forward(x_nchw, kernel_params_list, *, key_dim, num_heads,
                                attn_ratio, use_act):
    B, C, H, W = x_nchw.shape
    HW = H * W
    d = int(attn_ratio * key_dim)

    x = x_nchw.transpose(0, 2, 3, 1)                           # NHWC, once per forward
    col_mask = jnp.pad(jnp.ones((W, 1), jnp.float32), ((1, 1), (0, 0)))

    for kp in kernel_params_list:
        # fused attention block (token layout)
        x_tok = x.reshape(B, HW, C)
        x1_tok = _attention_block(x_tok, kp, num_heads=num_heads, key_dim=key_dim,
                                  d=d, use_act=use_act)
        x1 = x1_tok.reshape(B, H, W, C)
        # 1-px zero pad of the *small* (dim-channel) tensor feeds the 3x3 halo.
        # TODO(synk): fold this pad into kernel B via a sublane-offset scratch store
        # so the whole block becomes a single HBM pass.
        x1p = jnp.pad(x1, ((0, 0), (1, 1), (1, 1), (0, 0)))
        # fused feed-forward block
        x = _ffn_block(x1p, col_mask, kp, H=H, W=W, use_act=use_act)

    return x.transpose(0, 3, 1, 2)


# --------------------------- parameter init (BN folded) ----------------------

def _bn_params(key, c):
    k1, k2, k3, k4 = jax.random.split(key, 4)
    gamma = 1.0 + 0.1 * jax.random.normal(k1, (c,), jnp.float32)
    beta = 0.1 * jax.random.normal(k2, (c,), jnp.float32)
    mean = 0.1 * jax.random.normal(k3, (c,), jnp.float32)
    var = jax.random.uniform(k4, (c,), jnp.float32, 0.5, 1.5)
    return gamma, beta, mean, var


def _fold_pw(key, cin, cout):
    kw, kbn = jax.random.split(key)
    w = 0.1 * jax.random.normal(kw, (cin, cout), jnp.float32)
    gamma, beta, mean, var = _bn_params(kbn, cout)
    scale = gamma / jnp.sqrt(var + BN_EPS)
    return w * scale[None, :], beta - scale * mean


def _fold_dw(key, c):
    kw, kb, kbn = jax.random.split(key, 3)
    w = 0.1 * jax.random.normal(kw, (3, 3, c), jnp.float32)
    bias = 0.1 * jax.random.normal(kb, (c,), jnp.float32)
    gamma, beta, mean, var = _bn_params(kbn, c)
    scale = gamma / jnp.sqrt(var + BN_EPS)
    return w * scale[None, None, :], scale * (bias - mean) + beta


def init_block_params(key, dim, key_dim, num_heads, mlp_ratio, attn_ratio):
    nh_kd = key_dim * num_heads
    d = int(attn_ratio * key_dim)
    dh = d * num_heads
    hidden = int(dim * mlp_ratio)
    ks = jax.random.split(key, 7)
    wq, bq = _fold_pw(ks[0], dim, nh_kd)
    wk, bk = _fold_pw(ks[1], dim, nh_kd)
    wv, bv = _fold_pw(ks[2], dim, dh)
    wp, bp = _fold_pw(ks[3], dh, dim)
    w1, b1 = _fold_pw(ks[4], dim, hidden)
    wdw, bdw = _fold_dw(ks[5], hidden)
    w2, b2 = _fold_pw(ks[6], hidden, dim)
    return dict(wq=wq, bq=bq, wk=wk, bk=bk, wv=wv, bv=bv, wp=wp, bp=bp,
                w1=w1, b1=b1, wdw=wdw, bdw=bdw, w2=w2, b2=b2)


def prepare_kernel_params(p):
    """Kernel-ready params: fused QKV weight/bias, 2-D (1, C) biases."""
    return dict(
        wqkv=jnp.concatenate([p['wq'], p['wk'], p['wv']], axis=1),
        bqkv=jnp.concatenate([p['bq'], p['bk'], p['bv']]).reshape(1, -1),
        wp=p['wp'], bp=p['bp'].reshape(1, -1),
        w1=p['w1'], b1=p['b1'].reshape(1, -1),
        wdw=p['wdw'], bdw=p['bdw'].reshape(1, -1),
        w2=p['w2'], b2=p['b2'].reshape(1, -1),
    )


# --------------------------- pure-JAX reference (NCHW, like PyTorch) ---------

def ref_block(x, p, key_dim, num_heads, attn_ratio, use_act):
    B, C, H, W = x.shape
    HW = H * W
    d = int(attn_ratio * key_dim)
    dh = d * num_heads

    def pw(xx, w, b):
        return jnp.einsum('bchw,cd->bdhw', xx, w) + b[None, :, None, None]

    q = pw(x, p['wq'], p['bq'])
    k = pw(x, p['wk'], p['bk'])
    v = pw(x, p['wv'], p['bv'])
    qr = q.reshape(B, num_heads, key_dim, HW).transpose(0, 1, 3, 2)
    kr = k.reshape(B, num_heads, key_dim, HW)
    vr = v.reshape(B, num_heads, d, HW).transpose(0, 1, 3, 2)
    a = jax.nn.softmax(qr @ kr, axis=-1) @ vr
    a = a.transpose(0, 1, 3, 2).reshape(B, dh, H, W)
    if use_act:
        a = jax.nn.relu(a)
    x1 = x + pw(a, p['wp'], p['bp'])

    h1 = pw(x1, p['w1'], p['b1'])
    hidden = h1.shape[1]
    rhs = p['wdw'].transpose(2, 0, 1)[:, None, :, :]            # (C, 1, 3, 3)
    h2 = lax.conv_general_dilated(h1, rhs, (1, 1), 'SAME',
                                  feature_group_count=hidden,
                                  dimension_numbers=('NCHW', 'OIHW', 'NCHW'))
    h2 = h2 + p['bdw'][None, :, None, None]
    if use_act:
        h2 = jax.nn.relu(h2)
    return x1 + pw(h2, p['w2'], p['b2'])


# --------------------------- main --------------------------------------------

if __name__ == "__main__":
    # module config (SemanticsExtractorModule), small shapes
    block_count = 2
    embedding_dim = 32
    key_dim = 8
    num_heads = 2
    mlp_ratio = 2.0
    attn_ratio = 2.0
    use_act = True          # act_cfg = relu
    B, H, W = 2, 8, 8

    root = jax.random.PRNGKey(0)
    kx, kp = jax.random.split(root)
    x = jax.random.normal(kx, (B, embedding_dim, H, W), jnp.float32)

    params_list = [
        init_block_params(k, embedding_dim, key_dim, num_heads, mlp_ratio, attn_ratio)
        for k in jax.random.split(kp, block_count)
    ]
    kernel_params_list = [prepare_kernel_params(p) for p in params_list]

    out = semantics_extractor_forward(x, kernel_params_list, key_dim=key_dim,
                                      num_heads=num_heads, attn_ratio=attn_ratio,
                                      use_act=use_act)
    out = jax.block_until_ready(out)

    # sanity-check against a pure-JAX NCHW reference mirroring the PyTorch math
    ref = x
    for p in params_list:
        ref = ref_block(ref, p, key_dim, num_heads, attn_ratio, use_act)
    ref = jax.block_until_ready(ref)

    assert out.shape == x.shape and out.dtype == jnp.float32
    assert jnp.allclose(out, ref, rtol=2e-3, atol=2e-3), \
        float(jnp.max(jnp.abs(out - ref)))

    print("KERNEL_OK")
</pallas_src>

<mosaic_0001>
module attributes {stable_mosaic.version = 11 : i64} {
  func.func @kernel(%arg0: i32, %arg1: memref<1x64x32xf32, #tpu.memory_space<vmem>>, %arg2: memref<32x64xf32, #tpu.memory_space<vmem>>, %arg3: memref<1x64xf32, #tpu.memory_space<vmem>>, %arg4: memref<32x32xf32, #tpu.memory_space<vmem>>, %arg5: memref<1x32xf32, #tpu.memory_space<vmem>>, %arg6: memref<1x64x32xf32, #tpu.memory_space<vmem>>) attributes {dimension_semantics = [#tpu.dimension_semantics<parallel>], iteration_bounds = array<i64: 2>, scalar_prefetch = 0 : i64, scratch_operands = 0 : i64, tpu.core_type = #tpu.core_type<tc>, window_params = [{transform_indices = @transform_0, window_bounds = array<i64: 1, 64, 32>}, {pipeline_mode = #tpu.pipeline_mode<synchronous>, transform_indices = @transform_1, window_bounds = array<i64: 32, 64>}, {pipeline_mode = #tpu.pipeline_mode<synchronous>, transform_indices = @transform_2, window_bounds = array<i64: 1, 64>}, {pipeline_mode = #tpu.pipeline_mode<synchronous>, transform_indices = @transform_3, window_bounds = array<i64: 32, 32>}, {pipeline_mode = #tpu.pipeline_mode<synchronous>, transform_indices = @transform_4, window_bounds = array<i64: 1, 32>}, {transform_indices = @transform_5, window_bounds = array<i64: 1, 64, 32>}]} {
    %c0 = arith.constant 0 : index
    %c0_0 = arith.constant 0 : index
    %c0_1 = arith.constant 0 : index
    %0 = vector.load %arg1[%c0, %c0_0, %c0_1] : memref<1x64x32xf32, #tpu.memory_space<vmem>>, vector<1x64x32xf32>
    %1 = vector.shape_cast %0 : vector<1x64x32xf32> to vector<64x32xf32>
    %c0_2 = arith.constant 0 : index
    %c0_3 = arith.constant 0 : index
    %2 = vector.load %arg2[%c0_2, %c0_3] : memref<32x64xf32, #tpu.memory_space<vmem>>, vector<32x64xf32>
    %c0_4 = arith.constant 0 : index
    %c0_5 = arith.constant 0 : index
    %3 = vector.load %arg3[%c0_4, %c0_5] : memref<1x64xf32, #tpu.memory_space<vmem>>, vector<1x64xf32>
    %c0_6 = arith.constant 0 : index
    %c0_7 = arith.constant 0 : index
    %4 = vector.load %arg4[%c0_6, %c0_7] : memref<32x32xf32, #tpu.memory_space<vmem>>, vector<32x32xf32>
    %c0_8 = arith.constant 0 : index
    %c0_9 = arith.constant 0 : index
    %5 = vector.load %arg5[%c0_8, %c0_9] : memref<1x32xf32, #tpu.memory_space<vmem>>, vector<1x32xf32>
    %cst = arith.constant dense<0.000000e+00> : vector<64x64xf32>
    %6 = tpu.matmul %1, %2, %cst {dimension_numbers = #tpu.dot_dimension_numbers<[1], [0], [0], [1], [0, 0, 1, 1], [], []>} : vector<64x32xf32>, vector<32x64xf32>, vector<64x64xf32> -> vector<64x64xf32>
    %7 = vector.broadcast %3 : vector<1x64xf32> to vector<64x64xf32>
    %8 = arith.addf %6, %7 : vector<64x64xf32>
    %9 = vector.broadcast %5 : vector<1x32xf32> to vector<64x32xf32>
    %10 = arith.addf %1, %9 : vector<64x32xf32>
    %11 = vector.extract_strided_slice %8 {offsets = [0, 0], sizes = [64, 8], strides = [1, 1]} : vector<64x64xf32> to vector<64x8xf32>
    %12 = vector.extract_strided_slice %8 {offsets = [0, 16], sizes = [64, 8], strides = [1, 1]} : vector<64x64xf32> to vector<64x8xf32>
    %13 = vector.extract_strided_slice %8 {offsets = [0, 32], sizes = [64, 16], strides = [1, 1]} : vector<64x64xf32> to vector<64x16xf32>
    %cst_10 = arith.constant dense<0.000000e+00> : vector<64x64xf32>
    %14 = tpu.matmul %11, %12, %cst_10 {dimension_numbers = #tpu.dot_dimension_numbers<[1], [1], [0], [0], [0, 0, 1, 0], [], []>} : vector<64x8xf32>, vector<64x8xf32>, vector<64x64xf32> -> vector<64x64xf32>
    %cst_11 = arith.constant dense<0xFF800000> : vector<64xf32>
    %15 = vector.multi_reduction <maximumf>, %14, %cst_11 [1] : vector<64x64xf32> to vector<64xf32>
    %16 = vector.shape_cast %15 : vector<64xf32> to vector<64x1xf32>
    %17 = vector.broadcast %16 : vector<64x1xf32> to vector<64x64xf32>
    %18 = arith.subf %14, %17 : vector<64x64xf32>
    %19 = math.exp %18 : vector<64x64xf32>
    %cst_12 = arith.constant dense<0.000000e+00> : vector<64xf32>
    %20 = vector.multi_reduction <add>, %19, %cst_12 [1] : vector<64x64xf32> to vector<64xf32>
    %21 = vector.shape_cast %20 : vector<64xf32> to vector<64x1xf32>
    %22 = tpu.reciprocal %21 : vector<64x1xf32> -> vector<64x1xf32>
    %23 = vector.broadcast %22 : vector<64x1xf32> to vector<64x64xf32>
    %24 = arith.mulf %19, %23 : vector<64x64xf32>
    %cst_13 = arith.constant dense<0.000000e+00> : vector<64x16xf32>
    %25 = tpu.matmul %24, %13, %cst_13 {dimension_numbers = #tpu.dot_dimension_numbers<[1], [0], [0], [1], [0, 0, 1, 1], [], []>} : vector<64x64xf32>, vector<64x16xf32>, vector<64x16xf32> -> vector<64x16xf32>
    %cst_14 = arith.constant 0.000000e+00 : f32
    %26 = vector.broadcast %cst_14 : f32 to vector<64x16xf32>
    %27 = arith.maximumf %25, %26 : vector<64x16xf32>
    %28 = vector.extract_strided_slice %4 {offsets = [0, 0], sizes = [16, 32], strides = [1, 1]} : vector<32x32xf32> to vector<16x32xf32>
    %cst_15 = arith.constant dense<0.000000e+00> : vector<64x32xf32>
    %29 = tpu.matmul %27, %28, %cst_15 {dimension_numbers = #tpu.dot_dimension_numbers<[1], [0], [0], [1], [0, 0, 1, 1], [], []>} : vector<64x16xf32>, vector<16x32xf32>, vector<64x32xf32> -> vector<64x32xf32>
    %30 = arith.addf %10, %29 : vector<64x32xf32>
    %31 = vector.extract_strided_slice %8 {offsets = [0, 8], sizes = [64, 8], strides = [1, 1]} : vector<64x64xf32> to vector<64x8xf32>
    %32 = vector.extract_strided_slice %8 {offsets = [0, 24], sizes = [64, 8], strides = [1, 1]} : vector<64x64xf32> to vector<64x8xf32>
    %33 = vector.extract_strided_slice %8 {offsets = [0, 48], sizes = [64, 16], strides = [1, 1]} : vector<64x64xf32> to vector<64x16xf32>
    %cst_16 = arith.constant dense<0.000000e+00> : vector<64x64xf32>
    %34 = tpu.matmul %31, %32, %cst_16 {dimension_numbers = #tpu.dot_dimension_numbers<[1], [1], [0], [0], [0, 0, 1, 0], [], []>} : vector<64x8xf32>, vector<64x8xf32>, vector<64x64xf32> -> vector<64x64xf32>
    %cst_17 = arith.constant dense<0xFF800000> : vector<64xf32>
    %35 = vector.multi_reduction <maximumf>, %34, %cst_17 [1] : vector<64x64xf32> to vector<64xf32>
    %36 = vector.shape_cast %35 : vector<64xf32> to vector<64x1xf32>
    %37 = vector.broadcast %36 : vector<64x1xf32> to vector<64x64xf32>
    %38 = arith.subf %34, %37 : vector<64x64xf32>
    %39 = math.exp %38 : vector<64x64xf32>
    %cst_18 = arith.constant dense<0.000000e+00> : vector<64xf32>
    %40 = vector.multi_reduction <add>, %39, %cst_18 [1] : vector<64x64xf32> to vector<64xf32>
    %41 = vector.shape_cast %40 : vector<64xf32> to vector<64x1xf32>
    %42 = tpu.reciprocal %41 : vector<64x1xf32> -> vector<64x1xf32>
    %43 = vector.broadcast %42 : vector<64x1xf32> to vector<64x64xf32>
    %44 = arith.mulf %39, %43 : vector<64x64xf32>
    %cst_19 = arith.constant dense<0.000000e+00> : vector<64x16xf32>
    %45 = tpu.matmul %44, %33, %cst_19 {dimension_numbers = #tpu.dot_dimension_numbers<[1], [0], [0], [1], [0, 0, 1, 1], [], []>} : vector<64x64xf32>, vector<64x16xf32>, vector<64x16xf32> -> vector<64x16xf32>
    %cst_20 = arith.constant 0.000000e+00 : f32
    %46 = vector.broadcast %cst_20 : f32 to vector<64x16xf32>
    %47 = arith.maximumf %45, %46 : vector<64x16xf32>
    %48 = vector.extract_strided_slice %4 {offsets = [16, 0], sizes = [16, 32], strides = [1, 1]} : vector<32x32xf32> to vector<16x32xf32>
    %cst_21 = arith.constant dense<0.000000e+00> : vector<64x32xf32>
    %49 = tpu.matmul %47, %48, %cst_21 {dimension_numbers = #tpu.dot_dimension_numbers<[1], [0], [0], [1], [0, 0, 1, 1], [], []>} : vector<64x16xf32>, vector<16x32xf32>, vector<64x32xf32> -> vector<64x32xf32>
    %50 = arith.addf %30, %49 : vector<64x32xf32>
    %c0_22 = arith.constant 0 : index
    %c0_23 = arith.constant 0 : index
    %c0_24 = arith.constant 0 : index
    %51 = vector.load %arg6[%c0_22, %c0_23, %c0_24] : memref<1x64x32xf32, #tpu.memory_space<vmem>>, vector<1x64x32xf32>
    %52 = vector.shape_cast %51 : vector<1x64x32xf32> to vector<64x32xf32>
    %53 = vector.shape_cast %50 : vector<64x32xf32> to vector<1x64x32xf32>
    tpu.vector_store %arg6[%c0_22, %c0_23, %c0_24], %53 {strides = array<i32>} : memref<1x64x32xf32, #tpu.memory_space<vmem>>, vector<1x64x32xf32>,
    return
  }
  func.func @transform_0(%arg0: i32) -> (i32, i32, i32) {
    %c0_i32 = arith.constant 0 : i32
    %c0_i32_0 = arith.constant 0 : i32
    %c0_i32_1 = arith.constant 0 : i32
    return %arg0, %c0_i32, %c0_i32_0 : i32, i32, i32
  }
  func.func @transform_1(%arg0: i32) -> (i32, i32) {
    %c0_i32 = arith.constant 0 : i32
    %c0_i32_0 = arith.constant 0 : i32
    %c0_i32_1 = arith.constant 0 : i32
    return %c0_i32, %c0_i32_0 : i32, i32
  }
  func.func @transform_2(%arg0: i32) -> (i32, i32) {
    %c0_i32 = arith.constant 0 : i32
    %c0_i32_0 = arith.constant 0 : i32
    %c0_i32_1 = arith.constant 0 : i32
    return %c0_i32, %c0_i32_0 : i32, i32
  }
  func.func @transform_3(%arg0: i32) -> (i32, i32) {
    %c0_i32 = arith.constant 0 : i32
    %c0_i32_0 = arith.constant 0 : i32
    %c0_i32_1 = arith.constant 0 : i32
    return %c0_i32, %c0_i32_0 : i32, i32
  }
  func.func @transform_4(%arg0: i32) -> (i32, i32) {
    %c0_i32 = arith.constant 0 : i32
    %c0_i32_0 = arith.constant 0 : i32
    %c0_i32_1 = arith.constant 0 : i32
    return %c0_i32, %c0_i32_0 : i32, i32
  }
  func.func @transform_5(%arg0: i32) -> (i32, i32, i32) {
    %c0_i32 = arith.constant 0 : i32
    %c0_i32_0 = arith.constant 0 : i32
    %c0_i32_1 = arith.constant 0 : i32
    return %arg0, %c0_i32, %c0_i32_0 : i32, i32, i32
  }
}

module attributes {stable_mosaic.version = 11 : i64} {
  func.func @kernel(%arg0: i32, %arg1: memref<1x64x32xf32, #tpu.memory_space<vmem>>, %arg2: memref<32x64xf32, #tpu.memory_space<vmem>>, %arg3: memref<1x64xf32, #tpu.memory_space<vmem>>, %arg4: memref<32x32xf32, #tpu.memory_space<vmem>>, %arg5: memref<1x32xf32, #tpu.memory_space<vmem>>, %arg6: memref<1x64x32xf32, #tpu.memory_space<vmem>>) attributes {dimension_semantics = [#tpu.dimension_semantics<parallel>], iteration_bounds = array<i64: 2>, scalar_prefetch = 0 : i64, scratch_operands = 0 : i64, tpu.core_type = #tpu.core_type<tc>, window_params = [{transform_indices = @transform_0, window_bounds = array<i64: 1, 64, 32>}, {pipeline_mode = #tpu.pipeline_mode<synchronous>, transform_indices = @transform_1, window_bounds = array<i64: 32, 64>}, {pipeline_mode = #tpu.pipeline_mode<synchronous>, transform_indices = @transform_2, window_bounds = array<i64: 1, 64>}, {pipeline_mode = #tpu.pipeline_mode<synchronous>, transform_indices = @transform_3, window_bounds = array<i64: 32, 32>}, {pipeline_mode = #tpu.pipeline_mode<synchronous>, transform_indices = @transform_4, window_bounds = array<i64: 1, 32>}, {transform_indices = @transform_5, window_bounds = array<i64: 1, 64, 32>}]} {
    %c0 = arith.constant 0 : index
    %c0_0 = arith.constant 0 : index
    %c0_1 = arith.constant 0 : index
    %0 = vector.load %arg1[%c0, %c0_0, %c0_1] : memref<1x64x32xf32, #tpu.memory_space<vmem>>, vector<1x64x32xf32>
    %1 = vector.shape_cast %0 : vector<1x64x32xf32> to vector<64x32xf32>
    %c0_2 = arith.constant 0 : index
    %c0_3 = arith.constant 0 : index
    %2 = vector.load %arg2[%c0_2, %c0_3] : memref<32x64xf32, #tpu.memory_space<vmem>>, vector<32x64xf32>
    %c0_4 = arith.constant 0 : index
    %c0_5 = arith.constant 0 : index
    %3 = vector.load %arg3[%c0_4, %c0_5] : memref<1x64xf32, #tpu.memory_space<vmem>>, vector<1x64xf32>
    %c0_6 = arith.constant 0 : index
    %c0_7 = arith.constant 0 : index
    %4 = vector.load %arg4[%c0_6, %c0_7] : memref<32x32xf32, #tpu.memory_space<vmem>>, vector<32x32xf32>
    %c0_8 = arith.constant 0 : index
    %c0_9 = arith.constant 0 : index
    %5 = vector.load %arg5[%c0_8, %c0_9] : memref<1x32xf32, #tpu.memory_space<vmem>>, vector<1x32xf32>
    %cst = arith.constant dense<0.000000e+00> : vector<64x64xf32>
    %6 = tpu.matmul %1, %2, %cst {dimension_numbers = #tpu.dot_dimension_numbers<[1], [0], [0], [1], [0, 0, 1, 1], [], []>} : vector<64x32xf32>, vector<32x64xf32>, vector<64x64xf32> -> vector<64x64xf32>
    %7 = vector.broadcast %3 : vector<1x64xf32> to vector<64x64xf32>
    %8 = arith.addf %6, %7 : vector<64x64xf32>
    %9 = vector.broadcast %5 : vector<1x32xf32> to vector<64x32xf32>
    %10 = arith.addf %1, %9 : vector<64x32xf32>
    %11 = vector.extract_strided_slice %8 {offsets = [0, 0], sizes = [64, 8], strides = [1, 1]} : vector<64x64xf32> to vector<64x8xf32>
    %12 = vector.extract_strided_slice %8 {offsets = [0, 16], sizes = [64, 8], strides = [1, 1]} : vector<64x64xf32> to vector<64x8xf32>
    %13 = vector.extract_strided_slice %8 {offsets = [0, 32], sizes = [64, 16], strides = [1, 1]} : vector<64x64xf32> to vector<64x16xf32>
    %cst_10 = arith.constant dense<0.000000e+00> : vector<64x64xf32>
    %14 = tpu.matmul %11, %12, %cst_10 {dimension_numbers = #tpu.dot_dimension_numbers<[1], [1], [0], [0], [0, 0, 1, 0], [], []>} : vector<64x8xf32>, vector<64x8xf32>, vector<64x64xf32> -> vector<64x64xf32>
    %cst_11 = arith.constant dense<0xFF800000> : vector<64xf32>
    %15 = vector.multi_reduction <maximumf>, %14, %cst_11 [1] : vector<64x64xf32> to vector<64xf32>
    %16 = vector.shape_cast %15 : vector<64xf32> to vector<64x1xf32>
    %17 = vector.broadcast %16 : vector<64x1xf32> to vector<64x64xf32>
    %18 = arith.subf %14, %17 : vector<64x64xf32>
    %19 = math.exp %18 : vector<64x64xf32>
    %cst_12 = arith.constant dense<0.000000e+00> : vector<64xf32>
    %20 = vector.multi_reduction <add>, %19, %cst_12 [1] : vector<64x64xf32> to vector<64xf32>
    %21 = vector.shape_cast %20 : vector<64xf32> to vector<64x1xf32>
    %22 = tpu.reciprocal %21 : vector<64x1xf32> -> vector<64x1xf32>
    %23 = vector.broadcast %22 : vector<64x1xf32> to vector<64x64xf32>
    %24 = arith.mulf %19, %23 : vector<64x64xf32>
    %cst_13 = arith.constant dense<0.000000e+00> : vector<64x16xf32>
    %25 = tpu.matmul %24, %13, %cst_13 {dimension_numbers = #tpu.dot_dimension_numbers<[1], [0], [0], [1], [0, 0, 1, 1], [], []>} : vector<64x64xf32>, vector<64x16xf32>, vector<64x16xf32> -> vector<64x16xf32>
    %cst_14 = arith.constant 0.000000e+00 : f32
    %26 = vector.broadcast %cst_14 : f32 to vector<64x16xf32>
    %27 = arith.maximumf %25, %26 : vector<64x16xf32>
    %28 = vector.extract_strided_slice %4 {offsets = [0, 0], sizes = [16, 32], strides = [1, 1]} : vector<32x32xf32> to vector<16x32xf32>
    %cst_15 = arith.constant dense<0.000000e+00> : vector<64x32xf32>
    %29 = tpu.matmul %27, %28, %cst_15 {dimension_numbers = #tpu.dot_dimension_numbers<[1], [0], [0], [1], [0, 0, 1, 1], [], []>} : vector<64x16xf32>, vector<16x32xf32>, vector<64x32xf32> -> vector<64x32xf32>
    %30 = arith.addf %10, %29 : vector<64x32xf32>
    %31 = vector.extract_strided_slice %8 {offsets = [0, 8], sizes = [64, 8], strides = [1, 1]} : vector<64x64xf32> to vector<64x8xf32>
    %32 = vector.extract_strided_slice %8 {offsets = [0, 24], sizes = [64, 8], strides = [1, 1]} : vector<64x64xf32> to vector<64x8xf32>
    %33 = vector.extract_strided_slice %8 {offsets = [0, 48], sizes = [64, 16], strides = [1, 1]} : vector<64x64xf32> to vector<64x16xf32>
    %cst_16 = arith.constant dense<0.000000e+00> : vector<64x64xf32>
    %34 = tpu.matmul %31, %32, %cst_16 {dimension_numbers = #tpu.dot_dimension_numbers<[1], [1], [0], [0], [0, 0, 1, 0], [], []>} : vector<64x8xf32>, vector<64x8xf32>, vector<64x64xf32> -> vector<64x64xf32>
    %cst_17 = arith.constant dense<0xFF800000> : vector<64xf32>
    %35 = vector.multi_reduction <maximumf>, %34, %cst_17 [1] : vector<64x64xf32> to vector<64xf32>
    %36 = vector.shape_cast %35 : vector<64xf32> to vector<64x1xf32>
    %37 = vector.broadcast %36 : vector<64x1xf32> to vector<64x64xf32>
    %38 = arith.subf %34, %37 : vector<64x64xf32>
    %39 = math.exp %38 : vector<64x64xf32>
    %cst_18 = arith.constant dense<0.000000e+00> : vector<64xf32>
    %40 = vector.multi_reduction <add>, %39, %cst_18 [1] : vector<64x64xf32> to vector<64xf32>
    %41 = vector.shape_cast %40 : vector<64xf32> to vector<64x1xf32>
    %42 = tpu.reciprocal %41 : vector<64x1xf32> -> vector<64x1xf32>
    %43 = vector.broadcast %42 : vector<64x1xf32> to vector<64x64xf32>
    %44 = arith.mulf %39, %43 : vector<64x64xf32>
    %cst_19 = arith.constant dense<0.000000e+00> : vector<64x16xf32>
    %45 = tpu.matmul %44, %33, %cst_19 {dimension_numbers = #tpu.dot_dimension_numbers<[1], [0], [0], [1], [0, 0, 1, 1], [], []>} : vector<64x64xf32>, vector<64x16xf32>, vector<64x16xf32> -> vector<64x16xf32>
    %cst_20 = arith.constant 0.000000e+00 : f32
    %46 = vector.broadcast %cst_20 : f32 to vector<64x16xf32>
    %47 = arith.maximumf %45, %46 : vector<64x16xf32>
    %48 = vector.extract_strided_slice %4 {offsets = [16, 0], sizes = [16, 32], strides = [1, 1]} : vector<32x32xf32> to vector<16x32xf32>
    %cst_21 = arith.constant dense<0.000000e+00> : vector<64x32xf32>
    %49 = tpu.matmul %47, %48, %cst_21 {dimension_numbers = #tpu.dot_dimension_numbers<[1], [0], [0], [1], [0, 0, 1, 1], [], []>} : vector<64x16xf32>, vector<16x32xf32>, vector<64x32xf32> -> vector<64x32xf32>
    %50 = arith.addf %30, %49 : vector<64x32xf32>
    %c0_22 = arith.constant 0 : index
    %c0_23 = arith.constant 0 : index
    %c0_24 = arith.constant 0 : index
    %51 = vector.load %arg6[%c0_22, %c0_23, %c0_24] : memref<1x64x32xf32, #tpu.memory_space<vmem>>, vector<1x64x32xf32>
    %52 = vector.shape_cast %51 : vector<1x64x32xf32> to vector<64x32xf32>
    %53 = vector.shape_cast %50 : vector<64x32xf32> to vector<1x64x32xf32>
    tpu.vector_store %arg6[%c0_22, %c0_23, %c0_24], %53 {strides = array<i32>} : memref<1x64x32xf32, #tpu.memory_space<vmem>>, vector<1x64x32xf32>,
    return
  }
  func.func @transform_0(%arg0: i32) -> (i32, i32, i32) {
    %c0_i32 = arith.constant 0 : i32
    %c0_i32_0 = arith.constant 0 : i32
    %c0_i32_1 = arith.constant 0 : i32
    return %arg0, %c0_i32, %c0_i32_0 : i32, i32, i32
  }
  func.func @transform_1(%arg0: i32) -> (i32, i32) {
    %c0_i32 = arith.constant 0 : i32
    %c0_i32_0 = arith.constant 0 : i32
    %c0_i32_1 = arith.constant 0 : i32
    return %c0_i32, %c0_i32_0 : i32, i32
  }
  func.func @transform_2(%arg0: i32) -> (i32, i32) {
    %c0_i32 = arith.constant 0 : i32
    %c0_i32_0 = arith.constant 0 : i32
    %c0_i32_1 = arith.constant 0 : i32
    return %c0_i32, %c0_i32_0 : i32, i32
  }
  func.func @transform_3(%arg0: i32) -> (i32, i32) {
    %c0_i32 = arith.constant 0 : i32
    %c0_i32_0 = arith.constant 0 : i32
    %c0_i32_1 = arith.constant 0 : i32
    return %c0_i32, %c0_i32_0 : i32, i32
  }
  func.func @transform_4(%arg0: i32) -> (i32, i32) {
    %c0_i32 = arith.constant 0 : i32
    %c0_i32_0 = arith.constant 0 : i32
    %c0_i32_1 = arith.constant 0 : i32
    return %c0_i32, %c0_i32_0 : i32, i32
  }
  func.func @transform_5(%arg0: i32) -> (i32, i32, i32) {
    %c0_i32 = arith.constant 0 : i32
    %c0_i32_0 = arith.constant 0 : i32
    %c0_i32_1 = arith.constant 0 : i32
    return %arg0, %c0_i32, %c0_i32_0 : i32, i32, i32
  }
}

module attributes {stable_mosaic.version = 11 : i64} {
  func.func @kernel(%arg0: i32, %arg1: memref<1x10x10x32xf32, #tpu.memory_space<vmem>>, %arg2: memref<10x1xf32, #tpu.memory_space<vmem>>, %arg3: memref<32x64xf32, #tpu.memory_space<vmem>>, %arg4: memref<1x64xf32, #tpu.memory_space<vmem>>, %arg5: memref<3x3x64xf32, #tpu.memory_space<vmem>>, %arg6: memref<1x64xf32, #tpu.memory_space<vmem>>, %arg7: memref<64x32xf32, #tpu.memory_space<vmem>>, %arg8: memref<1x32xf32, #tpu.memory_space<vmem>>, %arg9: memref<1x8x8x32xf32, #tpu.memory_space<vmem>>) attributes {dimension_semantics = [#tpu.dimension_semantics<parallel>], iteration_bounds = array<i64: 2>, scalar_prefetch = 0 : i64, scratch_operands = 0 : i64, tpu.core_type = #tpu.core_type<tc>, window_params = [{transform_indices = @transform_0, window_bounds = array<i64: 1, 10, 10, 32>}, {pipeline_mode = #tpu.pipeline_mode<synchronous>, transform_indices = @transform_1, window_bounds = array<i64: 10, 1>}, {pipeline_mode = #tpu.pipeline_mode<synchronous>, transform_indices = @transform_2, window_bounds = array<i64: 32, 64>}, {pipeline_mode = #tpu.pipeline_mode<synchronous>, transform_indices = @transform_3, window_bounds = array<i64: 1, 64>}, {pipeline_mode = #tpu.pipeline_mode<synchronous>, transform_indices = @transform_4, window_bounds = array<i64: 3, 3, 64>}, {pipeline_mode = #tpu.pipeline_mode<synchronous>, transform_indices = @transform_5, window_bounds = array<i64: 1, 64>}, {pipeline_mode = #tpu.pipeline_mode<synchronous>, transform_indices = @transform_6, window_bounds = array<i64: 64, 32>}, {pipeline_mode = #tpu.pipeline_mode<synchronous>, transform_indices = @transform_7, window_bounds = array<i64: 1, 32>}, {transform_indices = @transform_8, window_bounds = array<i64: 1, 8, 8, 32>}]} {
    %c0 = arith.constant 0 : index
    %c0_0 = arith.constant 0 : index
    %c0_1 = arith.constant 0 : index
    %c0_2 = arith.constant 0 : index
    %0 = vector.load %arg1[%c0, %c0_0, %c0_1, %c0_2] : memref<1x10x10x32xf32, #tpu.memory_space<vmem>>, vector<1x10x10x32xf32>
    %1 = vector.shape_cast %0 : vector<1x10x10x32xf32> to vector<10x10x32xf32>
    %c0_3 = arith.constant 0 : index
    %c0_4 = arith.constant 0 : index
    %2 = vector.load %arg2[%c0_3, %c0_4] : memref<10x1xf32, #tpu.memory_space<vmem>>, vector<10x1xf32>
    %c0_5 = arith.constant 0 : index
    %c0_6 = arith.constant 0 : index
    %3 = vector.load %arg3[%c0_5, %c0_6] : memref<32x64xf32, #tpu.memory_space<vmem>>, vector<32x64xf32>
    %c0_7 = arith.constant 0 : index
    %c0_8 = arith.constant 0 : index
    %4 = vector.load %arg4[%c0_7, %c0_8] : memref<1x64xf32, #tpu.memory_space<vmem>>, vector<1x64xf32>
    %c0_9 = arith.constant 0 : index
    %c0_10 = arith.constant 0 : index
    %c0_11 = arith.constant 0 : index
    %5 = vector.load %arg5[%c0_9, %c0_10, %c0_11] : memref<3x3x64xf32, #tpu.memory_space<vmem>>, vector<3x3x64xf32>
    %c0_12 = arith.constant 0 : index
    %c0_13 = arith.constant 0 : index
    %6 = vector.load %arg6[%c0_12, %c0_13] : memref<1x64xf32, #tpu.memory_space<vmem>>, vector<1x64xf32>
    %c0_14 = arith.constant 0 : index
    %c0_15 = arith.constant 0 : index
    %7 = vector.load %arg7[%c0_14, %c0_15] : memref<64x32xf32, #tpu.memory_space<vmem>>, vector<64x32xf32>
    %c0_16 = arith.constant 0 : index
    %c0_17 = arith.constant 0 : index
    %8 = vector.load %arg8[%c0_16, %c0_17] : memref<1x32xf32, #tpu.memory_space<vmem>>, vector<1x32xf32>
    %cst = arith.constant 0.000000e+00 : f32
    %9 = vector.broadcast %cst : f32 to vector<10x64xf32>
    %10 = vector.extract_strided_slice %1 {offsets = [1, 0, 0], sizes = [1, 10, 32], strides = [1, 1, 1]} : vector<10x10x32xf32> to vector<1x10x32xf32>
    %11 = vector.shape_cast %10 : vector<1x10x32xf32> to vector<10x32xf32>
    %cst_18 = arith.constant dense<0.000000e+00> : vector<10x64xf32>
    %12 = tpu.matmul %11, %3, %cst_18 {dimension_numbers = #tpu.dot_dimension_numbers<[1], [0], [0], [1], [0, 0, 1, 1], [], []>} : vector<10x32xf32>, vector<32x64xf32>, vector<10x64xf32> -> vector<10x64xf32>
    %13 = vector.broadcast %4 : vector<1x64xf32> to vector<10x64xf32>
    %14 = arith.addf %12, %13 : vector<10x64xf32>
    %15 = vector.broadcast %2 : vector<10x1xf32> to vector<10x64xf32>
    %16 = arith.mulf %14, %15 : vector<10x64xf32>
    %17 = vector.extract_strided_slice %1 {offsets = [2, 0, 0], sizes = [1, 10, 32], strides = [1, 1, 1]} : vector<10x10x32xf32> to vector<1x10x32xf32>
    %18 = vector.shape_cast %17 : vector<1x10x32xf32> to vector<10x32xf32>
    %cst_19 = arith.constant dense<0.000000e+00> : vector<10x64xf32>
    %19 = tpu.matmul %18, %3, %cst_19 {dimension_numbers = #tpu.dot_dimension_numbers<[1], [0], [0], [1], [0, 0, 1, 1], [], []>} : vector<10x32xf32>, vector<32x64xf32>, vector<10x64xf32> -> vector<10x64xf32>
    %20 = vector.broadcast %4 : vector<1x64xf32> to vector<10x64xf32>
    %21 = arith.addf %19, %20 : vector<10x64xf32>
    %22 = vector.broadcast %2 : vector<10x1xf32> to vector<10x64xf32>
    %23 = arith.mulf %21, %22 : vector<10x64xf32>
    %24 = vector.extract_strided_slice %1 {offsets = [3, 0, 0], sizes = [1, 10, 32], strides = [1, 1, 1]} : vector<10x10x32xf32> to vector<1x10x32xf32>
    %25 = vector.shape_cast %24 : vector<1x10x32xf32> to vector<10x32xf32>
    %cst_20 = arith.constant dense<0.000000e+00> : vector<10x64xf32>
    %26 = tpu.matmul %25, %3, %cst_20 {dimension_numbers = #tpu.dot_dimension_numbers<[1], [0], [0], [1], [0, 0, 1, 1], [], []>} : vector<10x32xf32>, vector<32x64xf32>, vector<10x64xf32> -> vector<10x64xf32>
    %27 = vector.broadcast %4 : vector<1x64xf32> to vector<10x64xf32>
    %28 = arith.addf %26, %27 : vector<10x64xf32>
    %29 = vector.broadcast %2 : vector<10x1xf32> to vector<10x64xf32>
    %30 = arith.mulf %28, %29 : vector<10x64xf32>
    %31 = vector.extract_strided_slice %1 {offsets = [4, 0, 0], sizes = [1, 10, 32], strides = [1, 1, 1]} : vector<10x10x32xf32> to vector<1x10x32xf32>
    %32 = vector.shape_cast %31 : vector<1x10x32xf32> to vector<10x32xf32>
    %cst_21 = arith.constant dense<0.000000e+00> : vector<10x64xf32>
    %33 = tpu.matmul %32, %3, %cst_21 {dimension_numbers = #tpu.dot_dimension_numbers<[1], [0], [0], [1], [0, 0, 1, 1], [], []>} : vector<10x32xf32>, vector<32x64xf32>, vector<10x64xf32> -> vector<10x64xf32>
    %34 = vector.broadcast %4 : vector<1x64xf32> to vector<10x64xf32>
    %35 = arith.addf %33, %34 : vector<10x64xf32>
    %36 = vector.broadcast %2 : vector<10x1xf32> to vector<10x64xf32>
    %37 = arith.mulf %35, %36 : vector<10x64xf32>
    %38 = vector.extract_strided_slice %1 {offsets = [5, 0, 0], sizes = [1, 10, 32], strides = [1, 1, 1]} : vector<10x10x32xf32> to vector<1x10x32xf32>
    %39 = vector.shape_cast %38 : vector<1x10x32xf32> to vector<10x32xf32>
    %cst_22 = arith.constant dense<0.000000e+00> : vector<10x64xf32>
    %40 = tpu.matmul %39, %3, %cst_22 {dimension_numbers = #tpu.dot_dimension_numbers<[1], [0], [0], [1], [0, 0, 1, 1], [], []>} : vector<10x32xf32>, vector<32x64xf32>, vector<10x64xf32> -> vector<10x64xf32>
    %41 = vector.broadcast %4 : vector<1x64xf32> to vector<10x64xf32>
    %42 = arith.addf %40, %41 : vector<10x64xf32>
    %43 = vector.broadcast %2 : vector<10x1xf32> to vector<10x64xf32>
    %44 = arith.mulf %42, %43 : vector<10x64xf32>
    %45 = vector.extract_strided_slice %1 {offsets = [6, 0, 0], sizes = [1, 10, 32], strides = [1, 1, 1]} : vector<10x10x32xf32> to vector<1x10x32xf32>
    %46 = vector.shape_cast %45 : vector<1x10x32xf32> to vector<10x32xf32>
    %cst_23 = arith.constant dense<0.000000e+00> : vector<10x64xf32>
    %47 = tpu.matmul %46, %3, %cst_23 {dimension_numbers = #tpu.dot_dimension_numbers<[1], [0], [0], [1], [0, 0, 1, 1], [], []>} : vector<10x32xf32>, vector<32x64xf32>, vector<10x64xf32> -> vector<10x64xf32>
    %48 = vector.broadcast %4 : vector<1x64xf32> to vector<10x64xf32>
    %49 = arith.addf %47, %48 : vector<10x64xf32>
    %50 = vector.broadcast %2 : vector<10x1xf32> to vector<10x64xf32>
    %51 = arith.mulf %49, %50 : vector<10x64xf32>
    %52 = vector.extract_strided_slice %1 {offsets = [7, 0, 0], sizes = [1, 10, 32], strides = [1, 1, 1]} : vector<10x10x32xf32> to vector<1x10x32xf32>
    %53 = vector.shape_cast %52 : vector<1x10x32xf32> to vector<10x32xf32>
    %cst_24 = arith.constant dense<0.000000e+00> : vector<10x64xf32>
    %54 = tpu.matmul %53, %3, %cst_24 {dimension_numbers = #tpu.dot_dimension_numbers<[1], [0], [0], [1], [0, 0, 1, 1], [], []>} : vector<10x32xf32>, vector<32x64xf32>, vector<10x64xf32> -> vector<10x64xf32>
    %55 = vector.broadcast %4 : vector<1x64xf32> to vector<10x64xf32>
    %56 = arith.addf %54, %55 : vector<10x64xf32>
    %57 = vector.broadcast %2 : vector<10x1xf32> to vector<10x64xf32>
    %58 = arith.mulf %56, %57 : vector<10x64xf32>
    %59 = vector.extract_strided_slice %1 {offsets = [8, 0, 0], sizes = [1, 10, 32], strides = [1, 1, 1]} : vector<10x10x32xf32> to vector<1x10x32xf32>
    %60 = vector.shape_cast %59 : vector<1x10x32xf32> to vector<10x32xf32>
    %cst_25 = arith.constant dense<0.000000e+00> : vector<10x64xf32>
    %61 = tpu.matmul %60, %3, %cst_25 {dimension_numbers = #tpu.dot_dimension_numbers<[1], [0], [0], [1], [0, 0, 1, 1], [], []>} : vector<10x32xf32>, vector<32x64xf32>, vector<10x64xf32> -> vector<10x64xf32>
    %62 = vector.broadcast %4 : vector<1x64xf32> to vector<10x64xf32>
    %63 = arith.addf %61, %62 : vector<10x64xf32>
    %64 = vector.broadcast %2 : vector<10x1xf32> to vector<10x64xf32>
    %65 = arith.mulf %63, %64 : vector<10x64xf32>
    %cst_26 = arith.constant 0.000000e+00 : f32
    %66 = vector.broadcast %cst_26 : f32 to vector<8x64xf32>
    %67 = vector.extract_strided_slice %9 {offsets = [0, 0], sizes = [8, 64], strides = [1, 1]} : vector<10x64xf32> to vector<8x64xf32>
    %68 = vector.extract_strided_slice %5 {offsets = [0, 0, 0], sizes = [1, 1, 64], strides = [1, 1, 1]} : vector<3x3x64xf32> to vector<1x1x64xf32>
    %69 = vector.shape_cast %68 : vector<1x1x64xf32> to vector<64xf32>
    %70 = vector.shape_cast %69 : vector<64xf32> to vector<1x64xf32>
    %71 = vector.broadcast %70 : vector<1x64xf32> to vector<8x64xf32>
    %72 = arith.mulf %67, %71 : vector<8x64xf32>
    %73 = arith.addf %66, %72 : vector<8x64xf32>
    %74 = vector.extract_strided_slice %9 {offsets = [1, 0], sizes = [8, 64], strides = [1, 1]} : vector<10x64xf32> to vector<8x64xf32>
    %75 = vector.extract_strided_slice %5 {offsets = [0, 1, 0], sizes = [1, 1, 64], strides = [1, 1, 1]} : vector<3x3x64xf32> to vector<1x1x64xf32>
    %76 = vector.shape_cast %75 : vector<1x1x64xf32> to vector<64xf32>
    %77 = vector.shape_cast %76 : vector<64xf32> to vector<1x64xf32>
    %78 = vector.broadcast %77 : vector<1x64xf32> to vector<8x64xf32>
    %79 = arith.mulf %74, %78 : vector<8x64xf32>
    %80 = arith.addf %73, %79 : vector<8x64xf32>
    %81 = vector.extract_strided_slice %9 {offsets = [2, 0], sizes = [8, 64], strides = [1, 1]} : vector<10x64xf32> to vector<8x64xf32>
    %82 = vector.extract_strided_slice %5 {offsets = [0, 2, 0], sizes = [1, 1, 64], strides = [1, 1, 1]} : vector<3x3x64xf32> to vector<1x1x64xf32>
    %83 = vector.shape_cast %82 : vector<1x1x64xf32> to vector<64xf32>
    %84 = vector.shape_cast %83 : vector<64xf32> to vector<1x64xf32>
    %85 = vector.broadcast %84 : vector<1x64xf32> to vector<8x64xf32>
    %86 = arith.mulf %81, %85 : vector<8x64xf32>
    %87 = arith.addf %80, %86 : vector<8x64xf32>
    %88 = vector.extract_strided_slice %16 {offsets = [0, 0], sizes = [8, 64], strides = [1, 1]} : vector<10x64xf32> to vector<8x64xf32>
    %89 = vector.extract_strided_slice %5 {offsets = [1, 0, 0], sizes = [1, 1, 64], strides = [1, 1, 1]} : vector<3x3x64xf32> to vector<1x1x64xf32>
    %90 = vector.shape_cast %89 : vector<1x1x64xf32> to vector<64xf32>
    %91 = vector.shape_cast %90 : vector<64xf32> to vector<1x64xf32>
    %92 = vector.broadcast %91 : vector<1x64xf32> to vector<8x64xf32>
    %93 = arith.mulf %88, %92 : vector<8x64xf32>
    %94 = arith.addf %87, %93 : vector<8x64xf32>
    %95 = vector.extract_strided_slice %16 {offsets = [1, 0], sizes = [8, 64], strides = [1, 1]} : vector<10x64xf32> to vector<8x64xf32>
    %96 = vector.extract_strided_slice %5 {offsets = [1, 1, 0], sizes = [1, 1, 64], strides = [1, 1, 1]} : vector<3x3x64xf32> to vector<1x1x64xf32>
    %97 = vector.shape_cast %96 : vector<1x1x64xf32> to vector<64xf32>
    %98 = vector.shape_cast %97 : vector<64xf32> to vector<1x64xf32>
    %99 = vector.broadcast %98 : vector<1x64xf32> to vector<8x64xf32>
    %100 = arith.mulf %95, %99 : vector<8x64xf32>
    %101 = arith.addf %94, %100 : vector<8x64xf32>
    %102 = vector.extract_strided_slice %16 {offsets = [2, 0], sizes = [8, 64], strides = [1, 1]} : vector<10x64xf32> to vector<8x64xf32>
    %103 = vector.extract_strided_slice %5 {offsets = [1, 2, 0], sizes = [1, 1, 64], strides = [1, 1, 1]} : vector<3x3x64xf32> to vector<1x1x64xf32>
    %104 = vector.shape_cast %103 : vector<1x1x64xf32> to vector<64xf32>
    %105 = vector.shape_cast %104 : vector<64xf32> to vector<1x64xf32>
    %106 = vector.broadcast %105 : vector<1x64xf32> to vector<8x64xf32>
    %107 = arith.mulf %102, %106 : vector<8x64xf32>
    %108 = arith.addf %101, %107 : vector<8x64xf32>
    %109 = vector.extract_strided_slice %23 {offsets = [0, 0], sizes = [8, 64], strides = [1, 1]} : vector<10x64xf32> to vector<8x64xf32>
    %110 = vector.extract_strided_slice %5 {offsets = [2, 0, 0], sizes = [1, 1, 64], strides = [1, 1, 1]} : vector<3x3x64xf32> to vector<1x1x64xf32>
    %111 = vector.shape_cast %110 : vector<1x1x64xf32> to vector<64xf32>
    %112 = vector.shape_cast %111 : vector<64xf32> to vector<1x64xf32>
    %113 = vector.broadcast %112 : vector<1x64xf32> to vector<8x64xf32>
    %114 = arith.mulf %109, %113 : vector<8x64xf32>
    %115 = arith.addf %108, %114 : vector<8x64xf32>
    %116 = vector.extract_strided_slice %23 {offsets = [1, 0], sizes = [8, 64], strides = [1, 1]} : vector<10x64xf32> to vector<8x64xf32>
    %117 = vector.extract_strided_slice %5 {offsets = [2, 1, 0], sizes = [1, 1, 64], strides = [1, 1, 1]} : vector<3x3x64xf32> to vector<1x1x64xf32>
    %118 = vector.shape_cast %117 : vector<1x1x64xf32> to vector<64xf32>
    %119 = vector.shape_cast %118 : vector<64xf32> to vector<1x64xf32>
    %120 = vector.broadcast %119 : vector<1x64xf32> to vector<8x64xf32>
    %121 = arith.mulf %116, %120 : vector<8x64xf32>
    %122 = arith.addf %115, %121 : vector<8x64xf32>
    %123 = vector.extract_strided_slice %23 {offsets = [2, 0], sizes = [8, 64], strides = [1, 1]} : vector<10x64xf32> to vector<8x64xf32>
    %124 = vector.extract_strided_slice %5 {offsets = [2, 2, 0], sizes = [1, 1, 64], strides = [1, 1, 1]} : vector<3x3x64xf32> to vector<1x1x64xf32>
    %125 = vector.shape_cast %124 : vector<1x1x64xf32> to vector<64xf32>
    %126 = vector.shape_cast %125 : vector<64xf32> to vector<1x64xf32>
    %127 = vector.broadcast %126 : vector<1x64xf32> to vector<8x64xf32>
    %128 = arith.mulf %123, %127 : vector<8x64xf32>
    %129 = arith.addf %122, %128 : vector<8x64xf32>
    %130 = vector.broadcast %6 : vector<1x64xf32> to vector<8x64xf32>
    %131 = arith.addf %129, %130 : vector<8x64xf32>
    %cst_27 = arith.constant 0.000000e+00 : f32
    %132 = vector.broadcast %cst_27 : f32 to vector<8x64xf32>
    %133 = arith.maximumf %131, %132 : vector<8x64xf32>
    %134 = vector.extract_strided_slice %1 {offsets = [1, 1, 0], sizes = [1, 8, 32], strides = [1, 1, 1]} : vector<10x10x32xf32> to vector<1x8x32xf32>
    %135 = vector.shape_cast %134 : vector<1x8x32xf32> to vector<8x32xf32>
    %cst_28 = arith.constant dense<0.000000e+00> : vector<8x32xf32>
    %136 = tpu.matmul %133, %7, %cst_28 {dimension_numbers = #tpu.dot_dimension_numbers<[1], [0], [0], [1], [0, 0, 1, 1], [], []>} : vector<8x64xf32>, vector<64x32xf32>, vector<8x32xf32> -> vector<8x32xf32>
    %137 = arith.addf %135, %136 : vector<8x32xf32>
    %138 = vector.broadcast %8 : vector<1x32xf32> to vector<8x32xf32>
    %139 = arith.addf %137, %138 : vector<8x32xf32>
    %c0_29 = arith.constant 0 : index
    %c0_30 = arith.constant 0 : index
    %c0_31 = arith.constant 0 : index
    %c0_32 = arith.constant 0 : index
    %140 = vector.load %arg9[%c0_29, %c0_30, %c0_31, %c0_32] : memref<1x8x8x32xf32, #tpu.memory_space<vmem>>, vector<1x1x8x32xf32>
    %141 = vector.shape_cast %140 : vector<1x1x8x32xf32> to vector<8x32xf32>
    %142 = vector.shape_cast %139 : vector<8x32xf32> to vector<1x1x8x32xf32>
    tpu.vector_store %arg9[%c0_29, %c0_30, %c0_31, %c0_32], %142 {strides = array<i32>} : memref<1x8x8x32xf32, #tpu.memory_space<vmem>>, vector<1x1x8x32xf32>,
    %cst_33 = arith.constant 0.000000e+00 : f32
    %143 = vector.broadcast %cst_33 : f32 to vector<8x64xf32>
    %144 = vector.extract_strided_slice %16 {offsets = [0, 0], sizes = [8, 64], strides = [1, 1]} : vector<10x64xf32> to vector<8x64xf32>
    %145 = vector.extract_strided_slice %5 {offsets = [0, 0, 0], sizes = [1, 1, 64], strides = [1, 1, 1]} : vector<3x3x64xf32> to vector<1x1x64xf32>
    %146 = vector.shape_cast %145 : vector<1x1x64xf32> to vector<64xf32>
    %147 = vector.shape_cast %146 : vector<64xf32> to vector<1x64xf32>
    %148 = vector.broadcast %147 : vector<1x64xf32> to vector<8x64xf32>
    %149 = arith.mulf %144, %148 : vector<8x64xf32>
    %150 = arith.addf %143, %149 : vector<8x64xf32>
    %151 = vector.extract_strided_slice %16 {offsets = [1, 0], sizes = [8, 64], strides = [1, 1]} : vector<10x64xf32> to vector<8x64xf32>
    %152 = vector.extract_strided_slice %5 {offsets = [0, 1, 0], sizes = [1, 1, 64], strides = [1, 1, 1]} : vector<3x3x64xf32> to vector<1x1x64xf32>
    %153 = vector.shape_cast %152 : vector<1x1x64xf32> to vector<64xf32>
    %154 = vector.shape_cast %153 : vector<64xf32> to vector<1x64xf32>
    %155 = vector.broadcast %154 : vector<1x64xf32> to vector<8x64xf32>
    %156 = arith.mulf %151, %155 : vector<8x64xf32>
    %157 = arith.addf %150, %156 : vector<8x64xf32>
    %158 = vector.extract_strided_slice %16 {offsets = [2, 0], sizes = [8, 64], strides = [1, 1]} : vector<10x64xf32> to vector<8x64xf32>
    %159 = vector.extract_strided_slice %5 {offsets = [0, 2, 0], sizes = [1, 1, 64], strides = [1, 1, 1]} : vector<3x3x64xf32> to vector<1x1x64xf32>
    %160 = vector.shape_cast %159 : vector<1x1x64xf32> to vector<64xf32>
    %161 = vector.shape_cast %160 : vector<64xf32> to vector<1x64xf32>
    %162 = vector.broadcast %161 : vector<1x64xf32> to vector<8x64xf32>
    %163 = arith.mulf %158, %162 : vector<8x64xf32>
    %164 = arith.addf %157, %163 : vector<8x64xf32>
    %165 = vector.extract_strided_slice %23 {offsets = [0, 0], sizes = [8, 64], strides = [1, 1]} : vector<10x64xf32> to vector<8x64xf32>
    %166 = vector.extract_strided_slice %5 {offsets = [1, 0, 0], sizes = [1, 1, 64], strides = [1, 1, 1]} : vector<3x3x64xf32> to vector<1x1x64xf32>
    %167 = vector.shape_cast %166 : vector<1x1x64xf32> to vector<64xf32>
    %168 = vector.shape_cast %167 : vector<64xf32> to vector<1x64xf32>
    %169 = vector.broadcast %168 : vector<1x64xf32> to vector<8x64xf32>
    %170 = arith.mulf %165, %169 : vector<8x64xf32>
    %171 = arith.addf %164, %170 : vector<8x64xf32>
    %172 = vector.extract_strided_slice %23 {offsets = [1, 0], sizes = [8, 64], strides = [1, 1]} : vector<10x64xf32> to vector<8x64xf32>
    %173 = vector.extract_strided_slice %5 {offsets = [1, 1, 0], sizes = [1, 1, 64], strides = [1, 1, 1]} : vector<3x3x64xf32> to vector<1x1x64xf32>
    %174 = vector.shape_cast %173 : vector<1x1x64xf32> to vector<64xf32>
    %175 = vector.shape_cast %174 : vector<64xf32> to vector<1x64xf32>
    %176 = vector.broadcast %175 : vector<1x64xf32> to vector<8x64xf32>
    %177 = arith.mulf %172, %176 : vector<8x64xf32>
    %178 = arith.addf %171, %177 : vector<8x64xf32>
    %179 = vector.extract_strided_slice %23 {offsets = [2, 0], sizes = [8, 64], strides = [1, 1]} : vector<10x64xf32> to vector<8x64xf32>
    %180 = vector.extract_strided_slice %5 {offsets = [1, 2, 0], sizes = [1, 1, 64], strides = [1, 1, 1]} : vector<3x3x64xf32> to vector<1x1x64xf32>
    %181 = vector.shape_cast %180 : vector<1x1x64xf32> to vector<64xf32>
    %182 = vector.shape_cast %181 : vector<64xf32> to vector<1x64xf32>
    %183 = vector.broadcast %182 : vector<1x64xf32> to vector<8x64xf32>
    %184 = arith.mulf %179, %183 : vector<8x64xf32>
    %185 = arith.addf %178, %184 : vector<8x64xf32>
    %186 = vector.extract_strided_slice %30 {offsets = [0, 0], sizes = [8, 64], strides = [1, 1]} : vector<10x64xf32> to vector<8x64xf32>
    %187 = vector.extract_strided_slice %5 {offsets = [2, 0, 0], sizes = [1, 1, 64], strides = [1, 1, 1]} : vector<3x3x64xf32> to vector<1x1x64xf32>
    %188 = vector.shape_cast %187 : vector<1x1x64xf32> to vector<64xf32>
    %189 = vector.shape_cast %188 : vector<64xf32> to vector<1x64xf32>
    %190 = vector.broadcast %189 : vector<1x64xf32> to vector<8x64xf32>
    %191 = arith.mulf %186, %190 : vector<8x64xf32>
    %192 = arith.addf %185, %191 : vector<8x64xf32>
    %193 = vector.extract_strided_slice %30 {offsets = [1, 0], sizes = [8, 64], strides = [1, 1]} : vector<10x64xf32> to vector<8x64xf32>
    %194 = vector.extract_strided_slice %5 {offsets = [2, 1, 0], sizes = [1, 1, 64], strides = [1, 1, 1]} : vector<3x3x64xf32> to vector<1x1x64xf32>
    %195 = vector.shape_cast %194 : vector<1x1x64xf32> to vector<64xf32>
    %196 = vector.shape_cast %195 : vector<64xf32> to vector<1x64xf32>
    %197 = vector.broadcast %196 : vector<1x64xf32> to vector<8x64xf32>
    %198 = arith.mulf %193, %197 : vector<8x64xf32>
    %199 = arith.addf %192, %198 : vector<8x64xf32>
    %200 = vector.extract_strided_slice %30 {offsets = [2, 0], sizes = [8, 64], strides = [1, 1]} : vector<10x64xf32> to vector<8x64xf32>
    %201 = vector.extract_strided_slice %5 {offsets = [2, 2, 0], sizes = [1, 1, 64], strides = [1, 1, 1]} : vector<3x3x64xf32> to vector<1x1x64xf32>
    %202 = vector.shape_cast %201 : vector<1x1x64xf32> to vector<64xf32>
    %203 = vector.shape_cast %202 : vector<64xf32> to vector<1x64xf32>
    %204 = vector.broadcast %203 : vector<1x64xf32> to vector<8x64xf32>
    %205 = arith.mulf %200, %204 : vector<8x64xf32>
    %206 = arith.addf %199, %205 : vector<8x64xf32>
    %207 = vector.broadcast %6 : vector<1x64xf32> to vector<8x64xf32>
    %208 = arith.addf %206, %207 : vector<8x64xf32>
    %cst_34 = arith.constant 0.000000e+00 : f32
    %209 = vector.broadcast %cst_34 : f32 to vector<8x64xf32>
    %210 = arith.maximumf %208, %209 : vector<8x64xf32>
    %211 = vector.extract_strided_slice %1 {offsets = [2, 1, 0], sizes = [1, 8, 32], strides = [1, 1, 1]} : vector<10x10x32xf32> to vector<1x8x32xf32>
    %212 = vector.shape_cast %211 : vector<1x8x32xf32> to vector<8x32xf32>
    %cst_35 = arith.constant dense<0.000000e+00> : vector<8x32xf32>
    %213 = tpu.matmul %210, %7, %cst_35 {dimension_numbers = #tpu.dot_dimension_numbers<[1], [0], [0], [1], [0, 0, 1, 1], [], []>} : vector<8x64xf32>, vector<64x32xf32>, vector<8x32xf32> -> vector<8x32xf32>
    %214 = arith.addf %212, %213 : vector<8x32xf32>
    %215 = vector.broadcast %8 : vector<1x32xf32> to vector<8x32xf32>
    %216 = arith.addf %214, %215 : vector<8x32xf32>
    %c0_36 = arith.constant 0 : index
    %c1 = arith.constant 1 : index
    %c0_37 = arith.constant 0 : index
    %c0_38 = arith.constant 0 : index
    %217 = vector.load %arg9[%c0_36, %c1, %c0_37, %c0_38] : memref<1x8x8x32xf32, #tpu.memory_space<vmem>>, vector<1x1x8x32xf32>
    %218 = vector.shape_cast %217 : vector<1x1x8x32xf32> to vector<8x32xf32>
    %219 = vector.shape_cast %216 : vector<8x32xf32> to vector<1x1x8x32xf32>
    tpu.vector_store %arg9[%c0_36, %c1, %c0_37, %c0_38], %219 {strides = array<i32>} : memref<1x8x8x32xf32, #tpu.memory_space<vmem>>, vector<1x1x8x32xf32>,
    %cst_39 = arith.constant 0.000000e+00 : f32
    %220 = vector.broadcast %cst_39 : f32 to vector<8x64xf32>
    %221 = vector.extract_strided_slice %23 {offsets = [0, 0], sizes = [8, 64], strides = [1, 1]} : vector<10x64xf32> to vector<8x64xf32>
    %222 = vector.extract_strided_slice %5 {offsets = [0, 0, 0], sizes = [1, 1, 64], strides = [1, 1, 1]} : vector<3x3x64xf32> to vector<1x1x64xf32>
    %223 = vector.shape_cast %222 : vector<1x1x64xf32> to vector<64xf32>
    %224 = vector.shape_cast %223 : vector<64xf32> to vector<1x64xf32>
    %225 = vector.broadcast %224 : vector<1x64xf32> to vector<8x64xf32>
    %226 = arith.mulf %221, %225 : vector<8x64xf32>
    %227 = arith.addf %220, %226 : vector<8x64xf32>
    %228 = vector.extract_strided_slice %23 {offsets = [1, 0], sizes = [8, 64], strides = [1, 1]} : vector<10x64xf32> to vector<8x64xf32>
    %229 = vector.extract_strided_slice %5 {offsets = [0, 1, 0], sizes = [1, 1, 64], strides = [1, 1, 1]} : vector<3x3x64xf32> to vector<1x1x64xf32>
    %230 = vector.shape_cast %229 : vector<1x1x64xf32> to vector<64xf32>
    %231 = vector.shape_cast %230 : vector<64xf32> to vector<1x64xf32>
    %232 = vector.broadcast %231 : vector<1x64xf32> to vector<8x64xf32>
    %233 = arith.mulf %228, %232 : vector<8x64xf32>
    %234 = arith.addf %227, %233 : vector<8x64xf32>
    %235 = vector.extract_strided_slice %23 {offsets = [2, 0], sizes = [8, 64], strides = [1, 1]} : vector<10x64xf32> to vector<8x64xf32>
    %236 = vector.extract_strided_slice %5 {offsets = [0, 2, 0], sizes = [1, 1, 64], strides = [1, 1, 1]} : vector<3x3x64xf32> to vector<1x1x64xf32>
    %237 = vector.shape_cast %236 : vector<1x1x64xf32> to vector<64xf32>
    %238 = vector.shape_cast %237 : vector<64xf32> to vector<1x64xf32>
    %239 = vector.broadcast %238 : vector<1x64xf32> to vector<8x64xf32>
    %240 = arith.mulf %235, %239 : vector<8x64xf32>
    %241 = arith.addf %234, %240 : vector<8x64xf32>
    %242 = vector.extract_strided_slice %30 {offsets = [0, 0], sizes = [8, 64], strides = [1, 1]} : vector<10x64xf32> to vector<8x64xf32>
    %243 = vector.extract_strided_slice %5 {offsets = [1, 0, 0], sizes = [1, 1, 64], strides = [1, 1, 1]} : vector<3x3x64xf32> to vector<1x1x64xf32>
    %244 = vector.shape_cast %243 : vector<1x1x64xf32> to vector<64xf32>
    %245 = vector.shape_cast %244 : vector<64xf32> to vector<1x64xf32>
    %246 = vector.broadcast %245 : vector<1x64xf32> to vector<8x64xf32>
    %247 = arith.mulf %242, %246 : vector<8x64xf32>
    %248 = arith.addf %241, %247 : vector<8x64xf32>
    %249 = vector.extract_strided_slice %30 {offsets = [1, 0], sizes = [8, 64], strides = [1, 1]} : vector<10x64xf32> to vector<8x64xf32>
    %250 = vector.extract_strided_slice %5 {offsets = [1, 1, 0], sizes = [1, 1, 64], strides = [1, 1, 1]} : vector<3x3x64xf32> to vector<1x1x64xf32>
    %251 = vector.shape_cast %250 : vector<1x1x64xf32> to vector<64xf32>
    %252 = vector.shape_cast %251 : vector<64xf32> to vector<1x64xf32>
    %253 = vector.broadcast %252 : vector<1x64xf32> to vector<8x64xf32>
    %254 = arith.mulf %249, %253 : vector<8x64xf32>
    %255 = arith.addf %248, %254 : vector<8x64xf32>
    %256 = vector.extract_strided_slice %30 {offsets = [2, 0], sizes = [8, 64], strides = [1, 1]} : vector<10x64xf32> to vector<8x64xf32>
    %257 = vector.extract_strided_slice %5 {offsets = [1, 2, 0], sizes = [1, 1, 64], strides = [1, 1, 1]} : vector<3x3x64xf32> to vector<1x1x64xf32>
    %258 = vector.shape_cast %257 : vector<1x1x64xf32> to vector<64xf32>
    %259 = vector.shape_cast %258 : vector<64xf32> to vector<1x64xf32>
    %260 = vector.broadcast %259 : vector<1x64xf32> to vector<8x64xf32>
    %261 = arith.mulf %256, %260 : vector<8x64xf32>
    %262 = arith.addf %255, %261 : vector<8x64xf32>
    %263 = vector.extract_strided_slice %37 {offsets = [0, 0], sizes = [8, 64], strides = [1, 1]} : vector<10x64xf32> to vector<8x64xf32>
    %264 = vector.extract_strided_slice %5 {offsets = [2, 0, 0], sizes = [1, 1, 64], strides = [1, 1, 1]} : vector<3x3x64xf32> to vector<1x1x64xf32>
    %265 = vector.shape_cast %264 : vector<1x1x64xf32> to vector<64xf32>
    %266 = vector.shape_cast %265 : vector<64xf32> to vector<1x64xf32>
    %267 = vector.broadcast %266 : vector<1x64xf32> to vector<8x64xf32>
    %268 = arith.mulf %263, %267 : vector<8x64xf32>
    %269 = arith.addf %262, %268 : vector<8x64xf32>
    %270 = vector.extract_strided_slice %37 {offsets = [1, 0], sizes = [8, 64], strides = [1, 1]} : vector<10x64xf32> to vector<8x64xf32>
    %271 = vector.extract_strided_slice %5 {offsets = [2, 1, 0], sizes = [1, 1, 64], strides = [1, 1, 1]} : vector<3x3x64xf32> to vector<1x1x64xf32>
    %272 = vector.shape_cast %271 : vector<1x1x64xf32> to vector<64xf32>
    %273 = vector.shape_cast %272 : vector<64xf32> to vector<1x64xf32>
    %274 = vector.broadcast %273 : vector<1x64xf32> to vector<8x64xf32>
    %275 = arith.mulf %270, %274 : vector<8x64xf32>
    %276 = arith.addf %269, %275 : vector<8x64xf32>
    %277 = vector.extract_strided_slice %37 {offsets = [2, 0], sizes = [8, 64], strides = [1, 1]} : vector<10x64xf32> to vector<8x64xf32>
    %278 = vector.extract_strided_slice %5 {offsets = [2, 2, 0], sizes = [1, 1, 64], strides = [1, 1, 1]} : vector<3x3x64xf32> to vector<1x1x64xf32>
    %279 = vector.shape_cast %278 : vector<1x1x64xf32> to vector<64xf32>
    %280 = vector.shape_cast %279 : vector<64xf32> to vector<1x64xf32>
    %281 = vector.broadcast %280 : vector<1x64xf32> to vector<8x64xf32>
    %282 = arith.mulf %277, %281 : vector<8x64xf32>
    %283 = arith.addf %276, %282 : vector<8x64xf32>
    %284 = vector.broadcast %6 : vector<1x64xf32> to vector<8x64xf32>
    %285 = arith.addf %283, %284 : vector<8x64xf32>
    %cst_40 = arith.constant 0.000000e+00 : f32
    %286 = vector.broadcast %cst_40 : f32 to vector<8x64xf32>
    %287 = arith.maximumf %285, %286 : vector<8x64xf32>
    %288 = vector.extract_strided_slice %1 {offsets = [3, 1, 0], sizes = [1, 8, 32], strides = [1, 1, 1]} : vector<10x10x32xf32> to vector<1x8x32xf32>
    %289 = vector.shape_cast %288 : vector<1x8x32xf32> to vector<8x32xf32>
    %cst_41 = arith.constant dense<0.000000e+00> : vector<8x32xf32>
    %290 = tpu.matmul %287, %7, %cst_41 {dimension_numbers = #tpu.dot_dimension_numbers<[1], [0], [0], [1], [0, 0, 1, 1], [], []>} : vector<8x64xf32>, vector<64x32xf32>, vector<8x32xf32> -> vector<8x32xf32>
    %291 = arith.addf %289, %290 : vector<8x32xf32>
    %292 = vector.broadcast %8 : vector<1x32xf32> to vector<8x32xf32>
    %293 = arith.addf %291, %292 : vector<8x32xf32>
    %c0_42 = arith.constant 0 : index
    %c2 = arith.constant 2 : index
    %c0_43 = arith.constant 0 : index
    %c0_44 = arith.constant 0 : index
    %294 = vector.load %arg9[%c0_42, %c2, %c0_43, %c0_44] : memref<1x8x8x32xf32, #tpu.memory_space<vmem>>, vector<1x1x8x32xf32>
    %295 = vector.shape_cast %294 : vector<1x1x8x32xf32> to vector<8x32xf32>
    %296 = vector.shape_cast %293 : vector<8x32xf32> to vector<1x1x8x32xf32>
    tpu.vector_store %arg9[%c0_42, %c2, %c0_43, %c0_44], %296 {strides = array<i32>} : memref<1x8x8x32xf32, #tpu.memory_space<vmem>>, vector<1x1x8x32xf32>,
    %cst_45 = arith.constant 0.000000e+00 : f32
    %297 = vector.broadcast %cst_45 : f32 to vector<8x64xf32>
    %298 = vector.extract_strided_slice %30 {offsets = [0, 0], sizes = [8, 64], strides = [1, 1]} : vector<10x64xf32> to vector<8x64xf32>
    %299 = vector.extract_strided_slice %5 {offsets = [0, 0, 0], sizes = [1, 1, 64], strides = [1, 1, 1]} : vector<3x3x64xf32> to vector<1x1x64xf32>
    %300 = vector.shape_cast %299 : vector<1x1x64xf32> to vector<64xf32>
    %301 = vector.shape_cast %300 : vector<64xf32> to vector<1x64xf32>
    %302 = vector.broadcast %301 : vector<1x64xf32> to vector<8x64xf32>
    %303 = arith.mulf %298, %302 : vector<8x64xf32>
    %304 = arith.addf %297, %303 : vector<8x64xf32>
    %305 = vector.extract_strided_slice %30 {offsets = [1, 0], sizes = [8, 64], strides = [1, 1]} : vector<10x64xf32> to vector<8x64xf32>
    %306 = vector.extract_strided_slice %5 {offsets = [0, 1, 0], sizes = [1, 1, 64], strides = [1, 1, 1]} : vector<3x3x64xf32> to vector<1x1x64xf32>
    %307 = vector.shape_cast %306 : vector<1x1x64xf32> to vector<64xf32>
    %308 = vector.shape_cast %307 : vector<64xf32> to vector<1x64xf32>
    %309 = vector.broadcast %308 : vector<1x64xf32> to vector<8x64xf32>
    %310 = arith.mulf %305, %309 : vector<8x64xf32>
    %311 = arith.addf %304, %310 : vector<8x64xf32>
    %312 = vector.extract_strided_slice %30 {offsets = [2, 0], sizes = [8, 64], strides = [1, 1]} : vector<10x64xf32> to vector<8x64xf32>
    %313 = vector.extract_strided_slice %5 {offsets = [0, 2, 0], sizes = [1, 1, 64], strides = [1, 1, 1]} : vector<3x3x64xf32> to vector<1x1x64xf32>
    %314 = vector.shape_cast %313 : vector<1x1x64xf32> to vector<64xf32>
    %315 = vector.shape_cast %314 : vector<64xf32> to vector<1x64xf32>
    %316 = vector.broadcast %315 : vector<1x64xf32> to vector<8x64xf32>
    %317 = arith.mulf %312, %316 : vector<8x64xf32>
    %318 = arith.addf %311, %317 : vector<8x64xf32>
    %319 = vector.extract_strided_slice %37 {offsets = [0, 0], sizes = [8, 64], strides = [1, 1]} : vector<10x64xf32> to vector<8x64xf32>
    %320 = vector.extract_strided_slice %5 {offsets = [1, 0, 0], sizes = [1, 1, 64], strides = [1, 1, 1]} : vector<3x3x64xf32> to vector<1x1x64xf32>
    %321 = vector.shape_cast %320 : vector<1x1x64xf32> to vector<64xf32>
    %322 = vector.shape_cast %321 : vector<64xf32> to vector<1x64xf32>
    %323 = vector.broadcast %322 : vector<1x64xf32> to vector<8x64xf32>
    %324 = arith.mulf %319, %323 : vector<8x64xf32>
    %325 = arith.addf %318, %324 : vector<8x64xf32>
    %326 = vector.extract_strided_slice %37 {offsets = [1, 0], sizes = [8, 64], strides = [1, 1]} : vector<10x64xf32> to vector<8x64xf32>
    %327 = vector.extract_strided_slice %5 {offsets = [1, 1, 0], sizes = [1, 1, 64], strides = [1, 1, 1]} : vector<3x3x64xf32> to vector<1x1x64xf32>
    %328 = vector.shape_cast %327 : vector<1x1x64xf32> to vector<64xf32>
    %329 = vector.shape_cast %328 : vector<64xf32> to vector<1x64xf32>
    %330 = vector.broadcast %329 : vector<1x64xf32> to vector<8x64xf32>
    %331 = arith.mulf %326, %330 : vector<8x64xf32>
    %332 = arith.addf %325, %331 : vector<8x64xf32>
    %333 = vector.extract_strided_slice %37 {offsets = [2, 0], sizes = [8, 64], strides = [1, 1]} : vector<10x64xf32> to vector<8x64xf32>
    %334 = vector.extract_strided_slice %5 {offsets = [1, 2, 0], sizes = [1, 1, 64], strides = [1, 1, 1]} : vector<3x3x64xf32> to vector<1x1x64xf32>
    %335 = vector.shape_cast %334 : vector<1x1x64xf32> to vector<64xf32>
    %336 = vector.shape_cast %335 : vector<64xf32> to vector<1x64xf32>
    %337 = vector.broadcast %336 : vector<1x64xf32> to vector<8x64xf32>
    %338 = arith.mulf %333, %337 : vector<8x64xf32>
    %339 = arith.addf %332, %338 : vector<8x64xf32>
    %340 = vector.extract_strided_slice %44 {offsets = [0, 0], sizes = [8, 64], strides = [1, 1]} : vector<10x64xf32> to vector<8x64xf32>
    %341 = vector.extract_strided_slice %5 {offsets = [2, 0, 0], sizes = [1, 1, 64], strides = [1, 1, 1]} : vector<3x3x64xf32> to vector<1x1x64xf32>
    %342 = vector.shape_cast %341 : vector<1x1x64xf32> to vector<64xf32>
    %343 = vector.shape_cast %342 : vector<64xf32> to vector<1x64xf32>
    %344 = vector.broadcast %343 : vector<1x64xf32> to vector<8x64xf32>
    %345 = arith.mulf %340, %344 : vector<8x64xf32>
    %346 = arith.addf %339, %345 : vector<8x64xf32>
    %347 = vector.extract_strided_slice %44 {offsets = [1, 0], sizes = [8, 64], strides = [1, 1]} : vector<10x64xf32> to vector<8x64xf32>
    %348 = vector.extract_strided_slice %5 {offsets = [2, 1, 0], sizes = [1, 1, 64], strides = [1, 1, 1]} : vector<3x3x64xf32> to vector<1x1x64xf32>
    %349 = vector.shape_cast %348 : vector<1x1x64xf32> to vector<64xf32>
    %350 = vector.shape_cast %349 : vector<64xf32> to vector<1x64xf32>
    %351 = vector.broadcast %350 : vector<1x64xf32> to vector<8x64xf32>
    %352 = arith.mulf %347, %351 : vector<8x64xf32>
    %353 = arith.addf %346, %352 : vector<8x64xf32>
    %354 = vector.extract_strided_slice %44 {offsets = [2, 0], sizes = [8, 64], strides = [1, 1]} : vector<10x64xf32> to vector<8x64xf32>
    %355 = vector.extract_strided_slice %5 {offsets = [2, 2, 0], sizes = [1, 1, 64], strides = [1, 1, 1]} : vector<3x3x64xf32> to vector<1x1x64xf32>
    %356 = vector.shape_cast %355 : vector<1x1x64xf32> to vector<64xf32>
    %357 = vector.shape_cast %356 : vector<64xf32> to vector<1x64xf32>
    %358 = vector.broadcast %357 : vector<1x64xf32> to vector<8x64xf32>
    %359 = arith.mulf %354, %358 : vector<8x64xf32>
    %360 = arith.addf %353, %359 : vector<8x64xf32>
    %361 = vector.broadcast %6 : vector<1x64xf32> to vector<8x64xf32>
    %362 = arith.addf %360, %361 : vector<8x64xf32>
    %cst_46 = arith.constant 0.000000e+00 : f32
    %363 = vector.broadcast %cst_46 : f32 to vector<8x64xf32>
    %364 = arith.maximumf %362, %363 : vector<8x64xf32>
    %365 = vector.extract_strided_slice %1 {offsets = [4, 1, 0], sizes = [1, 8, 32], strides = [1, 1, 1]} : vector<10x10x32xf32> to vector<1x8x32xf32>
    %366 = vector.shape_cast %365 : vector<1x8x32xf32> to vector<8x32xf32>
    %cst_47 = arith.constant dense<0.000000e+00> : vector<8x32xf32>
    %367 = tpu.matmul %364, %7, %cst_47 {dimension_numbers = #tpu.dot_dimension_numbers<[1], [0], [0], [1], [0, 0, 1, 1], [], []>} : vector<8x64xf32>, vector<64x32xf32>, vector<8x32xf32> -> vector<8x32xf32>
    %368 = arith.addf %366, %367 : vector<8x32xf32>
    %369 = vector.broadcast %8 : vector<1x32xf32> to vector<8x32xf32>
    %370 = arith.addf %368, %369 : vector<8x32xf32>
    %c0_48 = arith.constant 0 : index
    %c3 = arith.constant 3 : index
    %c0_49 = arith.constant 0 : index
    %c0_50 = arith.constant 0 : index
    %371 = vector.load %arg9[%c0_48, %c3, %c0_49, %c0_50] : memref<1x8x8x32xf32, #tpu.memory_space<vmem>>, vector<1x1x8x32xf32>
    %372 = vector.shape_cast %371 : vector<1x1x8x32xf32> to vector<8x32xf32>
    %373 = vector.shape_cast %370 : vector<8x32xf32> to vector<1x1x8x32xf32>
    tpu.vector_store %arg9[%c0_48, %c3, %c0_49, %c0_50], %373 {strides = array<i32>} : memref<1x8x8x32xf32, #tpu.memory_space<vmem>>, vector<1x1x8x32xf32>,
    %cst_51 = arith.constant 0.000000e+00 : f32
    %374 = vector.broadcast %cst_51 : f32 to vector<8x64xf32>
    %375 = vector.extract_strided_slice %37 {offsets = [0, 0], sizes = [8, 64], strides = [1, 1]} : vector<10x64xf32> to vector<8x64xf32>
    %376 = vector.extract_strided_slice %5 {offsets = [0, 0, 0], sizes = [1, 1, 64], strides = [1, 1, 1]} : vector<3x3x64xf32> to vector<1x1x64xf32>
    %377 = vector.shape_cast %376 : vector<1x1x64xf32> to vector<64xf32>
    %378 = vector.shape_cast %377 : vector<64xf32> to vector<1x64xf32>
    %379 = vector.broadcast %378 : vector<1x64xf32> to vector<8x64xf32>
    %380 = arith.mulf %375, %379 : vector<8x64xf32>
    %381 = arith.addf %374, %380 : vector<8x64xf32>
    %382 = vector.extract_strided_slice %37 {offsets = [1, 0], sizes = [8, 64], strides = [1, 1]} : vector<10x64xf32> to vector<8x64xf32>
    %383 = vector.extract_strided_slice %5 {offsets = [0, 1, 0], sizes = [1, 1, 64], strides = [1, 1, 1]} : vector<3x3x64xf32> to vector<1x1x64xf32>
    %384 = vector.shape_cast %383 : vector<1x1x64xf32> to vector<64xf32>
    %385 = vector.shape_cast %384 : vector<64xf32> to vector<1x64xf32>
    %386 = vector.broadcast %385 : vector<1x64xf32> to vector<8x64xf32>
    %387 = arith.mulf %382, %386 : vector<8x64xf32>
    %388 = arith.addf %381, %387 : vector<8x64xf32>
    %389 = vector.extract_strided_slice %37 {offsets = [2, 0], sizes = [8, 64], strides = [1, 1]} : vector<10x64xf32> to vector<8x64xf32>
    %390 = vector.extract_strided_slice %5 {offsets = [0, 2, 0], sizes = [1, 1, 64], strides = [1, 1, 1]} : vector<3x3x64xf32> to vector<1x1x64xf32>
    %391 = vector.shape_cast %390 : vector<1x1x64xf32> to vector<64xf32>
    %392 = vector.shape_cast %391 : vector<64xf32> to vector<1x64xf32>
    %393 = vector.broadcast %392 : vector<1x64xf32> to vector<8x64xf32>
    %394 = arith.mulf %389, %393 : vector<8x64xf32>
    %395 = arith.addf %388, %394 : vector<8x64xf32>
    %396 = vector.extract_strided_slice %44 {offsets = [0, 0], sizes = [8, 64], strides = [1, 1]} : vector<10x64xf32> to vector<8x64xf32>
    %397 = vector.extract_strided_slice %5 {offsets = [1, 0, 0], sizes = [1, 1, 64], strides = [1, 1, 1]} : vector<3x3x64xf32> to vector<1x1x64xf32>
    %398 = vector.shape_cast %397 : vector<1x1x64xf32> to vector<64xf32>
    %399 = vector.shape_cast %398 : vector<64xf32> to vector<1x64xf32>
    %400 = vector.broadcast %399 : vector<1x64xf32> to vector<8x64xf32>
    %401 = arith.mulf %396, %400 : vector<8x64xf32>
    %402 = arith.addf %395, %401 : vector<8x64xf32>
    %403 = vector.extract_strided_slice %44 {offsets = [1, 0], sizes = [8, 64], strides = [1, 1]} : vector<10x64xf32> to vector<8x64xf32>
    %404 = vector.extract_strided_slice %5 {offsets = [1, 1, 0], sizes = [1, 1, 64], strides = [1, 1, 1]} : vector<3x3x64xf32> to vector<1x1x64xf32>
    %405 = vector.shape_cast %404 : vector<1x1x64xf32> to vector<64xf32>
    %406 = vector.shape_cast %405 : vector<64xf32> to vector<1x64xf32>
    %407 = vector.broadcast %406 : vector<1x64xf32> to vector<8x64xf32>
    %408 = arith.mulf %403, %407 : vector<8x64xf32>
    %409 = arith.addf %402, %408 : vector<8x64xf32>
    %410 = vector.extract_strided_slice %44 {offsets = [2, 0], sizes = [8, 64], strides = [1, 1]} : vector<10x64xf32> to vector<8x64xf32>
    %411 = vector.extract_strided_slice %5 {offsets = [1, 2, 0], sizes = [1, 1, 64], strides = [1, 1, 1]} : vector<3x3x64xf32> to vector<1x1x64xf32>
    %412 = vector.shape_cast %411 : vector<1x1x64xf32> to vector<64xf32>
    %413 = vector.shape_cast %412 : vector<64xf32> to vector<1x64xf32>
    %414 = vector.broadcast %413 : vector<1x64xf32> to vector<8x64xf32>
    %415 = arith.mulf %410, %414 : vector<8x64xf32>
    %416 = arith.addf %409, %415 : vector<8x64xf32>
    %417 = vector.extract_strided_slice %51 {offsets = [0, 0], sizes = [8, 64], strides = [1, 1]} : vector<10x64xf32> to vector<8x64xf32>
    %418 = vector.extract_strided_slice %5 {offsets = [2, 0, 0], sizes = [1, 1, 64], strides = [1, 1, 1]} : vector<3x3x64xf32> to vector<1x1x64xf32>
    %419 = vector.shape_cast %418 : vector<1x1x64xf32> to vector<64xf32>
    %420 = vector.shape_cast %419 : vector<64xf32> to vector<1x64xf32>
    %421 = vector.broadcast %420 : vector<1x64xf32> to vector<8x64xf32>
    %422 = arith.mulf %417, %421 : vector<8x64xf32>
    %423 = arith.addf %416, %422 : vector<8x64xf32>
    %424 = vector.extract_strided_slice %51 {offsets = [1, 0], sizes = [8, 64], strides = [1, 1]} : vector<10x64xf32> to vector<8x64xf32>
    %425 = vector.extract_strided_slice %5 {offsets = [2, 1, 0], sizes = [1, 1, 64], strides = [1, 1, 1]} : vector<3x3x64xf32> to vector<1x1x64xf32>
    %426 = vector.shape_cast %425 : vector<1x1x64xf32> to vector<64xf32>
    %427 = vector.shape_cast %426 : vector<64xf32> to vector<1x64xf32>
    %428 = vector.broadcast %427 : vector<1x64xf32> to vector<8x64xf32>
    %429 = arith.mulf %424, %428 : vector<8x64xf32>
    %430 = arith.addf %423, %429 : vector<8x64xf32>
    %431 = vector.extract_strided_slice %51 {offsets = [2, 0], sizes = [8, 64], strides = [1, 1]} : vector<10x64xf32> to vector<8x64xf32>
    %432 = vector.extract_strided_slice %5 {offsets = [2, 2, 0], sizes = [1, 1, 64], strides = [1, 1, 1]} : vector<3x3x64xf32> to vector<1x1x64xf32>
    %433 = vector.shape_cast %432 : vector<1x1x64xf32> to vector<64xf32>
    %434 = vector.shape_cast %433 : vector<64xf32> to vector<1x64xf32>
    %435 = vector.broadcast %434 : vector<1x64xf32> to vector<8x64xf32>
    %436 = arith.mulf %431, %435 : vector<8x64xf32>
    %437 = arith.addf %430, %436 : vector<8x64xf32>
    %438 = vector.broadcast %6 : vector<1x64xf32> to vector<8x64xf32>
    %439 = arith.addf %437, %438 : vector<8x64xf32>
    %cst_52 = arith.constant 0.000000e+00 : f32
    %440 = vector.broadcast %cst_52 : f32 to vector<8x64xf32>
    %441 = arith.maximumf %439, %440 : vector<8x64xf32>
    %442 = vector.extract_strided_slice %1 {offsets = [5, 1, 0], sizes = [1, 8, 32], strides = [1, 1, 1]} : vector<10x10x32xf32> to vector<1x8x32xf32>
    %443 = vector.shape_cast %442 : vector<1x8x32xf32> to vector<8x32xf32>
    %cst_53 = arith.constant dense<0.000000e+00> : vector<8x32xf32>
    %444 = tpu.matmul %441, %7, %cst_53 {dimension_numbers = #tpu.dot_dimension_numbers<[1], [0], [0], [1], [0, 0, 1, 1], [], []>} : vector<8x64xf32>, vector<64x32xf32>, vector<8x32xf32> -> vector<8x32xf32>
    %445 = arith.addf %443, %444 : vector<8x32xf32>
    %446 = vector.broadcast %8 : vector<1x32xf32> to vector<8x32xf32>
    %447 = arith.addf %445, %446 : vector<8x32xf32>
    %c0_54 = arith.constant 0 : index
    %c4 = arith.constant 4 : index
    %c0_55 = arith.constant 0 : index
    %c0_56 = arith.constant 0 : index
    %448 = vector.load %arg9[%c0_54, %c4, %c0_55, %c0_56] : memref<1x8x8x32xf32, #tpu.memory_space<vmem>>, vector<1x1x8x32xf32>
    %449 = vector.shape_cast %448 : vector<1x1x8x32xf32> to vector<8x32xf32>
    %450 = vector.shape_cast %447 : vector<8x32xf32> to vector<1x1x8x32xf32>
    tpu.vector_store %arg9[%c0_54, %c4, %c0_55, %c0_56], %450 {strides = array<i32>} : memref<1x8x8x32xf32, #tpu.memory_space<vmem>>, vector<1x1x8x32xf32>,
    %cst_57 = arith.constant 0.000000e+00 : f32
    %451 = vector.broadcast %cst_57 : f32 to vector<8x64xf32>
    %452 = vector.extract_strided_slice %44 {offsets = [0, 0], sizes = [8, 64], strides = [1, 1]} : vector<10x64xf32> to vector<8x64xf32>
    %453 = vector.extract_strided_slice %5 {offsets = [0, 0, 0], sizes = [1, 1, 64], strides = [1, 1, 1]} : vector<3x3x64xf32> to vector<1x1x64xf32>
    %454 = vector.shape_cast %453 : vector<1x1x64xf32> to vector<64xf32>
    %455 = vector.shape_cast %454 : vector<64xf32> to vector<1x64xf32>
    %456 = vector.broadcast %455 : vector<1x64xf32> to vector<8x64xf32>
    %457 = arith.mulf %452, %456 : vector<8x64xf32>
    %458 = arith.addf %451, %457 : vector<8x64xf32>
    %459 = vector.extract_strided_slice %44 {offsets = [1, 0], sizes = [8, 64], strides = [1, 1]} : vector<10x64xf32> to vector<8x64xf32>
    %460 = vector.extract_strided_slice %5 {offsets = [0, 1, 0], sizes = [1, 1, 64], strides = [1, 1, 1]} : vector<3x3x64xf32> to vector<1x1x64xf32>
    %461 = vector.shape_cast %460 : vector<1x1x64xf32> to vector<64xf32>
    %462 = vector.shape_cast %461 : vector<64xf32> to vector<1x64xf32>
    %463 = vector.broadcast %462 : vector<1x64xf32> to vector<8x64xf32>
    %464 = arith.mulf %459, %463 : vector<8x64xf32>
    %465 = arith.addf %458, %464 : vector<8x64xf32>
    %466 = vector.extract_strided_slice %44 {offsets = [2, 0], sizes = [8, 64], strides = [1, 1]} : vector<10x64xf32> to vector<8x64xf32>
    %467 = vector.extract_strided_slice %5 {offsets = [0, 2, 0], sizes = [1, 1, 64], strides = [1, 1, 1]} : vector<3x3x64xf32> to vector<1x1x64xf32>
    %468 = vector.shape_cast %467 : vector<1x1x64xf32> to vector<64xf32>
    %469 = vector.shape_cast %468 : vector<64xf32> to vector<1x64xf32>
    %470 = vector.broadcast %469 : vector<1x64xf32> to vector<8x64xf32>
    %471 = arith.mulf %466, %470 : vector<8x64xf32>
    %472 = arith.addf %465, %471 : vector<8x64xf32>
    %473 = vector.extract_strided_slice %51 {offsets = [0, 0], sizes = [8, 64], strides = [1, 1]} : vector<10x64xf32> to vector<8x64xf32>
    %474 = vector.extract_strided_slice %5 {offsets = [1, 0, 0], sizes = [1, 1, 64], strides = [1, 1, 1]} : vector<3x3x64xf32> to vector<1x1x64xf32>
    %475 = vector.shape_cast %474 : vector<1x1x64xf32> to vector<64xf32>
    %476 = vector.shape_cast %475 : vector<64xf32> to vector<1x64xf32>
    %477 = vector.broadcast %476 : vector<1x64xf32> to vector<8x64xf32>
    %478 = arith.mulf %473, %477 : vector<8x64xf32>
    %479 = arith.addf %472, %478 : vector<8x64xf32>
    %480 = vector.extract_strided_slice %51 {offsets = [1, 0], sizes = [8, 64], strides = [1, 1]} : vector<10x64xf32> to vector<8x64xf32>
    %481 = vector.extract_strided_slice %5 {offsets = [1, 1, 0], sizes = [1, 1, 64], strides = [1, 1, 1]} : vector<3x3x64xf32> to vector<1x1x64xf32>
    %482 = vector.shape_cast %481 : vector<1x1x64xf32> to vector<64xf32>
    %483 = vector.shape_cast %482 : vector<64xf32> to vector<1x64xf32>
    %484 = vector.broadcast %483 : vector<1x64xf32> to vector<8x64xf32>
    %485 = arith.mulf %480, %484 : vector<8x64xf32>
    %486 = arith.addf %479, %485 : vector<8x64xf32>
    %487 = vector.extract_strided_slice %51 {offsets = [2, 0], sizes = [8, 64], strides = [1, 1]} : vector<10x64xf32> to vector<8x64xf32>
    %488 = vector.extract_strided_slice %5 {offsets = [1, 2, 0], sizes = [1, 1, 64], strides = [1, 1, 1]} : vector<3x3x64xf32> to vector<1x1x64xf32>
    %489 = vector.shape_cast %488 : vector<1x1x64xf32> to vector<64xf32>
    %490 = vector.shape_cast %489 : vector<64xf32> to vector<1x64xf32>
    %491 = vector.broadcast %490 : vector<1x64xf32> to vector<8x64xf32>
    %492 = arith.mulf %487, %491 : vector<8x64xf32>
    %493 = arith.addf %486, %492 : vector<8x64xf32>
    %494 = vector.extract_strided_slice %58 {offsets = [0, 0], sizes = [8, 64], strides = [1, 1]} : vector<10x64xf32> to vector<8x64xf32>
    %495 = vector.extract_strided_slice %5 {offsets = [2, 0, 0], sizes = [1, 1, 64], strides = [1, 1, 1]} : vector<3x3x64xf32> to vector<1x1x64xf32>
    %496 = vector.shape_cast %495 : vector<1x1x64xf32> to vector<64xf32>
    %497 = vector.shape_cast %496 : vector<64xf32> to vector<1x64xf32>
    %498 = vector.broadcast %497 : vector<1x64xf32> to vector<8x64xf32>
    %499 = arith.mulf %494, %498 : vector<8x64xf32>
    %500 = arith.addf %493, %499 : vector<8x64xf32>
    %501 = vector.extract_strided_slice %58 {offsets = [1, 0], sizes = [8, 64], strides = [1, 1]} : vector<10x64xf32> to vector<8x64xf32>
    %502 = vector.extract_strided_slice %5 {offsets = [2, 1, 0], sizes = [1, 1, 64], strides = [1, 1, 1]} : vector<3x3x64xf32> to vector<1x1x64xf32>
    %503 = vector.shape_cast %502 : vector<1x1x64xf32> to vector<64xf32>
    %504 = vector.shape_cast %503 : vector<64xf32> to vector<1x64xf32>
    %505 = vector.broadcast %504 : vector<1x64xf32> to vector<8x64xf32>
    %506 = arith.mulf %501, %505 : vector<8x64xf32>
    %507 = arith.addf %500, %506 : vector<8x64xf32>
    %508 = vector.extract_strided_slice %58 {offsets = [2, 0], sizes = [8, 64], strides = [1, 1]} : vector<10x64xf32> to vector<8x64xf32>
    %509 = vector.extract_strided_slice %5 {offsets = [2, 2, 0], sizes = [1, 1, 64], strides = [1, 1, 1]} : vector<3x3x64xf32> to vector<1x1x64xf32>
    %510 = vector.shape_cast %509 : vector<1x1x64xf32> to vector<64xf32>
    %511 = vector.shape_cast %510 : vector<64xf32> to vector<1x64xf32>
    %512 = vector.broadcast %511 : vector<1x64xf32> to vector<8x64xf32>
    %513 = arith.mulf %508, %512 : vector<8x64xf32>
    %514 = arith.addf %507, %513 : vector<8x64xf32>
    %515 = vector.broadcast %6 : vector<1x64xf32> to vector<8x64xf32>
    %516 = arith.addf %514, %515 : vector<8x64xf32>
    %cst_58 = arith.constant 0.000000e+00 : f32
    %517 = vector.broadcast %cst_58 : f32 to vector<8x64xf32>
    %518 = arith.maximumf %516, %517 : vector<8x64xf32>
    %519 = vector.extract_strided_slice %1 {offsets = [6, 1, 0], sizes = [1, 8, 32], strides = [1, 1, 1]} : vector<10x10x32xf32> to vector<1x8x32xf32>
    %520 = vector.shape_cast %519 : vector<1x8x32xf32> to vector<8x32xf32>
    %cst_59 = arith.constant dense<0.000000e+00> : vector<8x32xf32>
    %521 = tpu.matmul %518, %7, %cst_59 {dimension_numbers = #tpu.dot_dimension_numbers<[1], [0], [0], [1], [0, 0, 1, 1], [], []>} : vector<8x64xf32>, vector<64x32xf32>, vector<8x32xf32> -> vector<8x32xf32>
    %522 = arith.addf %520, %521 : vector<8x32xf32>
    %523 = vector.broadcast %8 : vector<1x32xf32> to vector<8x32xf32>
    %524 = arith.addf %522, %523 : vector<8x32xf32>
    %c0_60 = arith.constant 0 : index
    %c5 = arith.constant 5 : index
    %c0_61 = arith.constant 0 : index
    %c0_62 = arith.constant 0 : index
    %525 = vector.load %arg9[%c0_60, %c5, %c0_61, %c0_62] : memref<1x8x8x32xf32, #tpu.memory_space<vmem>>, vector<1x1x8x32xf32>
    %526 = vector.shape_cast %525 : vector<1x1x8x32xf32> to vector<8x32xf32>
    %527 = vector.shape_cast %524 : vector<8x32xf32> to vector<1x1x8x32xf32>
    tpu.vector_store %arg9[%c0_60, %c5, %c0_61, %c0_62], %527 {strides = array<i32>} : memref<1x8x8x32xf32, #tpu.memory_space<vmem>>, vector<1x1x8x32xf32>,
    %cst_63 = arith.constant 0.000000e+00 : f32
    %528 = vector.broadcast %cst_63 : f32 to vector<8x64xf32>
    %529 = vector.extract_strided_slice %51 {offsets = [0, 0], sizes = [8, 64], strides = [1, 1]} : vector<10x64xf32> to vector<8x64xf32>
    %530 = vector.extract_strided_slice %5 {offsets = [0, 0, 0], sizes = [1, 1, 64], strides = [1, 1, 1]} : vector<3x3x64xf32> to vector<1x1x64xf32>
    %531 = vector.shape_cast %530 : vector<1x1x64xf32> to vector<64xf32>
    %532 = vector.shape_cast %531 : vector<64xf32> to vector<1x64xf32>
    %533 = vector.broadcast %532 : vector<1x64xf32> to vector<8x64xf32>
    %534 = arith.mulf %529, %533 : vector<8x64xf32>
    %535 = arith.addf %528, %534 : vector<8x64xf32>
    %536 = vector.extract_strided_slice %51 {offsets = [1, 0], sizes = [8, 64], strides = [1, 1]} : vector<10x64xf32> to vector<8x64xf32>
    %537 = vector.extract_strided_slice %5 {offsets = [0, 1, 0], sizes = [1, 1, 64], strides = [1, 1, 1]} : vector<3x3x64xf32> to vector<1x1x64xf32>
    %538 = vector.shape_cast %537 : vector<1x1x64xf32> to vector<64xf32>
    %539 = vector.shape_cast %538 : vector<64xf32> to vector<1x64xf32>
    %540 = vector.broadcast %539 : vector<1x64xf32> to vector<8x64xf32>
    %541 = arith.mulf %536, %540 : vector<8x64xf32>
    %542 = arith.addf %535, %541 : vector<8x64xf32>
    %543 = vector.extract_strided_slice %51 {offsets = [2, 0], sizes = [8, 64], strides = [1, 1]} : vector<10x64xf32> to vector<8x64xf32>
    %544 = vector.extract_strided_slice %5 {offsets = [0, 2, 0], sizes = [1, 1, 64], strides = [1, 1, 1]} : vector<3x3x64xf32> to vector<1x1x64xf32>
    %545 = vector.shape_cast %544 : vector<1x1x64xf32> to vector<64xf32>
    %546 = vector.shape_cast %545 : vector<64xf32> to vector<1x64xf32>
    %547 = vector.broadcast %546 : vector<1x64xf32> to vector<8x64xf32>
    %548 = arith.mulf %543, %547 : vector<8x64xf32>
    %549 = arith.addf %542, %548 : vector<8x64xf32>
    %550 = vector.extract_strided_slice %58 {offsets = [0, 0], sizes = [8, 64], strides = [1, 1]} : vector<10x64xf32> to vector<8x64xf32>
    %551 = vector.extract_strided_slice %5 {offsets = [1, 0, 0], sizes = [1, 1, 64], strides = [1, 1, 1]} : vector<3x3x64xf32> to vector<1x1x64xf32>
    %552 = vector.shape_cast %551 : vector<1x1x64xf32> to vector<64xf32>
    %553 = vector.shape_cast %552 : vector<64xf32> to vector<1x64xf32>
    %554 = vector.broadcast %553 : vector<1x64xf32> to vector<8x64xf32>
    %555 = arith.mulf %550, %554 : vector<8x64xf32>
    %556 = arith.addf %549, %555 : vector<8x64xf32>
    %557 = vector.extract_strided_slice %58 {offsets = [1, 0], sizes = [8, 64], strides = [1, 1]} : vector<10x64xf32> to vector<8x64xf32>
    %558 = vector.extract_strided_slice %5 {offsets = [1, 1, 0], sizes = [1, 1, 64], strides = [1, 1, 1]} : vector<3x3x64xf32> to vector<1x1x64xf32>
    %559 = vector.shape_cast %558 : vector<1x1x64xf32> to vector<64xf32>
    %560 = vector.shape_cast %559 : vector<64xf32> to vector<1x64xf32>
    %561 = vector.broadcast %560 : vector<1x64xf32> to vector<8x64xf32>
    %562 = arith.mulf %557, %561 : vector<8x64xf32>
    %563 = arith.addf %556, %562 : vector<8x64xf32>
    %564 = vector.extract_strided_slice %58 {offsets = [2, 0], sizes = [8, 64], strides = [1, 1]} : vector<10x64xf32> to vector<8x64xf32>
    %565 = vector.extract_strided_slice %5 {offsets = [1, 2, 0], sizes = [1, 1, 64], strides = [1, 1, 1]} : vector<3x3x64xf32> to vector<1x1x64xf32>
    %566 = vector.shape_cast %565 : vector<1x1x64xf32> to vector<64xf32>
    %567 = vector.shape_cast %566 : vector<64xf32> to vector<1x64xf32>
    %568 = vector.broadcast %567 : vector<1x64xf32> to vector<8x64xf32>
    %569 = arith.mulf %564, %568 : vector<8x64xf32>
    %570 = arith.addf %563, %569 : vector<8x64xf32>
    %571 = vector.extract_strided_slice %65 {offsets = [0, 0], sizes = [8, 64], strides = [1, 1]} : vector<10x64xf32> to vector<8x64xf32>
    %572 = vector.extract_strided_slice %5 {offsets = [2, 0, 0], sizes = [1, 1, 64], strides = [1, 1, 1]} : vector<3x3x64xf32> to vector<1x1x64xf32>
    %573 = vector.shape_cast %572 : vector<1x1x64xf32> to vector<64xf32>
    %574 = vector.shape_cast %573 : vector<64xf32> to vector<1x64xf32>
    %575 = vector.broadcast %574 : vector<1x64xf32> to vector<8x64xf32>
    %576 = arith.mulf %571, %575 : vector<8x64xf32>
    %577 = arith.addf %570, %576 : vector<8x64xf32>
    %578 = vector.extract_strided_slice %65 {offsets = [1, 0], sizes = [8, 64], strides = [1, 1]} : vector<10x64xf32> to vector<8x64xf32>
    %579 = vector.extract_strided_slice %5 {offsets = [2, 1, 0], sizes = [1, 1, 64], strides = [1, 1, 1]} : vector<3x3x64xf32> to vector<1x1x64xf32>
    %580 = vector.shape_cast %579 : vector<1x1x64xf32> to vector<64xf32>
    %581 = vector.shape_cast %580 : vector<64xf32> to vector<1x64xf32>
    %582 = vector.broadcast %581 : vector<1x64xf32> to vector<8x64xf32>
    %583 = arith.mulf %578, %582 : vector<8x64xf32>
    %584 = arith.addf %577, %583 : vector<8x64xf32>
    %585 = vector.extract_strided_slice %65 {offsets = [2, 0], sizes = [8, 64], strides = [1, 1]} : vector<10x64xf32> to vector<8x64xf32>
    %586 = vector.extract_strided_slice %5 {offsets = [2, 2, 0], sizes = [1, 1, 64], strides = [1, 1, 1]} : vector<3x3x64xf32> to vector<1x1x64xf32>
    %587 = vector.shape_cast %586 : vector<1x1x64xf32> to vector<64xf32>
    %588 = vector.shape_cast %587 : vector<64xf32> to vector<1x64xf32>
    %589 = vector.broadcast %588 : vector<1x64xf32> to vector<8x64xf32>
    %590 = arith.mulf %585, %589 : vector<8x64xf32>
    %591 = arith.addf %584, %590 : vector<8x64xf32>
    %592 = vector.broadcast %6 : vector<1x64xf32> to vector<8x64xf32>
    %593 = arith.addf %591, %592 : vector<8x64xf32>
    %cst_64 = arith.constant 0.000000e+00 : f32
    %594 = vector.broadcast %cst_64 : f32 to vector<8x64xf32>
    %595 = arith.maximumf %593, %594 : vector<8x64xf32>
    %596 = vector.extract_strided_slice %1 {offsets = [7, 1, 0], sizes = [1, 8, 32], strides = [1, 1, 1]} : vector<10x10x32xf32> to vector<1x8x32xf32>
    %597 = vector.shape_cast %596 : vector<1x8x32xf32> to vector<8x32xf32>
    %cst_65 = arith.constant dense<0.000000e+00> : vector<8x32xf32>
    %598 = tpu.matmul %595, %7, %cst_65 {dimension_numbers = #tpu.dot_dimension_numbers<[1], [0], [0], [1], [0, 0, 1, 1], [], []>} : vector<8x64xf32>, vector<64x32xf32>, vector<8x32xf32> -> vector<8x32xf32>
    %599 = arith.addf %597, %598 : vector<8x32xf32>
    %600 = vector.broadcast %8 : vector<1x32xf32> to vector<8x32xf32>
    %601 = arith.addf %599, %600 : vector<8x32xf32>
    %c0_66 = arith.constant 0 : index
    %c6 = arith.constant 6 : index
    %c0_67 = arith.constant 0 : index
    %c0_68 = arith.constant 0 : index
    %602 = vector.load %arg9[%c0_66, %c6, %c0_67, %c0_68] : memref<1x8x8x32xf32, #tpu.memory_space<vmem>>, vector<1x1x8x32xf32>
    %603 = vector.shape_cast %602 : vector<1x1x8x32xf32> to vector<8x32xf32>
    %604 = vector.shape_cast %601 : vector<8x32xf32> to vector<1x1x8x32xf32>
    tpu.vector_store %arg9[%c0_66, %c6, %c0_67, %c0_68], %604 {strides = array<i32>} : memref<1x8x8x32xf32, #tpu.memory_space<vmem>>, vector<1x1x8x32xf32>,
    %cst_69 = arith.constant 0.000000e+00 : f32
    %605 = vector.broadcast %cst_69 : f32 to vector<8x64xf32>
    %606 = vector.extract_strided_slice %58 {offsets = [0, 0], sizes = [8, 64], strides = [1, 1]} : vector<10x64xf32> to vector<8x64xf32>
    %607 = vector.extract_strided_slice %5 {offsets = [0, 0, 0], sizes = [1, 1, 64], strides = [1, 1, 1]} : vector<3x3x64xf32> to vector<1x1x64xf32>
    %608 = vector.shape_cast %607 : vector<1x1x64xf32> to vector<64xf32>
    %609 = vector.shape_cast %608 : vector<64xf32> to vector<1x64xf32>
    %610 = vector.broadcast %609 : vector<1x64xf32> to vector<8x64xf32>
    %611 = arith.mulf %606, %610 : vector<8x64xf32>
    %612 = arith.addf %605, %611 : vector<8x64xf32>
    %613 = vector.extract_strided_slice %58 {offsets = [1, 0], sizes = [8, 64], strides = [1, 1]} : vector<10x64xf32> to vector<8x64xf32>
    %614 = vector.extract_strided_slice %5 {offsets = [0, 1, 0], sizes = [1, 1, 64], strides = [1, 1, 1]} : vector<3x3x64xf32> to vector<1x1x64xf32>
    %615 = vector.shape_cast %614 : vector<1x1x64xf32> to vector<64xf32>
    %616 = vector.shape_cast %615 : vector<64xf32> to vector<1x64xf32>
    %617 = vector.broadcast %616 : vector<1x64xf32> to vector<8x64xf32>
    %618 = arith.mulf %613, %617 : vector<8x64xf32>
    %619 = arith.addf %612, %618 : vector<8x64xf32>
    %620 = vector.extract_strided_slice %58 {offsets = [2, 0], sizes = [8, 64], strides = [1, 1]} : vector<10x64xf32> to vector<8x64xf32>
    %621 = vector.extract_strided_slice %5 {offsets = [0, 2, 0], sizes = [1, 1, 64], strides = [1, 1, 1]} : vector<3x3x64xf32> to vector<1x1x64xf32>
    %622 = vector.shape_cast %621 : vector<1x1x64xf32> to vector<64xf32>
    %623 = vector.shape_cast %622 : vector<64xf32> to vector<1x64xf32>
    %624 = vector.broadcast %623 : vector<1x64xf32> to vector<8x64xf32>
    %625 = arith.mulf %620, %624 : vector<8x64xf32>
    %626 = arith.addf %619, %625 : vector<8x64xf32>
    %627 = vector.extract_strided_slice %65 {offsets = [0, 0], sizes = [8, 64], strides = [1, 1]} : vector<10x64xf32> to vector<8x64xf32>
    %628 = vector.extract_strided_slice %5 {offsets = [1, 0, 0], sizes = [1, 1, 64], strides = [1, 1, 1]} : vector<3x3x64xf32> to vector<1x1x64xf32>
    %629 = vector.shape_cast %628 : vector<1x1x64xf32> to vector<64xf32>
    %630 = vector.shape_cast %629 : vector<64xf32> to vector<1x64xf32>
    %631 = vector.broadcast %630 : vector<1x64xf32> to vector<8x64xf32>
    %632 = arith.mulf %627, %631 : vector<8x64xf32>
    %633 = arith.addf %626, %632 : vector<8x64xf32>
    %634 = vector.extract_strided_slice %65 {offsets = [1, 0], sizes = [8, 64], strides = [1, 1]} : vector<10x64xf32> to vector<8x64xf32>
    %635 = vector.extract_strided_slice %5 {offsets = [1, 1, 0], sizes = [1, 1, 64], strides = [1, 1, 1]} : vector<3x3x64xf32> to vector<1x1x64xf32>
    %636 = vector.shape_cast %635 : vector<1x1x64xf32> to vector<64xf32>
    %637 = vector.shape_cast %636 : vector<64xf32> to vector<1x64xf32>
    %638 = vector.broadcast %637 : vector<1x64xf32> to vector<8x64xf32>
    %639 = arith.mulf %634, %638 : vector<8x64xf32>
    %640 = arith.addf %633, %639 : vector<8x64xf32>
    %641 = vector.extract_strided_slice %65 {offsets = [2, 0], sizes = [8, 64], strides = [1, 1]} : vector<10x64xf32> to vector<8x64xf32>
    %642 = vector.extract_strided_slice %5 {offsets = [1, 2, 0], sizes = [1, 1, 64], strides = [1, 1, 1]} : vector<3x3x64xf32> to vector<1x1x64xf32>
    %643 = vector.shape_cast %642 : vector<1x1x64xf32> to vector<64xf32>
    %644 = vector.shape_cast %643 : vector<64xf32> to vector<1x64xf32>
    %645 = vector.broadcast %644 : vector<1x64xf32> to vector<8x64xf32>
    %646 = arith.mulf %641, %645 : vector<8x64xf32>
    %647 = arith.addf %640, %646 : vector<8x64xf32>
    %648 = vector.extract_strided_slice %9 {offsets = [0, 0], sizes = [8, 64], strides = [1, 1]} : vector<10x64xf32> to vector<8x64xf32>
    %649 = vector.extract_strided_slice %5 {offsets = [2, 0, 0], sizes = [1, 1, 64], strides = [1, 1, 1]} : vector<3x3x64xf32> to vector<1x1x64xf32>
    %650 = vector.shape_cast %649 : vector<1x1x64xf32> to vector<64xf32>
    %651 = vector.shape_cast %650 : vector<64xf32> to vector<1x64xf32>
    %652 = vector.broadcast %651 : vector<1x64xf32> to vector<8x64xf32>
    %653 = arith.mulf %648, %652 : vector<8x64xf32>
    %654 = arith.addf %647, %653 : vector<8x64xf32>
    %655 = vector.extract_strided_slice %9 {offsets = [1, 0], sizes = [8, 64], strides = [1, 1]} : vector<10x64xf32> to vector<8x64xf32>
    %656 = vector.extract_strided_slice %5 {offsets = [2, 1, 0], sizes = [1, 1, 64], strides = [1, 1, 1]} : vector<3x3x64xf32> to vector<1x1x64xf32>
    %657 = vector.shape_cast %656 : vector<1x1x64xf32> to vector<64xf32>
    %658 = vector.shape_cast %657 : vector<64xf32> to vector<1x64xf32>
    %659 = vector.broadcast %658 : vector<1x64xf32> to vector<8x64xf32>
    %660 = arith.mulf %655, %659 : vector<8x64xf32>
    %661 = arith.addf %654, %660 : vector<8x64xf32>
    %662 = vector.extract_strided_slice %9 {offsets = [2, 0], sizes = [8, 64], strides = [1, 1]} : vector<10x64xf32> to vector<8x64xf32>
    %663 = vector.extract_strided_slice %5 {offsets = [2, 2, 0], sizes = [1, 1, 64], strides = [1, 1, 1]} : vector<3x3x64xf32> to vector<1x1x64xf32>
    %664 = vector.shape_cast %663 : vector<1x1x64xf32> to vector<64xf32>
    %665 = vector.shape_cast %664 : vector<64xf32> to vector<1x64xf32>
    %666 = vector.broadcast %665 : vector<1x64xf32> to vector<8x64xf32>
    %667 = arith.mulf %662, %666 : vector<8x64xf32>
    %668 = arith.addf %661, %667 : vector<8x64xf32>
    %669 = vector.broadcast %6 : vector<1x64xf32> to vector<8x64xf32>
    %670 = arith.addf %668, %669 : vector<8x64xf32>
    %cst_70 = arith.constant 0.000000e+00 : f32
    %671 = vector.broadcast %cst_70 : f32 to vector<8x64xf32>
    %672 = arith.maximumf %670, %671 : vector<8x64xf32>
    %673 = vector.extract_strided_slice %1 {offsets = [8, 1, 0], sizes = [1, 8, 32], strides = [1, 1, 1]} : vector<10x10x32xf32> to vector<1x8x32xf32>
    %674 = vector.shape_cast %673 : vector<1x8x32xf32> to vector<8x32xf32>
    %cst_71 = arith.constant dense<0.000000e+00> : vector<8x32xf32>
    %675 = tpu.matmul %672, %7, %cst_71 {dimension_numbers = #tpu.dot_dimension_numbers<[1], [0], [0], [1], [0, 0, 1, 1], [], []>} : vector<8x64xf32>, vector<64x32xf32>, vector<8x32xf32> -> vector<8x32xf32>
    %676 = arith.addf %674, %675 : vector<8x32xf32>
    %677 = vector.broadcast %8 : vector<1x32xf32> to vector<8x32xf32>
    %678 = arith.addf %676, %677 : vector<8x32xf32>
    %c0_72 = arith.constant 0 : index
    %c7 = arith.constant 7 : index
    %c0_73 = arith.constant 0 : index
    %c0_74 = arith.constant 0 : index
    %679 = vector.load %arg9[%c0_72, %c7, %c0_73, %c0_74] : memref<1x8x8x32xf32, #tpu.memory_space<vmem>>, vector<1x1x8x32xf32>
    %680 = vector.shape_cast %679 : vector<1x1x8x32xf32> to vector<8x32xf32>
    %681 = vector.shape_cast %678 : vector<8x32xf32> to vector<1x1x8x32xf32>
    tpu.vector_store %arg9[%c0_72, %c7, %c0_73, %c0_74], %681 {strides = array<i32>} : memref<1x8x8x32xf32, #tpu.memory_space<vmem>>, vector<1x1x8x32xf32>,
    return
  }
  func.func @transform_0(%arg0: i32) -> (i32, i32, i32, i32) {
    %c0_i32 = arith.constant 0 : i32
    %c0_i32_0 = arith.constant 0 : i32
    %c0_i32_1 = arith.constant 0 : i32
    %c0_i32_2 = arith.constant 0 : i32
    return %arg0, %c0_i32, %c0_i32_0, %c0_i32_1 : i32, i32, i32, i32
  }
  func.func @transform_1(%arg0: i32) -> (i32, i32) {
    %c0_i32 = arith.constant 0 : i32
    %c0_i32_0 = arith.constant 0 : i32
    %c0_i32_1 = arith.constant 0 : i32
    return %c0_i32, %c0_i32_0 : i32, i32
  }
  func.func @transform_2(%arg0: i32) -> (i32, i32) {
    %c0_i32 = arith.constant 0 : i32
    %c0_i32_0 = arith.constant 0 : i32
    %c0_i32_1 = arith.constant 0 : i32
    return %c0_i32, %c0_i32_0 : i32, i32
  }
  func.func @transform_3(%arg0: i32) -> (i32, i32) {
    %c0_i32 = arith.constant 0 : i32
    %c0_i32_0 = arith.constant 0 : i32
    %c0_i32_1 = arith.constant 0 : i32
    return %c0_i32, %c0_i32_0 : i32, i32
  }
  func.func @transform_4(%arg0: i32) -> (i32, i32, i32) {
    %c0_i32 = arith.constant 0 : i32
    %c0_i32_0 = arith.constant 0 : i32
    %c0_i32_1 = arith.constant 0 : i32
    %c0_i32_2 = arith.constant 0 : i32
    return %c0_i32, %c0_i32_0, %c0_i32_1 : i32, i32, i32
  }
  func.func @transform_5(%arg0: i32) -> (i32, i32) {
    %c0_i32 = arith.constant 0 : i32
    %c0_i32_0 = arith.constant 0 : i32
    %c0_i32_1 = arith.constant 0 : i32
    return %c0_i32, %c0_i32_0 : i32, i32
  }
  func.func @transform_6(%arg0: i32) -> (i32, i32) {
    %c0_i32 = arith.constant 0 : i32
    %c0_i32_0 = arith.constant 0 : i32
    %c0_i32_1 = arith.constant 0 : i32
    return %c0_i32, %c0_i32_0 : i32, i32
  }
  func.func @transform_7(%arg0: i32) -> (i32, i32) {
    %c0_i32 = arith.constant 0 : i32
    %c0_i32_0 = arith.constant 0 : i32
    %c0_i32_1 = arith.constant 0 : i32
    return %c0_i32, %c0_i32_0 : i32, i32
  }
  func.func @transform_8(%arg0: i32) -> (i32, i32, i32, i32) {
    %c0_i32 = arith.constant 0 : i32
    %c0_i32_0 = arith.constant 0 : i32
    %c0_i32_1 = arith.constant 0 : i32
    %c0_i32_2 = arith.constant 0 : i32
    return %arg0, %c0_i32, %c0_i32_0, %c0_i32_1 : i32, i32, i32, i32
  }
}

module attributes {stable_mosaic.version = 11 : i64} {
  func.func @kernel(%arg0: i32, %arg1: memref<1x10x10x32xf32, #tpu.memory_space<vmem>>, %arg2: memref<10x1xf32, #tpu.memory_space<vmem>>, %arg3: memref<32x64xf32, #tpu.memory_space<vmem>>, %arg4: memref<1x64xf32, #tpu.memory_space<vmem>>, %arg5: memref<3x3x64xf32, #tpu.memory_space<vmem>>, %arg6: memref<1x64xf32, #tpu.memory_space<vmem>>, %arg7: memref<64x32xf32, #tpu.memory_space<vmem>>, %arg8: memref<1x32xf32, #tpu.memory_space<vmem>>, %arg9: memref<1x8x8x32xf32, #tpu.memory_space<vmem>>) attributes {dimension_semantics = [#tpu.dimension_semantics<parallel>], iteration_bounds = array<i64: 2>, scalar_prefetch = 0 : i64, scratch_operands = 0 : i64, tpu.core_type = #tpu.core_type<tc>, window_params = [{transform_indices = @transform_0, window_bounds = array<i64: 1, 10, 10, 32>}, {pipeline_mode = #tpu.pipeline_mode<synchronous>, transform_indices = @transform_1, window_bounds = array<i64: 10, 1>}, {pipeline_mode = #tpu.pipeline_mode<synchronous>, transform_indices = @transform_2, window_bounds = array<i64: 32, 64>}, {pipeline_mode = #tpu.pipeline_mode<synchronous>, transform_indices = @transform_3, window_bounds = array<i64: 1, 64>}, {pipeline_mode = #tpu.pipeline_mode<synchronous>, transform_indices = @transform_4, window_bounds = array<i64: 3, 3, 64>}, {pipeline_mode = #tpu.pipeline_mode<synchronous>, transform_indices = @transform_5, window_bounds = array<i64: 1, 64>}, {pipeline_mode = #tpu.pipeline_mode<synchronous>, transform_indices = @transform_6, window_bounds = array<i64: 64, 32>}, {pipeline_mode = #tpu.pipeline_mode<synchronous>, transform_indices = @transform_7, window_bounds = array<i64: 1, 32>}, {transform_indices = @transform_8, window_bounds = array<i64: 1, 8, 8, 32>}]} {
    %c0 = arith.constant 0 : index
    %c0_0 = arith.constant 0 : index
    %c0_1 = arith.constant 0 : index
    %c0_2 = arith.constant 0 : index
    %0 = vector.load %arg1[%c0, %c0_0, %c0_1, %c0_2] : memref<1x10x10x32xf32, #tpu.memory_space<vmem>>, vector<1x10x10x32xf32>
    %1 = vector.shape_cast %0 : vector<1x10x10x32xf32> to vector<10x10x32xf32>
    %c0_3 = arith.constant 0 : index
    %c0_4 = arith.constant 0 : index
    %2 = vector.load %arg2[%c0_3, %c0_4] : memref<10x1xf32, #tpu.memory_space<vmem>>, vector<10x1xf32>
    %c0_5 = arith.constant 0 : index
    %c0_6 = arith.constant 0 : index
    %3 = vector.load %arg3[%c0_5, %c0_6] : memref<32x64xf32, #tpu.memory_space<vmem>>, vector<32x64xf32>
    %c0_7 = arith.constant 0 : index
    %c0_8 = arith.constant 0 : index
    %4 = vector.load %arg4[%c0_7, %c0_8] : memref<1x64xf32, #tpu.memory_space<vmem>>, vector<1x64xf32>
    %c0_9 = arith.constant 0 : index
    %c0_10 = arith.constant 0 : index
    %c0_11 = arith.constant 0 : index
    %5 = vector.load %arg5[%c0_9, %c0_10, %c0_11] : memref<3x3x64xf32, #tpu.memory_space<vmem>>, vector<3x3x64xf32>
    %c0_12 = arith.constant 0 : index
    %c0_13 = arith.constant 0 : index
    %6 = vector.load %arg6[%c0_12, %c0_13] : memref<1x64xf32, #tpu.memory_space<vmem>>, vector<1x64xf32>
    %c0_14 = arith.constant 0 : index
    %c0_15 = arith.constant 0 : index
    %7 = vector.load %arg7[%c0_14, %c0_15] : memref<64x32xf32, #tpu.memory_space<vmem>>, vector<64x32xf32>
    %c0_16 = arith.constant 0 : index
    %c0_17 = arith.constant 0 : index
    %8 = vector.load %arg8[%c0_16, %c0_17] : memref<1x32xf32, #tpu.memory_space<vmem>>, vector<1x32xf32>
    %cst = arith.constant 0.000000e+00 : f32
    %9 = vector.broadcast %cst : f32 to vector<10x64xf32>
    %10 = vector.extract_strided_slice %1 {offsets = [1, 0, 0], sizes = [1, 10, 32], strides = [1, 1, 1]} : vector<10x10x32xf32> to vector<1x10x32xf32>
    %11 = vector.shape_cast %10 : vector<1x10x32xf32> to vector<10x32xf32>
    %cst_18 = arith.constant dense<0.000000e+00> : vector<10x64xf32>
    %12 = tpu.matmul %11, %3, %cst_18 {dimension_numbers = #tpu.dot_dimension_numbers<[1], [0], [0], [1], [0, 0, 1, 1], [], []>} : vector<10x32xf32>, vector<32x64xf32>, vector<10x64xf32> -> vector<10x64xf32>
    %13 = vector.broadcast %4 : vector<1x64xf32> to vector<10x64xf32>
    %14 = arith.addf %12, %13 : vector<10x64xf32>
    %15 = vector.broadcast %2 : vector<10x1xf32> to vector<10x64xf32>
    %16 = arith.mulf %14, %15 : vector<10x64xf32>
    %17 = vector.extract_strided_slice %1 {offsets = [2, 0, 0], sizes = [1, 10, 32], strides = [1, 1, 1]} : vector<10x10x32xf32> to vector<1x10x32xf32>
    %18 = vector.shape_cast %17 : vector<1x10x32xf32> to vector<10x32xf32>
    %cst_19 = arith.constant dense<0.000000e+00> : vector<10x64xf32>
    %19 = tpu.matmul %18, %3, %cst_19 {dimension_numbers = #tpu.dot_dimension_numbers<[1], [0], [0], [1], [0, 0, 1, 1], [], []>} : vector<10x32xf32>, vector<32x64xf32>, vector<10x64xf32> -> vector<10x64xf32>
    %20 = vector.broadcast %4 : vector<1x64xf32> to vector<10x64xf32>
    %21 = arith.addf %19, %20 : vector<10x64xf32>
    %22 = vector.broadcast %2 : vector<10x1xf32> to vector<10x64xf32>
    %23 = arith.mulf %21, %22 : vector<10x64xf32>
    %24 = vector.extract_strided_slice %1 {offsets = [3, 0, 0], sizes = [1, 10, 32], strides = [1, 1, 1]} : vector<10x10x32xf32> to vector<1x10x32xf32>
    %25 = vector.shape_cast %24 : vector<1x10x32xf32> to vector<10x32xf32>
    %cst_20 = arith.constant dense<0.000000e+00> : vector<10x64xf32>
    %26 = tpu.matmul %25, %3, %cst_20 {dimension_numbers = #tpu.dot_dimension_numbers<[1], [0], [0], [1], [0, 0, 1, 1], [], []>} : vector<10x32xf32>, vector<32x64xf32>, vector<10x64xf32> -> vector<10x64xf32>
    %27 = vector.broadcast %4 : vector<1x64xf32> to vector<10x64xf32>
    %28 = arith.addf %26, %27 : vector<10x64xf32>
    %29 = vector.broadcast %2 : vector<10x1xf32> to vector<10x64xf32>
    %30 = arith.mulf %28, %29 : vector<10x64xf32>
    %31 = vector.extract_strided_slice %1 {offsets = [4, 0, 0], sizes = [1, 10, 32], strides = [1, 1, 1]} : vector<10x10x32xf32> to vector<1x10x32xf32>
    %32 = vector.shape_cast %31 : vector<1x10x32xf32> to vector<10x32xf32>
    %cst_21 = arith.constant dense<0.000000e+00> : vector<10x64xf32>
    %33 = tpu.matmul %32, %3, %cst_21 {dimension_numbers = #tpu.dot_dimension_numbers<[1], [0], [0], [1], [0, 0, 1, 1], [], []>} : vector<10x32xf32>, vector<32x64xf32>, vector<10x64xf32> -> vector<10x64xf32>
    %34 = vector.broadcast %4 : vector<1x64xf32> to vector<10x64xf32>
    %35 = arith.addf %33, %34 : vector<10x64xf32>
    %36 = vector.broadcast %2 : vector<10x1xf32> to vector<10x64xf32>
    %37 = arith.mulf %35, %36 : vector<10x64xf32>
    %38 = vector.extract_strided_slice %1 {offsets = [5, 0, 0], sizes = [1, 10, 32], strides = [1, 1, 1]} : vector<10x10x32xf32> to vector<1x10x32xf32>
    %39 = vector.shape_cast %38 : vector<1x10x32xf32> to vector<10x32xf32>
    %cst_22 = arith.constant dense<0.000000e+00> : vector<10x64xf32>
    %40 = tpu.matmul %39, %3, %cst_22 {dimension_numbers = #tpu.dot_dimension_numbers<[1], [0], [0], [1], [0, 0, 1, 1], [], []>} : vector<10x32xf32>, vector<32x64xf32>, vector<10x64xf32> -> vector<10x64xf32>
    %41 = vector.broadcast %4 : vector<1x64xf32> to vector<10x64xf32>
    %42 = arith.addf %40, %41 : vector<10x64xf32>
    %43 = vector.broadcast %2 : vector<10x1xf32> to vector<10x64xf32>
    %44 = arith.mulf %42, %43 : vector<10x64xf32>
    %45 = vector.extract_strided_slice %1 {offsets = [6, 0, 0], sizes = [1, 10, 32], strides = [1, 1, 1]} : vector<10x10x32xf32> to vector<1x10x32xf32>
    %46 = vector.shape_cast %45 : vector<1x10x32xf32> to vector<10x32xf32>
    %cst_23 = arith.constant dense<0.000000e+00> : vector<10x64xf32>
    %47 = tpu.matmul %46, %3, %cst_23 {dimension_numbers = #tpu.dot_dimension_numbers<[1], [0], [0], [1], [0, 0, 1, 1], [], []>} : vector<10x32xf32>, vector<32x64xf32>, vector<10x64xf32> -> vector<10x64xf32>
    %48 = vector.broadcast %4 : vector<1x64xf32> to vector<10x64xf32>
    %49 = arith.addf %47, %48 : vector<10x64xf32>
    %50 = vector.broadcast %2 : vector<10x1xf32> to vector<10x64xf32>
    %51 = arith.mulf %49, %50 : vector<10x64xf32>
    %52 = vector.extract_strided_slice %1 {offsets = [7, 0, 0], sizes = [1, 10, 32], strides = [1, 1, 1]} : vector<10x10x32xf32> to vector<1x10x32xf32>
    %53 = vector.shape_cast %52 : vector<1x10x32xf32> to vector<10x32xf32>
    %cst_24 = arith.constant dense<0.000000e+00> : vector<10x64xf32>
    %54 = tpu.matmul %53, %3, %cst_24 {dimension_numbers = #tpu.dot_dimension_numbers<[1], [0], [0], [1], [0, 0, 1, 1], [], []>} : vector<10x32xf32>, vector<32x64xf32>, vector<10x64xf32> -> vector<10x64xf32>
    %55 = vector.broadcast %4 : vector<1x64xf32> to vector<10x64xf32>
    %56 = arith.addf %54, %55 : vector<10x64xf32>
    %57 = vector.broadcast %2 : vector<10x1xf32> to vector<10x64xf32>
    %58 = arith.mulf %56, %57 : vector<10x64xf32>
    %59 = vector.extract_strided_slice %1 {offsets = [8, 0, 0], sizes = [1, 10, 32], strides = [1, 1, 1]} : vector<10x10x32xf32> to vector<1x10x32xf32>
    %60 = vector.shape_cast %59 : vector<1x10x32xf32> to vector<10x32xf32>
    %cst_25 = arith.constant dense<0.000000e+00> : vector<10x64xf32>
    %61 = tpu.matmul %60, %3, %cst_25 {dimension_numbers = #tpu.dot_dimension_numbers<[1], [0], [0], [1], [0, 0, 1, 1], [], []>} : vector<10x32xf32>, vector<32x64xf32>, vector<10x64xf32> -> vector<10x64xf32>
    %62 = vector.broadcast %4 : vector<1x64xf32> to vector<10x64xf32>
    %63 = arith.addf %61, %62 : vector<10x64xf32>
    %64 = vector.broadcast %2 : vector<10x1xf32> to vector<10x64xf32>
    %65 = arith.mulf %63, %64 : vector<10x64xf32>
    %cst_26 = arith.constant 0.000000e+00 : f32
    %66 = vector.broadcast %cst_26 : f32 to vector<8x64xf32>
    %67 = vector.extract_strided_slice %9 {offsets = [0, 0], sizes = [8, 64], strides = [1, 1]} : vector<10x64xf32> to vector<8x64xf32>
    %68 = vector.extract_strided_slice %5 {offsets = [0, 0, 0], sizes = [1, 1, 64], strides = [1, 1, 1]} : vector<3x3x64xf32> to vector<1x1x64xf32>
    %69 = vector.shape_cast %68 : vector<1x1x64xf32> to vector<64xf32>
    %70 = vector.shape_cast %69 : vector<64xf32> to vector<1x64xf32>
    %71 = vector.broadcast %70 : vector<1x64xf32> to vector<8x64xf32>
    %72 = arith.mulf %67, %71 : vector<8x64xf32>
    %73 = arith.addf %66, %72 : vector<8x64xf32>
    %74 = vector.extract_strided_slice %9 {offsets = [1, 0], sizes = [8, 64], strides = [1, 1]} : vector<10x64xf32> to vector<8x64xf32>
    %75 = vector.extract_strided_slice %5 {offsets = [0, 1, 0], sizes = [1, 1, 64], strides = [1, 1, 1]} : vector<3x3x64xf32> to vector<1x1x64xf32>
    %76 = vector.shape_cast %75 : vector<1x1x64xf32> to vector<64xf32>
    %77 = vector.shape_cast %76 : vector<64xf32> to vector<1x64xf32>
    %78 = vector.broadcast %77 : vector<1x64xf32> to vector<8x64xf32>
    %79 = arith.mulf %74, %78 : vector<8x64xf32>
    %80 = arith.addf %73, %79 : vector<8x64xf32>
    %81 = vector.extract_strided_slice %9 {offsets = [2, 0], sizes = [8, 64], strides = [1, 1]} : vector<10x64xf32> to vector<8x64xf32>
    %82 = vector.extract_strided_slice %5 {offsets = [0, 2, 0], sizes = [1, 1, 64], strides = [1, 1, 1]} : vector<3x3x64xf32> to vector<1x1x64xf32>
    %83 = vector.shape_cast %82 : vector<1x1x64xf32> to vector<64xf32>
    %84 = vector.shape_cast %83 : vector<64xf32> to vector<1x64xf32>
    %85 = vector.broadcast %84 : vector<1x64xf32> to vector<8x64xf32>
    %86 = arith.mulf %81, %85 : vector<8x64xf32>
    %87 = arith.addf %80, %86 : vector<8x64xf32>
    %88 = vector.extract_strided_slice %16 {offsets = [0, 0], sizes = [8, 64], strides = [1, 1]} : vector<10x64xf32> to vector<8x64xf32>
    %89 = vector.extract_strided_slice %5 {offsets = [1, 0, 0], sizes = [1, 1, 64], strides = [1, 1, 1]} : vector<3x3x64xf32> to vector<1x1x64xf32>
    %90 = vector.shape_cast %89 : vector<1x1x64xf32> to vector<64xf32>
    %91 = vector.shape_cast %90 : vector<64xf32> to vector<1x64xf32>
    %92 = vector.broadcast %91 : vector<1x64xf32> to vector<8x64xf32>
    %93 = arith.mulf %88, %92 : vector<8x64xf32>
    %94 = arith.addf %87, %93 : vector<8x64xf32>
    %95 = vector.extract_strided_slice %16 {offsets = [1, 0], sizes = [8, 64], strides = [1, 1]} : vector<10x64xf32> to vector<8x64xf32>
    %96 = vector.extract_strided_slice %5 {offsets = [1, 1, 0], sizes = [1, 1, 64], strides = [1, 1, 1]} : vector<3x3x64xf32> to vector<1x1x64xf32>
    %97 = vector.shape_cast %96 : vector<1x1x64xf32> to vector<64xf32>
    %98 = vector.shape_cast %97 : vector<64xf32> to vector<1x64xf32>
    %99 = vector.broadcast %98 : vector<1x64xf32> to vector<8x64xf32>
    %100 = arith.mulf %95, %99 : vector<8x64xf32>
    %101 = arith.addf %94, %100 : vector<8x64xf32>
    %102 = vector.extract_strided_slice %16 {offsets = [2, 0], sizes = [8, 64], strides = [1, 1]} : vector<10x64xf32> to vector<8x64xf32>
    %103 = vector.extract_strided_slice %5 {offsets = [1, 2, 0], sizes = [1, 1, 64], strides = [1, 1, 1]} : vector<3x3x64xf32> to vector<1x1x64xf32>
    %104 = vector.shape_cast %103 : vector<1x1x64xf32> to vector<64xf32>
    %105 = vector.shape_cast %104 : vector<64xf32> to vector<1x64xf32>
    %106 = vector.broadcast %105 : vector<1x64xf32> to vector<8x64xf32>
    %107 = arith.mulf %102, %106 : vector<8x64xf32>
    %108 = arith.addf %101, %107 : vector<8x64xf32>
    %109 = vector.extract_strided_slice %23 {offsets = [0, 0], sizes = [8, 64], strides = [1, 1]} : vector<10x64xf32> to vector<8x64xf32>
    %110 = vector.extract_strided_slice %5 {offsets = [2, 0, 0], sizes = [1, 1, 64], strides = [1, 1, 1]} : vector<3x3x64xf32> to vector<1x1x64xf32>
    %111 = vector.shape_cast %110 : vector<1x1x64xf32> to vector<64xf32>
    %112 = vector.shape_cast %111 : vector<64xf32> to vector<1x64xf32>
    %113 = vector.broadcast %112 : vector<1x64xf32> to vector<8x64xf32>
    %114 = arith.mulf %109, %113 : vector<8x64xf32>
    %115 = arith.addf %108, %114 : vector<8x64xf32>
    %116 = vector.extract_strided_slice %23 {offsets = [1, 0], sizes = [8, 64], strides = [1, 1]} : vector<10x64xf32> to vector<8x64xf32>
    %117 = vector.extract_strided_slice %5 {offsets = [2, 1, 0], sizes = [1, 1, 64], strides = [1, 1, 1]} : vector<3x3x64xf32> to vector<1x1x64xf32>
    %118 = vector.shape_cast %117 : vector<1x1x64xf32> to vector<64xf32>
    %119 = vector.shape_cast %118 : vector<64xf32> to vector<1x64xf32>
    %120 = vector.broadcast %119 : vector<1x64xf32> to vector<8x64xf32>
    %121 = arith.mulf %116, %120 : vector<8x64xf32>
    %122 = arith.addf %115, %121 : vector<8x64xf32>
    %123 = vector.extract_strided_slice %23 {offsets = [2, 0], sizes = [8, 64], strides = [1, 1]} : vector<10x64xf32> to vector<8x64xf32>
    %124 = vector.extract_strided_slice %5 {offsets = [2, 2, 0], sizes = [1, 1, 64], strides = [1, 1, 1]} : vector<3x3x64xf32> to vector<1x1x64xf32>
    %125 = vector.shape_cast %124 : vector<1x1x64xf32> to vector<64xf32>
    %126 = vector.shape_cast %125 : vector<64xf32> to vector<1x64xf32>
    %127 = vector.broadcast %126 : vector<1x64xf32> to vector<8x64xf32>
    %128 = arith.mulf %123, %127 : vector<8x64xf32>
    %129 = arith.addf %122, %128 : vector<8x64xf32>
    %130 = vector.broadcast %6 : vector<1x64xf32> to vector<8x64xf32>
    %131 = arith.addf %129, %130 : vector<8x64xf32>
    %cst_27 = arith.constant 0.000000e+00 : f32
    %132 = vector.broadcast %cst_27 : f32 to vector<8x64xf32>
    %133 = arith.maximumf %131, %132 : vector<8x64xf32>
    %134 = vector.extract_strided_slice %1 {offsets = [1, 1, 0], sizes = [1, 8, 32], strides = [1, 1, 1]} : vector<10x10x32xf32> to vector<1x8x32xf32>
    %135 = vector.shape_cast %134 : vector<1x8x32xf32> to vector<8x32xf32>
    %cst_28 = arith.constant dense<0.000000e+00> : vector<8x32xf32>
    %136 = tpu.matmul %133, %7, %cst_28 {dimension_numbers = #tpu.dot_dimension_numbers<[1], [0], [0], [1], [0, 0, 1, 1], [], []>} : vector<8x64xf32>, vector<64x32xf32>, vector<8x32xf32> -> vector<8x32xf32>
    %137 = arith.addf %135, %136 : vector<8x32xf32>
    %138 = vector.broadcast %8 : vector<1x32xf32> to vector<8x32xf32>
    %139 = arith.addf %137, %138 : vector<8x32xf32>
    %c0_29 = arith.constant 0 : index
    %c0_30 = arith.constant 0 : index
    %c0_31 = arith.constant 0 : index
    %c0_32 = arith.constant 0 : index
    %140 = vector.load %arg9[%c0_29, %c0_30, %c0_31, %c0_32] : memref<1x8x8x32xf32, #tpu.memory_space<vmem>>, vector<1x1x8x32xf32>
    %141 = vector.shape_cast %140 : vector<1x1x8x32xf32> to vector<8x32xf32>
    %142 = vector.shape_cast %139 : vector<8x32xf32> to vector<1x1x8x32xf32>
    tpu.vector_store %arg9[%c0_29, %c0_30, %c0_31, %c0_32], %142 {strides = array<i32>} : memref<1x8x8x32xf32, #tpu.memory_space<vmem>>, vector<1x1x8x32xf32>,
    %cst_33 = arith.constant 0.000000e+00 : f32
    %143 = vector.broadcast %cst_33 : f32 to vector<8x64xf32>
    %144 = vector.extract_strided_slice %16 {offsets = [0, 0], sizes = [8, 64], strides = [1, 1]} : vector<10x64xf32> to vector<8x64xf32>
    %145 = vector.extract_strided_slice %5 {offsets = [0, 0, 0], sizes = [1, 1, 64], strides = [1, 1, 1]} : vector<3x3x64xf32> to vector<1x1x64xf32>
    %146 = vector.shape_cast %145 : vector<1x1x64xf32> to vector<64xf32>
    %147 = vector.shape_cast %146 : vector<64xf32> to vector<1x64xf32>
    %148 = vector.broadcast %147 : vector<1x64xf32> to vector<8x64xf32>
    %149 = arith.mulf %144, %148 : vector<8x64xf32>
    %150 = arith.addf %143, %149 : vector<8x64xf32>
    %151 = vector.extract_strided_slice %16 {offsets = [1, 0], sizes = [8, 64], strides = [1, 1]} : vector<10x64xf32> to vector<8x64xf32>
    %152 = vector.extract_strided_slice %5 {offsets = [0, 1, 0], sizes = [1, 1, 64], strides = [1, 1, 1]} : vector<3x3x64xf32> to vector<1x1x64xf32>
    %153 = vector.shape_cast %152 : vector<1x1x64xf32> to vector<64xf32>
    %154 = vector.shape_cast %153 : vector<64xf32> to vector<1x64xf32>
    %155 = vector.broadcast %154 : vector<1x64xf32> to vector<8x64xf32>
    %156 = arith.mulf %151, %155 : vector<8x64xf32>
    %157 = arith.addf %150, %156 : vector<8x64xf32>
    %158 = vector.extract_strided_slice %16 {offsets = [2, 0], sizes = [8, 64], strides = [1, 1]} : vector<10x64xf32> to vector<8x64xf32>
    %159 = vector.extract_strided_slice %5 {offsets = [0, 2, 0], sizes = [1, 1, 64], strides = [1, 1, 1]} : vector<3x3x64xf32> to vector<1x1x64xf32>
    %160 = vector.shape_cast %159 : vector<1x1x64xf32> to vector<64xf32>
    %161 = vector.shape_cast %160 : vector<64xf32> to vector<1x64xf32>
    %162 = vector.broadcast %161 : vector<1x64xf32> to vector<8x64xf32>
    %163 = arith.mulf %158, %162 : vector<8x64xf32>
    %164 = arith.addf %157, %163 : vector<8x64xf32>
    %165 = vector.extract_strided_slice %23 {offsets = [0, 0], sizes = [8, 64], strides = [1, 1]} : vector<10x64xf32> to vector<8x64xf32>
    %166 = vector.extract_strided_slice %5 {offsets = [1, 0, 0], sizes = [1, 1, 64], strides = [1, 1, 1]} : vector<3x3x64xf32> to vector<1x1x64xf32>
    %167 = vector.shape_cast %166 : vector<1x1x64xf32> to vector<64xf32>
    %168 = vector.shape_cast %167 : vector<64xf32> to vector<1x64xf32>
    %169 = vector.broadcast %168 : vector<1x64xf32> to vector<8x64xf32>
    %170 = arith.mulf %165, %169 : vector<8x64xf32>
    %171 = arith.addf %164, %170 : vector<8x64xf32>
    %172 = vector.extract_strided_slice %23 {offsets = [1, 0], sizes = [8, 64], strides = [1, 1]} : vector<10x64xf32> to vector<8x64xf32>
    %173 = vector.extract_strided_slice %5 {offsets = [1, 1, 0], sizes = [1, 1, 64], strides = [1, 1, 1]} : vector<3x3x64xf32> to vector<1x1x64xf32>
    %174 = vector.shape_cast %173 : vector<1x1x64xf32> to vector<64xf32>
    %175 = vector.shape_cast %174 : vector<64xf32> to vector<1x64xf32>
    %176 = vector.broadcast %175 : vector<1x64xf32> to vector<8x64xf32>
    %177 = arith.mulf %172, %176 : vector<8x64xf32>
    %178 = arith.addf %171, %177 : vector<8x64xf32>
    %179 = vector.extract_strided_slice %23 {offsets = [2, 0], sizes = [8, 64], strides = [1, 1]} : vector<10x64xf32> to vector<8x64xf32>
    %180 = vector.extract_strided_slice %5 {offsets = [1, 2, 0], sizes = [1, 1, 64], strides = [1, 1, 1]} : vector<3x3x64xf32> to vector<1x1x64xf32>
    %181 = vector.shape_cast %180 : vector<1x1x64xf32> to vector<64xf32>
    %182 = vector.shape_cast %181 : vector<64xf32> to vector<1x64xf32>
    %183 = vector.broadcast %182 : vector<1x64xf32> to vector<8x64xf32>
    %184 = arith.mulf %179, %183 : vector<8x64xf32>
    %185 = arith.addf %178, %184 : vector<8x64xf32>
    %186 = vector.extract_strided_slice %30 {offsets = [0, 0], sizes = [8, 64], strides = [1, 1]} : vector<10x64xf32> to vector<8x64xf32>
    %187 = vector.extract_strided_slice %5 {offsets = [2, 0, 0], sizes = [1, 1, 64], strides = [1, 1, 1]} : vector<3x3x64xf32> to vector<1x1x64xf32>
    %188 = vector.shape_cast %187 : vector<1x1x64xf32> to vector<64xf32>
    %189 = vector.shape_cast %188 : vector<64xf32> to vector<1x64xf32>
    %190 = vector.broadcast %189 : vector<1x64xf32> to vector<8x64xf32>
    %191 = arith.mulf %186, %190 : vector<8x64xf32>
    %192 = arith.addf %185, %191 : vector<8x64xf32>
    %193 = vector.extract_strided_slice %30 {offsets = [1, 0], sizes = [8, 64], strides = [1, 1]} : vector<10x64xf32> to vector<8x64xf32>
    %194 = vector.extract_strided_slice %5 {offsets = [2, 1, 0], sizes = [1, 1, 64], strides = [1, 1, 1]} : vector<3x3x64xf32> to vector<1x1x64xf32>
    %195 = vector.shape_cast %194 : vector<1x1x64xf32> to vector<64xf32>
    %196 = vector.shape_cast %195 : vector<64xf32> to vector<1x64xf32>
    %197 = vector.broadcast %196 : vector<1x64xf32> to vector<8x64xf32>
    %198 = arith.mulf %193, %197 : vector<8x64xf32>
    %199 = arith.addf %192, %198 : vector<8x64xf32>
    %200 = vector.extract_strided_slice %30 {offsets = [2, 0], sizes = [8, 64], strides = [1, 1]} : vector<10x64xf32> to vector<8x64xf32>
    %201 = vector.extract_strided_slice %5 {offsets = [2, 2, 0], sizes = [1, 1, 64], strides = [1, 1, 1]} : vector<3x3x64xf32> to vector<1x1x64xf32>
    %202 = vector.shape_cast %201 : vector<1x1x64xf32> to vector<64xf32>
    %203 = vector.shape_cast %202 : vector<64xf32> to vector<1x64xf32>
    %204 = vector.broadcast %203 : vector<1x64xf32> to vector<8x64xf32>
    %205 = arith.mulf %200, %204 : vector<8x64xf32>
    %206 = arith.addf %199, %205 : vector<8x64xf32>
    %207 = vector.broadcast %6 : vector<1x64xf32> to vector<8x64xf32>
    %208 = arith.addf %206, %207 : vector<8x64xf32>
    %cst_34 = arith.constant 0.000000e+00 : f32
    %209 = vector.broadcast %cst_34 : f32 to vector<8x64xf32>
    %210 = arith.maximumf %208, %209 : vector<8x64xf32>
    %211 = vector.extract_strided_slice %1 {offsets = [2, 1, 0], sizes = [1, 8, 32], strides = [1, 1, 1]} : vector<10x10x32xf32> to vector<1x8x32xf32>
    %212 = vector.shape_cast %211 : vector<1x8x32xf32> to vector<8x32xf32>
    %cst_35 = arith.constant dense<0.000000e+00> : vector<8x32xf32>
    %213 = tpu.matmul %210, %7, %cst_35 {dimension_numbers = #tpu.dot_dimension_numbers<[1], [0], [0], [1], [0, 0, 1, 1], [], []>} : vector<8x64xf32>, vector<64x32xf32>, vector<8x32xf32> -> vector<8x32xf32>
    %214 = arith.addf %212, %213 : vector<8x32xf32>
    %215 = vector.broadcast %8 : vector<1x32xf32> to vector<8x32xf32>
    %216 = arith.addf %214, %215 : vector<8x32xf32>
    %c0_36 = arith.constant 0 : index
    %c1 = arith.constant 1 : index
    %c0_37 = arith.constant 0 : index
    %c0_38 = arith.constant 0 : index
    %217 = vector.load %arg9[%c0_36, %c1, %c0_37, %c0_38] : memref<1x8x8x32xf32, #tpu.memory_space<vmem>>, vector<1x1x8x32xf32>
    %218 = vector.shape_cast %217 : vector<1x1x8x32xf32> to vector<8x32xf32>
    %219 = vector.shape_cast %216 : vector<8x32xf32> to vector<1x1x8x32xf32>
    tpu.vector_store %arg9[%c0_36, %c1, %c0_37, %c0_38], %219 {strides = array<i32>} : memref<1x8x8x32xf32, #tpu.memory_space<vmem>>, vector<1x1x8x32xf32>,
    %cst_39 = arith.constant 0.000000e+00 : f32
    %220 = vector.broadcast %cst_39 : f32 to vector<8x64xf32>
    %221 = vector.extract_strided_slice %23 {offsets = [0, 0], sizes = [8, 64], strides = [1, 1]} : vector<10x64xf32> to vector<8x64xf32>
    %222 = vector.extract_strided_slice %5 {offsets = [0, 0, 0], sizes = [1, 1, 64], strides = [1, 1, 1]} : vector<3x3x64xf32> to vector<1x1x64xf32>
    %223 = vector.shape_cast %222 : vector<1x1x64xf32> to vector<64xf32>
    %224 = vector.shape_cast %223 : vector<64xf32> to vector<1x64xf32>
    %225 = vector.broadcast %224 : vector<1x64xf32> to vector<8x64xf32>
    %226 = arith.mulf %221, %225 : vector<8x64xf32>
    %227 = arith.addf %220, %226 : vector<8x64xf32>
    %228 = vector.extract_strided_slice %23 {offsets = [1, 0], sizes = [8, 64], strides = [1, 1]} : vector<10x64xf32> to vector<8x64xf32>
    %229 = vector.extract_strided_slice %5 {offsets = [0, 1, 0], sizes = [1, 1, 64], strides = [1, 1, 1]} : vector<3x3x64xf32> to vector<1x1x64xf32>
    %230 = vector.shape_cast %229 : vector<1x1x64xf32> to vector<64xf32>
    %231 = vector.shape_cast %230 : vector<64xf32> to vector<1x64xf32>
    %232 = vector.broadcast %231 : vector<1x64xf32> to vector<8x64xf32>
    %233 = arith.mulf %228, %232 : vector<8x64xf32>
    %234 = arith.addf %227, %233 : vector<8x64xf32>
    %235 = vector.extract_strided_slice %23 {offsets = [2, 0], sizes = [8, 64], strides = [1, 1]} : vector<10x64xf32> to vector<8x64xf32>
    %236 = vector.extract_strided_slice %5 {offsets = [0, 2, 0], sizes = [1, 1, 64], strides = [1, 1, 1]} : vector<3x3x64xf32> to vector<1x1x64xf32>
    %237 = vector.shape_cast %236 : vector<1x1x64xf32> to vector<64xf32>
    %238 = vector.shape_cast %237 : vector<64xf32> to vector<1x64xf32>
    %239 = vector.broadcast %238 : vector<1x64xf32> to vector<8x64xf32>
    %240 = arith.mulf %235, %239 : vector<8x64xf32>
    %241 = arith.addf %234, %240 : vector<8x64xf32>
    %242 = vector.extract_strided_slice %30 {offsets = [0, 0], sizes = [8, 64], strides = [1, 1]} : vector<10x64xf32> to vector<8x64xf32>
    %243 = vector.extract_strided_slice %5 {offsets = [1, 0, 0], sizes = [1, 1, 64], strides = [1, 1, 1]} : vector<3x3x64xf32> to vector<1x1x64xf32>
    %244 = vector.shape_cast %243 : vector<1x1x64xf32> to vector<64xf32>
    %245 = vector.shape_cast %244 : vector<64xf32> to vector<1x64xf32>
    %246 = vector.broadcast %245 : vector<1x64xf32> to vector<8x64xf32>
    %247 = arith.mulf %242, %246 : vector<8x64xf32>
    %248 = arith.addf %241, %247 : vector<8x64xf32>
    %249 = vector.extract_strided_slice %30 {offsets = [1, 0], sizes = [8, 64], strides = [1, 1]} : vector<10x64xf32> to vector<8x64xf32>
    %250 = vector.extract_strided_slice %5 {offsets = [1, 1, 0], sizes = [1, 1, 64], strides = [1, 1, 1]} : vector<3x3x64xf32> to vector<1x1x64xf32>
    %251 = vector.shape_cast %250 : vector<1x1x64xf32> to vector<64xf32>
    %252 = vector.shape_cast %251 : vector<64xf32> to vector<1x64xf32>
    %253 = vector.broadcast %252 : vector<1x64xf32> to vector<8x64xf32>
    %254 = arith.mulf %249, %253 : vector<8x64xf32>
    %255 = arith.addf %248, %254 : vector<8x64xf32>
    %256 = vector.extract_strided_slice %30 {offsets = [2, 0], sizes = [8, 64], strides = [1, 1]} : vector<10x64xf32> to vector<8x64xf32>
    %257 = vector.extract_strided_slice %5 {offsets = [1, 2, 0], sizes = [1, 1, 64], strides = [1, 1, 1]} : vector<3x3x64xf32> to vector<1x1x64xf32>
    %258 = vector.shape_cast %257 : vector<1x1x64xf32> to vector<64xf32>
    %259 = vector.shape_cast %258 : vector<64xf32> to vector<1x64xf32>
    %260 = vector.broadcast %259 : vector<1x64xf32> to vector<8x64xf32>
    %261 = arith.mulf %256, %260 : vector<8x64xf32>
    %262 = arith.addf %255, %261 : vector<8x64xf32>
    %263 = vector.extract_strided_slice %37 {offsets = [0, 0], sizes = [8, 64], strides = [1, 1]} : vector<10x64xf32> to vector<8x64xf32>
    %264 = vector.extract_strided_slice %5 {offsets = [2, 0, 0], sizes = [1, 1, 64], strides = [1, 1, 1]} : vector<3x3x64xf32> to vector<1x1x64xf32>
    %265 = vector.shape_cast %264 : vector<1x1x64xf32> to vector<64xf32>
    %266 = vector.shape_cast %265 : vector<64xf32> to vector<1x64xf32>
    %267 = vector.broadcast %266 : vector<1x64xf32> to vector<8x64xf32>
    %268 = arith.mulf %263, %267 : vector<8x64xf32>
    %269 = arith.addf %262, %268 : vector<8x64xf32>
    %270 = vector.extract_strided_slice %37 {offsets = [1, 0], sizes = [8, 64], strides = [1, 1]} : vector<10x64xf32> to vector<8x64xf32>
    %271 = vector.extract_strided_slice %5 {offsets = [2, 1, 0], sizes = [1, 1, 64], strides = [1, 1, 1]} : vector<3x3x64xf32> to vector<1x1x64xf32>
    %272 = vector.shape_cast %271 : vector<1x1x64xf32> to vector<64xf32>
    %273 = vector.shape_cast %272 : vector<64xf32> to vector<1x64xf32>
    %274 = vector.broadcast %273 : vector<1x64xf32> to vector<8x64xf32>
    %275 = arith.mulf %270, %274 : vector<8x64xf32>
    %276 = arith.addf %269, %275 : vector<8x64xf32>
    %277 = vector.extract_strided_slice %37 {offsets = [2, 0], sizes = [8, 64], strides = [1, 1]} : vector<10x64xf32> to vector<8x64xf32>
    %278 = vector.extract_strided_slice %5 {offsets = [2, 2, 0], sizes = [1, 1, 64], strides = [1, 1, 1]} : vector<3x3x64xf32> to vector<1x1x64xf32>
    %279 = vector.shape_cast %278 : vector<1x1x64xf32> to vector<64xf32>
    %280 = vector.shape_cast %279 : vector<64xf32> to vector<1x64xf32>
    %281 = vector.broadcast %280 : vector<1x64xf32> to vector<8x64xf32>
    %282 = arith.mulf %277, %281 : vector<8x64xf32>
    %283 = arith.addf %276, %282 : vector<8x64xf32>
    %284 = vector.broadcast %6 : vector<1x64xf32> to vector<8x64xf32>
    %285 = arith.addf %283, %284 : vector<8x64xf32>
    %cst_40 = arith.constant 0.000000e+00 : f32
    %286 = vector.broadcast %cst_40 : f32 to vector<8x64xf32>
    %287 = arith.maximumf %285, %286 : vector<8x64xf32>
    %288 = vector.extract_strided_slice %1 {offsets = [3, 1, 0], sizes = [1, 8, 32], strides = [1, 1, 1]} : vector<10x10x32xf32> to vector<1x8x32xf32>
    %289 = vector.shape_cast %288 : vector<1x8x32xf32> to vector<8x32xf32>
    %cst_41 = arith.constant dense<0.000000e+00> : vector<8x32xf32>
    %290 = tpu.matmul %287, %7, %cst_41 {dimension_numbers = #tpu.dot_dimension_numbers<[1], [0], [0], [1], [0, 0, 1, 1], [], []>} : vector<8x64xf32>, vector<64x32xf32>, vector<8x32xf32> -> vector<8x32xf32>
    %291 = arith.addf %289, %290 : vector<8x32xf32>
    %292 = vector.broadcast %8 : vector<1x32xf32> to vector<8x32xf32>
    %293 = arith.addf %291, %292 : vector<8x32xf32>
    %c0_42 = arith.constant 0 : index
    %c2 = arith.constant 2 : index
    %c0_43 = arith.constant 0 : index
    %c0_44 = arith.constant 0 : index
    %294 = vector.load %arg9[%c0_42, %c2, %c0_43, %c0_44] : memref<1x8x8x32xf32, #tpu.memory_space<vmem>>, vector<1x1x8x32xf32>
    %295 = vector.shape_cast %294 : vector<1x1x8x32xf32> to vector<8x32xf32>
    %296 = vector.shape_cast %293 : vector<8x32xf32> to vector<1x1x8x32xf32>
    tpu.vector_store %arg9[%c0_42, %c2, %c0_43, %c0_44], %296 {strides = array<i32>} : memref<1x8x8x32xf32, #tpu.memory_space<vmem>>, vector<1x1x8x32xf32>,
    %cst_45 = arith.constant 0.000000e+00 : f32
    %297 = vector.broadcast %cst_45 : f32 to vector<8x64xf32>
    %298 = vector.extract_strided_slice %30 {offsets = [0, 0], sizes = [8, 64], strides = [1, 1]} : vector<10x64xf32> to vector<8x64xf32>
    %299 = vector.extract_strided_slice %5 {offsets = [0, 0, 0], sizes = [1, 1, 64], strides = [1, 1, 1]} : vector<3x3x64xf32> to vector<1x1x64xf32>
    %300 = vector.shape_cast %299 : vector<1x1x64xf32> to vector<64xf32>
    %301 = vector.shape_cast %300 : vector<64xf32> to vector<1x64xf32>
    %302 = vector.broadcast %301 : vector<1x64xf32> to vector<8x64xf32>
    %303 = arith.mulf %298, %302 : vector<8x64xf32>
    %304 = arith.addf %297, %303 : vector<8x64xf32>
    %305 = vector.extract_strided_slice %30 {offsets = [1, 0], sizes = [8, 64], strides = [1, 1]} : vector<10x64xf32> to vector<8x64xf32>
    %306 = vector.extract_strided_slice %5 {offsets = [0, 1, 0], sizes = [1, 1, 64], strides = [1, 1, 1]} : vector<3x3x64xf32> to vector<1x1x64xf32>
    %307 = vector.shape_cast %306 : vector<1x1x64xf32> to vector<64xf32>
    %308 = vector.shape_cast %307 : vector<64xf32> to vector<1x64xf32>
    %309 = vector.broadcast %308 : vector<1x64xf32> to vector<8x64xf32>
    %310 = arith.mulf %305, %309 : vector<8x64xf32>
    %311 = arith.addf %304, %310 : vector<8x64xf32>
    %312 = vector.extract_strided_slice %30 {offsets = [2, 0], sizes = [8, 64], strides = [1, 1]} : vector<10x64xf32> to vector<8x64xf32>
    %313 = vector.extract_strided_slice %5 {offsets = [0, 2, 0], sizes = [1, 1, 64], strides = [1, 1, 1]} : vector<3x3x64xf32> to vector<1x1x64xf32>
    %314 = vector.shape_cast %313 : vector<1x1x64xf32> to vector<64xf32>
    %315 = vector.shape_cast %314 : vector<64xf32> to vector<1x64xf32>
    %316 = vector.broadcast %315 : vector<1x64xf32> to vector<8x64xf32>
    %317 = arith.mulf %312, %316 : vector<8x64xf32>
    %318 = arith.addf %311, %317 : vector<8x64xf32>
    %319 = vector.extract_strided_slice %37 {offsets = [0, 0], sizes = [8, 64], strides = [1, 1]} : vector<10x64xf32> to vector<8x64xf32>
    %320 = vector.extract_strided_slice %5 {offsets = [1, 0, 0], sizes = [1, 1, 64], strides = [1, 1, 1]} : vector<3x3x64xf32> to vector<1x1x64xf32>
    %321 = vector.shape_cast %320 : vector<1x1x64xf32> to vector<64xf32>
    %322 = vector.shape_cast %321 : vector<64xf32> to vector<1x64xf32>
    %323 = vector.broadcast %322 : vector<1x64xf32> to vector<8x64xf32>
    %324 = arith.mulf %319, %323 : vector<8x64xf32>
    %325 = arith.addf %318, %324 : vector<8x64xf32>
    %326 = vector.extract_strided_slice %37 {offsets = [1, 0], sizes = [8, 64], strides = [1, 1]} : vector<10x64xf32> to vector<8x64xf32>
    %327 = vector.extract_strided_slice %5 {offsets = [1, 1, 0], sizes = [1, 1, 64], strides = [1, 1, 1]} : vector<3x3x64xf32> to vector<1x1x64xf32>
    %328 = vector.shape_cast %327 : vector<1x1x64xf32> to vector<64xf32>
    %329 = vector.shape_cast %328 : vector<64xf32> to vector<1x64xf32>
    %330 = vector.broadcast %329 : vector<1x64xf32> to vector<8x64xf32>
    %331 = arith.mulf %326, %330 : vector<8x64xf32>
    %332 = arith.addf %325, %331 : vector<8x64xf32>
    %333 = vector.extract_strided_slice %37 {offsets = [2, 0], sizes = [8, 64], strides = [1, 1]} : vector<10x64xf32> to vector<8x64xf32>
    %334 = vector.extract_strided_slice %5 {offsets = [1, 2, 0], sizes = [1, 1, 64], strides = [1, 1, 1]} : vector<3x3x64xf32> to vector<1x1x64xf32>
    %335 = vector.shape_cast %334 : vector<1x1x64xf32> to vector<64xf32>
    %336 = vector.shape_cast %335 : vector<64xf32> to vector<1x64xf32>
    %337 = vector.broadcast %336 : vector<1x64xf32> to vector<8x64xf32>
    %338 = arith.mulf %333, %337 : vector<8x64xf32>
    %339 = arith.addf %332, %338 : vector<8x64xf32>
    %340 = vector.extract_strided_slice %44 {offsets = [0, 0], sizes = [8, 64], strides = [1, 1]} : vector<10x64xf32> to vector<8x64xf32>
    %341 = vector.extract_strided_slice %5 {offsets = [2, 0, 0], sizes = [1, 1, 64], strides = [1, 1, 1]} : vector<3x3x64xf32> to vector<1x1x64xf32>
    %342 = vector.shape_cast %341 : vector<1x1x64xf32> to vector<64xf32>
    %343 = vector.shape_cast %342 : vector<64xf32> to vector<1x64xf32>
    %344 = vector.broadcast %343 : vector<1x64xf32> to vector<8x64xf32>
    %345 = arith.mulf %340, %344 : vector<8x64xf32>
    %346 = arith.addf %339, %345 : vector<8x64xf32>
    %347 = vector.extract_strided_slice %44 {offsets = [1, 0], sizes = [8, 64], strides = [1, 1]} : vector<10x64xf32> to vector<8x64xf32>
    %348 = vector.extract_strided_slice %5 {offsets = [2, 1, 0], sizes = [1, 1, 64], strides = [1, 1, 1]} : vector<3x3x64xf32> to vector<1x1x64xf32>
    %349 = vector.shape_cast %348 : vector<1x1x64xf32> to vector<64xf32>
    %350 = vector.shape_cast %349 : vector<64xf32> to vector<1x64xf32>
    %351 = vector.broadcast %350 : vector<1x64xf32> to vector<8x64xf32>
    %352 = arith.mulf %347, %351 : vector<8x64xf32>
    %353 = arith.addf %346, %352 : vector<8x64xf32>
    %354 = vector.extract_strided_slice %44 {offsets = [2, 0], sizes = [8, 64], strides = [1, 1]} : vector<10x64xf32> to vector<8x64xf32>
    %355 = vector.extract_strided_slice %5 {offsets = [2, 2, 0], sizes = [1, 1, 64], strides = [1, 1, 1]} : vector<3x3x64xf32> to vector<1x1x64xf32>
    %356 = vector.shape_cast %355 : vector<1x1x64xf32> to vector<64xf32>
    %357 = vector.shape_cast %356 : vector<64xf32> to vector<1x64xf32>
    %358 = vector.broadcast %357 : vector<1x64xf32> to vector<8x64xf32>
    %359 = arith.mulf %354, %358 : vector<8x64xf32>
    %360 = arith.addf %353, %359 : vector<8x64xf32>
    %361 = vector.broadcast %6 : vector<1x64xf32> to vector<8x64xf32>
    %362 = arith.addf %360, %361 : vector<8x64xf32>
    %cst_46 = arith.constant 0.000000e+00 : f32
    %363 = vector.broadcast %cst_46 : f32 to vector<8x64xf32>
    %364 = arith.maximumf %362, %363 : vector<8x64xf32>
    %365 = vector.extract_strided_slice %1 {offsets = [4, 1, 0], sizes = [1, 8, 32], strides = [1, 1, 1]} : vector<10x10x32xf32> to vector<1x8x32xf32>
    %366 = vector.shape_cast %365 : vector<1x8x32xf32> to vector<8x32xf32>
    %cst_47 = arith.constant dense<0.000000e+00> : vector<8x32xf32>
    %367 = tpu.matmul %364, %7, %cst_47 {dimension_numbers = #tpu.dot_dimension_numbers<[1], [0], [0], [1], [0, 0, 1, 1], [], []>} : vector<8x64xf32>, vector<64x32xf32>, vector<8x32xf32> -> vector<8x32xf32>
    %368 = arith.addf %366, %367 : vector<8x32xf32>
    %369 = vector.broadcast %8 : vector<1x32xf32> to vector<8x32xf32>
    %370 = arith.addf %368, %369 : vector<8x32xf32>
    %c0_48 = arith.constant 0 : index
    %c3 = arith.constant 3 : index
    %c0_49 = arith.constant 0 : index
    %c0_50 = arith.constant 0 : index
    %371 = vector.load %arg9[%c0_48, %c3, %c0_49, %c0_50] : memref<1x8x8x32xf32, #tpu.memory_space<vmem>>, vector<1x1x8x32xf32>
    %372 = vector.shape_cast %371 : vector<1x1x8x32xf32> to vector<8x32xf32>
    %373 = vector.shape_cast %370 : vector<8x32xf32> to vector<1x1x8x32xf32>
    tpu.vector_store %arg9[%c0_48, %c3, %c0_49, %c0_50], %373 {strides = array<i32>} : memref<1x8x8x32xf32, #tpu.memory_space<vmem>>, vector<1x1x8x32xf32>,
    %cst_51 = arith.constant 0.000000e+00 : f32
    %374 = vector.broadcast %cst_51 : f32 to vector<8x64xf32>
    %375 = vector.extract_strided_slice %37 {offsets = [0, 0], sizes = [8, 64], strides = [1, 1]} : vector<10x64xf32> to vector<8x64xf32>
    %376 = vector.extract_strided_slice %5 {offsets = [0, 0, 0], sizes = [1, 1, 64], strides = [1, 1, 1]} : vector<3x3x64xf32> to vector<1x1x64xf32>
    %377 = vector.shape_cast %376 : vector<1x1x64xf32> to vector<64xf32>
    %378 = vector.shape_cast %377 : vector<64xf32> to vector<1x64xf32>
    %379 = vector.broadcast %378 : vector<1x64xf32> to vector<8x64xf32>
    %380 = arith.mulf %375, %379 : vector<8x64xf32>
    %381 = arith.addf %374, %380 : vector<8x64xf32>
    %382 = vector.extract_strided_slice %37 {offsets = [1, 0], sizes = [8, 64], strides = [1, 1]} : vector<10x64xf32> to vector<8x64xf32>
    %383 = vector.extract_strided_slice %5 {offsets = [0, 1, 0], sizes = [1, 1, 64], strides = [1, 1, 1]} : vector<3x3x64xf32> to vector<1x1x64xf32>
    %384 = vector.shape_cast %383 : vector<1x1x64xf32> to vector<64xf32>
    %385 = vector.shape_cast %384 : vector<64xf32> to vector<1x64xf32>
    %386 = vector.broadcast %385 : vector<1x64xf32> to vector<8x64xf32>
    %387 = arith.mulf %382, %386 : vector<8x64xf32>
    %388 = arith.addf %381, %387 : vector<8x64xf32>
    %389 = vector.extract_strided_slice %37 {offsets = [2, 0], sizes = [8, 64], strides = [1, 1]} : vector<10x64xf32> to vector<8x64xf32>
    %390 = vector.extract_strided_slice %5 {offsets = [0, 2, 0], sizes = [1, 1, 64], strides = [1, 1, 1]} : vector<3x3x64xf32> to vector<1x1x64xf32>
    %391 = vector.shape_cast %390 : vector<1x1x64xf32> to vector<64xf32>
    %392 = vector.shape_cast %391 : vector<64xf32> to vector<1x64xf32>
    %393 = vector.broadcast %392 : vector<1x64xf32> to vector<8x64xf32>
    %394 = arith.mulf %389, %393 : vector<8x64xf32>
    %395 = arith.addf %388, %394 : vector<8x64xf32>
    %396 = vector.extract_strided_slice %44 {offsets = [0, 0], sizes = [8, 64], strides = [1, 1]} : vector<10x64xf32> to vector<8x64xf32>
    %397 = vector.extract_strided_slice %5 {offsets = [1, 0, 0], sizes = [1, 1, 64], strides = [1, 1, 1]} : vector<3x3x64xf32> to vector<1x1x64xf32>
    %398 = vector.shape_cast %397 : vector<1x1x64xf32> to vector<64xf32>
    %399 = vector.shape_cast %398 : vector<64xf32> to vector<1x64xf32>
    %400 = vector.broadcast %399 : vector<1x64xf32> to vector<8x64xf32>
    %401 = arith.mulf %396, %400 : vector<8x64xf32>
    %402 = arith.addf %395, %401 : vector<8x64xf32>
    %403 = vector.extract_strided_slice %44 {offsets = [1, 0], sizes = [8, 64], strides = [1, 1]} : vector<10x64xf32> to vector<8x64xf32>
    %404 = vector.extract_strided_slice %5 {offsets = [1, 1, 0], sizes = [1, 1, 64], strides = [1, 1, 1]} : vector<3x3x64xf32> to vector<1x1x64xf32>
    %405 = vector.shape_cast %404 : vector<1x1x64xf32> to vector<64xf32>
    %406 = vector.shape_cast %405 : vector<64xf32> to vector<1x64xf32>
    %407 = vector.broadcast %406 : vector<1x64xf32> to vector<8x64xf32>
    %408 = arith.mulf %403, %407 : vector<8x64xf32>
    %409 = arith.addf %402, %408 : vector<8x64xf32>
    %410 = vector.extract_strided_slice %44 {offsets = [2, 0], sizes = [8, 64], strides = [1, 1]} : vector<10x64xf32> to vector<8x64xf32>
    %411 = vector.extract_strided_slice %5 {offsets = [1, 2, 0], sizes = [1, 1, 64], strides = [1, 1, 1]} : vector<3x3x64xf32> to vector<1x1x64xf32>
    %412 = vector.shape_cast %411 : vector<1x1x64xf32> to vector<64xf32>
    %413 = vector.shape_cast %412 : vector<64xf32> to vector<1x64xf32>
    %414 = vector.broadcast %413 : vector<1x64xf32> to vector<8x64xf32>
    %415 = arith.mulf %410, %414 : vector<8x64xf32>
    %416 = arith.addf %409, %415 : vector<8x64xf32>
    %417 = vector.extract_strided_slice %51 {offsets = [0, 0], sizes = [8, 64], strides = [1, 1]} : vector<10x64xf32> to vector<8x64xf32>
    %418 = vector.extract_strided_slice %5 {offsets = [2, 0, 0], sizes = [1, 1, 64], strides = [1, 1, 1]} : vector<3x3x64xf32> to vector<1x1x64xf32>
    %419 = vector.shape_cast %418 : vector<1x1x64xf32> to vector<64xf32>
    %420 = vector.shape_cast %419 : vector<64xf32> to vector<1x64xf32>
    %421 = vector.broadcast %420 : vector<1x64xf32> to vector<8x64xf32>
    %422 = arith.mulf %417, %421 : vector<8x64xf32>
    %423 = arith.addf %416, %422 : vector<8x64xf32>
    %424 = vector.extract_strided_slice %51 {offsets = [1, 0], sizes = [8, 64], strides = [1, 1]} : vector<10x64xf32> to vector<8x64xf32>
    %425 = vector.extract_strided_slice %5 {offsets = [2, 1, 0], sizes = [1, 1, 64], strides = [1, 1, 1]} : vector<3x3x64xf32> to vector<1x1x64xf32>
    %426 = vector.shape_cast %425 : vector<1x1x64xf32> to vector<64xf32>
    %427 = vector.shape_cast %426 : vector<64xf32> to vector<1x64xf32>
    %428 = vector.broadcast %427 : vector<1x64xf32> to vector<8x64xf32>
    %429 = arith.mulf %424, %428 : vector<8x64xf32>
    %430 = arith.addf %423, %429 : vector<8x64xf32>
    %431 = vector.extract_strided_slice %51 {offsets = [2, 0], sizes = [8, 64], strides = [1, 1]} : vector<10x64xf32> to vector<8x64xf32>
    %432 = vector.extract_strided_slice %5 {offsets = [2, 2, 0], sizes = [1, 1, 64], strides = [1, 1, 1]} : vector<3x3x64xf32> to vector<1x1x64xf32>
    %433 = vector.shape_cast %432 : vector<1x1x64xf32> to vector<64xf32>
    %434 = vector.shape_cast %433 : vector<64xf32> to vector<1x64xf32>
    %435 = vector.broadcast %434 : vector<1x64xf32> to vector<8x64xf32>
    %436 = arith.mulf %431, %435 : vector<8x64xf32>
    %437 = arith.addf %430, %436 : vector<8x64xf32>
    %438 = vector.broadcast %6 : vector<1x64xf32> to vector<8x64xf32>
    %439 = arith.addf %437, %438 : vector<8x64xf32>
    %cst_52 = arith.constant 0.000000e+00 : f32
    %440 = vector.broadcast %cst_52 : f32 to vector<8x64xf32>
    %441 = arith.maximumf %439, %440 : vector<8x64xf32>
    %442 = vector.extract_strided_slice %1 {offsets = [5, 1, 0], sizes = [1, 8, 32], strides = [1, 1, 1]} : vector<10x10x32xf32> to vector<1x8x32xf32>
    %443 = vector.shape_cast %442 : vector<1x8x32xf32> to vector<8x32xf32>
    %cst_53 = arith.constant dense<0.000000e+00> : vector<8x32xf32>
    %444 = tpu.matmul %441, %7, %cst_53 {dimension_numbers = #tpu.dot_dimension_numbers<[1], [0], [0], [1], [0, 0, 1, 1], [], []>} : vector<8x64xf32>, vector<64x32xf32>, vector<8x32xf32> -> vector<8x32xf32>
    %445 = arith.addf %443, %444 : vector<8x32xf32>
    %446 = vector.broadcast %8 : vector<1x32xf32> to vector<8x32xf32>
    %447 = arith.addf %445, %446 : vector<8x32xf32>
    %c0_54 = arith.constant 0 : index
    %c4 = arith.constant 4 : index
    %c0_55 = arith.constant 0 : index
    %c0_56 = arith.constant 0 : index
    %448 = vector.load %arg9[%c0_54, %c4, %c0_55, %c0_56] : memref<1x8x8x32xf32, #tpu.memory_space<vmem>>, vector<1x1x8x32xf32>
    %449 = vector.shape_cast %448 : vector<1x1x8x32xf32> to vector<8x32xf32>
    %450 = vector.shape_cast %447 : vector<8x32xf32> to vector<1x1x8x32xf32>
    tpu.vector_store %arg9[%c0_54, %c4, %c0_55, %c0_56], %450 {strides = array<i32>} : memref<1x8x8x32xf32, #tpu.memory_space<vmem>>, vector<1x1x8x32xf32>,
    %cst_57 = arith.constant 0.000000e+00 : f32
    %451 = vector.broadcast %cst_57 : f32 to vector<8x64xf32>
    %452 = vector.extract_strided_slice %44 {offsets = [0, 0], sizes = [8, 64], strides = [1, 1]} : vector<10x64xf32> to vector<8x64xf32>
    %453 = vector.extract_strided_slice %5 {offsets = [0, 0, 0], sizes = [1, 1, 64], strides = [1, 1, 1]} : vector<3x3x64xf32> to vector<1x1x64xf32>
    %454 = vector.shape_cast %453 : vector<1x1x64xf32> to vector<64xf32>
    %455 = vector.shape_cast %454 : vector<64xf32> to vector<1x64xf32>
    %456 = vector.broadcast %455 : vector<1x64xf32> to vector<8x64xf32>
    %457 = arith.mulf %452, %456 : vector<8x64xf32>
    %458 = arith.addf %451, %457 : vector<8x64xf32>
    %459 = vector.extract_strided_slice %44 {offsets = [1, 0], sizes = [8, 64], strides = [1, 1]} : vector<10x64xf32> to vector<8x64xf32>
    %460 = vector.extract_strided_slice %5 {offsets = [0, 1, 0], sizes = [1, 1, 64], strides = [1, 1, 1]} : vector<3x3x64xf32> to vector<1x1x64xf32>
    %461 = vector.shape_cast %460 : vector<1x1x64xf32> to vector<64xf32>
    %462 = vector.shape_cast %461 : vector<64xf32> to vector<1x64xf32>
    %463 = vector.broadcast %462 : vector<1x64xf32> to vector<8x64xf32>
    %464 = arith.mulf %459, %463 : vector<8x64xf32>
    %465 = arith.addf %458, %464 : vector<8x64xf32>
    %466 = vector.extract_strided_slice %44 {offsets = [2, 0], sizes = [8, 64], strides = [1, 1]} : vector<10x64xf32> to vector<8x64xf32>
    %467 = vector.extract_strided_slice %5 {offsets = [0, 2, 0], sizes = [1, 1, 64], strides = [1, 1, 1]} : vector<3x3x64xf32> to vector<1x1x64xf32>
    %468 = vector.shape_cast %467 : vector<1x1x64xf32> to vector<64xf32>
    %469 = vector.shape_cast %468 : vector<64xf32> to vector<1x64xf32>
    %470 = vector.broadcast %469 : vector<1x64xf32> to vector<8x64xf32>
    %471 = arith.mulf %466, %470 : vector<8x64xf32>
    %472 = arith.addf %465, %471 : vector<8x64xf32>
    %473 = vector.extract_strided_slice %51 {offsets = [0, 0], sizes = [8, 64], strides = [1, 1]} : vector<10x64xf32> to vector<8x64xf32>
    %474 = vector.extract_strided_slice %5 {offsets = [1, 0, 0], sizes = [1, 1, 64], strides = [1, 1, 1]} : vector<3x3x64xf32> to vector<1x1x64xf32>
    %475 = vector.shape_cast %474 : vector<1x1x64xf32> to vector<64xf32>
    %476 = vector.shape_cast %475 : vector<64xf32> to vector<1x64xf32>
    %477 = vector.broadcast %476 : vector<1x64xf32> to vector<8x64xf32>
    %478 = arith.mulf %473, %477 : vector<8x64xf32>
    %479 = arith.addf %472, %478 : vector<8x64xf32>
    %480 = vector.extract_strided_slice %51 {offsets = [1, 0], sizes = [8, 64], strides = [1, 1]} : vector<10x64xf32> to vector<8x64xf32>
    %481 = vector.extract_strided_slice %5 {offsets = [1, 1, 0], sizes = [1, 1, 64], strides = [1, 1, 1]} : vector<3x3x64xf32> to vector<1x1x64xf32>
    %482 = vector.shape_cast %481 : vector<1x1x64xf32> to vector<64xf32>
    %483 = vector.shape_cast %482 : vector<64xf32> to vector<1x64xf32>
    %484 = vector.broadcast %483 : vector<1x64xf32> to vector<8x64xf32>
    %485 = arith.mulf %480, %484 : vector<8x64xf32>
    %486 = arith.addf %479, %485 : vector<8x64xf32>
    %487 = vector.extract_strided_slice %51 {offsets = [2, 0], sizes = [8, 64], strides = [1, 1]} : vector<10x64xf32> to vector<8x64xf32>
    %488 = vector.extract_strided_slice %5 {offsets = [1, 2, 0], sizes = [1, 1, 64], strides = [1, 1, 1]} : vector<3x3x64xf32> to vector<1x1x64xf32>
    %489 = vector.shape_cast %488 : vector<1x1x64xf32> to vector<64xf32>
    %490 = vector.shape_cast %489 : vector<64xf32> to vector<1x64xf32>
    %491 = vector.broadcast %490 : vector<1x64xf32> to vector<8x64xf32>
    %492 = arith.mulf %487, %491 : vector<8x64xf32>
    %493 = arith.addf %486, %492 : vector<8x64xf32>
    %494 = vector.extract_strided_slice %58 {offsets = [0, 0], sizes = [8, 64], strides = [1, 1]} : vector<10x64xf32> to vector<8x64xf32>
    %495 = vector.extract_strided_slice %5 {offsets = [2, 0, 0], sizes = [1, 1, 64], strides = [1, 1, 1]} : vector<3x3x64xf32> to vector<1x1x64xf32>
    %496 = vector.shape_cast %495 : vector<1x1x64xf32> to vector<64xf32>
    %497 = vector.shape_cast %496 : vector<64xf32> to vector<1x64xf32>
    %498 = vector.broadcast %497 : vector<1x64xf32> to vector<8x64xf32>
    %499 = arith.mulf %494, %498 : vector<8x64xf32>
    %500 = arith.addf %493, %499 : vector<8x64xf32>
    %501 = vector.extract_strided_slice %58 {offsets = [1, 0], sizes = [8, 64], strides = [1, 1]} : vector<10x64xf32> to vector<8x64xf32>
    %502 = vector.extract_strided_slice %5 {offsets = [2, 1, 0], sizes = [1, 1, 64], strides = [1, 1, 1]} : vector<3x3x64xf32> to vector<1x1x64xf32>
    %503 = vector.shape_cast %502 : vector<1x1x64xf32> to vector<64xf32>
    %504 = vector.shape_cast %503 : vector<64xf32> to vector<1x64xf32>
    %505 = vector.broadcast %504 : vector<1x64xf32> to vector<8x64xf32>
    %506 = arith.mulf %501, %505 : vector<8x64xf32>
    %507 = arith.addf %500, %506 : vector<8x64xf32>
    %508 = vector.extract_strided_slice %58 {offsets = [2, 0], sizes = [8, 64], strides = [1, 1]} : vector<10x64xf32> to vector<8x64xf32>
    %509 = vector.extract_strided_slice %5 {offsets = [2, 2, 0], sizes = [1, 1, 64], strides = [1, 1, 1]} : vector<3x3x64xf32> to vector<1x1x64xf32>
    %510 = vector.shape_cast %509 : vector<1x1x64xf32> to vector<64xf32>
    %511 = vector.shape_cast %510 : vector<64xf32> to vector<1x64xf32>
    %512 = vector.broadcast %511 : vector<1x64xf32> to vector<8x64xf32>
    %513 = arith.mulf %508, %512 : vector<8x64xf32>
    %514 = arith.addf %507, %513 : vector<8x64xf32>
    %515 = vector.broadcast %6 : vector<1x64xf32> to vector<8x64xf32>
    %516 = arith.addf %514, %515 : vector<8x64xf32>
    %cst_58 = arith.constant 0.000000e+00 : f32
    %517 = vector.broadcast %cst_58 : f32 to vector<8x64xf32>
    %518 = arith.maximumf %516, %517 : vector<8x64xf32>
    %519 = vector.extract_strided_slice %1 {offsets = [6, 1, 0], sizes = [1, 8, 32], strides = [1, 1, 1]} : vector<10x10x32xf32> to vector<1x8x32xf32>
    %520 = vector.shape_cast %519 : vector<1x8x32xf32> to vector<8x32xf32>
    %cst_59 = arith.constant dense<0.000000e+00> : vector<8x32xf32>
    %521 = tpu.matmul %518, %7, %cst_59 {dimension_numbers = #tpu.dot_dimension_numbers<[1], [0], [0], [1], [0, 0, 1, 1], [], []>} : vector<8x64xf32>, vector<64x32xf32>, vector<8x32xf32> -> vector<8x32xf32>
    %522 = arith.addf %520, %521 : vector<8x32xf32>
    %523 = vector.broadcast %8 : vector<1x32xf32> to vector<8x32xf32>
    %524 = arith.addf %522, %523 : vector<8x32xf32>
    %c0_60 = arith.constant 0 : index
    %c5 = arith.constant 5 : index
    %c0_61 = arith.constant 0 : index
    %c0_62 = arith.constant 0 : index
    %525 = vector.load %arg9[%c0_60, %c5, %c0_61, %c0_62] : memref<1x8x8x32xf32, #tpu.memory_space<vmem>>, vector<1x1x8x32xf32>
    %526 = vector.shape_cast %525 : vector<1x1x8x32xf32> to vector<8x32xf32>
    %527 = vector.shape_cast %524 : vector<8x32xf32> to vector<1x1x8x32xf32>
    tpu.vector_store %arg9[%c0_60, %c5, %c0_61, %c0_62], %527 {strides = array<i32>} : memref<1x8x8x32xf32, #tpu.memory_space<vmem>>, vector<1x1x8x32xf32>,
    %cst_63 = arith.constant 0.000000e+00 : f32
    %528 = vector.broadcast %cst_63 : f32 to vector<8x64xf32>
    %529 = vector.extract_strided_slice %51 {offsets = [0, 0], sizes = [8, 64], strides = [1, 1]} : vector<10x64xf32> to vector<8x64xf32>
    %530 = vector.extract_strided_slice %5 {offsets = [0, 0, 0], sizes = [1, 1, 64], strides = [1, 1, 1]} : vector<3x3x64xf32> to vector<1x1x64xf32>
    %531 = vector.shape_cast %530 : vector<1x1x64xf32> to vector<64xf32>
    %532 = vector.shape_cast %531 : vector<64xf32> to vector<1x64xf32>
    %533 = vector.broadcast %532 : vector<1x64xf32> to vector<8x64xf32>
    %534 = arith.mulf %529, %533 : vector<8x64xf32>
    %535 = arith.addf %528, %534 : vector<8x64xf32>
    %536 = vector.extract_strided_slice %51 {offsets = [1, 0], sizes = [8, 64], strides = [1, 1]} : vector<10x64xf32> to vector<8x64xf32>
    %537 = vector.extract_strided_slice %5 {offsets = [0, 1, 0], sizes = [1, 1, 64], strides = [1, 1, 1]} : vector<3x3x64xf32> to vector<1x1x64xf32>
    %538 = vector.shape_cast %537 : vector<1x1x64xf32> to vector<64xf32>
    %539 = vector.shape_cast %538 : vector<64xf32> to vector<1x64xf32>
    %540 = vector.broadcast %539 : vector<1x64xf32> to vector<8x64xf32>
    %541 = arith.mulf %536, %540 : vector<8x64xf32>
    %542 = arith.addf %535, %541 : vector<8x64xf32>
    %543 = vector.extract_strided_slice %51 {offsets = [2, 0], sizes = [8, 64], strides = [1, 1]} : vector<10x64xf32> to vector<8x64xf32>
    %544 = vector.extract_strided_slice %5 {offsets = [0, 2, 0], sizes = [1, 1, 64], strides = [1, 1, 1]} : vector<3x3x64xf32> to vector<1x1x64xf32>
    %545 = vector.shape_cast %544 : vector<1x1x64xf32> to vector<64xf32>
    %546 = vector.shape_cast %545 : vector<64xf32> to vector<1x64xf32>
    %547 = vector.broadcast %546 : vector<1x64xf32> to vector<8x64xf32>
    %548 = arith.mulf %543, %547 : vector<8x64xf32>
    %549 = arith.addf %542, %548 : vector<8x64xf32>
    %550 = vector.extract_strided_slice %58 {offsets = [0, 0], sizes = [8, 64], strides = [1, 1]} : vector<10x64xf32> to vector<8x64xf32>
    %551 = vector.extract_strided_slice %5 {offsets = [1, 0, 0], sizes = [1, 1, 64], strides = [1, 1, 1]} : vector<3x3x64xf32> to vector<1x1x64xf32>
    %552 = vector.shape_cast %551 : vector<1x1x64xf32> to vector<64xf32>
    %553 = vector.shape_cast %552 : vector<64xf32> to vector<1x64xf32>
    %554 = vector.broadcast %553 : vector<1x64xf32> to vector<8x64xf32>
    %555 = arith.mulf %550, %554 : vector<8x64xf32>
    %556 = arith.addf %549, %555 : vector<8x64xf32>
    %557 = vector.extract_strided_slice %58 {offsets = [1, 0], sizes = [8, 64], strides = [1, 1]} : vector<10x64xf32> to vector<8x64xf32>
    %558 = vector.extract_strided_slice %5 {offsets = [1, 1, 0], sizes = [1, 1, 64], strides = [1, 1, 1]} : vector<3x3x64xf32> to vector<1x1x64xf32>
    %559 = vector.shape_cast %558 : vector<1x1x64xf32> to vector<64xf32>
    %560 = vector.shape_cast %559 : vector<64xf32> to vector<1x64xf32>
    %561 = vector.broadcast %560 : vector<1x64xf32> to vector<8x64xf32>
    %562 = arith.mulf %557, %561 : vector<8x64xf32>
    %563 = arith.addf %556, %562 : vector<8x64xf32>
    %564 = vector.extract_strided_slice %58 {offsets = [2, 0], sizes = [8, 64], strides = [1, 1]} : vector<10x64xf32> to vector<8x64xf32>
    %565 = vector.extract_strided_slice %5 {offsets = [1, 2, 0], sizes = [1, 1, 64], strides = [1, 1, 1]} : vector<3x3x64xf32> to vector<1x1x64xf32>
    %566 = vector.shape_cast %565 : vector<1x1x64xf32> to vector<64xf32>
    %567 = vector.shape_cast %566 : vector<64xf32> to vector<1x64xf32>
    %568 = vector.broadcast %567 : vector<1x64xf32> to vector<8x64xf32>
    %569 = arith.mulf %564, %568 : vector<8x64xf32>
    %570 = arith.addf %563, %569 : vector<8x64xf32>
    %571 = vector.extract_strided_slice %65 {offsets = [0, 0], sizes = [8, 64], strides = [1, 1]} : vector<10x64xf32> to vector<8x64xf32>
    %572 = vector.extract_strided_slice %5 {offsets = [2, 0, 0], sizes = [1, 1, 64], strides = [1, 1, 1]} : vector<3x3x64xf32> to vector<1x1x64xf32>
    %573 = vector.shape_cast %572 : vector<1x1x64xf32> to vector<64xf32>
    %574 = vector.shape_cast %573 : vector<64xf32> to vector<1x64xf32>
    %575 = vector.broadcast %574 : vector<1x64xf32> to vector<8x64xf32>
    %576 = arith.mulf %571, %575 : vector<8x64xf32>
    %577 = arith.addf %570, %576 : vector<8x64xf32>
    %578 = vector.extract_strided_slice %65 {offsets = [1, 0], sizes = [8, 64], strides = [1, 1]} : vector<10x64xf32> to vector<8x64xf32>
    %579 = vector.extract_strided_slice %5 {offsets = [2, 1, 0], sizes = [1, 1, 64], strides = [1, 1, 1]} : vector<3x3x64xf32> to vector<1x1x64xf32>
    %580 = vector.shape_cast %579 : vector<1x1x64xf32> to vector<64xf32>
    %581 = vector.shape_cast %580 : vector<64xf32> to vector<1x64xf32>
    %582 = vector.broadcast %581 : vector<1x64xf32> to vector<8x64xf32>
    %583 = arith.mulf %578, %582 : vector<8x64xf32>
    %584 = arith.addf %577, %583 : vector<8x64xf32>
    %585 = vector.extract_strided_slice %65 {offsets = [2, 0], sizes = [8, 64], strides = [1, 1]} : vector<10x64xf32> to vector<8x64xf32>
    %586 = vector.extract_strided_slice %5 {offsets = [2, 2, 0], sizes = [1, 1, 64], strides = [1, 1, 1]} : vector<3x3x64xf32> to vector<1x1x64xf32>
    %587 = vector.shape_cast %586 : vector<1x1x64xf32> to vector<64xf32>
    %588 = vector.shape_cast %587 : vector<64xf32> to vector<1x64xf32>
    %589 = vector.broadcast %588 : vector<1x64xf32> to vector<8x64xf32>
    %590 = arith.mulf %585, %589 : vector<8x64xf32>
    %591 = arith.addf %584, %590 : vector<8x64xf32>
    %592 = vector.broadcast %6 : vector<1x64xf32> to vector<8x64xf32>
    %593 = arith.addf %591, %592 : vector<8x64xf32>
    %cst_64 = arith.constant 0.000000e+00 : f32
    %594 = vector.broadcast %cst_64 : f32 to vector<8x64xf32>
    %595 = arith.maximumf %593, %594 : vector<8x64xf32>
    %596 = vector.extract_strided_slice %1 {offsets = [7, 1, 0], sizes = [1, 8, 32], strides = [1, 1, 1]} : vector<10x10x32xf32> to vector<1x8x32xf32>
    %597 = vector.shape_cast %596 : vector<1x8x32xf32> to vector<8x32xf32>
    %cst_65 = arith.constant dense<0.000000e+00> : vector<8x32xf32>
    %598 = tpu.matmul %595, %7, %cst_65 {dimension_numbers = #tpu.dot_dimension_numbers<[1], [0], [0], [1], [0, 0, 1, 1], [], []>} : vector<8x64xf32>, vector<64x32xf32>, vector<8x32xf32> -> vector<8x32xf32>
    %599 = arith.addf %597, %598 : vector<8x32xf32>
    %600 = vector.broadcast %8 : vector<1x32xf32> to vector<8x32xf32>
    %601 = arith.addf %599, %600 : vector<8x32xf32>
    %c0_66 = arith.constant 0 : index
    %c6 = arith.constant 6 : index
    %c0_67 = arith.constant 0 : index
    %c0_68 = arith.constant 0 : index
    %602 = vector.load %arg9[%c0_66, %c6, %c0_67, %c0_68] : memref<1x8x8x32xf32, #tpu.memory_space<vmem>>, vector<1x1x8x32xf32>
    %603 = vector.shape_cast %602 : vector<1x1x8x32xf32> to vector<8x32xf32>
    %604 = vector.shape_cast %601 : vector<8x32xf32> to vector<1x1x8x32xf32>
    tpu.vector_store %arg9[%c0_66, %c6, %c0_67, %c0_68], %604 {strides = array<i32>} : memref<1x8x8x32xf32, #tpu.memory_space<vmem>>, vector<1x1x8x32xf32>,
    %cst_69 = arith.constant 0.000000e+00 : f32
    %605 = vector.broadcast %cst_69 : f32 to vector<8x64xf32>
    %606 = vector.extract_strided_slice %58 {offsets = [0, 0], sizes = [8, 64], strides = [1, 1]} : vector<10x64xf32> to vector<8x64xf32>
    %607 = vector.extract_strided_slice %5 {offsets = [0, 0, 0], sizes = [1, 1, 64], strides = [1, 1, 1]} : vector<3x3x64xf32> to vector<1x1x64xf32>
    %608 = vector.shape_cast %607 : vector<1x1x64xf32> to vector<64xf32>
    %609 = vector.shape_cast %608 : vector<64xf32> to vector<1x64xf32>
    %610 = vector.broadcast %609 : vector<1x64xf32> to vector<8x64xf32>
    %611 = arith.mulf %606, %610 : vector<8x64xf32>
    %612 = arith.addf %605, %611 : vector<8x64xf32>
    %613 = vector.extract_strided_slice %58 {offsets = [1, 0], sizes = [8, 64], strides = [1, 1]} : vector<10x64xf32> to vector<8x64xf32>
    %614 = vector.extract_strided_slice %5 {offsets = [0, 1, 0], sizes = [1, 1, 64], strides = [1, 1, 1]} : vector<3x3x64xf32> to vector<1x1x64xf32>
    %615 = vector.shape_cast %614 : vector<1x1x64xf32> to vector<64xf32>
    %616 = vector.shape_cast %615 : vector<64xf32> to vector<1x64xf32>
    %617 = vector.broadcast %616 : vector<1x64xf32> to vector<8x64xf32>
    %618 = arith.mulf %613, %617 : vector<8x64xf32>
    %619 = arith.addf %612, %618 : vector<8x64xf32>
    %620 = vector.extract_strided_slice %58 {offsets = [2, 0], sizes = [8, 64], strides = [1, 1]} : vector<10x64xf32> to vector<8x64xf32>
    %621 = vector.extract_strided_slice %5 {offsets = [0, 2, 0], sizes = [1, 1, 64], strides = [1, 1, 1]} : vector<3x3x64xf32> to vector<1x1x64xf32>
    %622 = vector.shape_cast %621 : vector<1x1x64xf32> to vector<64xf32>
    %623 = vector.shape_cast %622 : vector<64xf32> to vector<1x64xf32>
    %624 = vector.broadcast %623 : vector<1x64xf32> to vector<8x64xf32>
    %625 = arith.mulf %620, %624 : vector<8x64xf32>
    %626 = arith.addf %619, %625 : vector<8x64xf32>
    %627 = vector.extract_strided_slice %65 {offsets = [0, 0], sizes = [8, 64], strides = [1, 1]} : vector<10x64xf32> to vector<8x64xf32>
    %628 = vector.extract_strided_slice %5 {offsets = [1, 0, 0], sizes = [1, 1, 64], strides = [1, 1, 1]} : vector<3x3x64xf32> to vector<1x1x64xf32>
    %629 = vector.shape_cast %628 : vector<1x1x64xf32> to vector<64xf32>
    %630 = vector.shape_cast %629 : vector<64xf32> to vector<1x64xf32>
    %631 = vector.broadcast %630 : vector<1x64xf32> to vector<8x64xf32>
    %632 = arith.mulf %627, %631 : vector<8x64xf32>
    %633 = arith.addf %626, %632 : vector<8x64xf32>
    %634 = vector.extract_strided_slice %65 {offsets = [1, 0], sizes = [8, 64], strides = [1, 1]} : vector<10x64xf32> to vector<8x64xf32>
    %635 = vector.extract_strided_slice %5 {offsets = [1, 1, 0], sizes = [1, 1, 64], strides = [1, 1, 1]} : vector<3x3x64xf32> to vector<1x1x64xf32>
    %636 = vector.shape_cast %635 : vector<1x1x64xf32> to vector<64xf32>
    %637 = vector.shape_cast %636 : vector<64xf32> to vector<1x64xf32>
    %638 = vector.broadcast %637 : vector<1x64xf32> to vector<8x64xf32>
    %639 = arith.mulf %634, %638 : vector<8x64xf32>
    %640 = arith.addf %633, %639 : vector<8x64xf32>
    %641 = vector.extract_strided_slice %65 {offsets = [2, 0], sizes = [8, 64], strides = [1, 1]} : vector<10x64xf32> to vector<8x64xf32>
    %642 = vector.extract_strided_slice %5 {offsets = [1, 2, 0], sizes = [1, 1, 64], strides = [1, 1, 1]} : vector<3x3x64xf32> to vector<1x1x64xf32>
    %643 = vector.shape_cast %642 : vector<1x1x64xf32> to vector<64xf32>
    %644 = vector.shape_cast %643 : vector<64xf32> to vector<1x64xf32>
    %645 = vector.broadcast %644 : vector<1x64xf32> to vector<8x64xf32>
    %646 = arith.mulf %641, %645 : vector<8x64xf32>
    %647 = arith.addf %640, %646 : vector<8x64xf32>
    %648 = vector.extract_strided_slice %9 {offsets = [0, 0], sizes = [8, 64], strides = [1, 1]} : vector<10x64xf32> to vector<8x64xf32>
    %649 = vector.extract_strided_slice %5 {offsets = [2, 0, 0], sizes = [1, 1, 64], strides = [1, 1, 1]} : vector<3x3x64xf32> to vector<1x1x64xf32>
    %650 = vector.shape_cast %649 : vector<1x1x64xf32> to vector<64xf32>
    %651 = vector.shape_cast %650 : vector<64xf32> to vector<1x64xf32>
    %652 = vector.broadcast %651 : vector<1x64xf32> to vector<8x64xf32>
    %653 = arith.mulf %648, %652 : vector<8x64xf32>
    %654 = arith.addf %647, %653 : vector<8x64xf32>
    %655 = vector.extract_strided_slice %9 {offsets = [1, 0], sizes = [8, 64], strides = [1, 1]} : vector<10x64xf32> to vector<8x64xf32>
    %656 = vector.extract_strided_slice %5 {offsets = [2, 1, 0], sizes = [1, 1, 64], strides = [1, 1, 1]} : vector<3x3x64xf32> to vector<1x1x64xf32>
    %657 = vector.shape_cast %656 : vector<1x1x64xf32> to vector<64xf32>
    %658 = vector.shape_cast %657 : vector<64xf32> to vector<1x64xf32>
    %659 = vector.broadcast %658 : vector<1x64xf32> to vector<8x64xf32>
    %660 = arith.mulf %655, %659 : vector<8x64xf32>
    %661 = arith.addf %654, %660 : vector<8x64xf32>
    %662 = vector.extract_strided_slice %9 {offsets = [2, 0], sizes = [8, 64], strides = [1, 1]} : vector<10x64xf32> to vector<8x64xf32>
    %663 = vector.extract_strided_slice %5 {offsets = [2, 2, 0], sizes = [1, 1, 64], strides = [1, 1, 1]} : vector<3x3x64xf32> to vector<1x1x64xf32>
    %664 = vector.shape_cast %663 : vector<1x1x64xf32> to vector<64xf32>
    %665 = vector.shape_cast %664 : vector<64xf32> to vector<1x64xf32>
    %666 = vector.broadcast %665 : vector<1x64xf32> to vector<8x64xf32>
    %667 = arith.mulf %662, %666 : vector<8x64xf32>
    %668 = arith.addf %661, %667 : vector<8x64xf32>
    %669 = vector.broadcast %6 : vector<1x64xf32> to vector<8x64xf32>
    %670 = arith.addf %668, %669 : vector<8x64xf32>
    %cst_70 = arith.constant 0.000000e+00 : f32
    %671 = vector.broadcast %cst_70 : f32 to vector<8x64xf32>
    %672 = arith.maximumf %670, %671 : vector<8x64xf32>
    %673 = vector.extract_strided_slice %1 {offsets = [8, 1, 0], sizes = [1, 8, 32], strides = [1, 1, 1]} : vector<10x10x32xf32> to vector<1x8x32xf32>
    %674 = vector.shape_cast %673 : vector<1x8x32xf32> to vector<8x32xf32>
    %cst_71 = arith.constant dense<0.000000e+00> : vector<8x32xf32>
    %675 = tpu.matmul %672, %7, %cst_71 {dimension_numbers = #tpu.dot_dimension_numbers<[1], [0], [0], [1], [0, 0, 1, 1], [], []>} : vector<8x64xf32>, vector<64x32xf32>, vector<8x32xf32> -> vector<8x32xf32>
    %676 = arith.addf %674, %675 : vector<8x32xf32>
    %677 = vector.broadcast %8 : vector<1x32xf32> to vector<8x32xf32>
    %678 = arith.addf %676, %677 : vector<8x32xf32>
    %c0_72 = arith.constant 0 : index
    %c7 = arith.constant 7 : index
    %c0_73 = arith.constant 0 : index
    %c0_74 = arith.constant 0 : index
    %679 = vector.load %arg9[%c0_72, %c7, %c0_73, %c0_74] : memref<1x8x8x32xf32, #tpu.memory_space<vmem>>, vector<1x1x8x32xf32>
    %680 = vector.shape_cast %679 : vector<1x1x8x32xf32> to vector<8x32xf32>
    %681 = vector.shape_cast %678 : vector<8x32xf32> to vector<1x1x8x32xf32>
    tpu.vector_store %arg9[%c0_72, %c7, %c0_73, %c0_74], %681 {strides = array<i32>} : memref<1x8x8x32xf32, #tpu.memory_space<vmem>>, vector<1x1x8x32xf32>,
    return
  }
  func.func @transform_0(%arg0: i32) -> (i32, i32, i32, i32) {
    %c0_i32 = arith.constant 0 : i32
    %c0_i32_0 = arith.constant 0 : i32
    %c0_i32_1 = arith.constant 0 : i32
    %c0_i32_2 = arith.constant 0 : i32
    return %arg0, %c0_i32, %c0_i32_0, %c0_i32_1 : i32, i32, i32, i32
  }
  func.func @transform_1(%arg0: i32) -> (i32, i32) {
    %c0_i32 = arith.constant 0 : i32
    %c0_i32_0 = arith.constant 0 : i32
    %c0_i32_1 = arith.constant 0 : i32
    return %c0_i32, %c0_i32_0 : i32, i32
  }
  func.func @transform_2(%arg0: i32) -> (i32, i32) {
    %c0_i32 = arith.constant 0 : i32
    %c0_i32_0 = arith.constant 0 : i32
    %c0_i32_1 = arith.constant 0 : i32
    return %c0_i32, %c0_i32_0 : i32, i32
  }
  func.func @transform_3(%arg0: i32) -> (i32, i32) {
    %c0_i32 = arith.constant 0 : i32
    %c0_i32_0 = arith.constant 0 : i32
    %c0_i32_1 = arith.constant 0 : i32
    return %c0_i32, %c0_i32_0 : i32, i32
  }
  func.func @transform_4(%arg0: i32) -> (i32, i32, i32) {
    %c0_i32 = arith.constant 0 : i32
    %c0_i32_0 = arith.constant 0 : i32
    %c0_i32_1 = arith.constant 0 : i32
    %c0_i32_2 = arith.constant 0 : i32
    return %c0_i32, %c0_i32_0, %c0_i32_1 : i32, i32, i32
  }
  func.func @transform_5(%arg0: i32) -> (i32, i32) {
    %c0_i32 = arith.constant 0 : i32
    %c0_i32_0 = arith.constant 0 : i32
    %c0_i32_1 = arith.constant 0 : i32
    return %c0_i32, %c0_i32_0 : i32, i32
  }
  func.func @transform_6(%arg0: i32) -> (i32, i32) {
    %c0_i32 = arith.constant 0 : i32
    %c0_i32_0 = arith.constant 0 : i32
    %c0_i32_1 = arith.constant 0 : i32
    return %c0_i32, %c0_i32_0 : i32, i32
  }
  func.func @transform_7(%arg0: i32) -> (i32, i32) {
    %c0_i32 = arith.constant 0 : i32
    %c0_i32_0 = arith.constant 0 : i32
    %c0_i32_1 = arith.constant 0 : i32
    return %c0_i32, %c0_i32_0 : i32, i32
  }
  func.func @transform_8(%arg0: i32) -> (i32, i32, i32, i32) {
    %c0_i32 = arith.constant 0 : i32
    %c0_i32_0 = arith.constant 0 : i32
    %c0_i32_1 = arith.constant 0 : i32
    %c0_i32_2 = arith.constant 0 : i32
    return %arg0, %c0_i32, %c0_i32_0, %c0_i32_1 : i32, i32, i32, i32
  }
}

</mosaic_0001>

<llo_original>
// kernel: semantics_extractor_forward.4
$region0: #{semantics_extractor_forward.4}
  #allocation0 [shape = 'u32[]', space=smem, size = 0x4, offset = 0x4, fixed_abs, tag = 'smem constant byte address 0x4 - core index']
  #allocation1 [shape = 'u32[144,128]{1,0:T(1,128)}', space=vmem, size = 0x12000, scoped, tag = 'internal scratch']
  %s0 = inlined_call_operand.hbm [shape: f32[2,64,32], index: 0, kind: input, shape index: {}]
  %s1 = inlined_call_operand.vmem [shape: f32[32,64], index: 1, kind: input, shape index: {}]
  %s2 = inlined_call_operand.vmem [shape: f32[1,64], index: 2, kind: input, shape index: {}]
  %s3 = inlined_call_operand.hbm [shape: f32[32,32], index: 3, kind: input, shape index: {}]
  %s4 = inlined_call_operand.vmem [shape: f32[1,32], index: 4, kind: input, shape index: {}]
  %s5 = inlined_call_operand.vmem [shape: f32[2,64,32], index: 5, kind: output, shape index: {}]
  %s6 = sld [smem:[#allocation0]]
  $region61: #{semantics_extractor_forward.4} parent=0
    _
  %s8 = ssub.s32 1, %s6
  %s9 = scalar_select 0, %s8, %s6
  $region1: #{semantics_extractor_forward.4} parent=0
    #allocation2 [shape = 'u8[65536]{0}', space=vmem, size = 0x10000, scoped, tag = 'input window, operand 0']
    #allocation3 [shape = 's32[2]{0}', space=sflag, size = 0x8, scoped, tag = 'scoped memory for semantics_extractor_forward.4']
    #allocation4 [shape = 'u8[16384]{0}', space=vmem, size = 0x4000, scoped, tag = 'input window, operand 3, single buffered']
    #allocation5 [shape = 's32[1]{0}', space=sflag, size = 0x4, scoped, tag = 'scoped memory for semantics_extractor_forward.4']
    %10 = vsyncpa [#allocation3], 0
    %s11 = scalar_lea.sflag [#allocation3], 1
    %12 = vsyncpa %s11, 0
    %13 = vsyncpa [#allocation5], 0
    loop: start=0, step=1, limit=4
    $region2: #{semantics_extractor_forward.4} parent=1 // loop_pre_header
      _
    $region3: #{semantics_extractor_forward.4} parent=1 // loop_header
      %s15 = sphi 0, %s19
      %p16 = scmp.ge.s32.totalorder %s15, 4
      %s25 = sphi 0, %s27
      %s28 = sphi 0, %s25
      %s29 = sphi 0, %s28
      %s45 = sphi 0, %s29
      %s49 = sphi 0, %s49
      %s51 = sphi 0, %s49
      %s52 = sphi 0, %s51
      %s66 = sphi 0, %s52
      %s70 = sphi 0, %s70
      %s72 = sphi 0, %s70
      %s73 = sphi 0, %s72
      %s87 = sphi 0, %s73
      %s91 = sphi 0, %s91
      %s93 = sphi 0, %s91
      %s94 = sphi 0, %s93
      %s108 = sphi 0, %s94
      %s112 = sphi 0, %s112
      %s114 = sphi 0, %s112
      %s115 = sphi 0, %s114
      %s129 = sphi 0, %s115
      %s135 = sphi 0, %s137
      %s138 = sphi 0, %s135
      %s139 = sphi 0, %s138
      %s155 = sphi 0, %s139
    $region4: #{semantics_extractor_forward.4} parent=1 // loop_header_branch
      %18 = sbr.rel (%p16) target = $region8
    $region5: #{semantics_extractor_forward.4} parent=1 // loop_body
      %s20 = ssub.s32 %s15, 1
      %s21 = ssub.s32 %s15, 2
      %s22 = sadd.s32 %s15, 1
      %s23 = ssub.s32 %s15, %s22
      %p24 = scmp.eq.s32.totalorder %s23, 0
      %s26 = sadd.s32 %s25, 1
      %s27 = scalar_select %p24, %s25, %s26
      %p30 = pneg %p24
      %p31 = scmp.eq.s32.totalorder %s15, 1
      %p32 = por %p30, %p31
      %p33 = scmp.ne.s32.totalorder %s25, %s28
      %p34 = scmp.eq.s32.totalorder %s15, 0
      %p35 = por %p33, %p34
      %p36 = scmp.ne.s32.totalorder %s25, %s28
      %p37 = scmp.eq.s32.totalorder %s20, 1
      %p38 = por %p36, %p37
      %p39 = scmp.ne.s32.totalorder %s28, %s29
      %p40 = scmp.eq.s32.totalorder %s20, 0
      %p41 = por %p39, %p40
      %p42 = scmp.ne.s32.totalorder %s28, %s29
      %p43 = scmp.eq.s32.totalorder %s21, 1
      %p44 = por %p42, %p43
      %p46 = scmp.ne.s32.totalorder %s29, %s45
      %p47 = scmp.eq.s32.totalorder %s21, 0
      %p48 = por %p46, %p47
      %s50 = sadd.s32 %s49, 1
      %p53 = scmp.eq.s32.totalorder %s15, 1
      %p54 = scmp.ne.s32.totalorder %s49, %s51
      %p55 = scmp.eq.s32.totalorder %s15, 0
      %p56 = por %p54, %p55
      %p57 = scmp.ne.s32.totalorder %s49, %s51
      %p58 = scmp.eq.s32.totalorder %s20, 1
      %p59 = por %p57, %p58
      %p60 = scmp.ne.s32.totalorder %s51, %s52
      %p61 = scmp.eq.s32.totalorder %s20, 0
      %p62 = por %p60, %p61
      %p63 = scmp.ne.s32.totalorder %s51, %s52
      %p64 = scmp.eq.s32.totalorder %s21, 1
      %p65 = por %p63, %p64
      %p67 = scmp.ne.s32.totalorder %s52, %s66
      %p68 = scmp.eq.s32.totalorder %s21, 0
      %p69 = por %p67, %p68
      %s71 = sadd.s32 %s70, 1
      %p74 = scmp.eq.s32.totalorder %s15, 1
      %p75 = scmp.ne.s32.totalorder %s70, %s72
      %p76 = scmp.eq.s32.totalorder %s15, 0
      %p77 = por %p75, %p76
      %p78 = scmp.ne.s32.totalorder %s70, %s72
      %p79 = scmp.eq.s32.totalorder %s20, 1
      %p80 = por %p78, %p79
      %p81 = scmp.ne.s32.totalorder %s72, %s73
      %p82 = scmp.eq.s32.totalorder %s20, 0
      %p83 = por %p81, %p82
      %p84 = scmp.ne.s32.totalorder %s72, %s73
      %p85 = scmp.eq.s32.totalorder %s21, 1
      %p86 = por %p84, %p85
      %p88 = scmp.ne.s32.totalorder %s73, %s87
      %p89 = scmp.eq.s32.totalorder %s21, 0
      %p90 = por %p88, %p89
      %s92 = sadd.s32 %s91, 1
      %p95 = scmp.eq.s32.totalorder %s15, 1
      %p96 = scmp.ne.s32.totalorder %s91, %s93
      %p97 = scmp.eq.s32.totalorder %s15, 0
      %p98 = por %p96, %p97
      %p99 = scmp.ne.s32.totalorder %s91, %s93
      %p100 = scmp.eq.s32.totalorder %s20, 1
      %p101 = por %p99, %p100
      %p102 = scmp.ne.s32.totalorder %s93, %s94
      %p103 = scmp.eq.s32.totalorder %s20, 0
      %p104 = por %p102, %p103
      %p105 = scmp.ne.s32.totalorder %s93, %s94
      %p106 = scmp.eq.s32.totalorder %s21, 1
      %p107 = por %p105, %p106
      %p109 = scmp.ne.s32.totalorder %s94, %s108
      %p110 = scmp.eq.s32.totalorder %s21, 0
      %p111 = por %p109, %p110
      %s113 = sadd.s32 %s112, 1
      %p116 = scmp.eq.s32.totalorder %s15, 1
      %p117 = scmp.ne.s32.totalorder %s112, %s114
      %p118 = scmp.eq.s32.totalorder %s15, 0
      %p119 = por %p117, %p118
      %p120 = scmp.ne.s32.totalorder %s112, %s114
      %p121 = scmp.eq.s32.totalorder %s20, 1
      %p122 = por %p120, %p121
      %p123 = scmp.ne.s32.totalorder %s114, %s115
      %p124 = scmp.eq.s32.totalorder %s20, 0
      %p125 = por %p123, %p124
      %p126 = scmp.ne.s32.totalorder %s114, %s115
      %p127 = scmp.eq.s32.totalorder %s21, 1
      %p128 = por %p126, %p127
      %p130 = scmp.ne.s32.totalorder %s115, %s129
      %p131 = scmp.eq.s32.totalorder %s21, 0
      %p132 = por %p130, %p131
      %s133 = ssub.s32 %s15, %s22
      %p134 = scmp.eq.s32.totalorder %s133, 0
      %s136 = sadd.s32 %s135, 1
      %s137 = scalar_select %p134, %s135, %s136
      %p140 = pneg %p134
      %p141 = scmp.eq.s32.totalorder %s15, 1
      %p142 = por %p140, %p141
      %p143 = scmp.ne.s32.totalorder %s135, %s138
      %p144 = scmp.eq.s32.totalorder %s15, 0
      %p145 = por %p143, %p144
      %p146 = scmp.ne.s32.totalorder %s135, %s138
      %p147 = scmp.eq.s32.totalorder %s20, 1
      %p148 = por %p146, %p147
      %p149 = scmp.ne.s32.totalorder %s138, %s139
      %p150 = scmp.eq.s32.totalorder %s20, 0
      %p151 = por %p149, %p150
      %p152 = scmp.ne.s32.totalorder %s138, %s139
      %p153 = scmp.eq.s32.totalorder %s21, 1
      %p154 = por %p152, %p153
      %p156 = scmp.ne.s32.totalorder %s139, %s155
      %p157 = scmp.eq.s32.totalorder %s21, 0
      %p158 = por %p156, %p157
      %p159 = scmp.le.s32.totalorder 1, %s15
      %p160 = scmp.lt.s32.totalorder %s15, 3
      %p161 = pnand %p159, %p160
      %p162 = pneg %p161
      // Predicated region
      $region9: #{semantics_extractor_forward.4} parent=5 // pred_check
        _
      $region10: #{semantics_extractor_forward.4} parent=5 // pred_check_branch
        %164 = sbr.rel (%p161) target = $region12
      $region11: #{semantics_extractor_forward.4} parent=5 // pred_region
        %s165 = ssub.s32 %s15, 1
        // Predicated region
        $region13: #{semantics_extractor_forward.4} parent=11 // pred_check
          %p166 = pneg %p62
        $region14: #{semantics_extractor_forward.4} parent=11 // pred_check_branch
          %168 = sbr.rel (%p166) target = $region16
        $region15: #{semantics_extractor_forward.4} parent=11 // pred_region
          _
        $region16: #{semantics_extractor_forward.4} parent=11 // pred_fallthru
          _
        // Predicated region
        $region17: #{semantics_extractor_forward.4} parent=11 // pred_check
          %p169 = pneg %p83
        $region18: #{semantics_extractor_forward.4} parent=11 // pred_check_branch
          %171 = sbr.rel (%p169) target = $region20
        $region19: #{semantics_extractor_forward.4} parent=11 // pred_region
          _
        $region20: #{semantics_extractor_forward.4} parent=11 // pred_fallthru
          _
        // Predicated region
        $region21: #{semantics_extractor_forward.4} parent=11 // pred_check
          %p172 = pneg %p104
        $region22: #{semantics_extractor_forward.4} parent=11 // pred_check_branch
          %174 = sbr.rel (%p172) target = $region24
        $region23: #{semantics_extractor_forward.4} parent=11 // pred_region
          %s176 = ssub.s32 512, 512
          %177 = vsyncadd [#allocation5], %s176
          %s178 = sshll.u32 [#allocation4], 4
          %s179 = int_to_ptr.vmem [resolvable:$true] %s178
          %184 = dma.hbm_to_vmem [thread:$0]  %s3, 512, %s179, [#allocation5], 128, 128, 8
        $region24: #{semantics_extractor_forward.4} parent=11 // pred_fallthru
          _
        // Predicated region
        $region25: #{semantics_extractor_forward.4} parent=11 // pred_check
          %p185 = pneg %p125
        $region26: #{semantics_extractor_forward.4} parent=11 // pred_check_branch
          %187 = sbr.rel (%p185) target = $region28
        $region27: #{semantics_extractor_forward.4} parent=11 // pred_region
          _
        $region28: #{semantics_extractor_forward.4} parent=11 // pred_fallthru
          _
      $region12: #{semantics_extractor_forward.4} parent=5 // pred_fallthru
        _
      %p188 = scmp.lt.s32.totalorder %s15, 2
      // Predicated region
      $region29: #{semantics_extractor_forward.4} parent=5 // pred_check
        %p189 = pneg %p188
      $region30: #{semantics_extractor_forward.4} parent=5 // pred_check_branch
        %191 = sbr.rel (%p189) target = $region32
      $region31: #{semantics_extractor_forward.4} parent=5 // pred_region
        // Predicated region
        $region33: #{semantics_extractor_forward.4} parent=31 // pred_check
          %p192 = pneg %p35
        $region34: #{semantics_extractor_forward.4} parent=31 // pred_check_branch
          %194 = sbr.rel (%p192) target = $region36
        $region35: #{semantics_extractor_forward.4} parent=31 // pred_region
          %s195 = sand.u32 %s25, 1
          %s196 = scalar_lea.sflag [#allocation3], %s195
          %s197 = sand.u32 %s25, 1
          %s198 = smul.addr %s197, 64
          %s199 = scalar_lea.vmem [#allocation2], %s198
          %s201 = ssub.s32 1024, 1024
          %202 = vsyncadd %s196, %s201
          %s203 = smul.addr %s15, 8
          %s204 = smul.addr %s203, 128
          %s205 = scalar_lea.hbm %s0, %s204
          %s206 = sshll.u32 %s199, 4
          %s207 = int_to_ptr.vmem [resolvable:$true] %s206
          %212 = dma.hbm_to_vmem [thread:$0]  %s205, 1024, %s207, %s196, 128, 128, 8
        $region36: #{semantics_extractor_forward.4} parent=31 // pred_fallthru
          _
      $region32: #{semantics_extractor_forward.4} parent=5 // pred_fallthru
        _
      %p213 = scmp.le.s32.totalorder 1, %s15
      %p214 = scmp.lt.s32.totalorder %s15, 3
      %p215 = pnand %p213, %p214
      %p216 = pneg %p215
      // Predicated region
      $region37: #{semantics_extractor_forward.4} parent=5 // pred_check
        _
      $region38: #{semantics_extractor_forward.4} parent=5 // pred_check_branch
        %218 = sbr.rel (%p215) target = $region40
      $region39: #{semantics_extractor_forward.4} parent=5 // pred_region
        %s219 = ssub.s32 %s15, 1
        %s220 = sand.u32 %s28, 1
        %s221 = scalar_lea.sflag [#allocation3], %s220
        %s222 = sand.u32 %s28, 1
        %s223 = smul.addr %s222, 64
        %s224 = scalar_lea.vmem [#allocation2], %s223
        // Predicated region
        $region41: #{semantics_extractor_forward.4} parent=39 // pred_check
          %p225 = pneg %p41
        $region42: #{semantics_extractor_forward.4} parent=39 // pred_check_branch
          %227 = sbr.rel (%p225) target = $region44
        $region43: #{semantics_extractor_forward.4} parent=39 // pred_region
          %228 = dma.done %s221, 1024
        $region44: #{semantics_extractor_forward.4} parent=39 // pred_fallthru
          _
        // Predicated region
        $region45: #{semantics_extractor_forward.4} parent=39 // pred_check
          %p229 = pneg %p104
        $region46: #{semantics_extractor_forward.4} parent=39 // pred_check_branch
          %231 = sbr.rel (%p229) target = $region48
        $region47: #{semantics_extractor_forward.4} parent=39 // pred_region
          %232 = dma.done [#allocation5], 512
        $region48: #{semantics_extractor_forward.4} parent=39 // pred_fallthru
          _
        %s233 = sand.u32 %s28, 1
        %s234 = scalar_lea.sflag [#allocation3], %s233
        %s235 = sand.u32 %s28, 1
        %s236 = smul.addr %s235, 64
        %s237 = scalar_lea.vmem [#allocation2], %s236
        %p238 = pneg %p41
        %p239 = pneg %p38
        %p240 = pneg %p62
        %p241 = pneg %p59
        %p242 = pneg %p83
        %p243 = pneg %p80
        %p244 = pneg %p104
        %p245 = pneg %p101
        %p246 = pneg %p125
        %p247 = pneg %p122
        %p248 = pneg %p151
        %p249 = pneg %p148
        %p250 = scmp.lt.s32.totalorder %s20, 1
        %s251 = scalar_select %p250, %s20, 1
        %s252 = smul.addr %s251, 8
        %s253 = smul.addr %s252, 8
        %s254 = scalar_lea.vmem %s5, %s253
        %p255 = scmp.lt.s32.totalorder %s20, 1
        %s256 = scalar_select %p255, %s20, 1
        %s257 = smul.addr %s256, 8
        %s258 = smul.addr %s257, 8
        %s259 = scalar_lea.vmem %s5, %s258
        %v260 = vld [vmem:[%s224] sm:$0xff]
        %v261 = vld [vmem:[%s224 + $0x8] sm:$0xff]
        %v262 = vld [vmem:[%s224 + $0x10] sm:$0xff]
        %v263 = vld [vmem:[%s224 + $0x18] sm:$0xff]
        %v264 = vld [vmem:[%s224 + $0x20] sm:$0xff]
        %v265 = vld [vmem:[%s224 + $0x28] sm:$0xff]
        %v266 = vld [vmem:[%s224 + $0x30] sm:$0xff]
        %v267 = vld [vmem:[%s224 + $0x38] sm:$0xff]
        %v268 = vld [vmem:[%s1] sm:$0xff]
        %v269 = vld [vmem:[%s1 + $0x8] sm:$0xff]
        %v270 = vld [vmem:[%s1 + $0x10] sm:$0xff]
        %v271 = vld [vmem:[%s1 + $0x18] sm:$0xff]
        %v272 = vld [vmem:[%s2] sm:$0x1]
        %v273 = vld [vmem:[#allocation4] sm:$0xff]
        %v274 = vld [vmem:[#allocation4 + $0x8] sm:$0xff]
        %v275 = vld [vmem:[#allocation4 + $0x10] sm:$0xff]
        %v276 = vld [vmem:[#allocation4 + $0x18] sm:$0xff]
        %v277 = vld [vmem:[%s4] sm:$0x1]
        %v279 = vlaneseq
        %v280 = vshrl.u32 %v279, 7
        %v281 = vsub.s32 0, %v280
        %v282 = vrot.slane %v272, %v281
        %vm284 = vcmask 261120
        %v286 = vsel %vm284, %v260, 0
        %v289 = vsel %vm284, %v261, 0
        %v292 = vsel %vm284, %v262, 0
        %v295 = vsel %vm284, %v263, 0
        %v298 = vsel %vm284, %v264, 0
        %v301 = vsel %vm284, %v265, 0
        %v304 = vsel %vm284, %v266, 0
        %v307 = vsel %vm284, %v267, 0
        %309 = vmatprep.subr.mxu0 0.0
        %310 = vmatpush1.msra.mxu0 0.0
        %311 = vmatprep.subr.mxu0 0.0
        %312 = vmatpush1.msra.mxu0 0.0
        %313 = vmatprep.subr.mxu0 0.0
        %314 = vmatpush1.msra.mxu0 0.0
        %315 = vmatprep.subr.mxu0 0.0
        %316 = vmatpush1.msra.mxu0 0.0
        %317 = vmatprep.subr.mxu0 0.0
        %318 = vmatpush1.msra.mxu0 0.0
        %319 = vmatprep.subr.mxu0 0.0
        %320 = vmatpush1.msra.mxu0 0.0
        %321 = vmatprep.subr.mxu0 0.0
        %322 = vmatpush1.msra.mxu0 0.0
        %323 = vmatprep.subr.mxu0 0.0
        %324 = vmatpush1.msra.mxu0 0.0
        %325 = vmatprep.subr.mxu0 0.0
        %326 = vmatpush1.msra.mxu0 0.0
        %327 = vmatprep.subr.mxu0 0.0
        %328 = vmatpush1.msra.mxu0 0.0
        %329 = vmatprep.subr.mxu0 0.0
        %330 = vmatpush1.msra.mxu0 0.0
        %331 = vmatprep.subr.mxu0 0.0
        %332 = vmatpush1.msra.mxu0 0.0
        %333 = vmatprep.subr.mxu0 0.0
        %334 = vmatpush1.msra.mxu0 %v271
        %335 = vmatprep.subr.mxu0 0.0
        %336 = vmatpush1.msra.mxu0 %v270
        %337 = vmatprep.subr.mxu0 0.0
        %338 = vmatpush1.msra.mxu0 %v269
        %339 = vmatprep.subr.mxu0 0.0
        %340 = vmatpush1.msra.mxu0 %v268
        %341 = vmatprep.subr.mxu0 0.0
        %342 = vmatpush2.msra.mxu0 0.0
        %343 = vmatprep.subr.mxu0 0.0
        %344 = vmatpush2.msra.mxu0 0.0
        %345 = vmatprep.subr.mxu0 0.0
        %346 = vmatpush2.msra.mxu0 0.0
        %347 = vmatprep.subr.mxu0 0.0
        %348 = vmatpush2.msra.mxu0 0.0
        %349 = vmatprep.subr.mxu0 0.0
        %350 = vmatpush2.msra.mxu0 0.0
        %351 = vmatprep.subr.mxu0 0.0
        %352 = vmatpush2.msra.mxu0 0.0
        %353 = vmatprep.subr.mxu0 0.0
        %354 = vmatpush2.msra.mxu0 0.0
        %355 = vmatprep.subr.mxu0 0.0
        %356 = vmatpush2.msra.mxu0 0.0
        %357 = vmatprep.subr.mxu0 0.0
        %358 = vmatpush2.msra.mxu0 0.0
        %359 = vmatprep.subr.mxu0 0.0
        %360 = vmatpush2.msra.mxu0 0.0
        %361 = vmatprep.subr.mxu0 0.0
        %362 = vmatpush2.msra.mxu0 0.0
        %363 = vmatprep.subr.mxu0 0.0
        %364 = vmatpush2.msra.mxu0 0.0
        %365 = vmatprep.subr.mxu0 0.0
        %366 = vmatpush2.msra.mxu0 0.0
        %367 = vmatprep.subr.mxu0 0.0
        %368 = vmatpush2.msra.mxu0 0.0
        %369 = vmatprep.subr.mxu0 0.0
        %370 = vmatpush2.msra.mxu0 0.0
        %371 = vmatprep.subr.mxu0 0.0
        %372 = vmatpush2.msra.mxu0 0.0
        %373 = vmatprep.mubr.f32.mxu0 0.0
        %374 = vmatmul.mubr.f32.gmra.mxu0 %v286
        %v375 = vpop.f32.mrf.mxu0
        %v376 = vadd.f32 %v282, %v375
        %v377 = vpop.f32.mrf.mxu0
        %378 = vmatprep.mubr.f32.mxu0 0.0
        %379 = vmatmul.mubr.f32.gmra.mxu0 %v289
        %v380 = vpop.f32.mrf.mxu0
        %v381 = vadd.f32 %v282, %v380
        %v382 = vpop.f32.mrf.mxu0
        %383 = vmatprep.mubr.f32.mxu0 0.0
        %384 = vmatmul.mubr.f32.gmra.mxu0 %v292
        %v385 = vpop.f32.mrf.mxu0
        %v386 = vadd.f32 %v282, %v385
        %v387 = vpop.f32.mrf.mxu0
        %388 = vmatprep.mubr.f32.mxu0 0.0
        %389 = vmatmul.mubr.f32.gmra.mxu0 %v295
        %v390 = vpop.f32.mrf.mxu0
        %v391 = vadd.f32 %v282, %v390
        %v392 = vpop.f32.mrf.mxu0
        %393 = vmatprep.mubr.f32.mxu0 0.0
        %394 = vmatmul.mubr.f32.gmra.mxu0 %v298
        %v395 = vpop.f32.mrf.mxu0
        %v396 = vadd.f32 %v282, %v395
        %v397 = vpop.f32.mrf.mxu0
        %398 = vmatprep.mubr.f32.mxu0 0.0
        %399 = vmatmul.mubr.f32.gmra.mxu0 %v301
        %v400 = vpop.f32.mrf.mxu0
        %v401 = vadd.f32 %v282, %v400
        %v402 = vpop.f32.mrf.mxu0
        %403 = vmatprep.mubr.f32.mxu0 0.0
        %404 = vmatmul.mubr.f32.gmra.mxu0 %v304
        %v405 = vpop.f32.mrf.mxu0
        %v406 = vadd.f32 %v282, %v405
        %v407 = vpop.f32.mrf.mxu0
        %408 = vmatprep.mubr.f32.mxu0 0.0
        %409 = vmatmul.mubr.f32.gmra.mxu0 %v307
        %v410 = vpop.f32.mrf.mxu0
        %v411 = vadd.f32 %v282, %v410
        %v412 = vpop.f32.mrf.mxu0
        %413 = vdwg.mxu0
        %v415 = vlaneseq
        %v416 = vshrl.u32 %v415, 7
        %v417 = vsub.s32 0, %v416
        %v418 = vrot.slane %v277, %v417
        %v420 = vadd.f32 %v260, %v418
        %v421 = vadd.f32 %v261, %v418
        %v422 = vadd.f32 %v262, %v418
        %v423 = vadd.f32 %v263, %v418
        %v424 = vadd.f32 %v264, %v418
        %v425 = vadd.f32 %v265, %v418
        %v426 = vadd.f32 %v266, %v418
        %v427 = vadd.f32 %v267, %v418
        %436 = vrot.lane.b32.xlu0 %v376, 112
        %v437 = vpop.permute.xlu0 %436
        %438 = vrot.lane.b32.xlu0 %v381, 112
        %v439 = vpop.permute.xlu0 %438
        %440 = vrot.lane.b32.xlu0 %v386, 112
        %v441 = vpop.permute.xlu0 %440
        %442 = vrot.lane.b32.xlu0 %v391, 112
        %v443 = vpop.permute.xlu0 %442
        %444 = vrot.lane.b32.xlu0 %v396, 112
        %v445 = vpop.permute.xlu0 %444
        %446 = vrot.lane.b32.xlu0 %v401, 112
        %v447 = vpop.permute.xlu0 %446
        %448 = vrot.lane.b32.xlu0 %v406, 112
        %v449 = vpop.permute.xlu0 %448
        %450 = vrot.lane.b32.xlu0 %v411, 112
        %v451 = vpop.permute.xlu0 %450
        %vm452 = vcmask 64512
        %v453 = vsel %vm452, %v376, 0
        %v455 = vsel %vm452, %v381, 0
        %v457 = vsel %vm452, %v386, 0
        %v459 = vsel %vm452, %v391, 0
        %v461 = vsel %vm452, %v396, 0
        %v463 = vsel %vm452, %v401, 0
        %v465 = vsel %vm452, %v406, 0
        %v467 = vsel %vm452, %v411, 0
        %v469 = vsel %vm452, %v437, 0
        %v471 = vsel %vm452, %v439, 0
        %v473 = vsel %vm452, %v441, 0
        %v475 = vsel %vm452, %v443, 0
        %v477 = vsel %vm452, %v445, 0
        %v479 = vsel %vm452, %v447, 0
        %v481 = vsel %vm452, %v449, 0
        %v483 = vsel %vm452, %v451, 0
        %485 = vmatprep.subr.mxu0 0.0
        %486 = vmatpush1.xpose.msra.mxu0 0.0
        %487 = vmatprep.subr.mxu0 0.0
        %488 = vmatpush1.xpose.msra.mxu0 0.0
        %489 = vmatprep.subr.mxu0 0.0
        %490 = vmatpush1.xpose.msra.mxu0 0.0
        %491 = vmatprep.subr.mxu0 0.0
        %492 = vmatpush1.xpose.msra.mxu0 0.0
        %493 = vmatprep.subr.mxu0 0.0
        %494 = vmatpush1.xpose.msra.mxu0 0.0
        %495 = vmatprep.subr.mxu0 0.0
        %496 = vmatpush1.xpose.msra.mxu0 0.0
        %497 = vmatprep.subr.mxu0 0.0
        %498 = vmatpush1.xpose.msra.mxu0 0.0
        %499 = vmatprep.subr.mxu0 0.0
        %500 = vmatpush1.xpose.msra.mxu0 0.0
        %501 = vmatprep.subr.mxu0 0.0
        %502 = vmatpush1.xpose.msra.mxu0 %v483
        %503 = vmatprep.subr.mxu0 0.0
        %504 = vmatpush1.xpose.msra.mxu0 %v481
        %505 = vmatprep.subr.mxu0 0.0
        %506 = vmatpush1.xpose.msra.mxu0 %v479
        %507 = vmatprep.subr.mxu0 0.0
        %508 = vmatpush1.xpose.msra.mxu0 %v477
        %509 = vmatprep.subr.mxu0 0.0
        %510 = vmatpush1.xpose.msra.mxu0 %v475
        %511 = vmatprep.subr.mxu0 0.0
        %512 = vmatpush1.xpose.msra.mxu0 %v473
        %513 = vmatprep.subr.mxu0 0.0
        %514 = vmatpush1.xpose.msra.mxu0 %v471
        %515 = vmatprep.subr.mxu0 0.0
        %516 = vmatpush1.xpose.msra.mxu0 %v469
        %517 = vmatprep.subr.mxu0 0.0
        %518 = vmatpush2.xpose.msra.mxu0 0.0
        %519 = vmatprep.subr.mxu0 0.0
        %520 = vmatpush2.xpose.msra.mxu0 0.0
        %521 = vmatprep.subr.mxu0 0.0
        %522 = vmatpush2.xpose.msra.mxu0 0.0
        %523 = vmatprep.subr.mxu0 0.0
        %524 = vmatpush2.xpose.msra.mxu0 0.0
        %525 = vmatprep.subr.mxu0 0.0
        %526 = vmatpush2.xpose.msra.mxu0 0.0
        %527 = vmatprep.subr.mxu0 0.0
        %528 = vmatpush2.xpose.msra.mxu0 0.0
        %529 = vmatprep.subr.mxu0 0.0
        %530 = vmatpush2.xpose.msra.mxu0 0.0
        %531 = vmatprep.subr.mxu0 0.0
        %532 = vmatpush2.xpose.msra.mxu0 0.0
        %533 = vmatprep.subr.mxu0 0.0
        %534 = vmatpush2.xpose.msra.mxu0 0.0
        %535 = vmatprep.subr.mxu0 0.0
        %536 = vmatpush2.xpose.msra.mxu0 0.0
        %537 = vmatprep.subr.mxu0 0.0
        %538 = vmatpush2.xpose.msra.mxu0 0.0
        %539 = vmatprep.subr.mxu0 0.0
        %540 = vmatpush2.xpose.msra.mxu0 0.0
        %541 = vmatprep.subr.mxu0 0.0
        %542 = vmatpush2.xpose.msra.mxu0 0.0
        %543 = vmatprep.subr.mxu0 0.0
        %544 = vmatpush2.xpose.msra.mxu0 0.0
        %545 = vmatprep.subr.mxu0 0.0
        %546 = vmatpush2.xpose.msra.mxu0 0.0
        %547 = vmatprep.subr.mxu0 0.0
        %548 = vmatpush2.xpose.msra.mxu0 0.0
        %549 = vmatprep.mubr.f32.mxu0 0.0
        %550 = vmatmul.mubr.f32.gmra.mxu0 %v453
        %v551 = vpop.f32.mrf.mxu0
        %v552 = vadd.f32 0.0, %v551
        %v553 = vpop.f32.mrf.mxu0
        %554 = vmatprep.mubr.f32.mxu0 0.0
        %555 = vmatmul.mubr.f32.gmra.mxu0 %v455
        %v556 = vpop.f32.mrf.mxu0
        %v557 = vadd.f32 0.0, %v556
        %v558 = vpop.f32.mrf.mxu0
        %559 = vmatprep.mubr.f32.mxu0 0.0
        %560 = vmatmul.mubr.f32.gmra.mxu0 %v457
        %v561 = vpop.f32.mrf.mxu0
        %v562 = vadd.f32 0.0, %v561
        %v563 = vpop.f32.mrf.mxu0
        %564 = vmatprep.mubr.f32.mxu0 0.0
        %565 = vmatmul.mubr.f32.gmra.mxu0 %v459
        %v566 = vpop.f32.mrf.mxu0
        %v567 = vadd.f32 0.0, %v566
        %v568 = vpop.f32.mrf.mxu0
        %569 = vmatprep.mubr.f32.mxu0 0.0
        %570 = vmatmul.mubr.f32.gmra.mxu0 %v461
        %v571 = vpop.f32.mrf.mxu0
        %v572 = vadd.f32 0.0, %v571
        %v573 = vpop.f32.mrf.mxu0
        %574 = vmatprep.mubr.f32.mxu0 0.0
        %575 = vmatmul.mubr.f32.gmra.mxu0 %v463
        %v576 = vpop.f32.mrf.mxu0
        %v577 = vadd.f32 0.0, %v576
        %v578 = vpop.f32.mrf.mxu0
        %579 = vmatprep.mubr.f32.mxu0 0.0
        %580 = vmatmul.mubr.f32.gmra.mxu0 %v465
        %v581 = vpop.f32.mrf.mxu0
        %v582 = vadd.f32 0.0, %v581
        %v583 = vpop.f32.mrf.mxu0
        %584 = vmatprep.mubr.f32.mxu0 0.0
        %585 = vmatmul.mubr.f32.gmra.mxu0 %v467
        %v586 = vpop.f32.mrf.mxu0
        %v587 = vadd.f32 0.0, %v586
        %v588 = vpop.f32.mrf.mxu0
        %589 = vdwg.mxu0
        %vm590 = vcmask 523264
        %v591 = vsel %vm590, %v552, -inf
        %592 = vmax.xlane.f32.xlu0 %v591
        %v593 = vpop.xlane.xlu0 %592
        %v594 = vsel %vm590, %v557, -inf
        %595 = vmax.xlane.f32.xlu0 %v594
        %v596 = vpop.xlane.xlu0 %595
        %v597 = vsel %vm590, %v562, -inf
        %598 = vmax.xlane.f32.xlu0 %v597
        %v599 = vpop.xlane.xlu0 %598
        %v600 = vsel %vm590, %v567, -inf
        %601 = vmax.xlane.f32.xlu0 %v600
        %v602 = vpop.xlane.xlu0 %601
        %v603 = vsel %vm590, %v572, -inf
        %604 = vmax.xlane.f32.xlu0 %v603
        %v605 = vpop.xlane.xlu0 %604
        %v606 = vsel %vm590, %v577, -inf
        %607 = vmax.xlane.f32.xlu0 %v606
        %v608 = vpop.xlane.xlu0 %607
        %v609 = vsel %vm590, %v582, -inf
        %610 = vmax.xlane.f32.xlu0 %v609
        %v611 = vpop.xlane.xlu0 %610
        %v612 = vsel %vm590, %v587, -inf
        %613 = vmax.xlane.f32.xlu0 %v612
        %v614 = vpop.xlane.xlu0 %613
        %v615 = vsub.f32 %v552, %v593
        %v616 = vsub.f32 %v557, %v596
        %v617 = vsub.f32 %v562, %v599
        %v618 = vsub.f32 %v567, %v602
        %v619 = vsub.f32 %v572, %v605
        %v620 = vsub.f32 %v577, %v608
        %v621 = vsub.f32 %v582, %v611
        %v622 = vsub.f32 %v587, %v614
        %v623 = vmul.f32 %v615, 1.442695
        %v624 = vpow.pop %v623
        %v625 = vmul.f32 %v616, 1.442695
        %v626 = vpow.pop %v625
        %v627 = vmul.f32 %v617, 1.442695
        %v628 = vpow.pop %v627
        %v629 = vmul.f32 %v618, 1.442695
        %v630 = vpow.pop %v629
        %v631 = vmul.f32 %v619, 1.442695
        %v632 = vpow.pop %v631
        %v633 = vmul.f32 %v620, 1.442695
        %v634 = vpow.pop %v633
        %v635 = vmul.f32 %v621, 1.442695
        %v636 = vpow.pop %v635
        %v637 = vmul.f32 %v622, 1.442695
        %v638 = vpow.pop %v637
        %v639 = vsel %vm590, %v624, 0.0
        %640 = vadd.xlane.f32.xlu0 %v639
        %v641 = vpop.xlane.xlu0 %640
        %v642 = vsel %vm590, %v626, 0.0
        %643 = vadd.xlane.f32.xlu0 %v642
        %v644 = vpop.xlane.xlu0 %643
        %v645 = vsel %vm590, %v628, 0.0
        %646 = vadd.xlane.f32.xlu0 %v645
        %v647 = vpop.xlane.xlu0 %646
        %v648 = vsel %vm590, %v630, 0.0
        %649 = vadd.xlane.f32.xlu0 %v648
        %v650 = vpop.xlane.xlu0 %649
        %v651 = vsel %vm590, %v632, 0.0
        %652 = vadd.xlane.f32.xlu0 %v651
        %v653 = vpop.xlane.xlu0 %652
        %v654 = vsel %vm590, %v634, 0.0
        %655 = vadd.xlane.f32.xlu0 %v654
        %v656 = vpop.xlane.xlu0 %655
        %v657 = vsel %vm590, %v636, 0.0
        %658 = vadd.xlane.f32.xlu0 %v657
        %v659 = vpop.xlane.xlu0 %658
        %v660 = vsel %vm590, %v638, 0.0
        %661 = vadd.xlane.f32.xlu0 %v660
        %v662 = vpop.xlane.xlu0 %661
        %v663 = vrcp.pop %v641
        %v664 = vrcp.pop %v644
        %v665 = vrcp.pop %v647
        %v666 = vrcp.pop %v650
        %v667 = vrcp.pop %v653
        %v668 = vrcp.pop %v656
        %v669 = vrcp.pop %v659
        %v670 = vrcp.pop %v662
        %v671 = vmul.f32 %v624, %v663
        %v672 = vmul.f32 %v626, %v664
        %v673 = vmul.f32 %v628, %v665
        %v674 = vmul.f32 %v630, %v666
        %v675 = vmul.f32 %v632, %v667
        %v676 = vmul.f32 %v634, %v668
        %v677 = vmul.f32 %v636, %v669
        %v678 = vmul.f32 %v638, %v670
        %679 = vrot.lane.b32.xlu0 %v376, 96
        %v680 = vpop.permute.xlu0 %679
        %681 = vrot.lane.b32.xlu0 %v381, 96
        %v682 = vpop.permute.xlu0 %681
        %683 = vrot.lane.b32.xlu0 %v386, 96
        %v684 = vpop.permute.xlu0 %683
        %685 = vrot.lane.b32.xlu0 %v391, 96
        %v686 = vpop.permute.xlu0 %685
        %687 = vrot.lane.b32.xlu0 %v396, 96
        %v688 = vpop.permute.xlu0 %687
        %689 = vrot.lane.b32.xlu0 %v401, 96
        %v690 = vpop.permute.xlu0 %689
        %691 = vrot.lane.b32.xlu0 %v406, 96
        %v692 = vpop.permute.xlu0 %691
        %693 = vrot.lane.b32.xlu0 %v411, 96
        %v694 = vpop.permute.xlu0 %693
        %v704 = vsel %vm590, %v671, 0
        %v707 = vsel %vm590, %v672, 0
        %v710 = vsel %vm590, %v673, 0
        %v713 = vsel %vm590, %v674, 0
        %v716 = vsel %vm590, %v675, 0
        %v719 = vsel %vm590, %v676, 0
        %v722 = vsel %vm590, %v677, 0
        %v725 = vsel %vm590, %v678, 0
        %727 = vmatprep.subr.mxu0 0.0
        %728 = vmatpush1.msra.mxu0 0.0
        %729 = vmatprep.subr.mxu0 0.0
        %730 = vmatpush1.msra.mxu0 0.0
        %731 = vmatprep.subr.mxu0 0.0
        %732 = vmatpush1.msra.mxu0 0.0
        %733 = vmatprep.subr.mxu0 0.0
        %734 = vmatpush1.msra.mxu0 0.0
        %735 = vmatprep.subr.mxu0 0.0
        %736 = vmatpush1.msra.mxu0 0.0
        %737 = vmatprep.subr.mxu0 0.0
        %738 = vmatpush1.msra.mxu0 0.0
        %739 = vmatprep.subr.mxu0 0.0
        %740 = vmatpush1.msra.mxu0 0.0
        %741 = vmatprep.subr.mxu0 0.0
        %742 = vmatpush1.msra.mxu0 0.0
        %743 = vmatprep.subr.mxu0 0.0
        %744 = vmatpush1.msra.mxu0 %v694
        %745 = vmatprep.subr.mxu0 0.0
        %746 = vmatpush1.msra.mxu0 %v692
        %747 = vmatprep.subr.mxu0 0.0
        %748 = vmatpush1.msra.mxu0 %v690
        %749 = vmatprep.subr.mxu0 0.0
        %750 = vmatpush1.msra.mxu0 %v688
        %751 = vmatprep.subr.mxu0 0.0
        %752 = vmatpush1.msra.mxu0 %v686
        %753 = vmatprep.subr.mxu0 0.0
        %754 = vmatpush1.msra.mxu0 %v684
        %755 = vmatprep.subr.mxu0 0.0
        %756 = vmatpush1.msra.mxu0 %v682
        %757 = vmatprep.subr.mxu0 0.0
        %758 = vmatpush1.msra.mxu0 %v680
        %759 = vmatprep.subr.mxu0 0.0
        %760 = vmatpush2.msra.mxu0 0.0
        %761 = vmatprep.subr.mxu0 0.0
        %762 = vmatpush2.msra.mxu0 0.0
        %763 = vmatprep.subr.mxu0 0.0
        %764 = vmatpush2.msra.mxu0 0.0
        %765 = vmatprep.subr.mxu0 0.0
        %766 = vmatpush2.msra.mxu0 0.0
        %767 = vmatprep.subr.mxu0 0.0
        %768 = vmatpush2.msra.mxu0 0.0
        %769 = vmatprep.subr.mxu0 0.0
        %770 = vmatpush2.msra.mxu0 0.0
        %771 = vmatprep.subr.mxu0 0.0
        %772 = vmatpush2.msra.mxu0 0.0
        %773 = vmatprep.subr.mxu0 0.0
        %774 = vmatpush2.msra.mxu0 0.0
        %775 = vmatprep.subr.mxu0 0.0
        %776 = vmatpush2.msra.mxu0 0.0
        %777 = vmatprep.subr.mxu0 0.0
        %778 = vmatpush2.msra.mxu0 0.0
        %779 = vmatprep.subr.mxu0 0.0
        %780 = vmatpush2.msra.mxu0 0.0
        %781 = vmatprep.subr.mxu0 0.0
        %782 = vmatpush2.msra.mxu0 0.0
        %783 = vmatprep.subr.mxu0 0.0
        %784 = vmatpush2.msra.mxu0 0.0
        %785 = vmatprep.subr.mxu0 0.0
        %786 = vmatpush2.msra.mxu0 0.0
        %787 = vmatprep.subr.mxu0 0.0
        %788 = vmatpush2.msra.mxu0 0.0
        %789 = vmatprep.subr.mxu0 0.0
        %790 = vmatpush2.msra.mxu0 0.0
        %791 = vmatprep.mubr.f32.mxu0 0.0
        %792 = vmatmul.mubr.f32.gmra.mxu0 %v704
        %v793 = vpop.f32.mrf.mxu0
        %v794 = vadd.f32 0.0, %v793
        %v795 = vpop.f32.mrf.mxu0
        %796 = vmatprep.mubr.f32.mxu0 0.0
        %797 = vmatmul.mubr.f32.gmra.mxu0 %v707
        %v798 = vpop.f32.mrf.mxu0
        %v799 = vadd.f32 0.0, %v798
        %v800 = vpop.f32.mrf.mxu0
        %801 = vmatprep.mubr.f32.mxu0 0.0
        %802 = vmatmul.mubr.f32.gmra.mxu0 %v710
        %v803 = vpop.f32.mrf.mxu0
        %v804 = vadd.f32 0.0, %v803
        %v805 = vpop.f32.mrf.mxu0
        %806 = vmatprep.mubr.f32.mxu0 0.0
        %807 = vmatmul.mubr.f32.gmra.mxu0 %v713
        %v808 = vpop.f32.mrf.mxu0
        %v809 = vadd.f32 0.0, %v808
        %v810 = vpop.f32.mrf.mxu0
        %811 = vmatprep.mubr.f32.mxu0 0.0
        %812 = vmatmul.mubr.f32.gmra.mxu0 %v716
        %v813 = vpop.f32.mrf.mxu0
        %v814 = vadd.f32 0.0, %v813
        %v815 = vpop.f32.mrf.mxu0
        %816 = vmatprep.mubr.f32.mxu0 0.0
        %817 = vmatmul.mubr.f32.gmra.mxu0 %v719
        %v818 = vpop.f32.mrf.mxu0
        %v819 = vadd.f32 0.0, %v818
        %v820 = vpop.f32.mrf.mxu0
        %821 = vmatprep.mubr.f32.mxu0 0.0
        %822 = vmatmul.mubr.f32.gmra.mxu0 %v722
        %v823 = vpop.f32.mrf.mxu0
        %v824 = vadd.f32 0.0, %v823
        %v825 = vpop.f32.mrf.mxu0
        %826 = vmatprep.mubr.f32.mxu0 0.0
        %827 = vmatmul.mubr.f32.gmra.mxu0 %v725
        %v828 = vpop.f32.mrf.mxu0
        %v829 = vadd.f32 0.0, %v828
        %v830 = vpop.f32.mrf.mxu0
        %831 = vdwg.mxu0
        %v832 = vmax.f32 %v794, 0.0
        %v833 = vmax.f32 %v799, 0.0
        %v834 = vmax.f32 %v804, 0.0
        %v835 = vmax.f32 %v809, 0.0
        %v836 = vmax.f32 %v814, 0.0
        %v837 = vmax.f32 %v819, 0.0
        %v838 = vmax.f32 %v824, 0.0
        %v839 = vmax.f32 %v829, 0.0
        %vm840 = vcmask 130048
        %v842 = vsel %vm840, %v832, 0
        %v845 = vsel %vm840, %v833, 0
        %v848 = vsel %vm840, %v834, 0
        %v851 = vsel %vm840, %v835, 0
        %v854 = vsel %vm840, %v836, 0
        %v857 = vsel %vm840, %v837, 0
        %v860 = vsel %vm840, %v838, 0
        %v863 = vsel %vm840, %v839, 0
        %865 = vmatprep.subr.mxu0 0.0
        %866 = vmatpush1.msra.mxu0 0.0
        %867 = vmatprep.subr.mxu0 0.0
        %868 = vmatpush1.msra.mxu0 0.0
        %869 = vmatprep.subr.mxu0 0.0
        %870 = vmatpush1.msra.mxu0 0.0
        %871 = vmatprep.subr.mxu0 0.0
        %872 = vmatpush1.msra.mxu0 0.0
        %873 = vmatprep.subr.mxu0 0.0
        %874 = vmatpush1.msra.mxu0 0.0
        %875 = vmatprep.subr.mxu0 0.0
        %876 = vmatpush1.msra.mxu0 0.0
        %877 = vmatprep.subr.mxu0 0.0
        %878 = vmatpush1.msra.mxu0 0.0
        %879 = vmatprep.subr.mxu0 0.0
        %880 = vmatpush1.msra.mxu0 0.0
        %881 = vmatprep.subr.mxu0 0.0
        %882 = vmatpush1.msra.mxu0 0.0
        %883 = vmatprep.subr.mxu0 0.0
        %884 = vmatpush1.msra.mxu0 0.0
        %885 = vmatprep.subr.mxu0 0.0
        %886 = vmatpush1.msra.mxu0 0.0
        %887 = vmatprep.subr.mxu0 0.0
        %888 = vmatpush1.msra.mxu0 0.0
        %889 = vmatprep.subr.mxu0 0.0
        %890 = vmatpush1.msra.mxu0 0.0
        %891 = vmatprep.subr.mxu0 0.0
        %892 = vmatpush1.msra.mxu0 0.0
        %893 = vmatprep.subr.mxu0 0.0
        %894 = vmatpush1.msra.mxu0 %v274
        %895 = vmatprep.subr.mxu0 0.0
        %896 = vmatpush1.msra.mxu0 %v273
        %897 = vmatprep.subr.mxu0 0.0
        %898 = vmatpush2.msra.mxu0 0.0
        %899 = vmatprep.subr.mxu0 0.0
        %900 = vmatpush2.msra.mxu0 0.0
        %901 = vmatprep.subr.mxu0 0.0
        %902 = vmatpush2.msra.mxu0 0.0
        %903 = vmatprep.subr.mxu0 0.0
        %904 = vmatpush2.msra.mxu0 0.0
        %905 = vmatprep.subr.mxu0 0.0
        %906 = vmatpush2.msra.mxu0 0.0
        %907 = vmatprep.subr.mxu0 0.0
        %908 = vmatpush2.msra.mxu0 0.0
        %909 = vmatprep.subr.mxu0 0.0
        %910 = vmatpush2.msra.mxu0 0.0
        %911 = vmatprep.subr.mxu0 0.0
        %912 = vmatpush2.msra.mxu0 0.0
        %913 = vmatprep.subr.mxu0 0.0
        %914 = vmatpush2.msra.mxu0 0.0
        %915 = vmatprep.subr.mxu0 0.0
        %916 = vmatpush2.msra.mxu0 0.0
        %917 = vmatprep.subr.mxu0 0.0
        %918 = vmatpush2.msra.mxu0 0.0
        %919 = vmatprep.subr.mxu0 0.0
        %920 = vmatpush2.msra.mxu0 0.0
        %921 = vmatprep.subr.mxu0 0.0
        %922 = vmatpush2.msra.mxu0 0.0
        %923 = vmatprep.subr.mxu0 0.0
        %924 = vmatpush2.msra.mxu0 0.0
        %925 = vmatprep.subr.mxu0 0.0
        %926 = vmatpush2.msra.mxu0 0.0
        %927 = vmatprep.subr.mxu0 0.0
        %928 = vmatpush2.msra.mxu0 0.0
        %929 = vmatprep.mubr.f32.mxu0 0.0
        %930 = vmatmul.mubr.f32.gmra.mxu0 %v842
        %v931 = vpop.f32.mrf.mxu0
        %v932 = vadd.f32 0.0, %v931
        %v933 = vpop.f32.mrf.mxu0
        %934 = vmatprep.mubr.f32.mxu0 0.0
        %935 = vmatmul.mubr.f32.gmra.mxu0 %v845
        %v936 = vpop.f32.mrf.mxu0
        %v937 = vadd.f32 0.0, %v936
        %v938 = vpop.f32.mrf.mxu0
        %939 = vmatprep.mubr.f32.mxu0 0.0
        %940 = vmatmul.mubr.f32.gmra.mxu0 %v848
        %v941 = vpop.f32.mrf.mxu0
        %v942 = vadd.f32 0.0, %v941
        %v943 = vpop.f32.mrf.mxu0
        %944 = vmatprep.mubr.f32.mxu0 0.0
        %945 = vmatmul.mubr.f32.gmra.mxu0 %v851
        %v946 = vpop.f32.mrf.mxu0
        %v947 = vadd.f32 0.0, %v946
        %v948 = vpop.f32.mrf.mxu0
        %949 = vmatprep.mubr.f32.mxu0 0.0
        %950 = vmatmul.mubr.f32.gmra.mxu0 %v854
        %v951 = vpop.f32.mrf.mxu0
        %v952 = vadd.f32 0.0, %v951
        %v953 = vpop.f32.mrf.mxu0
        %954 = vmatprep.mubr.f32.mxu0 0.0
        %955 = vmatmul.mubr.f32.gmra.mxu0 %v857
        %v956 = vpop.f32.mrf.mxu0
        %v957 = vadd.f32 0.0, %v956
        %v958 = vpop.f32.mrf.mxu0
        %959 = vmatprep.mubr.f32.mxu0 0.0
        %960 = vmatmul.mubr.f32.gmra.mxu0 %v860
        %v961 = vpop.f32.mrf.mxu0
        %v962 = vadd.f32 0.0, %v961
        %v963 = vpop.f32.mrf.mxu0
        %964 = vmatprep.mubr.f32.mxu0 0.0
        %965 = vmatmul.mubr.f32.gmra.mxu0 %v863
        %v966 = vpop.f32.mrf.mxu0
        %v967 = vadd.f32 0.0, %v966
        %v968 = vpop.f32.mrf.mxu0
        %969 = vdwg.mxu0
        %v970 = vadd.f32 %v420, %v932
        %v971 = vadd.f32 %v421, %v937
        %v972 = vadd.f32 %v422, %v942
        %v973 = vadd.f32 %v423, %v947
        %v974 = vadd.f32 %v424, %v952
        %v975 = vadd.f32 %v425, %v957
        %v976 = vadd.f32 %v426, %v962
        %v977 = vadd.f32 %v427, %v967
        %978 = vrot.lane.b32.xlu0 %v376, 120
        %v979 = vpop.permute.xlu0 %978
        %980 = vrot.lane.b32.xlu0 %v381, 120
        %v981 = vpop.permute.xlu0 %980
        %982 = vrot.lane.b32.xlu0 %v386, 120
        %v983 = vpop.permute.xlu0 %982
        %984 = vrot.lane.b32.xlu0 %v391, 120
        %v985 = vpop.permute.xlu0 %984
        %986 = vrot.lane.b32.xlu0 %v396, 120
        %v987 = vpop.permute.xlu0 %986
        %988 = vrot.lane.b32.xlu0 %v401, 120
        %v989 = vpop.permute.xlu0 %988
        %990 = vrot.lane.b32.xlu0 %v406, 120
        %v991 = vpop.permute.xlu0 %990
        %992 = vrot.lane.b32.xlu0 %v411, 120
        %v993 = vpop.permute.xlu0 %992
        %994 = vrot.lane.b32.xlu0 %v376, 104
        %v995 = vpop.permute.xlu0 %994
        %996 = vrot.lane.b32.xlu0 %v381, 104
        %v997 = vpop.permute.xlu0 %996
        %998 = vrot.lane.b32.xlu0 %v386, 104
        %v999 = vpop.permute.xlu0 %998
        %1000 = vrot.lane.b32.xlu0 %v391, 104
        %v1001 = vpop.permute.xlu0 %1000
        %1002 = vrot.lane.b32.xlu0 %v396, 104
        %v1003 = vpop.permute.xlu0 %1002
        %1004 = vrot.lane.b32.xlu0 %v401, 104
        %v1005 = vpop.permute.xlu0 %1004
        %1006 = vrot.lane.b32.xlu0 %v406, 104
        %v1007 = vpop.permute.xlu0 %1006
        %1008 = vrot.lane.b32.xlu0 %v411, 104
        %v1009 = vpop.permute.xlu0 %1008
        %v1010 = vsel %vm452, %v979, 0
        %v1012 = vsel %vm452, %v981, 0
        %v1014 = vsel %vm452, %v983, 0
        %v1016 = vsel %vm452, %v985, 0
        %v1018 = vsel %vm452, %v987, 0
        %v1020 = vsel %vm452, %v989, 0
        %v1022 = vsel %vm452, %v991, 0
        %v1024 = vsel %vm452, %v993, 0
        %v1026 = vsel %vm452, %v995, 0
        %v1028 = vsel %vm452, %v997, 0
        %v1030 = vsel %vm452, %v999, 0
        %v1032 = vsel %vm452, %v1001, 0
        %v1034 = vsel %vm452, %v1003, 0
        %v1036 = vsel %vm452, %v1005, 0
        %v1038 = vsel %vm452, %v1007, 0
        %v1040 = vsel %vm452, %v1009, 0
        %1042 = vmatprep.subr.mxu0 0.0
        %1043 = vmatpush1.xpose.msra.mxu0 0.0
        %1044 = vmatprep.subr.mxu0 0.0
        %1045 = vmatpush1.xpose.msra.mxu0 0.0
        %1046 = vmatprep.subr.mxu0 0.0
        %1047 = vmatpush1.xpose.msra.mxu0 0.0
        %1048 = vmatprep.subr.mxu0 0.0
        %1049 = vmatpush1.xpose.msra.mxu0 0.0
        %1050 = vmatprep.subr.mxu0 0.0
        %1051 = vmatpush1.xpose.msra.mxu0 0.0
        %1052 = vmatprep.subr.mxu0 0.0
        %1053 = vmatpush1.xpose.msra.mxu0 0.0
        %1054 = vmatprep.subr.mxu0 0.0
        %1055 = vmatpush1.xpose.msra.mxu0 0.0
        %1056 = vmatprep.subr.mxu0 0.0
        %1057 = vmatpush1.xpose.msra.mxu0 0.0
        %1058 = vmatprep.subr.mxu0 0.0
        %1059 = vmatpush1.xpose.msra.mxu0 %v1040
        %1060 = vmatprep.subr.mxu0 0.0
        %1061 = vmatpush1.xpose.msra.mxu0 %v1038
        %1062 = vmatprep.subr.mxu0 0.0
        %1063 = vmatpush1.xpose.msra.mxu0 %v1036
        %1064 = vmatprep.subr.mxu0 0.0
        %1065 = vmatpush1.xpose.msra.mxu0 %v1034
        %1066 = vmatprep.subr.mxu0 0.0
        %1067 = vmatpush1.xpose.msra.mxu0 %v1032
        %1068 = vmatprep.subr.mxu0 0.0
        %1069 = vmatpush1.xpose.msra.mxu0 %v1030
        %1070 = vmatprep.subr.mxu0 0.0
        %1071 = vmatpush1.xpose.msra.mxu0 %v1028
        %1072 = vmatprep.subr.mxu0 0.0
        %1073 = vmatpush1.xpose.msra.mxu0 %v1026
        %1074 = vmatprep.subr.mxu0 0.0
        %1075 = vmatpush2.xpose.msra.mxu0 0.0
        %1076 = vmatprep.subr.mxu0 0.0
        %1077 = vmatpush2.xpose.msra.mxu0 0.0
        %1078 = vmatprep.subr.mxu0 0.0
        %1079 = vmatpush2.xpose.msra.mxu0 0.0
        %1080 = vmatprep.subr.mxu0 0.0
        %1081 = vmatpush2.xpose.msra.mxu0 0.0
        %1082 = vmatprep.subr.mxu0 0.0
        %1083 = vmatpush2.xpose.msra.mxu0 0.0
        %1084 = vmatprep.subr.mxu0 0.0
        %1085 = vmatpush2.xpose.msra.mxu0 0.0
        %1086 = vmatprep.subr.mxu0 0.0
        %1087 = vmatpush2.xpose.msra.mxu0 0.0
        %1088 = vmatprep.subr.mxu0 0.0
        %1089 = vmatpush2.xpose.msra.mxu0 0.0
        %1090 = vmatprep.subr.mxu0 0.0
        %1091 = vmatpush2.xpose.msra.mxu0 0.0
        %1092 = vmatprep.subr.mxu0 0.0
        %1093 = vmatpush2.xpose.msra.mxu0 0.0
        %1094 = vmatprep.subr.mxu0 0.0
        %1095 = vmatpush2.xpose.msra.mxu0 0.0
        %1096 = vmatprep.subr.mxu0 0.0
        %1097 = vmatpush2.xpose.msra.mxu0 0.0
        %1098 = vmatprep.subr.mxu0 0.0
        %1099 = vmatpush2.xpose.msra.mxu0 0.0
        %1100 = vmatprep.subr.mxu0 0.0
        %1101 = vmatpush2.xpose.msra.mxu0 0.0
        %1102 = vmatprep.subr.mxu0 0.0
        %1103 = vmatpush2.xpose.msra.mxu0 0.0
        %1104 = vmatprep.subr.mxu0 0.0
        %1105 = vmatpush2.xpose.msra.mxu0 0.0
        %1106 = vmatprep.mubr.f32.mxu0 0.0
        %1107 = vmatmul.mubr.f32.gmra.mxu0 %v1010
        %v1108 = vpop.f32.mrf.mxu0
        %v1109 = vadd.f32 0.0, %v1108
        %v1110 = vpop.f32.mrf.mxu0
        %1111 = vmatprep.mubr.f32.mxu0 0.0
        %1112 = vmatmul.mubr.f32.gmra.mxu0 %v1012
        %v1113 = vpop.f32.mrf.mxu0
        %v1114 = vadd.f32 0.0, %v1113
        %v1115 = vpop.f32.mrf.mxu0
        %1116 = vmatprep.mubr.f32.mxu0 0.0
        %1117 = vmatmul.mubr.f32.gmra.mxu0 %v1014
        %v1118 = vpop.f32.mrf.mxu0
        %v1119 = vadd.f32 0.0, %v1118
        %v1120 = vpop.f32.mrf.mxu0
        %1121 = vmatprep.mubr.f32.mxu0 0.0
        %1122 = vmatmul.mubr.f32.gmra.mxu0 %v1016
        %v1123 = vpop.f32.mrf.mxu0
        %v1124 = vadd.f32 0.0, %v1123
        %v1125 = vpop.f32.mrf.mxu0
        %1126 = vmatprep.mubr.f32.mxu0 0.0
        %1127 = vmatmul.mubr.f32.gmra.mxu0 %v1018
        %v1128 = vpop.f32.mrf.mxu0
        %v1129 = vadd.f32 0.0, %v1128
        %v1130 = vpop.f32.mrf.mxu0
        %1131 = vmatprep.mubr.f32.mxu0 0.0
        %1132 = vmatmul.mubr.f32.gmra.mxu0 %v1020
        %v1133 = vpop.f32.mrf.mxu0
        %v1134 = vadd.f32 0.0, %v1133
        %v1135 = vpop.f32.mrf.mxu0
        %1136 = vmatprep.mubr.f32.mxu0 0.0
        %1137 = vmatmul.mubr.f32.gmra.mxu0 %v1022
        %v1138 = vpop.f32.mrf.mxu0
        %v1139 = vadd.f32 0.0, %v1138
        %v1140 = vpop.f32.mrf.mxu0
        %1141 = vmatprep.mubr.f32.mxu0 0.0
        %1142 = vmatmul.mubr.f32.gmra.mxu0 %v1024
        %v1143 = vpop.f32.mrf.mxu0
        %v1144 = vadd.f32 0.0, %v1143
        %v1145 = vpop.f32.mrf.mxu0
        %1146 = vdwg.mxu0
        %v1147 = vsel %vm590, %v1109, -inf
        %1148 = vmax.xlane.f32.xlu0 %v1147
        %v1149 = vpop.xlane.xlu0 %1148
        %v1150 = vsel %vm590, %v1114, -inf
        %1151 = vmax.xlane.f32.xlu0 %v1150
        %v1152 = vpop.xlane.xlu0 %1151
        %v1153 = vsel %vm590, %v1119, -inf
        %1154 = vmax.xlane.f32.xlu0 %v1153
        %v1155 = vpop.xlane.xlu0 %1154
        %v1156 = vsel %vm590, %v1124, -inf
        %1157 = vmax.xlane.f32.xlu0 %v1156
        %v1158 = vpop.xlane.xlu0 %1157
        %v1159 = vsel %vm590, %v1129, -inf
        %1160 = vmax.xlane.f32.xlu0 %v1159
        %v1161 = vpop.xlane.xlu0 %1160
        %v1162 = vsel %vm590, %v1134, -inf
        %1163 = vmax.xlane.f32.xlu0 %v1162
        %v1164 = vpop.xlane.xlu0 %1163
        %v1165 = vsel %vm590, %v1139, -inf
        %1166 = vmax.xlane.f32.xlu0 %v1165
        %v1167 = vpop.xlane.xlu0 %1166
        %v1168 = vsel %vm590, %v1144, -inf
        %1169 = vmax.xlane.f32.xlu0 %v1168
        %v1170 = vpop.xlane.xlu0 %1169
        %v1171 = vsub.f32 %v1109, %v1149
        %v1172 = vsub.f32 %v1114, %v1152
        %v1173 = vsub.f32 %v1119, %v1155
        %v1174 = vsub.f32 %v1124, %v1158
        %v1175 = vsub.f32 %v1129, %v1161
        %v1176 = vsub.f32 %v1134, %v1164
        %v1177 = vsub.f32 %v1139, %v1167
        %v1178 = vsub.f32 %v1144, %v1170
        %v1179 = vmul.f32 %v1171, 1.442695
        %v1180 = vpow.pop %v1179
        %v1181 = vmul.f32 %v1172, 1.442695
        %v1182 = vpow.pop %v1181
        %v1183 = vmul.f32 %v1173, 1.442695
        %v1184 = vpow.pop %v1183
        %v1185 = vmul.f32 %v1174, 1.442695
        %v1186 = vpow.pop %v1185
        %v1187 = vmul.f32 %v1175, 1.442695
        %v1188 = vpow.pop %v1187
        %v1189 = vmul.f32 %v1176, 1.442695
        %v1190 = vpow.pop %v1189
        %v1191 = vmul.f32 %v1177, 1.442695
        %v1192 = vpow.pop %v1191
        %v1193 = vmul.f32 %v1178, 1.442695
        %v1194 = vpow.pop %v1193
        %v1195 = vsel %vm590, %v1180, 0.0
        %1196 = vadd.xlane.f32.xlu0 %v1195
        %v1197 = vpop.xlane.xlu0 %1196
        %v1198 = vsel %vm590, %v1182, 0.0
        %1199 = vadd.xlane.f32.xlu0 %v1198
        %v1200 = vpop.xlane.xlu0 %1199
        %v1201 = vsel %vm590, %v1184, 0.0
        %1202 = vadd.xlane.f32.xlu0 %v1201
        %v1203 = vpop.xlane.xlu0 %1202
        %v1204 = vsel %vm590, %v1186, 0.0
        %1205 = vadd.xlane.f32.xlu0 %v1204
        %v1206 = vpop.xlane.xlu0 %1205
        %v1207 = vsel %vm590, %v1188, 0.0
        %1208 = vadd.xlane.f32.xlu0 %v1207
        %v1209 = vpop.xlane.xlu0 %1208
        %v1210 = vsel %vm590, %v1190, 0.0
        %1211 = vadd.xlane.f32.xlu0 %v1210
        %v1212 = vpop.xlane.xlu0 %1211
        %v1213 = vsel %vm590, %v1192, 0.0
        %1214 = vadd.xlane.f32.xlu0 %v1213
        %v1215 = vpop.xlane.xlu0 %1214
        %v1216 = vsel %vm590, %v1194, 0.0
        %1217 = vadd.xlane.f32.xlu0 %v1216
        %v1218 = vpop.xlane.xlu0 %1217
        %v1219 = vrcp.pop %v1197
        %v1220 = vrcp.pop %v1200
        %v1221 = vrcp.pop %v1203
        %v1222 = vrcp.pop %v1206
        %v1223 = vrcp.pop %v1209
        %v1224 = vrcp.pop %v1212
        %v1225 = vrcp.pop %v1215
        %v1226 = vrcp.pop %v1218
        %v1227 = vmul.f32 %v1180, %v1219
        %v1228 = vmul.f32 %v1182, %v1220
        %v1229 = vmul.f32 %v1184, %v1221
        %v1230 = vmul.f32 %v1186, %v1222
        %v1231 = vmul.f32 %v1188, %v1223
        %v1232 = vmul.f32 %v1190, %v1224
        %v1233 = vmul.f32 %v1192, %v1225
        %v1234 = vmul.f32 %v1194, %v1226
        %1235 = vrot.lane.b32.xlu0 %v376, 80
        %v1236 = vpop.permute.xlu0 %1235
        %1237 = vrot.lane.b32.xlu0 %v381, 80
        %v1238 = vpop.permute.xlu0 %1237
        %1239 = vrot.lane.b32.xlu0 %v386, 80
        %v1240 = vpop.permute.xlu0 %1239
        %1241 = vrot.lane.b32.xlu0 %v391, 80
        %v1242 = vpop.permute.xlu0 %1241
        %1243 = vrot.lane.b32.xlu0 %v396, 80
        %v1244 = vpop.permute.xlu0 %1243
        %1245 = vrot.lane.b32.xlu0 %v401, 80
        %v1246 = vpop.permute.xlu0 %1245
        %1247 = vrot.lane.b32.xlu0 %v406, 80
        %v1248 = vpop.permute.xlu0 %1247
        %1249 = vrot.lane.b32.xlu0 %v411, 80
        %v1250 = vpop.permute.xlu0 %1249
        %v1260 = vsel %vm590, %v1227, 0
        %v1263 = vsel %vm590, %v1228, 0
        %v1266 = vsel %vm590, %v1229, 0
        %v1269 = vsel %vm590, %v1230, 0
        %v1272 = vsel %vm590, %v1231, 0
        %v1275 = vsel %vm590, %v1232, 0
        %v1278 = vsel %vm590, %v1233, 0
        %v1281 = vsel %vm590, %v1234, 0
        %1283 = vmatprep.subr.mxu0 0.0
        %1284 = vmatpush1.msra.mxu0 0.0
        %1285 = vmatprep.subr.mxu0 0.0
        %1286 = vmatpush1.msra.mxu0 0.0
        %1287 = vmatprep.subr.mxu0 0.0
        %1288 = vmatpush1.msra.mxu0 0.0
        %1289 = vmatprep.subr.mxu0 0.0
        %1290 = vmatpush1.msra.mxu0 0.0
        %1291 = vmatprep.subr.mxu0 0.0
        %1292 = vmatpush1.msra.mxu0 0.0
        %1293 = vmatprep.subr.mxu0 0.0
        %1294 = vmatpush1.msra.mxu0 0.0
        %1295 = vmatprep.subr.mxu0 0.0
        %1296 = vmatpush1.msra.mxu0 0.0
        %1297 = vmatprep.subr.mxu0 0.0
        %1298 = vmatpush1.msra.mxu0 0.0
        %1299 = vmatprep.subr.mxu0 0.0
        %1300 = vmatpush1.msra.mxu0 %v1250
        %1301 = vmatprep.subr.mxu0 0.0
        %1302 = vmatpush1.msra.mxu0 %v1248
        %1303 = vmatprep.subr.mxu0 0.0
        %1304 = vmatpush1.msra.mxu0 %v1246
        %1305 = vmatprep.subr.mxu0 0.0
        %1306 = vmatpush1.msra.mxu0 %v1244
        %1307 = vmatprep.subr.mxu0 0.0
        %1308 = vmatpush1.msra.mxu0 %v1242
        %1309 = vmatprep.subr.mxu0 0.0
        %1310 = vmatpush1.msra.mxu0 %v1240
        %1311 = vmatprep.subr.mxu0 0.0
        %1312 = vmatpush1.msra.mxu0 %v1238
        %1313 = vmatprep.subr.mxu0 0.0
        %1314 = vmatpush1.msra.mxu0 %v1236
        %1315 = vmatprep.subr.mxu0 0.0
        %1316 = vmatpush2.msra.mxu0 0.0
        %1317 = vmatprep.subr.mxu0 0.0
        %1318 = vmatpush2.msra.mxu0 0.0
        %1319 = vmatprep.subr.mxu0 0.0
        %1320 = vmatpush2.msra.mxu0 0.0
        %1321 = vmatprep.subr.mxu0 0.0
        %1322 = vmatpush2.msra.mxu0 0.0
        %1323 = vmatprep.subr.mxu0 0.0
        %1324 = vmatpush2.msra.mxu0 0.0
        %1325 = vmatprep.subr.mxu0 0.0
        %1326 = vmatpush2.msra.mxu0 0.0
        %1327 = vmatprep.subr.mxu0 0.0
        %1328 = vmatpush2.msra.mxu0 0.0
        %1329 = vmatprep.subr.mxu0 0.0
        %1330 = vmatpush2.msra.mxu0 0.0
        %1331 = vmatprep.subr.mxu0 0.0
        %1332 = vmatpush2.msra.mxu0 0.0
        %1333 = vmatprep.subr.mxu0 0.0
        %1334 = vmatpush2.msra.mxu0 0.0
        %1335 = vmatprep.subr.mxu0 0.0
        %1336 = vmatpush2.msra.mxu0 0.0
        %1337 = vmatprep.subr.mxu0 0.0
        %1338 = vmatpush2.msra.mxu0 0.0
        %1339 = vmatprep.subr.mxu0 0.0
        %1340 = vmatpush2.msra.mxu0 0.0
        %1341 = vmatprep.subr.mxu0 0.0
        %1342 = vmatpush2.msra.mxu0 0.0
        %1343 = vmatprep.subr.mxu0 0.0
        %1344 = vmatpush2.msra.mxu0 0.0
        %1345 = vmatprep.subr.mxu0 0.0
        %1346 = vmatpush2.msra.mxu0 0.0
        %1347 = vmatprep.mubr.f32.mxu0 0.0
        %1348 = vmatmul.mubr.f32.gmra.mxu0 %v1260
        %v1349 = vpop.f32.mrf.mxu0
        %v1350 = vadd.f32 0.0, %v1349
        %v1351 = vpop.f32.mrf.mxu0
        %1352 = vmatprep.mubr.f32.mxu0 0.0
        %1353 = vmatmul.mubr.f32.gmra.mxu0 %v1263
        %v1354 = vpop.f32.mrf.mxu0
        %v1355 = vadd.f32 0.0, %v1354
        %v1356 = vpop.f32.mrf.mxu0
        %1357 = vmatprep.mubr.f32.mxu0 0.0
        %1358 = vmatmul.mubr.f32.gmra.mxu0 %v1266
        %v1359 = vpop.f32.mrf.mxu0
        %v1360 = vadd.f32 0.0, %v1359
        %v1361 = vpop.f32.mrf.mxu0
        %1362 = vmatprep.mubr.f32.mxu0 0.0
        %1363 = vmatmul.mubr.f32.gmra.mxu0 %v1269
        %v1364 = vpop.f32.mrf.mxu0
        %v1365 = vadd.f32 0.0, %v1364
        %v1366 = vpop.f32.mrf.mxu0
        %1367 = vmatprep.mubr.f32.mxu0 0.0
        %1368 = vmatmul.mubr.f32.gmra.mxu0 %v1272
        %v1369 = vpop.f32.mrf.mxu0
        %v1370 = vadd.f32 0.0, %v1369
        %v1371 = vpop.f32.mrf.mxu0
        %1372 = vmatprep.mubr.f32.mxu0 0.0
        %1373 = vmatmul.mubr.f32.gmra.mxu0 %v1275
        %v1374 = vpop.f32.mrf.mxu0
        %v1375 = vadd.f32 0.0, %v1374
        %v1376 = vpop.f32.mrf.mxu0
        %1377 = vmatprep.mubr.f32.mxu0 0.0
        %1378 = vmatmul.mubr.f32.gmra.mxu0 %v1278
        %v1379 = vpop.f32.mrf.mxu0
        %v1380 = vadd.f32 0.0, %v1379
        %v1381 = vpop.f32.mrf.mxu0
        %1382 = vmatprep.mubr.f32.mxu0 0.0
        %1383 = vmatmul.mubr.f32.gmra.mxu0 %v1281
        %v1384 = vpop.f32.mrf.mxu0
        %v1385 = vadd.f32 0.0, %v1384
        %v1386 = vpop.f32.mrf.mxu0
        %1387 = vdwg.mxu0
        %v1388 = vmax.f32 %v1350, 0.0
        %v1389 = vmax.f32 %v1355, 0.0
        %v1390 = vmax.f32 %v1360, 0.0
        %v1391 = vmax.f32 %v1365, 0.0
        %v1392 = vmax.f32 %v1370, 0.0
        %v1393 = vmax.f32 %v1375, 0.0
        %v1394 = vmax.f32 %v1380, 0.0
        %v1395 = vmax.f32 %v1385, 0.0
        %v1397 = vsel %vm840, %v1388, 0
        %v1400 = vsel %vm840, %v1389, 0
        %v1403 = vsel %vm840, %v1390, 0
        %v1406 = vsel %vm840, %v1391, 0
        %v1409 = vsel %vm840, %v1392, 0
        %v1412 = vsel %vm840, %v1393, 0
        %v1415 = vsel %vm840, %v1394, 0
        %v1418 = vsel %vm840, %v1395, 0
        %1420 = vmatprep.subr.mxu0 0.0
        %1421 = vmatpush1.msra.mxu0 0.0
        %1422 = vmatprep.subr.mxu0 0.0
        %1423 = vmatpush1.msra.mxu0 0.0
        %1424 = vmatprep.subr.mxu0 0.0
        %1425 = vmatpush1.msra.mxu0 0.0
        %1426 = vmatprep.subr.mxu0 0.0
        %1427 = vmatpush1.msra.mxu0 0.0
        %1428 = vmatprep.subr.mxu0 0.0
        %1429 = vmatpush1.msra.mxu0 0.0
        %1430 = vmatprep.subr.mxu0 0.0
        %1431 = vmatpush1.msra.mxu0 0.0
        %1432 = vmatprep.subr.mxu0 0.0
        %1433 = vmatpush1.msra.mxu0 0.0
        %1434 = vmatprep.subr.mxu0 0.0
        %1435 = vmatpush1.msra.mxu0 0.0
        %1436 = vmatprep.subr.mxu0 0.0
        %1437 = vmatpush1.msra.mxu0 0.0
        %1438 = vmatprep.subr.mxu0 0.0
        %1439 = vmatpush1.msra.mxu0 0.0
        %1440 = vmatprep.subr.mxu0 0.0
        %1441 = vmatpush1.msra.mxu0 0.0
        %1442 = vmatprep.subr.mxu0 0.0
        %1443 = vmatpush1.msra.mxu0 0.0
        %1444 = vmatprep.subr.mxu0 0.0
        %1445 = vmatpush1.msra.mxu0 0.0
        %1446 = vmatprep.subr.mxu0 0.0
        %1447 = vmatpush1.msra.mxu0 0.0
        %1448 = vmatprep.subr.mxu0 0.0
        %1449 = vmatpush1.msra.mxu0 %v276
        %1450 = vmatprep.subr.mxu0 0.0
        %1451 = vmatpush1.msra.mxu0 %v275
        %1452 = vmatprep.subr.mxu0 0.0
        %1453 = vmatpush2.msra.mxu0 0.0
        %1454 = vmatprep.subr.mxu0 0.0
        %1455 = vmatpush2.msra.mxu0 0.0
        %1456 = vmatprep.subr.mxu0 0.0
        %1457 = vmatpush2.msra.mxu0 0.0
        %1458 = vmatprep.subr.mxu0 0.0
        %1459 = vmatpush2.msra.mxu0 0.0
        %1460 = vmatprep.subr.mxu0 0.0
        %1461 = vmatpush2.msra.mxu0 0.0
        %1462 = vmatprep.subr.mxu0 0.0
        %1463 = vmatpush2.msra.mxu0 0.0
        %1464 = vmatprep.subr.mxu0 0.0
        %1465 = vmatpush2.msra.mxu0 0.0
        %1466 = vmatprep.subr.mxu0 0.0
        %1467 = vmatpush2.msra.mxu0 0.0
        %1468 = vmatprep.subr.mxu0 0.0
        %1469 = vmatpush2.msra.mxu0 0.0
        %1470 = vmatprep.subr.mxu0 0.0
        %1471 = vmatpush2.msra.mxu0 0.0
        %1472 = vmatprep.subr.mxu0 0.0
        %1473 = vmatpush2.msra.mxu0 0.0
        %1474 = vmatprep.subr.mxu0 0.0
        %1475 = vmatpush2.msra.mxu0 0.0
        %1476 = vmatprep.subr.mxu0 0.0
        %1477 = vmatpush2.msra.mxu0 0.0
        %1478 = vmatprep.subr.mxu0 0.0
        %1479 = vmatpush2.msra.mxu0 0.0
        %1480 = vmatprep.subr.mxu0 0.0
        %1481 = vmatpush2.msra.mxu0 0.0
        %1482 = vmatprep.subr.mxu0 0.0
        %1483 = vmatpush2.msra.mxu0 0.0
        %1484 = vmatprep.mubr.f32.mxu0 0.0
        %1485 = vmatmul.mubr.f32.gmra.mxu0 %v1397
        %v1486 = vpop.f32.mrf.mxu0
        %v1487 = vadd.f32 0.0, %v1486
        %v1488 = vpop.f32.mrf.mxu0
        %1489 = vmatprep.mubr.f32.mxu0 0.0
        %1490 = vmatmul.mubr.f32.gmra.mxu0 %v1400
        %v1491 = vpop.f32.mrf.mxu0
        %v1492 = vadd.f32 0.0, %v1491
        %v1493 = vpop.f32.mrf.mxu0
        %1494 = vmatprep.mubr.f32.mxu0 0.0
        %1495 = vmatmul.mubr.f32.gmra.mxu0 %v1403
        %v1496 = vpop.f32.mrf.mxu0
        %v1497 = vadd.f32 0.0, %v1496
        %v1498 = vpop.f32.mrf.mxu0
        %1499 = vmatprep.mubr.f32.mxu0 0.0
        %1500 = vmatmul.mubr.f32.gmra.mxu0 %v1406
        %v1501 = vpop.f32.mrf.mxu0
        %v1502 = vadd.f32 0.0, %v1501
        %v1503 = vpop.f32.mrf.mxu0
        %1504 = vmatprep.mubr.f32.mxu0 0.0
        %1505 = vmatmul.mubr.f32.gmra.mxu0 %v1409
        %v1506 = vpop.f32.mrf.mxu0
        %v1507 = vadd.f32 0.0, %v1506
        %v1508 = vpop.f32.mrf.mxu0
        %1509 = vmatprep.mubr.f32.mxu0 0.0
        %1510 = vmatmul.mubr.f32.gmra.mxu0 %v1412
        %v1511 = vpop.f32.mrf.mxu0
        %v1512 = vadd.f32 0.0, %v1511
        %v1513 = vpop.f32.mrf.mxu0
        %1514 = vmatprep.mubr.f32.mxu0 0.0
        %1515 = vmatmul.mubr.f32.gmra.mxu0 %v1415
        %v1516 = vpop.f32.mrf.mxu0
        %v1517 = vadd.f32 0.0, %v1516
        %v1518 = vpop.f32.mrf.mxu0
        %1519 = vmatprep.mubr.f32.mxu0 0.0
        %1520 = vmatmul.mubr.f32.gmra.mxu0 %v1418
        %v1521 = vpop.f32.mrf.mxu0
        %v1522 = vadd.f32 0.0, %v1521
        %v1523 = vpop.f32.mrf.mxu0
        %1524 = vdwg.mxu0
        %v1525 = vadd.f32 %v970, %v1487
        %v1526 = vadd.f32 %v971, %v1492
        %v1527 = vadd.f32 %v972, %v1497
        %v1528 = vadd.f32 %v973, %v1502
        %v1529 = vadd.f32 %v974, %v1507
        %v1530 = vadd.f32 %v975, %v1512
        %v1531 = vadd.f32 %v976, %v1517
        %v1532 = vadd.f32 %v977, %v1522
        %1533 = vst.msk [vmem:[%s259] sm:$0xff] %vm284, %v1525
        %1534 = vst.msk [vmem:[%s259 + $0x8] sm:$0xff] %vm284, %v1526
        %1535 = vst.msk [vmem:[%s259 + $0x10] sm:$0xff] %vm284, %v1527
        %1536 = vst.msk [vmem:[%s259 + $0x18] sm:$0xff] %vm284, %v1528
        %1537 = vst.msk [vmem:[%s259 + $0x20] sm:$0xff] %vm284, %v1529
        %1538 = vst.msk [vmem:[%s259 + $0x28] sm:$0xff] %vm284, %v1530
        %1539 = vst.msk [vmem:[%s259 + $0x30] sm:$0xff] %vm284, %v1531
        %1540 = vst.msk [vmem:[%s259 + $0x38] sm:$0xff] %vm284, %v1532
        %p1541 = scmp.lt.s32.totalorder %s20, 1
        %s1542 = scalar_select %p1541, %s20, 1
        %s1543 = smul.addr %s1542, 8
        %s1544 = smul.addr %s1543, 8
        %s1545 = scalar_lea.vmem %s5, %s1544
        // Predicated region
        $region49: #{semantics_extractor_forward.4} parent=39 // pred_check
          %p1546 = pneg %p148
        $region50: #{semantics_extractor_forward.4} parent=39 // pred_check_branch
          %1548 = sbr.rel (%p1546) target = $region52
        $region51: #{semantics_extractor_forward.4} parent=39 // pred_region
          _
        $region52: #{semantics_extractor_forward.4} parent=39 // pred_fallthru
          _
      $region40: #{semantics_extractor_forward.4} parent=5 // pred_fallthru
        _
      %p1549 = scmp.le.s32.totalorder 2, %s15
      // Predicated region
      $region53: #{semantics_extractor_forward.4} parent=5 // pred_check
        %p1550 = pneg %p1549
      $region54: #{semantics_extractor_forward.4} parent=5 // pred_check_branch
        %1552 = sbr.rel (%p1550) target = $region56
      $region55: #{semantics_extractor_forward.4} parent=5 // pred_region
        %s1553 = ssub.s32 %s15, 2
        // Predicated region
        $region57: #{semantics_extractor_forward.4} parent=55 // pred_check
          %p1554 = pneg %p154
        $region58: #{semantics_extractor_forward.4} parent=55 // pred_check_branch
          %1556 = sbr.rel (%p1554) target = $region60
        $region59: #{semantics_extractor_forward.4} parent=55 // pred_region
          %p1557 = scmp.lt.s32.totalorder %s21, 1
          %s1558 = scalar_select %p1557, %s21, 1
          %s1559 = smul.addr %s1558, 8
          %s1560 = smul.addr %s1559, 8
          %s1561 = scalar_lea.vmem %s5, %s1560
        $region60: #{semantics_extractor_forward.4} parent=55 // pred_fallthru
          _
      $region56: #{semantics_extractor_forward.4} parent=5 // pred_fallthru
        _
    $region6: #{semantics_extractor_forward.4} parent=1 // loop_footer
      %s19 = sadd.s32 1, %s15
    $region7: #{semantics_extractor_forward.4} parent=1 // loop_footer_branch
      %14 = sbr.rel target = $region3
    $region8: #{semantics_extractor_forward.4} parent=1 // loop_exit
      _
    %1562 = vsyncpa [#allocation3], 1
    %s1563 = scalar_lea.sflag [#allocation3], 1
    %1564 = vsyncpa %s1563, 1
    %1565 = vsyncpa [#allocation5], 1

// kernel: semantics_extractor_forward.6
$region0: #{semantics_extractor_forward.6}
  #allocation0 [shape = 'u32[]', space=smem, size = 0x4, offset = 0x4, fixed_abs, tag = 'smem constant byte address 0x4 - core index']
  #allocation1 [shape = 'u32[144,128]{1,0:T(1,128)}', space=vmem, size = 0x12000, scoped, tag = 'internal scratch']
  %s0 = inlined_call_operand.vmem [shape: f32[2,64,32], index: 0, kind: input, shape index: {}]
  %s1 = inlined_call_operand.vmem [shape: f32[32,64], index: 1, kind: input, shape index: {}]
  %s2 = inlined_call_operand.vmem [shape: f32[1,64], index: 2, kind: input, shape index: {}]
  %s3 = inlined_call_operand.vmem [shape: f32[32,32], index: 3, kind: input, shape index: {}]
  %s4 = inlined_call_operand.vmem [shape: f32[1,32], index: 4, kind: input, shape index: {}]
  %s5 = inlined_call_operand.vmem [shape: f32[2,64,32], index: 5, kind: output, shape index: {}]
  %s6 = sld [smem:[#allocation0]]
  $region53: #{semantics_extractor_forward.6} parent=0
    _
  %s8 = ssub.s32 1, %s6
  %s9 = scalar_select 0, %s8, %s6
  loop: start=0, step=1, limit=4
  $region2: #{semantics_extractor_forward.6} parent=0 // loop_pre_header
    _
  $region3: #{semantics_extractor_forward.6} parent=0 // loop_header
    %s11 = sphi 0, %s15
    %p12 = scmp.ge.s32.totalorder %s11, 4
    %s21 = sphi 0, %s23
    %s24 = sphi 0, %s21
    %s25 = sphi 0, %s24
    %s41 = sphi 0, %s25
    %s45 = sphi 0, %s45
    %s47 = sphi 0, %s45
    %s48 = sphi 0, %s47
    %s62 = sphi 0, %s48
    %s66 = sphi 0, %s66
    %s68 = sphi 0, %s66
    %s69 = sphi 0, %s68
    %s83 = sphi 0, %s69
    %s87 = sphi 0, %s87
    %s89 = sphi 0, %s87
    %s90 = sphi 0, %s89
    %s104 = sphi 0, %s90
    %s108 = sphi 0, %s108
    %s110 = sphi 0, %s108
    %s111 = sphi 0, %s110
    %s125 = sphi 0, %s111
    %s131 = sphi 0, %s133
    %s134 = sphi 0, %s131
    %s135 = sphi 0, %s134
    %s151 = sphi 0, %s135
  $region4: #{semantics_extractor_forward.6} parent=0 // loop_header_branch
    %14 = sbr.rel (%p12) target = $region8
  $region5: #{semantics_extractor_forward.6} parent=0 // loop_body
    %s16 = ssub.s32 %s11, 1
    %s17 = ssub.s32 %s11, 2
    %s18 = sadd.s32 %s11, 1
    %s19 = ssub.s32 %s11, %s18
    %p20 = scmp.eq.s32.totalorder %s19, 0
    %s22 = sadd.s32 %s21, 1
    %s23 = scalar_select %p20, %s21, %s22
    %p26 = pneg %p20
    %p27 = scmp.eq.s32.totalorder %s11, 1
    %p28 = por %p26, %p27
    %p29 = scmp.ne.s32.totalorder %s21, %s24
    %p30 = scmp.eq.s32.totalorder %s11, 0
    %p31 = por %p29, %p30
    %p32 = scmp.ne.s32.totalorder %s21, %s24
    %p33 = scmp.eq.s32.totalorder %s16, 1
    %p34 = por %p32, %p33
    %p35 = scmp.ne.s32.totalorder %s24, %s25
    %p36 = scmp.eq.s32.totalorder %s16, 0
    %p37 = por %p35, %p36
    %p38 = scmp.ne.s32.totalorder %s24, %s25
    %p39 = scmp.eq.s32.totalorder %s17, 1
    %p40 = por %p38, %p39
    %p42 = scmp.ne.s32.totalorder %s25, %s41
    %p43 = scmp.eq.s32.totalorder %s17, 0
    %p44 = por %p42, %p43
    %s46 = sadd.s32 %s45, 1
    %p49 = scmp.eq.s32.totalorder %s11, 1
    %p50 = scmp.ne.s32.totalorder %s45, %s47
    %p51 = scmp.eq.s32.totalorder %s11, 0
    %p52 = por %p50, %p51
    %p53 = scmp.ne.s32.totalorder %s45, %s47
    %p54 = scmp.eq.s32.totalorder %s16, 1
    %p55 = por %p53, %p54
    %p56 = scmp.ne.s32.totalorder %s47, %s48
    %p57 = scmp.eq.s32.totalorder %s16, 0
    %p58 = por %p56, %p57
    %p59 = scmp.ne.s32.totalorder %s47, %s48
    %p60 = scmp.eq.s32.totalorder %s17, 1
    %p61 = por %p59, %p60
    %p63 = scmp.ne.s32.totalorder %s48, %s62
    %p64 = scmp.eq.s32.totalorder %s17, 0
    %p65 = por %p63, %p64
    %s67 = sadd.s32 %s66, 1
    %p70 = scmp.eq.s32.totalorder %s11, 1
    %p71 = scmp.ne.s32.totalorder %s66, %s68
    %p72 = scmp.eq.s32.totalorder %s11, 0
    %p73 = por %p71, %p72
    %p74 = scmp.ne.s32.totalorder %s66, %s68
    %p75 = scmp.eq.s32.totalorder %s16, 1
    %p76 = por %p74, %p75
    %p77 = scmp.ne.s32.totalorder %s68, %s69
    %p78 = scmp.eq.s32.totalorder %s16, 0
    %p79 = por %p77, %p78
    %p80 = scmp.ne.s32.totalorder %s68, %s69
    %p81 = scmp.eq.s32.totalorder %s17, 1
    %p82 = por %p80, %p81
    %p84 = scmp.ne.s32.totalorder %s69, %s83
    %p85 = scmp.eq.s32.totalorder %s17, 0
    %p86 = por %p84, %p85
    %s88 = sadd.s32 %s87, 1
    %p91 = scmp.eq.s32.totalorder %s11, 1
    %p92 = scmp.ne.s32.totalorder %s87, %s89
    %p93 = scmp.eq.s32.totalorder %s11, 0
    %p94 = por %p92, %p93
    %p95 = scmp.ne.s32.totalorder %s87, %s89
    %p96 = scmp.eq.s32.totalorder %s16, 1
    %p97 = por %p95, %p96
    %p98 = scmp.ne.s32.totalorder %s89, %s90
    %p99 = scmp.eq.s32.totalorder %s16, 0
    %p100 = por %p98, %p99
    %p101 = scmp.ne.s32.totalorder %s89, %s90
    %p102 = scmp.eq.s32.totalorder %s17, 1
    %p103 = por %p101, %p102
    %p105 = scmp.ne.s32.totalorder %s90, %s104
    %p106 = scmp.eq.s32.totalorder %s17, 0
    %p107 = por %p105, %p106
    %s109 = sadd.s32 %s108, 1
    %p112 = scmp.eq.s32.totalorder %s11, 1
    %p113 = scmp.ne.s32.totalorder %s108, %s110
    %p114 = scmp.eq.s32.totalorder %s11, 0
    %p115 = por %p113, %p114
    %p116 = scmp.ne.s32.totalorder %s108, %s110
    %p117 = scmp.eq.s32.totalorder %s16, 1
    %p118 = por %p116, %p117
    %p119 = scmp.ne.s32.totalorder %s110, %s111
    %p120 = scmp.eq.s32.totalorder %s16, 0
    %p121 = por %p119, %p120
    %p122 = scmp.ne.s32.totalorder %s110, %s111
    %p123 = scmp.eq.s32.totalorder %s17, 1
    %p124 = por %p122, %p123
    %p126 = scmp.ne.s32.totalorder %s111, %s125
    %p127 = scmp.eq.s32.totalorder %s17, 0
    %p128 = por %p126, %p127
    %s129 = ssub.s32 %s11, %s18
    %p130 = scmp.eq.s32.totalorder %s129, 0
    %s132 = sadd.s32 %s131, 1
    %s133 = scalar_select %p130, %s131, %s132
    %p136 = pneg %p130
    %p137 = scmp.eq.s32.totalorder %s11, 1
    %p138 = por %p136, %p137
    %p139 = scmp.ne.s32.totalorder %s131, %s134
    %p140 = scmp.eq.s32.totalorder %s11, 0
    %p141 = por %p139, %p140
    %p142 = scmp.ne.s32.totalorder %s131, %s134
    %p143 = scmp.eq.s32.totalorder %s16, 1
    %p144 = por %p142, %p143
    %p145 = scmp.ne.s32.totalorder %s134, %s135
    %p146 = scmp.eq.s32.totalorder %s16, 0
    %p147 = por %p145, %p146
    %p148 = scmp.ne.s32.totalorder %s134, %s135
    %p149 = scmp.eq.s32.totalorder %s17, 1
    %p150 = por %p148, %p149
    %p152 = scmp.ne.s32.totalorder %s135, %s151
    %p153 = scmp.eq.s32.totalorder %s17, 0
    %p154 = por %p152, %p153
    %p155 = scmp.le.s32.totalorder 1, %s11
    %p156 = scmp.lt.s32.totalorder %s11, 3
    %p157 = pnand %p155, %p156
    %p158 = pneg %p157
    // Predicated region
    $region9: #{semantics_extractor_forward.6} parent=5 // pred_check
      _
    $region10: #{semantics_extractor_forward.6} parent=5 // pred_check_branch
      %160 = sbr.rel (%p157) target = $region12
    $region11: #{semantics_extractor_forward.6} parent=5 // pred_region
      %s161 = ssub.s32 %s11, 1
      // Predicated region
      $region13: #{semantics_extractor_forward.6} parent=11 // pred_check
        %p162 = pneg %p58
      $region14: #{semantics_extractor_forward.6} parent=11 // pred_check_branch
        %164 = sbr.rel (%p162) target = $region16
      $region15: #{semantics_extractor_forward.6} parent=11 // pred_region
        _
      $region16: #{semantics_extractor_forward.6} parent=11 // pred_fallthru
        _
      // Predicated region
      $region17: #{semantics_extractor_forward.6} parent=11 // pred_check
        %p165 = pneg %p79
      $region18: #{semantics_extractor_forward.6} parent=11 // pred_check_branch
        %167 = sbr.rel (%p165) target = $region20
      $region19: #{semantics_extractor_forward.6} parent=11 // pred_region
        _
      $region20: #{semantics_extractor_forward.6} parent=11 // pred_fallthru
        _
      // Predicated region
      $region21: #{semantics_extractor_forward.6} parent=11 // pred_check
        %p168 = pneg %p100
      $region22: #{semantics_extractor_forward.6} parent=11 // pred_check_branch
        %170 = sbr.rel (%p168) target = $region24
      $region23: #{semantics_extractor_forward.6} parent=11 // pred_region
        _
      $region24: #{semantics_extractor_forward.6} parent=11 // pred_fallthru
        _
      // Predicated region
      $region25: #{semantics_extractor_forward.6} parent=11 // pred_check
        %p171 = pneg %p121
      $region26: #{semantics_extractor_forward.6} parent=11 // pred_check_branch
        %173 = sbr.rel (%p171) target = $region28
      $region27: #{semantics_extractor_forward.6} parent=11 // pred_region
        _
      $region28: #{semantics_extractor_forward.6} parent=11 // pred_fallthru
        _
    $region12: #{semantics_extractor_forward.6} parent=5 // pred_fallthru
      _
    %p174 = scmp.lt.s32.totalorder %s11, 2
    // Predicated region
    $region29: #{semantics_extractor_forward.6} parent=5 // pred_check
      %p175 = pneg %p174
    $region30: #{semantics_extractor_forward.6} parent=5 // pred_check_branch
      %177 = sbr.rel (%p175) target = $region32
    $region31: #{semantics_extractor_forward.6} parent=5 // pred_region
      // Predicated region
      $region33: #{semantics_extractor_forward.6} parent=31 // pred_check
        %p178 = pneg %p31
      $region34: #{semantics_extractor_forward.6} parent=31 // pred_check_branch
        %180 = sbr.rel (%p178) target = $region36
      $region35: #{semantics_extractor_forward.6} parent=31 // pred_region
        %p181 = scmp.lt.s32.totalorder %s11, 1
        %s182 = scalar_select %p181, %s11, 1
        %s183 = smul.addr %s182, 8
        %s184 = smul.addr %s183, 8
        %s185 = scalar_lea.vmem %s0, %s184
      $region36: #{semantics_extractor_forward.6} parent=31 // pred_fallthru
        _
    $region32: #{semantics_extractor_forward.6} parent=5 // pred_fallthru
      _
    %p186 = scmp.le.s32.totalorder 1, %s11
    %p187 = scmp.lt.s32.totalorder %s11, 3
    %p188 = pnand %p186, %p187
    %p189 = pneg %p188
    // Predicated region
    $region37: #{semantics_extractor_forward.6} parent=5 // pred_check
      _
    $region38: #{semantics_extractor_forward.6} parent=5 // pred_check_branch
      %191 = sbr.rel (%p188) target = $region40
    $region39: #{semantics_extractor_forward.6} parent=5 // pred_region
      %s192 = ssub.s32 %s11, 1
      %p193 = scmp.lt.s32.totalorder %s16, 1
      %s194 = scalar_select %p193, %s16, 1
      %s195 = smul.addr %s194, 8
      %s196 = smul.addr %s195, 8
      %s197 = scalar_lea.vmem %s0, %s196
      %p198 = pneg %p37
      %p199 = pneg %p34
      %p200 = pneg %p58
      %p201 = pneg %p55
      %p202 = pneg %p79
      %p203 = pneg %p76
      %p204 = pneg %p100
      %p205 = pneg %p97
      %p206 = pneg %p121
      %p207 = pneg %p118
      %p208 = pneg %p147
      %p209 = pneg %p144
      %p210 = scmp.lt.s32.totalorder %s16, 1
      %s211 = scalar_select %p210, %s16, 1
      %s212 = smul.addr %s211, 8
      %s213 = smul.addr %s212, 8
      %s214 = scalar_lea.vmem %s5, %s213
      %p215 = scmp.lt.s32.totalorder %s16, 1
      %s216 = scalar_select %p215, %s16, 1
      %s217 = smul.addr %s216, 8
      %s218 = smul.addr %s217, 8
      %s219 = scalar_lea.vmem %s0, %s218
      %p220 = scmp.lt.s32.totalorder %s16, 1
      %s221 = scalar_select %p220, %s16, 1
      %s222 = smul.addr %s221, 8
      %s223 = smul.addr %s222, 8
      %s224 = scalar_lea.vmem %s5, %s223
      %v225 = vld [vmem:[%s219] sm:$0xff]
      %v226 = vld [vmem:[%s219 + $0x8] sm:$0xff]
      %v227 = vld [vmem:[%s219 + $0x10] sm:$0xff]
      %v228 = vld [vmem:[%s219 + $0x18] sm:$0xff]
      %v229 = vld [vmem:[%s219 + $0x20] sm:$0xff]
      %v230 = vld [vmem:[%s219 + $0x28] sm:$0xff]
      %v231 = vld [vmem:[%s219 + $0x30] sm:$0xff]
      %v232 = vld [vmem:[%s219 + $0x38] sm:$0xff]
      %v233 = vld [vmem:[%s1] sm:$0xff]
      %v234 = vld [vmem:[%s1 + $0x8] sm:$0xff]
      %v235 = vld [vmem:[%s1 + $0x10] sm:$0xff]
      %v236 = vld [vmem:[%s1 + $0x18] sm:$0xff]
      %v237 = vld [vmem:[%s2] sm:$0x1]
      %v238 = vld [vmem:[%s3] sm:$0xff]
      %v239 = vld [vmem:[%s3 + $0x8] sm:$0xff]
      %v240 = vld [vmem:[%s3 + $0x10] sm:$0xff]
      %v241 = vld [vmem:[%s3 + $0x18] sm:$0xff]
      %v242 = vld [vmem:[%s4] sm:$0x1]
      %v244 = vlaneseq
      %v245 = vshrl.u32 %v244, 7
      %v246 = vsub.s32 0, %v245
      %v247 = vrot.slane %v237, %v246
      %vm249 = vcmask 261120
      %v251 = vsel %vm249, %v225, 0
      %v254 = vsel %vm249, %v226, 0
      %v257 = vsel %vm249, %v227, 0
      %v260 = vsel %vm249, %v228, 0
      %v263 = vsel %vm249, %v229, 0
      %v266 = vsel %vm249, %v230, 0
      %v269 = vsel %vm249, %v231, 0
      %v272 = vsel %vm249, %v232, 0
      %274 = vmatprep.subr.mxu0 0.0
      %275 = vmatpush1.msra.mxu0 0.0
      %276 = vmatprep.subr.mxu0 0.0
      %277 = vmatpush1.msra.mxu0 0.0
      %278 = vmatprep.subr.mxu0 0.0
      %279 = vmatpush1.msra.mxu0 0.0
      %280 = vmatprep.subr.mxu0 0.0
      %281 = vmatpush1.msra.mxu0 0.0
      %282 = vmatprep.subr.mxu0 0.0
      %283 = vmatpush1.msra.mxu0 0.0
      %284 = vmatprep.subr.mxu0 0.0
      %285 = vmatpush1.msra.mxu0 0.0
      %286 = vmatprep.subr.mxu0 0.0
      %287 = vmatpush1.msra.mxu0 0.0
      %288 = vmatprep.subr.mxu0 0.0
      %289 = vmatpush1.msra.mxu0 0.0
      %290 = vmatprep.subr.mxu0 0.0
      %291 = vmatpush1.msra.mxu0 0.0
      %292 = vmatprep.subr.mxu0 0.0
      %293 = vmatpush1.msra.mxu0 0.0
      %294 = vmatprep.subr.mxu0 0.0
      %295 = vmatpush1.msra.mxu0 0.0
      %296 = vmatprep.subr.mxu0 0.0
      %297 = vmatpush1.msra.mxu0 0.0
      %298 = vmatprep.subr.mxu0 0.0
      %299 = vmatpush1.msra.mxu0 %v236
      %300 = vmatprep.subr.mxu0 0.0
      %301 = vmatpush1.msra.mxu0 %v235
      %302 = vmatprep.subr.mxu0 0.0
      %303 = vmatpush1.msra.mxu0 %v234
      %304 = vmatprep.subr.mxu0 0.0
      %305 = vmatpush1.msra.mxu0 %v233
      %306 = vmatprep.subr.mxu0 0.0
      %307 = vmatpush2.msra.mxu0 0.0
      %308 = vmatprep.subr.mxu0 0.0
      %309 = vmatpush2.msra.mxu0 0.0
      %310 = vmatprep.subr.mxu0 0.0
      %311 = vmatpush2.msra.mxu0 0.0
      %312 = vmatprep.subr.mxu0 0.0
      %313 = vmatpush2.msra.mxu0 0.0
      %314 = vmatprep.subr.mxu0 0.0
      %315 = vmatpush2.msra.mxu0 0.0
      %316 = vmatprep.subr.mxu0 0.0
      %317 = vmatpush2.msra.mxu0 0.0
      %318 = vmatprep.subr.mxu0 0.0
      %319 = vmatpush2.msra.mxu0 0.0
      %320 = vmatprep.subr.mxu0 0.0
      %321 = vmatpush2.msra.mxu0 0.0
      %322 = vmatprep.subr.mxu0 0.0
      %323 = vmatpush2.msra.mxu0 0.0
      %324 = vmatprep.subr.mxu0 0.0
      %325 = vmatpush2.msra.mxu0 0.0
      %326 = vmatprep.subr.mxu0 0.0
      %327 = vmatpush2.msra.mxu0 0.0
      %328 = vmatprep.subr.mxu0 0.0
      %329 = vmatpush2.msra.mxu0 0.0
      %330 = vmatprep.subr.mxu0 0.0
      %331 = vmatpush2.msra.mxu0 0.0
      %332 = vmatprep.subr.mxu0 0.0
      %333 = vmatpush2.msra.mxu0 0.0
      %334 = vmatprep.subr.mxu0 0.0
      %335 = vmatpush2.msra.mxu0 0.0
      %336 = vmatprep.subr.mxu0 0.0
      %337 = vmatpush2.msra.mxu0 0.0
      %338 = vmatprep.mubr.f32.mxu0 0.0
      %339 = vmatmul.mubr.f32.gmra.mxu0 %v251
      %v340 = vpop.f32.mrf.mxu0
      %v341 = vadd.f32 %v247, %v340
      %v342 = vpop.f32.mrf.mxu0
      %343 = vmatprep.mubr.f32.mxu0 0.0
      %344 = vmatmul.mubr.f32.gmra.mxu0 %v254
      %v345 = vpop.f32.mrf.mxu0
      %v346 = vadd.f32 %v247, %v345
      %v347 = vpop.f32.mrf.mxu0
      %348 = vmatprep.mubr.f32.mxu0 0.0
      %349 = vmatmul.mubr.f32.gmra.mxu0 %v257
      %v350 = vpop.f32.mrf.mxu0
      %v351 = vadd.f32 %v247, %v350
      %v352 = vpop.f32.mrf.mxu0
      %353 = vmatprep.mubr.f32.mxu0 0.0
      %354 = vmatmul.mubr.f32.gmra.mxu0 %v260
      %v355 = vpop.f32.mrf.mxu0
      %v356 = vadd.f32 %v247, %v355
      %v357 = vpop.f32.mrf.mxu0
      %358 = vmatprep.mubr.f32.mxu0 0.0
      %359 = vmatmul.mubr.f32.gmra.mxu0 %v263
      %v360 = vpop.f32.mrf.mxu0
      %v361 = vadd.f32 %v247, %v360
      %v362 = vpop.f32.mrf.mxu0
      %363 = vmatprep.mubr.f32.mxu0 0.0
      %364 = vmatmul.mubr.f32.gmra.mxu0 %v266
      %v365 = vpop.f32.mrf.mxu0
      %v366 = vadd.f32 %v247, %v365
      %v367 = vpop.f32.mrf.mxu0
      %368 = vmatprep.mubr.f32.mxu0 0.0
      %369 = vmatmul.mubr.f32.gmra.mxu0 %v269
      %v370 = vpop.f32.mrf.mxu0
      %v371 = vadd.f32 %v247, %v370
      %v372 = vpop.f32.mrf.mxu0
      %373 = vmatprep.mubr.f32.mxu0 0.0
      %374 = vmatmul.mubr.f32.gmra.mxu0 %v272
      %v375 = vpop.f32.mrf.mxu0
      %v376 = vadd.f32 %v247, %v375
      %v377 = vpop.f32.mrf.mxu0
      %378 = vdwg.mxu0
      %v380 = vlaneseq
      %v381 = vshrl.u32 %v380, 7
      %v382 = vsub.s32 0, %v381
      %v383 = vrot.slane %v242, %v382
      %v385 = vadd.f32 %v225, %v383
      %v386 = vadd.f32 %v226, %v383
      %v387 = vadd.f32 %v227, %v383
      %v388 = vadd.f32 %v228, %v383
      %v389 = vadd.f32 %v229, %v383
      %v390 = vadd.f32 %v230, %v383
      %v391 = vadd.f32 %v231, %v383
      %v392 = vadd.f32 %v232, %v383
      %401 = vrot.lane.b32.xlu0 %v341, 112
      %v402 = vpop.permute.xlu0 %401
      %403 = vrot.lane.b32.xlu0 %v346, 112
      %v404 = vpop.permute.xlu0 %403
      %405 = vrot.lane.b32.xlu0 %v351, 112
      %v406 = vpop.permute.xlu0 %405
      %407 = vrot.lane.b32.xlu0 %v356, 112
      %v408 = vpop.permute.xlu0 %407
      %409 = vrot.lane.b32.xlu0 %v361, 112
      %v410 = vpop.permute.xlu0 %409
      %411 = vrot.lane.b32.xlu0 %v366, 112
      %v412 = vpop.permute.xlu0 %411
      %413 = vrot.lane.b32.xlu0 %v371, 112
      %v414 = vpop.permute.xlu0 %413
      %415 = vrot.lane.b32.xlu0 %v376, 112
      %v416 = vpop.permute.xlu0 %415
      %vm417 = vcmask 64512
      %v418 = vsel %vm417, %v341, 0
      %v420 = vsel %vm417, %v346, 0
      %v422 = vsel %vm417, %v351, 0
      %v424 = vsel %vm417, %v356, 0
      %v426 = vsel %vm417, %v361, 0
      %v428 = vsel %vm417, %v366, 0
      %v430 = vsel %vm417, %v371, 0
      %v432 = vsel %vm417, %v376, 0
      %v434 = vsel %vm417, %v402, 0
      %v436 = vsel %vm417, %v404, 0
      %v438 = vsel %vm417, %v406, 0
      %v440 = vsel %vm417, %v408, 0
      %v442 = vsel %vm417, %v410, 0
      %v444 = vsel %vm417, %v412, 0
      %v446 = vsel %vm417, %v414, 0
      %v448 = vsel %vm417, %v416, 0
      %450 = vmatprep.subr.mxu0 0.0
      %451 = vmatpush1.xpose.msra.mxu0 0.0
      %452 = vmatprep.subr.mxu0 0.0
      %453 = vmatpush1.xpose.msra.mxu0 0.0
      %454 = vmatprep.subr.mxu0 0.0
      %455 = vmatpush1.xpose.msra.mxu0 0.0
      %456 = vmatprep.subr.mxu0 0.0
      %457 = vmatpush1.xpose.msra.mxu0 0.0
      %458 = vmatprep.subr.mxu0 0.0
      %459 = vmatpush1.xpose.msra.mxu0 0.0
      %460 = vmatprep.subr.mxu0 0.0
      %461 = vmatpush1.xpose.msra.mxu0 0.0
      %462 = vmatprep.subr.mxu0 0.0
      %463 = vmatpush1.xpose.msra.mxu0 0.0
      %464 = vmatprep.subr.mxu0 0.0
      %465 = vmatpush1.xpose.msra.mxu0 0.0
      %466 = vmatprep.subr.mxu0 0.0
      %467 = vmatpush1.xpose.msra.mxu0 %v448
      %468 = vmatprep.subr.mxu0 0.0
      %469 = vmatpush1.xpose.msra.mxu0 %v446
      %470 = vmatprep.subr.mxu0 0.0
      %471 = vmatpush1.xpose.msra.mxu0 %v444
      %472 = vmatprep.subr.mxu0 0.0
      %473 = vmatpush1.xpose.msra.mxu0 %v442
      %474 = vmatprep.subr.mxu0 0.0
      %475 = vmatpush1.xpose.msra.mxu0 %v440
      %476 = vmatprep.subr.mxu0 0.0
      %477 = vmatpush1.xpose.msra.mxu0 %v438
      %478 = vmatprep.subr.mxu0 0.0
      %479 = vmatpush1.xpose.msra.mxu0 %v436
      %480 = vmatprep.subr.mxu0 0.0
      %481 = vmatpush1.xpose.msra.mxu0 %v434
      %482 = vmatprep.subr.mxu0 0.0
      %483 = vmatpush2.xpose.msra.mxu0 0.0
      %484 = vmatprep.subr.mxu0 0.0
      %485 = vmatpush2.xpose.msra.mxu0 0.0
      %486 = vmatprep.subr.mxu0 0.0
      %487 = vmatpush2.xpose.msra.mxu0 0.0
      %488 = vmatprep.subr.mxu0 0.0
      %489 = vmatpush2.xpose.msra.mxu0 0.0
      %490 = vmatprep.subr.mxu0 0.0
      %491 = vmatpush2.xpose.msra.mxu0 0.0
      %492 = vmatprep.subr.mxu0 0.0
      %493 = vmatpush2.xpose.msra.mxu0 0.0
      %494 = vmatprep.subr.mxu0 0.0
      %495 = vmatpush2.xpose.msra.mxu0 0.0
      %496 = vmatprep.subr.mxu0 0.0
      %497 = vmatpush2.xpose.msra.mxu0 0.0
      %498 = vmatprep.subr.mxu0 0.0
      %499 = vmatpush2.xpose.msra.mxu0 0.0
      %500 = vmatprep.subr.mxu0 0.0
      %501 = vmatpush2.xpose.msra.mxu0 0.0
      %502 = vmatprep.subr.mxu0 0.0
      %503 = vmatpush2.xpose.msra.mxu0 0.0
      %504 = vmatprep.subr.mxu0 0.0
      %505 = vmatpush2.xpose.msra.mxu0 0.0
      %506 = vmatprep.subr.mxu0 0.0
      %507 = vmatpush2.xpose.msra.mxu0 0.0
      %508 = vmatprep.subr.mxu0 0.0
      %509 = vmatpush2.xpose.msra.mxu0 0.0
      %510 = vmatprep.subr.mxu0 0.0
      %511 = vmatpush2.xpose.msra.mxu0 0.0
      %512 = vmatprep.subr.mxu0 0.0
      %513 = vmatpush2.xpose.msra.mxu0 0.0
      %514 = vmatprep.mubr.f32.mxu0 0.0
      %515 = vmatmul.mubr.f32.gmra.mxu0 %v418
      %v516 = vpop.f32.mrf.mxu0
      %v517 = vadd.f32 0.0, %v516
      %v518 = vpop.f32.mrf.mxu0
      %519 = vmatprep.mubr.f32.mxu0 0.0
      %520 = vmatmul.mubr.f32.gmra.mxu0 %v420
      %v521 = vpop.f32.mrf.mxu0
      %v522 = vadd.f32 0.0, %v521
      %v523 = vpop.f32.mrf.mxu0
      %524 = vmatprep.mubr.f32.mxu0 0.0
      %525 = vmatmul.mubr.f32.gmra.mxu0 %v422
      %v526 = vpop.f32.mrf.mxu0
      %v527 = vadd.f32 0.0, %v526
      %v528 = vpop.f32.mrf.mxu0
      %529 = vmatprep.mubr.f32.mxu0 0.0
      %530 = vmatmul.mubr.f32.gmra.mxu0 %v424
      %v531 = vpop.f32.mrf.mxu0
      %v532 = vadd.f32 0.0, %v531
      %v533 = vpop.f32.mrf.mxu0
      %534 = vmatprep.mubr.f32.mxu0 0.0
      %535 = vmatmul.mubr.f32.gmra.mxu0 %v426
      %v536 = vpop.f32.mrf.mxu0
      %v537 = vadd.f32 0.0, %v536
      %v538 = vpop.f32.mrf.mxu0
      %539 = vmatprep.mubr.f32.mxu0 0.0
      %540 = vmatmul.mubr.f32.gmra.mxu0 %v428
      %v541 = vpop.f32.mrf.mxu0
      %v542 = vadd.f32 0.0, %v541
      %v543 = vpop.f32.mrf.mxu0
      %544 = vmatprep.mubr.f32.mxu0 0.0
      %545 = vmatmul.mubr.f32.gmra.mxu0 %v430
      %v546 = vpop.f32.mrf.mxu0
      %v547 = vadd.f32 0.0, %v546
      %v548 = vpop.f32.mrf.mxu0
      %549 = vmatprep.mubr.f32.mxu0 0.0
      %550 = vmatmul.mubr.f32.gmra.mxu0 %v432
      %v551 = vpop.f32.mrf.mxu0
      %v552 = vadd.f32 0.0, %v551
      %v553 = vpop.f32.mrf.mxu0
      %554 = vdwg.mxu0
      %vm555 = vcmask 523264
      %v556 = vsel %vm555, %v517, -inf
      %557 = vmax.xlane.f32.xlu0 %v556
      %v558 = vpop.xlane.xlu0 %557
      %v559 = vsel %vm555, %v522, -inf
      %560 = vmax.xlane.f32.xlu0 %v559
      %v561 = vpop.xlane.xlu0 %560
      %v562 = vsel %vm555, %v527, -inf
      %563 = vmax.xlane.f32.xlu0 %v562
      %v564 = vpop.xlane.xlu0 %563
      %v565 = vsel %vm555, %v532, -inf
      %566 = vmax.xlane.f32.xlu0 %v565
      %v567 = vpop.xlane.xlu0 %566
      %v568 = vsel %vm555, %v537, -inf
      %569 = vmax.xlane.f32.xlu0 %v568
      %v570 = vpop.xlane.xlu0 %569
      %v571 = vsel %vm555, %v542, -inf
      %572 = vmax.xlane.f32.xlu0 %v571
      %v573 = vpop.xlane.xlu0 %572
      %v574 = vsel %vm555, %v547, -inf
      %575 = vmax.xlane.f32.xlu0 %v574
      %v576 = vpop.xlane.xlu0 %575
      %v577 = vsel %vm555, %v552, -inf
      %578 = vmax.xlane.f32.xlu0 %v577
      %v579 = vpop.xlane.xlu0 %578
      %v580 = vsub.f32 %v517, %v558
      %v581 = vsub.f32 %v522, %v561
      %v582 = vsub.f32 %v527, %v564
      %v583 = vsub.f32 %v532, %v567
      %v584 = vsub.f32 %v537, %v570
      %v585 = vsub.f32 %v542, %v573
      %v586 = vsub.f32 %v547, %v576
      %v587 = vsub.f32 %v552, %v579
      %v588 = vmul.f32 %v580, 1.442695
      %v589 = vpow.pop %v588
      %v590 = vmul.f32 %v581, 1.442695
      %v591 = vpow.pop %v590
      %v592 = vmul.f32 %v582, 1.442695
      %v593 = vpow.pop %v592
      %v594 = vmul.f32 %v583, 1.442695
      %v595 = vpow.pop %v594
      %v596 = vmul.f32 %v584, 1.442695
      %v597 = vpow.pop %v596
      %v598 = vmul.f32 %v585, 1.442695
      %v599 = vpow.pop %v598
      %v600 = vmul.f32 %v586, 1.442695
      %v601 = vpow.pop %v600
      %v602 = vmul.f32 %v587, 1.442695
      %v603 = vpow.pop %v602
      %v604 = vsel %vm555, %v589, 0.0
      %605 = vadd.xlane.f32.xlu0 %v604
      %v606 = vpop.xlane.xlu0 %605
      %v607 = vsel %vm555, %v591, 0.0
      %608 = vadd.xlane.f32.xlu0 %v607
      %v609 = vpop.xlane.xlu0 %608
      %v610 = vsel %vm555, %v593, 0.0
      %611 = vadd.xlane.f32.xlu0 %v610
      %v612 = vpop.xlane.xlu0 %611
      %v613 = vsel %vm555, %v595, 0.0
      %614 = vadd.xlane.f32.xlu0 %v613
      %v615 = vpop.xlane.xlu0 %614
      %v616 = vsel %vm555, %v597, 0.0
      %617 = vadd.xlane.f32.xlu0 %v616
      %v618 = vpop.xlane.xlu0 %617
      %v619 = vsel %vm555, %v599, 0.0
      %620 = vadd.xlane.f32.xlu0 %v619
      %v621 = vpop.xlane.xlu0 %620
      %v622 = vsel %vm555, %v601, 0.0
      %623 = vadd.xlane.f32.xlu0 %v622
      %v624 = vpop.xlane.xlu0 %623
      %v625 = vsel %vm555, %v603, 0.0
      %626 = vadd.xlane.f32.xlu0 %v625
      %v627 = vpop.xlane.xlu0 %626
      %v628 = vrcp.pop %v606
      %v629 = vrcp.pop %v609
      %v630 = vrcp.pop %v612
      %v631 = vrcp.pop %v615
      %v632 = vrcp.pop %v618
      %v633 = vrcp.pop %v621
      %v634 = vrcp.pop %v624
      %v635 = vrcp.pop %v627
      %v636 = vmul.f32 %v589, %v628
      %v637 = vmul.f32 %v591, %v629
      %v638 = vmul.f32 %v593, %v630
      %v639 = vmul.f32 %v595, %v631
      %v640 = vmul.f32 %v597, %v632
      %v641 = vmul.f32 %v599, %v633
      %v642 = vmul.f32 %v601, %v634
      %v643 = vmul.f32 %v603, %v635
      %644 = vrot.lane.b32.xlu0 %v341, 96
      %v645 = vpop.permute.xlu0 %644
      %646 = vrot.lane.b32.xlu0 %v346, 96
      %v647 = vpop.permute.xlu0 %646
      %648 = vrot.lane.b32.xlu0 %v351, 96
      %v649 = vpop.permute.xlu0 %648
      %650 = vrot.lane.b32.xlu0 %v356, 96
      %v651 = vpop.permute.xlu0 %650
      %652 = vrot.lane.b32.xlu0 %v361, 96
      %v653 = vpop.permute.xlu0 %652
      %654 = vrot.lane.b32.xlu0 %v366, 96
      %v655 = vpop.permute.xlu0 %654
      %656 = vrot.lane.b32.xlu0 %v371, 96
      %v657 = vpop.permute.xlu0 %656
      %658 = vrot.lane.b32.xlu0 %v376, 96
      %v659 = vpop.permute.xlu0 %658
      %v669 = vsel %vm555, %v636, 0
      %v672 = vsel %vm555, %v637, 0
      %v675 = vsel %vm555, %v638, 0
      %v678 = vsel %vm555, %v639, 0
      %v681 = vsel %vm555, %v640, 0
      %v684 = vsel %vm555, %v641, 0
      %v687 = vsel %vm555, %v642, 0
      %v690 = vsel %vm555, %v643, 0
      %692 = vmatprep.subr.mxu0 0.0
      %693 = vmatpush1.msra.mxu0 0.0
      %694 = vmatprep.subr.mxu0 0.0
      %695 = vmatpush1.msra.mxu0 0.0
      %696 = vmatprep.subr.mxu0 0.0
      %697 = vmatpush1.msra.mxu0 0.0
      %698 = vmatprep.subr.mxu0 0.0
      %699 = vmatpush1.msra.mxu0 0.0
      %700 = vmatprep.subr.mxu0 0.0
      %701 = vmatpush1.msra.mxu0 0.0
      %702 = vmatprep.subr.mxu0 0.0
      %703 = vmatpush1.msra.mxu0 0.0
      %704 = vmatprep.subr.mxu0 0.0
      %705 = vmatpush1.msra.mxu0 0.0
      %706 = vmatprep.subr.mxu0 0.0
      %707 = vmatpush1.msra.mxu0 0.0
      %708 = vmatprep.subr.mxu0 0.0
      %709 = vmatpush1.msra.mxu0 %v659
      %710 = vmatprep.subr.mxu0 0.0
      %711 = vmatpush1.msra.mxu0 %v657
      %712 = vmatprep.subr.mxu0 0.0
      %713 = vmatpush1.msra.mxu0 %v655
      %714 = vmatprep.subr.mxu0 0.0
      %715 = vmatpush1.msra.mxu0 %v653
      %716 = vmatprep.subr.mxu0 0.0
      %717 = vmatpush1.msra.mxu0 %v651
      %718 = vmatprep.subr.mxu0 0.0
      %719 = vmatpush1.msra.mxu0 %v649
      %720 = vmatprep.subr.mxu0 0.0
      %721 = vmatpush1.msra.mxu0 %v647
      %722 = vmatprep.subr.mxu0 0.0
      %723 = vmatpush1.msra.mxu0 %v645
      %724 = vmatprep.subr.mxu0 0.0
      %725 = vmatpush2.msra.mxu0 0.0
      %726 = vmatprep.subr.mxu0 0.0
      %727 = vmatpush2.msra.mxu0 0.0
      %728 = vmatprep.subr.mxu0 0.0
      %729 = vmatpush2.msra.mxu0 0.0
      %730 = vmatprep.subr.mxu0 0.0
      %731 = vmatpush2.msra.mxu0 0.0
      %732 = vmatprep.subr.mxu0 0.0
      %733 = vmatpush2.msra.mxu0 0.0
      %734 = vmatprep.subr.mxu0 0.0
      %735 = vmatpush2.msra.mxu0 0.0
      %736 = vmatprep.subr.mxu0 0.0
      %737 = vmatpush2.msra.mxu0 0.0
      %738 = vmatprep.subr.mxu0 0.0
      %739 = vmatpush2.msra.mxu0 0.0
      %740 = vmatprep.subr.mxu0 0.0
      %741 = vmatpush2.msra.mxu0 0.0
      %742 = vmatprep.subr.mxu0 0.0
      %743 = vmatpush2.msra.mxu0 0.0
      %744 = vmatprep.subr.mxu0 0.0
      %745 = vmatpush2.msra.mxu0 0.0
      %746 = vmatprep.subr.mxu0 0.0
      %747 = vmatpush2.msra.mxu0 0.0
      %748 = vmatprep.subr.mxu0 0.0
      %749 = vmatpush2.msra.mxu0 0.0
      %750 = vmatprep.subr.mxu0 0.0
      %751 = vmatpush2.msra.mxu0 0.0
      %752 = vmatprep.subr.mxu0 0.0
      %753 = vmatpush2.msra.mxu0 0.0
      %754 = vmatprep.subr.mxu0 0.0
      %755 = vmatpush2.msra.mxu0 0.0
      %756 = vmatprep.mubr.f32.mxu0 0.0
      %757 = vmatmul.mubr.f32.gmra.mxu0 %v669
      %v758 = vpop.f32.mrf.mxu0
      %v759 = vadd.f32 0.0, %v758
      %v760 = vpop.f32.mrf.mxu0
      %761 = vmatprep.mubr.f32.mxu0 0.0
      %762 = vmatmul.mubr.f32.gmra.mxu0 %v672
      %v763 = vpop.f32.mrf.mxu0
      %v764 = vadd.f32 0.0, %v763
      %v765 = vpop.f32.mrf.mxu0
      %766 = vmatprep.mubr.f32.mxu0 0.0
      %767 = vmatmul.mubr.f32.gmra.mxu0 %v675
      %v768 = vpop.f32.mrf.mxu0
      %v769 = vadd.f32 0.0, %v768
      %v770 = vpop.f32.mrf.mxu0
      %771 = vmatprep.mubr.f32.mxu0 0.0
      %772 = vmatmul.mubr.f32.gmra.mxu0 %v678
      %v773 = vpop.f32.mrf.mxu0
      %v774 = vadd.f32 0.0, %v773
      %v775 = vpop.f32.mrf.mxu0
      %776 = vmatprep.mubr.f32.mxu0 0.0
      %777 = vmatmul.mubr.f32.gmra.mxu0 %v681
      %v778 = vpop.f32.mrf.mxu0
      %v779 = vadd.f32 0.0, %v778
      %v780 = vpop.f32.mrf.mxu0
      %781 = vmatprep.mubr.f32.mxu0 0.0
      %782 = vmatmul.mubr.f32.gmra.mxu0 %v684
      %v783 = vpop.f32.mrf.mxu0
      %v784 = vadd.f32 0.0, %v783
      %v785 = vpop.f32.mrf.mxu0
      %786 = vmatprep.mubr.f32.mxu0 0.0
      %787 = vmatmul.mubr.f32.gmra.mxu0 %v687
      %v788 = vpop.f32.mrf.mxu0
      %v789 = vadd.f32 0.0, %v788
      %v790 = vpop.f32.mrf.mxu0
      %791 = vmatprep.mubr.f32.mxu0 0.0
      %792 = vmatmul.mubr.f32.gmra.mxu0 %v690
      %v793 = vpop.f32.mrf.mxu0
      %v794 = vadd.f32 0.0, %v793
      %v795 = vpop.f32.mrf.mxu0
      %796 = vdwg.mxu0
      %v797 = vmax.f32 %v759, 0.0
      %v798 = vmax.f32 %v764, 0.0
      %v799 = vmax.f32 %v769, 0.0
      %v800 = vmax.f32 %v774, 0.0
      %v801 = vmax.f32 %v779, 0.0
      %v802 = vmax.f32 %v784, 0.0
      %v803 = vmax.f32 %v789, 0.0
      %v804 = vmax.f32 %v794, 0.0
      %vm805 = vcmask 130048
      %v807 = vsel %vm805, %v797, 0
      %v810 = vsel %vm805, %v798, 0
      %v813 = vsel %vm805, %v799, 0
      %v816 = vsel %vm805, %v800, 0
      %v819 = vsel %vm805, %v801, 0
      %v822 = vsel %vm805, %v802, 0
      %v825 = vsel %vm805, %v803, 0
      %v828 = vsel %vm805, %v804, 0
      %830 = vmatprep.subr.mxu0 0.0
      %831 = vmatpush1.msra.mxu0 0.0
      %832 = vmatprep.subr.mxu0 0.0
      %833 = vmatpush1.msra.mxu0 0.0
      %834 = vmatprep.subr.mxu0 0.0
      %835 = vmatpush1.msra.mxu0 0.0
      %836 = vmatprep.subr.mxu0 0.0
      %837 = vmatpush1.msra.mxu0 0.0
      %838 = vmatprep.subr.mxu0 0.0
      %839 = vmatpush1.msra.mxu0 0.0
      %840 = vmatprep.subr.mxu0 0.0
      %841 = vmatpush1.msra.mxu0 0.0
      %842 = vmatprep.subr.mxu0 0.0
      %843 = vmatpush1.msra.mxu0 0.0
      %844 = vmatprep.subr.mxu0 0.0
      %845 = vmatpush1.msra.mxu0 0.0
      %846 = vmatprep.subr.mxu0 0.0
      %847 = vmatpush1.msra.mxu0 0.0
      %848 = vmatprep.subr.mxu0 0.0
      %849 = vmatpush1.msra.mxu0 0.0
      %850 = vmatprep.subr.mxu0 0.0
      %851 = vmatpush1.msra.mxu0 0.0
      %852 = vmatprep.subr.mxu0 0.0
      %853 = vmatpush1.msra.mxu0 0.0
      %854 = vmatprep.subr.mxu0 0.0
      %855 = vmatpush1.msra.mxu0 0.0
      %856 = vmatprep.subr.mxu0 0.0
      %857 = vmatpush1.msra.mxu0 0.0
      %858 = vmatprep.subr.mxu0 0.0
      %859 = vmatpush1.msra.mxu0 %v239
      %860 = vmatprep.subr.mxu0 0.0
      %861 = vmatpush1.msra.mxu0 %v238
      %862 = vmatprep.subr.mxu0 0.0
      %863 = vmatpush2.msra.mxu0 0.0
      %864 = vmatprep.subr.mxu0 0.0
      %865 = vmatpush2.msra.mxu0 0.0
      %866 = vmatprep.subr.mxu0 0.0
      %867 = vmatpush2.msra.mxu0 0.0
      %868 = vmatprep.subr.mxu0 0.0
      %869 = vmatpush2.msra.mxu0 0.0
      %870 = vmatprep.subr.mxu0 0.0
      %871 = vmatpush2.msra.mxu0 0.0
      %872 = vmatprep.subr.mxu0 0.0
      %873 = vmatpush2.msra.mxu0 0.0
      %874 = vmatprep.subr.mxu0 0.0
      %875 = vmatpush2.msra.mxu0 0.0
      %876 = vmatprep.subr.mxu0 0.0
      %877 = vmatpush2.msra.mxu0 0.0
      %878 = vmatprep.subr.mxu0 0.0
      %879 = vmatpush2.msra.mxu0 0.0
      %880 = vmatprep.subr.mxu0 0.0
      %881 = vmatpush2.msra.mxu0 0.0
      %882 = vmatprep.subr.mxu0 0.0
      %883 = vmatpush2.msra.mxu0 0.0
      %884 = vmatprep.subr.mxu0 0.0
      %885 = vmatpush2.msra.mxu0 0.0
      %886 = vmatprep.subr.mxu0 0.0
      %887 = vmatpush2.msra.mxu0 0.0
      %888 = vmatprep.subr.mxu0 0.0
      %889 = vmatpush2.msra.mxu0 0.0
      %890 = vmatprep.subr.mxu0 0.0
      %891 = vmatpush2.msra.mxu0 0.0
      %892 = vmatprep.subr.mxu0 0.0
      %893 = vmatpush2.msra.mxu0 0.0
      %894 = vmatprep.mubr.f32.mxu0 0.0
      %895 = vmatmul.mubr.f32.gmra.mxu0 %v807
      %v896 = vpop.f32.mrf.mxu0
      %v897 = vadd.f32 0.0, %v896
      %v898 = vpop.f32.mrf.mxu0
      %899 = vmatprep.mubr.f32.mxu0 0.0
      %900 = vmatmul.mubr.f32.gmra.mxu0 %v810
      %v901 = vpop.f32.mrf.mxu0
      %v902 = vadd.f32 0.0, %v901
      %v903 = vpop.f32.mrf.mxu0
      %904 = vmatprep.mubr.f32.mxu0 0.0
      %905 = vmatmul.mubr.f32.gmra.mxu0 %v813
      %v906 = vpop.f32.mrf.mxu0
      %v907 = vadd.f32 0.0, %v906
      %v908 = vpop.f32.mrf.mxu0
      %909 = vmatprep.mubr.f32.mxu0 0.0
      %910 = vmatmul.mubr.f32.gmra.mxu0 %v816
      %v911 = vpop.f32.mrf.mxu0
      %v912 = vadd.f32 0.0, %v911
      %v913 = vpop.f32.mrf.mxu0
      %914 = vmatprep.mubr.f32.mxu0 0.0
      %915 = vmatmul.mubr.f32.gmra.mxu0 %v819
      %v916 = vpop.f32.mrf.mxu0
      %v917 = vadd.f32 0.0, %v916
      %v918 = vpop.f32.mrf.mxu0
      %919 = vmatprep.mubr.f32.mxu0 0.0
      %920 = vmatmul.mubr.f32.gmra.mxu0 %v822
      %v921 = vpop.f32.mrf.mxu0
      %v922 = vadd.f32 0.0, %v921
      %v923 = vpop.f32.mrf.mxu0
      %924 = vmatprep.mubr.f32.mxu0 0.0
      %925 = vmatmul.mubr.f32.gmra.mxu0 %v825
      %v926 = vpop.f32.mrf.mxu0
      %v927 = vadd.f32 0.0, %v926
      %v928 = vpop.f32.mrf.mxu0
      %929 = vmatprep.mubr.f32.mxu0 0.0
      %930 = vmatmul.mubr.f32.gmra.mxu0 %v828
      %v931 = vpop.f32.mrf.mxu0
      %v932 = vadd.f32 0.0, %v931
      %v933 = vpop.f32.mrf.mxu0
      %934 = vdwg.mxu0
      %v935 = vadd.f32 %v385, %v897
      %v936 = vadd.f32 %v386, %v902
      %v937 = vadd.f32 %v387, %v907
      %v938 = vadd.f32 %v388, %v912
      %v939 = vadd.f32 %v389, %v917
      %v940 = vadd.f32 %v390, %v922
      %v941 = vadd.f32 %v391, %v927
      %v942 = vadd.f32 %v392, %v932
      %943 = vrot.lane.b32.xlu0 %v341, 120
      %v944 = vpop.permute.xlu0 %943
      %945 = vrot.lane.b32.xlu0 %v346, 120
      %v946 = vpop.permute.xlu0 %945
      %947 = vrot.lane.b32.xlu0 %v351, 120
      %v948 = vpop.permute.xlu0 %947
      %949 = vrot.lane.b32.xlu0 %v356, 120
      %v950 = vpop.permute.xlu0 %949
      %951 = vrot.lane.b32.xlu0 %v361, 120
      %v952 = vpop.permute.xlu0 %951
      %953 = vrot.lane.b32.xlu0 %v366, 120
      %v954 = vpop.permute.xlu0 %953
      %955 = vrot.lane.b32.xlu0 %v371, 120
      %v956 = vpop.permute.xlu0 %955
      %957 = vrot.lane.b32.xlu0 %v376, 120
      %v958 = vpop.permute.xlu0 %957
      %959 = vrot.lane.b32.xlu0 %v341, 104
      %v960 = vpop.permute.xlu0 %959
      %961 = vrot.lane.b32.xlu0 %v346, 104
      %v962 = vpop.permute.xlu0 %961
      %963 = vrot.lane.b32.xlu0 %v351, 104
      %v964 = vpop.permute.xlu0 %963
      %965 = vrot.lane.b32.xlu0 %v356, 104
      %v966 = vpop.permute.xlu0 %965
      %967 = vrot.lane.b32.xlu0 %v361, 104
      %v968 = vpop.permute.xlu0 %967
      %969 = vrot.lane.b32.xlu0 %v366, 104
      %v970 = vpop.permute.xlu0 %969
      %971 = vrot.lane.b32.xlu0 %v371, 104
      %v972 = vpop.permute.xlu0 %971
      %973 = vrot.lane.b32.xlu0 %v376, 104
      %v974 = vpop.permute.xlu0 %973
      %v975 = vsel %vm417, %v944, 0
      %v977 = vsel %vm417, %v946, 0
      %v979 = vsel %vm417, %v948, 0
      %v981 = vsel %vm417, %v950, 0
      %v983 = vsel %vm417, %v952, 0
      %v985 = vsel %vm417, %v954, 0
      %v987 = vsel %vm417, %v956, 0
      %v989 = vsel %vm417, %v958, 0
      %v991 = vsel %vm417, %v960, 0
      %v993 = vsel %vm417, %v962, 0
      %v995 = vsel %vm417, %v964, 0
      %v997 = vsel %vm417, %v966, 0
      %v999 = vsel %vm417, %v968, 0
      %v1001 = vsel %vm417, %v970, 0
      %v1003 = vsel %vm417, %v972, 0
      %v1005 = vsel %vm417, %v974, 0
      %1007 = vmatprep.subr.mxu0 0.0
      %1008 = vmatpush1.xpose.msra.mxu0 0.0
      %1009 = vmatprep.subr.mxu0 0.0
      %1010 = vmatpush1.xpose.msra.mxu0 0.0
      %1011 = vmatprep.subr.mxu0 0.0
      %1012 = vmatpush1.xpose.msra.mxu0 0.0
      %1013 = vmatprep.subr.mxu0 0.0
      %1014 = vmatpush1.xpose.msra.mxu0 0.0
      %1015 = vmatprep.subr.mxu0 0.0
      %1016 = vmatpush1.xpose.msra.mxu0 0.0
      %1017 = vmatprep.subr.mxu0 0.0
      %1018 = vmatpush1.xpose.msra.mxu0 0.0
      %1019 = vmatprep.subr.mxu0 0.0
      %1020 = vmatpush1.xpose.msra.mxu0 0.0
      %1021 = vmatprep.subr.mxu0 0.0
      %1022 = vmatpush1.xpose.msra.mxu0 0.0
      %1023 = vmatprep.subr.mxu0 0.0
      %1024 = vmatpush1.xpose.msra.mxu0 %v1005
      %1025 = vmatprep.subr.mxu0 0.0
      %1026 = vmatpush1.xpose.msra.mxu0 %v1003
      %1027 = vmatprep.subr.mxu0 0.0
      %1028 = vmatpush1.xpose.msra.mxu0 %v1001
      %1029 = vmatprep.subr.mxu0 0.0
      %1030 = vmatpush1.xpose.msra.mxu0 %v999
      %1031 = vmatprep.subr.mxu0 0.0
      %1032 = vmatpush1.xpose.msra.mxu0 %v997
      %1033 = vmatprep.subr.mxu0 0.0
      %1034 = vmatpush1.xpose.msra.mxu0 %v995
      %1035 = vmatprep.subr.mxu0 0.0
      %1036 = vmatpush1.xpose.msra.mxu0 %v993
      %1037 = vmatprep.subr.mxu0 0.0
      %1038 = vmatpush1.xpose.msra.mxu0 %v991
      %1039 = vmatprep.subr.mxu0 0.0
      %1040 = vmatpush2.xpose.msra.mxu0 0.0
      %1041 = vmatprep.subr.mxu0 0.0
      %1042 = vmatpush2.xpose.msra.mxu0 0.0
      %1043 = vmatprep.subr.mxu0 0.0
      %1044 = vmatpush2.xpose.msra.mxu0 0.0
      %1045 = vmatprep.subr.mxu0 0.0
      %1046 = vmatpush2.xpose.msra.mxu0 0.0
      %1047 = vmatprep.subr.mxu0 0.0
      %1048 = vmatpush2.xpose.msra.mxu0 0.0
      %1049 = vmatprep.subr.mxu0 0.0
      %1050 = vmatpush2.xpose.msra.mxu0 0.0
      %1051 = vmatprep.subr.mxu0 0.0
      %1052 = vmatpush2.xpose.msra.mxu0 0.0
      %1053 = vmatprep.subr.mxu0 0.0
      %1054 = vmatpush2.xpose.msra.mxu0 0.0
      %1055 = vmatprep.subr.mxu0 0.0
      %1056 = vmatpush2.xpose.msra.mxu0 0.0
      %1057 = vmatprep.subr.mxu0 0.0
      %1058 = vmatpush2.xpose.msra.mxu0 0.0
      %1059 = vmatprep.subr.mxu0 0.0
      %1060 = vmatpush2.xpose.msra.mxu0 0.0
      %1061 = vmatprep.subr.mxu0 0.0
      %1062 = vmatpush2.xpose.msra.mxu0 0.0
      %1063 = vmatprep.subr.mxu0 0.0
      %1064 = vmatpush2.xpose.msra.mxu0 0.0
      %1065 = vmatprep.subr.mxu0 0.0
      %1066 = vmatpush2.xpose.msra.mxu0 0.0
      %1067 = vmatprep.subr.mxu0 0.0
      %1068 = vmatpush2.xpose.msra.mxu0 0.0
      %1069 = vmatprep.subr.mxu0 0.0
      %1070 = vmatpush2.xpose.msra.mxu0 0.0
      %1071 = vmatprep.mubr.f32.mxu0 0.0
      %1072 = vmatmul.mubr.f32.gmra.mxu0 %v975
      %v1073 = vpop.f32.mrf.mxu0
      %v1074 = vadd.f32 0.0, %v1073
      %v1075 = vpop.f32.mrf.mxu0
      %1076 = vmatprep.mubr.f32.mxu0 0.0
      %1077 = vmatmul.mubr.f32.gmra.mxu0 %v977
      %v1078 = vpop.f32.mrf.mxu0
      %v1079 = vadd.f32 0.0, %v1078
      %v1080 = vpop.f32.mrf.mxu0
      %1081 = vmatprep.mubr.f32.mxu0 0.0
      %1082 = vmatmul.mubr.f32.gmra.mxu0 %v979
      %v1083 = vpop.f32.mrf.mxu0
      %v1084 = vadd.f32 0.0, %v1083
      %v1085 = vpop.f32.mrf.mxu0
      %1086 = vmatprep.mubr.f32.mxu0 0.0
      %1087 = vmatmul.mubr.f32.gmra.mxu0 %v981
      %v1088 = vpop.f32.mrf.mxu0
      %v1089 = vadd.f32 0.0, %v1088
      %v1090 = vpop.f32.mrf.mxu0
      %1091 = vmatprep.mubr.f32.mxu0 0.0
      %1092 = vmatmul.mubr.f32.gmra.mxu0 %v983
      %v1093 = vpop.f32.mrf.mxu0
      %v1094 = vadd.f32 0.0, %v1093
      %v1095 = vpop.f32.mrf.mxu0
      %1096 = vmatprep.mubr.f32.mxu0 0.0
      %1097 = vmatmul.mubr.f32.gmra.mxu0 %v985
      %v1098 = vpop.f32.mrf.mxu0
      %v1099 = vadd.f32 0.0, %v1098
      %v1100 = vpop.f32.mrf.mxu0
      %1101 = vmatprep.mubr.f32.mxu0 0.0
      %1102 = vmatmul.mubr.f32.gmra.mxu0 %v987
      %v1103 = vpop.f32.mrf.mxu0
      %v1104 = vadd.f32 0.0, %v1103
      %v1105 = vpop.f32.mrf.mxu0
      %1106 = vmatprep.mubr.f32.mxu0 0.0
      %1107 = vmatmul.mubr.f32.gmra.mxu0 %v989
      %v1108 = vpop.f32.mrf.mxu0
      %v1109 = vadd.f32 0.0, %v1108
      %v1110 = vpop.f32.mrf.mxu0
      %1111 = vdwg.mxu0
      %v1112 = vsel %vm555, %v1074, -inf
      %1113 = vmax.xlane.f32.xlu0 %v1112
      %v1114 = vpop.xlane.xlu0 %1113
      %v1115 = vsel %vm555, %v1079, -inf
      %1116 = vmax.xlane.f32.xlu0 %v1115
      %v1117 = vpop.xlane.xlu0 %1116
      %v1118 = vsel %vm555, %v1084, -inf
      %1119 = vmax.xlane.f32.xlu0 %v1118
      %v1120 = vpop.xlane.xlu0 %1119
      %v1121 = vsel %vm555, %v1089, -inf
      %1122 = vmax.xlane.f32.xlu0 %v1121
      %v1123 = vpop.xlane.xlu0 %1122
      %v1124 = vsel %vm555, %v1094, -inf
      %1125 = vmax.xlane.f32.xlu0 %v1124
      %v1126 = vpop.xlane.xlu0 %1125
      %v1127 = vsel %vm555, %v1099, -inf
      %1128 = vmax.xlane.f32.xlu0 %v1127
      %v1129 = vpop.xlane.xlu0 %1128
      %v1130 = vsel %vm555, %v1104, -inf
      %1131 = vmax.xlane.f32.xlu0 %v1130
      %v1132 = vpop.xlane.xlu0 %1131
      %v1133 = vsel %vm555, %v1109, -inf
      %1134 = vmax.xlane.f32.xlu0 %v1133
      %v1135 = vpop.xlane.xlu0 %1134
      %v1136 = vsub.f32 %v1074, %v1114
      %v1137 = vsub.f32 %v1079, %v1117
      %v1138 = vsub.f32 %v1084, %v1120
      %v1139 = vsub.f32 %v1089, %v1123
      %v1140 = vsub.f32 %v1094, %v1126
      %v1141 = vsub.f32 %v1099, %v1129
      %v1142 = vsub.f32 %v1104, %v1132
      %v1143 = vsub.f32 %v1109, %v1135
      %v1144 = vmul.f32 %v1136, 1.442695
      %v1145 = vpow.pop %v1144
      %v1146 = vmul.f32 %v1137, 1.442695
      %v1147 = vpow.pop %v1146
      %v1148 = vmul.f32 %v1138, 1.442695
      %v1149 = vpow.pop %v1148
      %v1150 = vmul.f32 %v1139, 1.442695
      %v1151 = vpow.pop %v1150
      %v1152 = vmul.f32 %v1140, 1.442695
      %v1153 = vpow.pop %v1152
      %v1154 = vmul.f32 %v1141, 1.442695
      %v1155 = vpow.pop %v1154
      %v1156 = vmul.f32 %v1142, 1.442695
      %v1157 = vpow.pop %v1156
      %v1158 = vmul.f32 %v1143, 1.442695
      %v1159 = vpow.pop %v1158
      %v1160 = vsel %vm555, %v1145, 0.0
      %1161 = vadd.xlane.f32.xlu0 %v1160
      %v1162 = vpop.xlane.xlu0 %1161
      %v1163 = vsel %vm555, %v1147, 0.0
      %1164 = vadd.xlane.f32.xlu0 %v1163
      %v1165 = vpop.xlane.xlu0 %1164
      %v1166 = vsel %vm555, %v1149, 0.0
      %1167 = vadd.xlane.f32.xlu0 %v1166
      %v1168 = vpop.xlane.xlu0 %1167
      %v1169 = vsel %vm555, %v1151, 0.0
      %1170 = vadd.xlane.f32.xlu0 %v1169
      %v1171 = vpop.xlane.xlu0 %1170
      %v1172 = vsel %vm555, %v1153, 0.0
      %1173 = vadd.xlane.f32.xlu0 %v1172
      %v1174 = vpop.xlane.xlu0 %1173
      %v1175 = vsel %vm555, %v1155, 0.0
      %1176 = vadd.xlane.f32.xlu0 %v1175
      %v1177 = vpop.xlane.xlu0 %1176
      %v1178 = vsel %vm555, %v1157, 0.0
      %1179 = vadd.xlane.f32.xlu0 %v1178
      %v1180 = vpop.xlane.xlu0 %1179
      %v1181 = vsel %vm555, %v1159, 0.0
      %1182 = vadd.xlane.f32.xlu0 %v1181
      %v1183 = vpop.xlane.xlu0 %1182
      %v1184 = vrcp.pop %v1162
      %v1185 = vrcp.pop %v1165
      %v1186 = vrcp.pop %v1168
      %v1187 = vrcp.pop %v1171
      %v1188 = vrcp.pop %v1174
      %v1189 = vrcp.pop %v1177
      %v1190 = vrcp.pop %v1180
      %v1191 = vrcp.pop %v1183
      %v1192 = vmul.f32 %v1145, %v1184
      %v1193 = vmul.f32 %v1147, %v1185
      %v1194 = vmul.f32 %v1149, %v1186
      %v1195 = vmul.f32 %v1151, %v1187
      %v1196 = vmul.f32 %v1153, %v1188
      %v1197 = vmul.f32 %v1155, %v1189
      %v1198 = vmul.f32 %v1157, %v1190
      %v1199 = vmul.f32 %v1159, %v1191
      %1200 = vrot.lane.b32.xlu0 %v341, 80
      %v1201 = vpop.permute.xlu0 %1200
      %1202 = vrot.lane.b32.xlu0 %v346, 80
      %v1203 = vpop.permute.xlu0 %1202
      %1204 = vrot.lane.b32.xlu0 %v351, 80
      %v1205 = vpop.permute.xlu0 %1204
      %1206 = vrot.lane.b32.xlu0 %v356, 80
      %v1207 = vpop.permute.xlu0 %1206
      %1208 = vrot.lane.b32.xlu0 %v361, 80
      %v1209 = vpop.permute.xlu0 %1208
      %1210 = vrot.lane.b32.xlu0 %v366, 80
      %v1211 = vpop.permute.xlu0 %1210
      %1212 = vrot.lane.b32.xlu0 %v371, 80
      %v1213 = vpop.permute.xlu0 %1212
      %1214 = vrot.lane.b32.xlu0 %v376, 80
      %v1215 = vpop.permute.xlu0 %1214
      %v1225 = vsel %vm555, %v1192, 0
      %v1228 = vsel %vm555, %v1193, 0
      %v1231 = vsel %vm555, %v1194, 0
      %v1234 = vsel %vm555, %v1195, 0
      %v1237 = vsel %vm555, %v1196, 0
      %v1240 = vsel %vm555, %v1197, 0
      %v1243 = vsel %vm555, %v1198, 0
      %v1246 = vsel %vm555, %v1199, 0
      %1248 = vmatprep.subr.mxu0 0.0
      %1249 = vmatpush1.msra.mxu0 0.0
      %1250 = vmatprep.subr.mxu0 0.0
      %1251 = vmatpush1.msra.mxu0 0.0
      %1252 = vmatprep.subr.mxu0 0.0
      %1253 = vmatpush1.msra.mxu0 0.0
      %1254 = vmatprep.subr.mxu0 0.0
      %1255 = vmatpush1.msra.mxu0 0.0
      %1256 = vmatprep.subr.mxu0 0.0
      %1257 = vmatpush1.msra.mxu0 0.0
      %1258 = vmatprep.subr.mxu0 0.0
      %1259 = vmatpush1.msra.mxu0 0.0
      %1260 = vmatprep.subr.mxu0 0.0
      %1261 = vmatpush1.msra.mxu0 0.0
      %1262 = vmatprep.subr.mxu0 0.0
      %1263 = vmatpush1.msra.mxu0 0.0
      %1264 = vmatprep.subr.mxu0 0.0
      %1265 = vmatpush1.msra.mxu0 %v1215
      %1266 = vmatprep.subr.mxu0 0.0
      %1267 = vmatpush1.msra.mxu0 %v1213
      %1268 = vmatprep.subr.mxu0 0.0
      %1269 = vmatpush1.msra.mxu0 %v1211
      %1270 = vmatprep.subr.mxu0 0.0
      %1271 = vmatpush1.msra.mxu0 %v1209
      %1272 = vmatprep.subr.mxu0 0.0
      %1273 = vmatpush1.msra.mxu0 %v1207
      %1274 = vmatprep.subr.mxu0 0.0
      %1275 = vmatpush1.msra.mxu0 %v1205
      %1276 = vmatprep.subr.mxu0 0.0
      %1277 = vmatpush1.msra.mxu0 %v1203
      %1278 = vmatprep.subr.mxu0 0.0
      %1279 = vmatpush1.msra.mxu0 %v1201
      %1280 = vmatprep.subr.mxu0 0.0
      %1281 = vmatpush2.msra.mxu0 0.0
      %1282 = vmatprep.subr.mxu0 0.0
      %1283 = vmatpush2.msra.mxu0 0.0
      %1284 = vmatprep.subr.mxu0 0.0
      %1285 = vmatpush2.msra.mxu0 0.0
      %1286 = vmatprep.subr.mxu0 0.0
      %1287 = vmatpush2.msra.mxu0 0.0
      %1288 = vmatprep.subr.mxu0 0.0
      %1289 = vmatpush2.msra.mxu0 0.0
      %1290 = vmatprep.subr.mxu0 0.0
      %1291 = vmatpush2.msra.mxu0 0.0
      %1292 = vmatprep.subr.mxu0 0.0
      %1293 = vmatpush2.msra.mxu0 0.0
      %1294 = vmatprep.subr.mxu0 0.0
      %1295 = vmatpush2.msra.mxu0 0.0
      %1296 = vmatprep.subr.mxu0 0.0
      %1297 = vmatpush2.msra.mxu0 0.0
      %1298 = vmatprep.subr.mxu0 0.0
      %1299 = vmatpush2.msra.mxu0 0.0
      %1300 = vmatprep.subr.mxu0 0.0
      %1301 = vmatpush2.msra.mxu0 0.0
      %1302 = vmatprep.subr.mxu0 0.0
      %1303 = vmatpush2.msra.mxu0 0.0
      %1304 = vmatprep.subr.mxu0 0.0
      %1305 = vmatpush2.msra.mxu0 0.0
      %1306 = vmatprep.subr.mxu0 0.0
      %1307 = vmatpush2.msra.mxu0 0.0
      %1308 = vmatprep.subr.mxu0 0.0
      %1309 = vmatpush2.msra.mxu0 0.0
      %1310 = vmatprep.subr.mxu0 0.0
      %1311 = vmatpush2.msra.mxu0 0.0
      %1312 = vmatprep.mubr.f32.mxu0 0.0
      %1313 = vmatmul.mubr.f32.gmra.mxu0 %v1225
      %v1314 = vpop.f32.mrf.mxu0
      %v1315 = vadd.f32 0.0, %v1314
      %v1316 = vpop.f32.mrf.mxu0
      %1317 = vmatprep.mubr.f32.mxu0 0.0
      %1318 = vmatmul.mubr.f32.gmra.mxu0 %v1228
      %v1319 = vpop.f32.mrf.mxu0
      %v1320 = vadd.f32 0.0, %v1319
      %v1321 = vpop.f32.mrf.mxu0
      %1322 = vmatprep.mubr.f32.mxu0 0.0
      %1323 = vmatmul.mubr.f32.gmra.mxu0 %v1231
      %v1324 = vpop.f32.mrf.mxu0
      %v1325 = vadd.f32 0.0, %v1324
      %v1326 = vpop.f32.mrf.mxu0
      %1327 = vmatprep.mubr.f32.mxu0 0.0
      %1328 = vmatmul.mubr.f32.gmra.mxu0 %v1234
      %v1329 = vpop.f32.mrf.mxu0
      %v1330 = vadd.f32 0.0, %v1329
      %v1331 = vpop.f32.mrf.mxu0
      %1332 = vmatprep.mubr.f32.mxu0 0.0
      %1333 = vmatmul.mubr.f32.gmra.mxu0 %v1237
      %v1334 = vpop.f32.mrf.mxu0
      %v1335 = vadd.f32 0.0, %v1334
      %v1336 = vpop.f32.mrf.mxu0
      %1337 = vmatprep.mubr.f32.mxu0 0.0
      %1338 = vmatmul.mubr.f32.gmra.mxu0 %v1240
      %v1339 = vpop.f32.mrf.mxu0
      %v1340 = vadd.f32 0.0, %v1339
      %v1341 = vpop.f32.mrf.mxu0
      %1342 = vmatprep.mubr.f32.mxu0 0.0
      %1343 = vmatmul.mubr.f32.gmra.mxu0 %v1243
      %v1344 = vpop.f32.mrf.mxu0
      %v1345 = vadd.f32 0.0, %v1344
      %v1346 = vpop.f32.mrf.mxu0
      %1347 = vmatprep.mubr.f32.mxu0 0.0
      %1348 = vmatmul.mubr.f32.gmra.mxu0 %v1246
      %v1349 = vpop.f32.mrf.mxu0
      %v1350 = vadd.f32 0.0, %v1349
      %v1351 = vpop.f32.mrf.mxu0
      %1352 = vdwg.mxu0
      %v1353 = vmax.f32 %v1315, 0.0
      %v1354 = vmax.f32 %v1320, 0.0
      %v1355 = vmax.f32 %v1325, 0.0
      %v1356 = vmax.f32 %v1330, 0.0
      %v1357 = vmax.f32 %v1335, 0.0
      %v1358 = vmax.f32 %v1340, 0.0
      %v1359 = vmax.f32 %v1345, 0.0
      %v1360 = vmax.f32 %v1350, 0.0
      %v1362 = vsel %vm805, %v1353, 0
      %v1365 = vsel %vm805, %v1354, 0
      %v1368 = vsel %vm805, %v1355, 0
      %v1371 = vsel %vm805, %v1356, 0
      %v1374 = vsel %vm805, %v1357, 0
      %v1377 = vsel %vm805, %v1358, 0
      %v1380 = vsel %vm805, %v1359, 0
      %v1383 = vsel %vm805, %v1360, 0
      %1385 = vmatprep.subr.mxu0 0.0
      %1386 = vmatpush1.msra.mxu0 0.0
      %1387 = vmatprep.subr.mxu0 0.0
      %1388 = vmatpush1.msra.mxu0 0.0
      %1389 = vmatprep.subr.mxu0 0.0
      %1390 = vmatpush1.msra.mxu0 0.0
      %1391 = vmatprep.subr.mxu0 0.0
      %1392 = vmatpush1.msra.mxu0 0.0
      %1393 = vmatprep.subr.mxu0 0.0
      %1394 = vmatpush1.msra.mxu0 0.0
      %1395 = vmatprep.subr.mxu0 0.0
      %1396 = vmatpush1.msra.mxu0 0.0
      %1397 = vmatprep.subr.mxu0 0.0
      %1398 = vmatpush1.msra.mxu0 0.0
      %1399 = vmatprep.subr.mxu0 0.0
      %1400 = vmatpush1.msra.mxu0 0.0
      %1401 = vmatprep.subr.mxu0 0.0
      %1402 = vmatpush1.msra.mxu0 0.0
      %1403 = vmatprep.subr.mxu0 0.0
      %1404 = vmatpush1.msra.mxu0 0.0
      %1405 = vmatprep.subr.mxu0 0.0
      %1406 = vmatpush1.msra.mxu0 0.0
      %1407 = vmatprep.subr.mxu0 0.0
      %1408 = vmatpush1.msra.mxu0 0.0
      %1409 = vmatprep.subr.mxu0 0.0
      %1410 = vmatpush1.msra.mxu0 0.0
      %1411 = vmatprep.subr.mxu0 0.0
      %1412 = vmatpush1.msra.mxu0 0.0
      %1413 = vmatprep.subr.mxu0 0.0
      %1414 = vmatpush1.msra.mxu0 %v241
      %1415 = vmatprep.subr.mxu0 0.0
      %1416 = vmatpush1.msra.mxu0 %v240
      %1417 = vmatprep.subr.mxu0 0.0
      %1418 = vmatpush2.msra.mxu0 0.0
      %1419 = vmatprep.subr.mxu0 0.0
      %1420 = vmatpush2.msra.mxu0 0.0
      %1421 = vmatprep.subr.mxu0 0.0
      %1422 = vmatpush2.msra.mxu0 0.0
      %1423 = vmatprep.subr.mxu0 0.0
      %1424 = vmatpush2.msra.mxu0 0.0
      %1425 = vmatprep.subr.mxu0 0.0
      %1426 = vmatpush2.msra.mxu0 0.0
      %1427 = vmatprep.subr.mxu0 0.0
      %1428 = vmatpush2.msra.mxu0 0.0
      %1429 = vmatprep.subr.mxu0 0.0
      %1430 = vmatpush2.msra.mxu0 0.0
      %1431 = vmatprep.subr.mxu0 0.0
      %1432 = vmatpush2.msra.mxu0 0.0
      %1433 = vmatprep.subr.mxu0 0.0
      %1434 = vmatpush2.msra.mxu0 0.0
      %1435 = vmatprep.subr.mxu0 0.0
      %1436 = vmatpush2.msra.mxu0 0.0
      %1437 = vmatprep.subr.mxu0 0.0
      %1438 = vmatpush2.msra.mxu0 0.0
      %1439 = vmatprep.subr.mxu0 0.0
      %1440 = vmatpush2.msra.mxu0 0.0
      %1441 = vmatprep.subr.mxu0 0.0
      %1442 = vmatpush2.msra.mxu0 0.0
      %1443 = vmatprep.subr.mxu0 0.0
      %1444 = vmatpush2.msra.mxu0 0.0
      %1445 = vmatprep.subr.mxu0 0.0
      %1446 = vmatpush2.msra.mxu0 0.0
      %1447 = vmatprep.subr.mxu0 0.0
      %1448 = vmatpush2.msra.mxu0 0.0
      %1449 = vmatprep.mubr.f32.mxu0 0.0
      %1450 = vmatmul.mubr.f32.gmra.mxu0 %v1362
      %v1451 = vpop.f32.mrf.mxu0
      %v1452 = vadd.f32 0.0, %v1451
      %v1453 = vpop.f32.mrf.mxu0
      %1454 = vmatprep.mubr.f32.mxu0 0.0
      %1455 = vmatmul.mubr.f32.gmra.mxu0 %v1365
      %v1456 = vpop.f32.mrf.mxu0
      %v1457 = vadd.f32 0.0, %v1456
      %v1458 = vpop.f32.mrf.mxu0
      %1459 = vmatprep.mubr.f32.mxu0 0.0
      %1460 = vmatmul.mubr.f32.gmra.mxu0 %v1368
      %v1461 = vpop.f32.mrf.mxu0
      %v1462 = vadd.f32 0.0, %v1461
      %v1463 = vpop.f32.mrf.mxu0
      %1464 = vmatprep.mubr.f32.mxu0 0.0
      %1465 = vmatmul.mubr.f32.gmra.mxu0 %v1371
      %v1466 = vpop.f32.mrf.mxu0
      %v1467 = vadd.f32 0.0, %v1466
      %v1468 = vpop.f32.mrf.mxu0
      %1469 = vmatprep.mubr.f32.mxu0 0.0
      %1470 = vmatmul.mubr.f32.gmra.mxu0 %v1374
      %v1471 = vpop.f32.mrf.mxu0
      %v1472 = vadd.f32 0.0, %v1471
      %v1473 = vpop.f32.mrf.mxu0
      %1474 = vmatprep.mubr.f32.mxu0 0.0
      %1475 = vmatmul.mubr.f32.gmra.mxu0 %v1377
      %v1476 = vpop.f32.mrf.mxu0
      %v1477 = vadd.f32 0.0, %v1476
      %v1478 = vpop.f32.mrf.mxu0
      %1479 = vmatprep.mubr.f32.mxu0 0.0
      %1480 = vmatmul.mubr.f32.gmra.mxu0 %v1380
      %v1481 = vpop.f32.mrf.mxu0
      %v1482 = vadd.f32 0.0, %v1481
      %v1483 = vpop.f32.mrf.mxu0
      %1484 = vmatprep.mubr.f32.mxu0 0.0
      %1485 = vmatmul.mubr.f32.gmra.mxu0 %v1383
      %v1486 = vpop.f32.mrf.mxu0
      %v1487 = vadd.f32 0.0, %v1486
      %v1488 = vpop.f32.mrf.mxu0
      %1489 = vdwg.mxu0
      %v1490 = vadd.f32 %v935, %v1452
      %v1491 = vadd.f32 %v936, %v1457
      %v1492 = vadd.f32 %v937, %v1462
      %v1493 = vadd.f32 %v938, %v1467
      %v1494 = vadd.f32 %v939, %v1472
      %v1495 = vadd.f32 %v940, %v1477
      %v1496 = vadd.f32 %v941, %v1482
      %v1497 = vadd.f32 %v942, %v1487
      %1498 = vst.msk [vmem:[%s224] sm:$0xff] %vm249, %v1490
      %1499 = vst.msk [vmem:[%s224 + $0x8] sm:$0xff] %vm249, %v1491
      %1500 = vst.msk [vmem:[%s224 + $0x10] sm:$0xff] %vm249, %v1492
      %1501 = vst.msk [vmem:[%s224 + $0x18] sm:$0xff] %vm249, %v1493
      %1502 = vst.msk [vmem:[%s224 + $0x20] sm:$0xff] %vm249, %v1494
      %1503 = vst.msk [vmem:[%s224 + $0x28] sm:$0xff] %vm249, %v1495
      %1504 = vst.msk [vmem:[%s224 + $0x30] sm:$0xff] %vm249, %v1496
      %1505 = vst.msk [vmem:[%s224 + $0x38] sm:$0xff] %vm249, %v1497
      %p1506 = scmp.lt.s32.totalorder %s16, 1
      %s1507 = scalar_select %p1506, %s16, 1
      %s1508 = smul.addr %s1507, 8
      %s1509 = smul.addr %s1508, 8
      %s1510 = scalar_lea.vmem %s5, %s1509
      // Predicated region
      $region41: #{semantics_extractor_forward.6} parent=39 // pred_check
        %p1511 = pneg %p144
      $region42: #{semantics_extractor_forward.6} parent=39 // pred_check_branch
        %1513 = sbr.rel (%p1511) target = $region44
      $region43: #{semantics_extractor_forward.6} parent=39 // pred_region
        _
      $region44: #{semantics_extractor_forward.6} parent=39 // pred_fallthru
        _
    $region40: #{semantics_extractor_forward.6} parent=5 // pred_fallthru
      _
    %p1514 = scmp.le.s32.totalorder 2, %s11
    // Predicated region
    $region45: #{semantics_extractor_forward.6} parent=5 // pred_check
      %p1515 = pneg %p1514
    $region46: #{semantics_extractor_forward.6} parent=5 // pred_check_branch
      %1517 = sbr.rel (%p1515) target = $region48
    $region47: #{semantics_extractor_forward.6} parent=5 // pred_region
      %s1518 = ssub.s32 %s11, 2
      // Predicated region
      $region49: #{semantics_extractor_forward.6} parent=47 // pred_check
        %p1519 = pneg %p150
      $region50: #{semantics_extractor_forward.6} parent=47 // pred_check_branch
        %1521 = sbr.rel (%p1519) target = $region52
      $region51: #{semantics_extractor_forward.6} parent=47 // pred_region
        %p1522 = scmp.lt.s32.totalorder %s17, 1
        %s1523 = scalar_select %p1522, %s17, 1
        %s1524 = smul.addr %s1523, 8
        %s1525 = smul.addr %s1524, 8
        %s1526 = scalar_lea.vmem %s5, %s1525
      $region52: #{semantics_extractor_forward.6} parent=47 // pred_fallthru
        _
    $region48: #{semantics_extractor_forward.6} parent=5 // pred_fallthru
      _
  $region6: #{semantics_extractor_forward.6} parent=0 // loop_footer
    %s15 = sadd.s32 1, %s11
  $region7: #{semantics_extractor_forward.6} parent=0 // loop_footer_branch
    %10 = sbr.rel target = $region3
  $region8: #{semantics_extractor_forward.6} parent=0 // loop_exit
    _

// kernel: semantics_extractor_forward.5
$region0: #{semantics_extractor_forward.5}
  #allocation0 [shape = 'u32[]', space=smem, size = 0x4, offset = 0x4, fixed_abs, tag = 'smem constant byte address 0x4 - core index']
  #allocation1 [shape = 'u32[144,128]{1,0:T(1,128)}', space=vmem, size = 0x12000, scoped, tag = 'internal scratch']
  %s0 = inlined_call_operand.vmem [shape: f32[2,10,10,32], index: 0, kind: input, shape index: {}]
  %s1 = inlined_call_operand.vmem [shape: f32[10,1], index: 1, kind: input, shape index: {}]
  %s2 = inlined_call_operand.vmem [shape: f32[32,64], index: 2, kind: input, shape index: {}]
  %s3 = inlined_call_operand.vmem [shape: f32[1,64], index: 3, kind: input, shape index: {}]
  %s4 = inlined_call_operand.vmem [shape: f32[3,3,64], index: 4, kind: input, shape index: {}]
  %s5 = inlined_call_operand.vmem [shape: f32[1,64], index: 5, kind: input, shape index: {}]
  %s6 = inlined_call_operand.vmem [shape: f32[64,32], index: 6, kind: input, shape index: {}]
  %s7 = inlined_call_operand.vmem [shape: f32[1,32], index: 7, kind: input, shape index: {}]
  %s8 = inlined_call_operand.vmem [shape: f32[2,8,8,32], index: 8, kind: output, shape index: {}]
  %s9 = sld [smem:[#allocation0]]
  $region65: #{semantics_extractor_forward.5} parent=0
    _
  %s11 = ssub.s32 1, %s9
  %s12 = scalar_select 0, %s11, %s9
  loop: start=0, step=1, limit=4
  $region2: #{semantics_extractor_forward.5} parent=0 // loop_pre_header
    _
  $region3: #{semantics_extractor_forward.5} parent=0 // loop_header
    %s14 = sphi 0, %s18
    %p15 = scmp.ge.s32.totalorder %s14, 4
    %s24 = sphi 0, %s26
    %s27 = sphi 0, %s24
    %s28 = sphi 0, %s27
    %s44 = sphi 0, %s28
    %s48 = sphi 0, %s48
    %s50 = sphi 0, %s48
    %s51 = sphi 0, %s50
    %s65 = sphi 0, %s51
    %s69 = sphi 0, %s69
    %s71 = sphi 0, %s69
    %s72 = sphi 0, %s71
    %s86 = sphi 0, %s72
    %s90 = sphi 0, %s90
    %s92 = sphi 0, %s90
    %s93 = sphi 0, %s92
    %s107 = sphi 0, %s93
    %s111 = sphi 0, %s111
    %s113 = sphi 0, %s111
    %s114 = sphi 0, %s113
    %s128 = sphi 0, %s114
    %s132 = sphi 0, %s132
    %s134 = sphi 0, %s132
    %s135 = sphi 0, %s134
    %s149 = sphi 0, %s135
    %s153 = sphi 0, %s153
    %s155 = sphi 0, %s153
    %s156 = sphi 0, %s155
    %s170 = sphi 0, %s156
    %s174 = sphi 0, %s174
    %s176 = sphi 0, %s174
    %s177 = sphi 0, %s176
    %s191 = sphi 0, %s177
    %s197 = sphi 0, %s199
    %s200 = sphi 0, %s197
    %s201 = sphi 0, %s200
    %s217 = sphi 0, %s201
  $region4: #{semantics_extractor_forward.5} parent=0 // loop_header_branch
    %17 = sbr.rel (%p15) target = $region8
  $region5: #{semantics_extractor_forward.5} parent=0 // loop_body
    %s19 = ssub.s32 %s14, 1
    %s20 = ssub.s32 %s14, 2
    %s21 = sadd.s32 %s14, 1
    %s22 = ssub.s32 %s14, %s21
    %p23 = scmp.eq.s32.totalorder %s22, 0
    %s25 = sadd.s32 %s24, 1
    %s26 = scalar_select %p23, %s24, %s25
    %p29 = pneg %p23
    %p30 = scmp.eq.s32.totalorder %s14, 1
    %p31 = por %p29, %p30
    %p32 = scmp.ne.s32.totalorder %s24, %s27
    %p33 = scmp.eq.s32.totalorder %s14, 0
    %p34 = por %p32, %p33
    %p35 = scmp.ne.s32.totalorder %s24, %s27
    %p36 = scmp.eq.s32.totalorder %s19, 1
    %p37 = por %p35, %p36
    %p38 = scmp.ne.s32.totalorder %s27, %s28
    %p39 = scmp.eq.s32.totalorder %s19, 0
    %p40 = por %p38, %p39
    %p41 = scmp.ne.s32.totalorder %s27, %s28
    %p42 = scmp.eq.s32.totalorder %s20, 1
    %p43 = por %p41, %p42
    %p45 = scmp.ne.s32.totalorder %s28, %s44
    %p46 = scmp.eq.s32.totalorder %s20, 0
    %p47 = por %p45, %p46
    %s49 = sadd.s32 %s48, 1
    %p52 = scmp.eq.s32.totalorder %s14, 1
    %p53 = scmp.ne.s32.totalorder %s48, %s50
    %p54 = scmp.eq.s32.totalorder %s14, 0
    %p55 = por %p53, %p54
    %p56 = scmp.ne.s32.totalorder %s48, %s50
    %p57 = scmp.eq.s32.totalorder %s19, 1
    %p58 = por %p56, %p57
    %p59 = scmp.ne.s32.totalorder %s50, %s51
    %p60 = scmp.eq.s32.totalorder %s19, 0
    %p61 = por %p59, %p60
    %p62 = scmp.ne.s32.totalorder %s50, %s51
    %p63 = scmp.eq.s32.totalorder %s20, 1
    %p64 = por %p62, %p63
    %p66 = scmp.ne.s32.totalorder %s51, %s65
    %p67 = scmp.eq.s32.totalorder %s20, 0
    %p68 = por %p66, %p67
    %s70 = sadd.s32 %s69, 1
    %p73 = scmp.eq.s32.totalorder %s14, 1
    %p74 = scmp.ne.s32.totalorder %s69, %s71
    %p75 = scmp.eq.s32.totalorder %s14, 0
    %p76 = por %p74, %p75
    %p77 = scmp.ne.s32.totalorder %s69, %s71
    %p78 = scmp.eq.s32.totalorder %s19, 1
    %p79 = por %p77, %p78
    %p80 = scmp.ne.s32.totalorder %s71, %s72
    %p81 = scmp.eq.s32.totalorder %s19, 0
    %p82 = por %p80, %p81
    %p83 = scmp.ne.s32.totalorder %s71, %s72
    %p84 = scmp.eq.s32.totalorder %s20, 1
    %p85 = por %p83, %p84
    %p87 = scmp.ne.s32.totalorder %s72, %s86
    %p88 = scmp.eq.s32.totalorder %s20, 0
    %p89 = por %p87, %p88
    %s91 = sadd.s32 %s90, 1
    %p94 = scmp.eq.s32.totalorder %s14, 1
    %p95 = scmp.ne.s32.totalorder %s90, %s92
    %p96 = scmp.eq.s32.totalorder %s14, 0
    %p97 = por %p95, %p96
    %p98 = scmp.ne.s32.totalorder %s90, %s92
    %p99 = scmp.eq.s32.totalorder %s19, 1
    %p100 = por %p98, %p99
    %p101 = scmp.ne.s32.totalorder %s92, %s93
    %p102 = scmp.eq.s32.totalorder %s19, 0
    %p103 = por %p101, %p102
    %p104 = scmp.ne.s32.totalorder %s92, %s93
    %p105 = scmp.eq.s32.totalorder %s20, 1
    %p106 = por %p104, %p105
    %p108 = scmp.ne.s32.totalorder %s93, %s107
    %p109 = scmp.eq.s32.totalorder %s20, 0
    %p110 = por %p108, %p109
    %s112 = sadd.s32 %s111, 1
    %p115 = scmp.eq.s32.totalorder %s14, 1
    %p116 = scmp.ne.s32.totalorder %s111, %s113
    %p117 = scmp.eq.s32.totalorder %s14, 0
    %p118 = por %p116, %p117
    %p119 = scmp.ne.s32.totalorder %s111, %s113
    %p120 = scmp.eq.s32.totalorder %s19, 1
    %p121 = por %p119, %p120
    %p122 = scmp.ne.s32.totalorder %s113, %s114
    %p123 = scmp.eq.s32.totalorder %s19, 0
    %p124 = por %p122, %p123
    %p125 = scmp.ne.s32.totalorder %s113, %s114
    %p126 = scmp.eq.s32.totalorder %s20, 1
    %p127 = por %p125, %p126
    %p129 = scmp.ne.s32.totalorder %s114, %s128
    %p130 = scmp.eq.s32.totalorder %s20, 0
    %p131 = por %p129, %p130
    %s133 = sadd.s32 %s132, 1
    %p136 = scmp.eq.s32.totalorder %s14, 1
    %p137 = scmp.ne.s32.totalorder %s132, %s134
    %p138 = scmp.eq.s32.totalorder %s14, 0
    %p139 = por %p137, %p138
    %p140 = scmp.ne.s32.totalorder %s132, %s134
    %p141 = scmp.eq.s32.totalorder %s19, 1
    %p142 = por %p140, %p141
    %p143 = scmp.ne.s32.totalorder %s134, %s135
    %p144 = scmp.eq.s32.totalorder %s19, 0
    %p145 = por %p143, %p144
    %p146 = scmp.ne.s32.totalorder %s134, %s135
    %p147 = scmp.eq.s32.totalorder %s20, 1
    %p148 = por %p146, %p147
    %p150 = scmp.ne.s32.totalorder %s135, %s149
    %p151 = scmp.eq.s32.totalorder %s20, 0
    %p152 = por %p150, %p151
    %s154 = sadd.s32 %s153, 1
    %p157 = scmp.eq.s32.totalorder %s14, 1
    %p158 = scmp.ne.s32.totalorder %s153, %s155
    %p159 = scmp.eq.s32.totalorder %s14, 0
    %p160 = por %p158, %p159
    %p161 = scmp.ne.s32.totalorder %s153, %s155
    %p162 = scmp.eq.s32.totalorder %s19, 1
    %p163 = por %p161, %p162
    %p164 = scmp.ne.s32.totalorder %s155, %s156
    %p165 = scmp.eq.s32.totalorder %s19, 0
    %p166 = por %p164, %p165
    %p167 = scmp.ne.s32.totalorder %s155, %s156
    %p168 = scmp.eq.s32.totalorder %s20, 1
    %p169 = por %p167, %p168
    %p171 = scmp.ne.s32.totalorder %s156, %s170
    %p172 = scmp.eq.s32.totalorder %s20, 0
    %p173 = por %p171, %p172
    %s175 = sadd.s32 %s174, 1
    %p178 = scmp.eq.s32.totalorder %s14, 1
    %p179 = scmp.ne.s32.totalorder %s174, %s176
    %p180 = scmp.eq.s32.totalorder %s14, 0
    %p181 = por %p179, %p180
    %p182 = scmp.ne.s32.totalorder %s174, %s176
    %p183 = scmp.eq.s32.totalorder %s19, 1
    %p184 = por %p182, %p183
    %p185 = scmp.ne.s32.totalorder %s176, %s177
    %p186 = scmp.eq.s32.totalorder %s19, 0
    %p187 = por %p185, %p186
    %p188 = scmp.ne.s32.totalorder %s176, %s177
    %p189 = scmp.eq.s32.totalorder %s20, 1
    %p190 = por %p188, %p189
    %p192 = scmp.ne.s32.totalorder %s177, %s191
    %p193 = scmp.eq.s32.totalorder %s20, 0
    %p194 = por %p192, %p193
    %s195 = ssub.s32 %s14, %s21
    %p196 = scmp.eq.s32.totalorder %s195, 0
    %s198 = sadd.s32 %s197, 1
    %s199 = scalar_select %p196, %s197, %s198
    %p202 = pneg %p196
    %p203 = scmp.eq.s32.totalorder %s14, 1
    %p204 = por %p202, %p203
    %p205 = scmp.ne.s32.totalorder %s197, %s200
    %p206 = scmp.eq.s32.totalorder %s14, 0
    %p207 = por %p205, %p206
    %p208 = scmp.ne.s32.totalorder %s197, %s200
    %p209 = scmp.eq.s32.totalorder %s19, 1
    %p210 = por %p208, %p209
    %p211 = scmp.ne.s32.totalorder %s200, %s201
    %p212 = scmp.eq.s32.totalorder %s19, 0
    %p213 = por %p211, %p212
    %p214 = scmp.ne.s32.totalorder %s200, %s201
    %p215 = scmp.eq.s32.totalorder %s20, 1
    %p216 = por %p214, %p215
    %p218 = scmp.ne.s32.totalorder %s201, %s217
    %p219 = scmp.eq.s32.totalorder %s20, 0
    %p220 = por %p218, %p219
    %p221 = scmp.le.s32.totalorder 1, %s14
    %p222 = scmp.lt.s32.totalorder %s14, 3
    %p223 = pnand %p221, %p222
    %p224 = pneg %p223
    // Predicated region
    $region9: #{semantics_extractor_forward.5} parent=5 // pred_check
      _
    $region10: #{semantics_extractor_forward.5} parent=5 // pred_check_branch
      %226 = sbr.rel (%p223) target = $region12
    $region11: #{semantics_extractor_forward.5} parent=5 // pred_region
      %s227 = ssub.s32 %s14, 1
      // Predicated region
      $region13: #{semantics_extractor_forward.5} parent=11 // pred_check
        %p228 = pneg %p61
      $region14: #{semantics_extractor_forward.5} parent=11 // pred_check_branch
        %230 = sbr.rel (%p228) target = $region16
      $region15: #{semantics_extractor_forward.5} parent=11 // pred_region
        _
      $region16: #{semantics_extractor_forward.5} parent=11 // pred_fallthru
        _
      // Predicated region
      $region17: #{semantics_extractor_forward.5} parent=11 // pred_check
        %p231 = pneg %p82
      $region18: #{semantics_extractor_forward.5} parent=11 // pred_check_branch
        %233 = sbr.rel (%p231) target = $region20
      $region19: #{semantics_extractor_forward.5} parent=11 // pred_region
        _
      $region20: #{semantics_extractor_forward.5} parent=11 // pred_fallthru
        _
      // Predicated region
      $region21: #{semantics_extractor_forward.5} parent=11 // pred_check
        %p234 = pneg %p103
      $region22: #{semantics_extractor_forward.5} parent=11 // pred_check_branch
        %236 = sbr.rel (%p234) target = $region24
      $region23: #{semantics_extractor_forward.5} parent=11 // pred_region
        _
      $region24: #{semantics_extractor_forward.5} parent=11 // pred_fallthru
        _
      // Predicated region
      $region25: #{semantics_extractor_forward.5} parent=11 // pred_check
        %p237 = pneg %p124
      $region26: #{semantics_extractor_forward.5} parent=11 // pred_check_branch
        %239 = sbr.rel (%p237) target = $region28
      $region27: #{semantics_extractor_forward.5} parent=11 // pred_region
        _
      $region28: #{semantics_extractor_forward.5} parent=11 // pred_fallthru
        _
      // Predicated region
      $region29: #{semantics_extractor_forward.5} parent=11 // pred_check
        %p240 = pneg %p145
      $region30: #{semantics_extractor_forward.5} parent=11 // pred_check_branch
        %242 = sbr.rel (%p240) target = $region32
      $region31: #{semantics_extractor_forward.5} parent=11 // pred_region
        _
      $region32: #{semantics_extractor_forward.5} parent=11 // pred_fallthru
        _
      // Predicated region
      $region33: #{semantics_extractor_forward.5} parent=11 // pred_check
        %p243 = pneg %p166
      $region34: #{semantics_extractor_forward.5} parent=11 // pred_check_branch
        %245 = sbr.rel (%p243) target = $region36
      $region35: #{semantics_extractor_forward.5} parent=11 // pred_region
        _
      $region36: #{semantics_extractor_forward.5} parent=11 // pred_fallthru
        _
      // Predicated region
      $region37: #{semantics_extractor_forward.5} parent=11 // pred_check
        %p246 = pneg %p187
      $region38: #{semantics_extractor_forward.5} parent=11 // pred_check_branch
        %248 = sbr.rel (%p246) target = $region40
      $region39: #{semantics_extractor_forward.5} parent=11 // pred_region
        _
      $region40: #{semantics_extractor_forward.5} parent=11 // pred_fallthru
        _
    $region12: #{semantics_extractor_forward.5} parent=5 // pred_fallthru
      _
    %p249 = scmp.lt.s32.totalorder %s14, 2
    // Predicated region
    $region41: #{semantics_extractor_forward.5} parent=5 // pred_check
      %p250 = pneg %p249
    $region42: #{semantics_extractor_forward.5} parent=5 // pred_check_branch
      %252 = sbr.rel (%p250) target = $region44
    $region43: #{semantics_extractor_forward.5} parent=5 // pred_region
      // Predicated region
      $region45: #{semantics_extractor_forward.5} parent=43 // pred_check
        %p253 = pneg %p34
      $region46: #{semantics_extractor_forward.5} parent=43 // pred_check_branch
        %255 = sbr.rel (%p253) target = $region48
      $region47: #{semantics_extractor_forward.5} parent=43 // pred_region
        %p256 = scmp.lt.s32.totalorder %s14, 1
        %s257 = scalar_select %p256, %s14, 1
        %s258 = smul.addr %s257, 20
        %s259 = smul.addr %s258, 8
        %s260 = scalar_lea.vmem %s0, %s259
      $region48: #{semantics_extractor_forward.5} parent=43 // pred_fallthru
        _
    $region44: #{semantics_extractor_forward.5} parent=5 // pred_fallthru
      _
    %p261 = scmp.le.s32.totalorder 1, %s14
    %p262 = scmp.lt.s32.totalorder %s14, 3
    %p263 = pnand %p261, %p262
    %p264 = pneg %p263
    // Predicated region
    $region49: #{semantics_extractor_forward.5} parent=5 // pred_check
      _
    $region50: #{semantics_extractor_forward.5} parent=5 // pred_check_branch
      %266 = sbr.rel (%p263) target = $region52
    $region51: #{semantics_extractor_forward.5} parent=5 // pred_region
      %s267 = ssub.s32 %s14, 1
      %p268 = scmp.lt.s32.totalorder %s19, 1
      %s269 = scalar_select %p268, %s19, 1
      %s270 = smul.addr %s269, 20
      %s271 = smul.addr %s270, 8
      %s272 = scalar_lea.vmem %s0, %s271
      %p273 = pneg %p40
      %p274 = pneg %p37
      %p275 = pneg %p61
      %p276 = pneg %p58
      %p277 = pneg %p82
      %p278 = pneg %p79
      %p279 = pneg %p103
      %p280 = pneg %p100
      %p281 = pneg %p124
      %p282 = pneg %p121
      %p283 = pneg %p145
      %p284 = pneg %p142
      %p285 = pneg %p166
      %p286 = pneg %p163
      %p287 = pneg %p187
      %p288 = pneg %p184
      %p289 = pneg %p213
      %p290 = pneg %p210
      %p291 = scmp.lt.s32.totalorder %s19, 1
      %s292 = scalar_select %p291, %s19, 1
      %s293 = smul.addr %s292, 8
      %s294 = smul.addr %s293, 8
      %s295 = scalar_lea.vmem %s8, %s294
      %p296 = scmp.lt.s32.totalorder %s19, 1
      %s297 = scalar_select %p296, %s19, 1
      %s298 = smul.addr %s297, 20
      %s299 = smul.addr %s298, 8
      %s300 = scalar_lea.vmem %s0, %s299
      %p301 = scmp.lt.s32.totalorder %s19, 1
      %s302 = scalar_select %p301, %s19, 1
      %s303 = smul.addr %s302, 8
      %s304 = smul.addr %s303, 8
      %s305 = scalar_lea.vmem %s8, %s304
      %v306 = vld [vmem:[%s300 + $0x10] sm:$0xff]
      %v307 = vld [vmem:[%s300 + $0x18] sm:$0x3]
      %v308 = vld [vmem:[%s300 + $0x20] sm:$0xff]
      %v309 = vld [vmem:[%s300 + $0x28] sm:$0x3]
      %v310 = vld [vmem:[%s300 + $0x30] sm:$0xff]
      %v311 = vld [vmem:[%s300 + $0x38] sm:$0x3]
      %v312 = vld [vmem:[%s300 + $0x40] sm:$0xff]
      %v313 = vld [vmem:[%s300 + $0x48] sm:$0x3]
      %v314 = vld [vmem:[%s300 + $0x50] sm:$0xff]
      %v315 = vld [vmem:[%s300 + $0x58] sm:$0x3]
      %v316 = vld [vmem:[%s300 + $0x60] sm:$0xff]
      %v317 = vld [vmem:[%s300 + $0x68] sm:$0x3]
      %v318 = vld [vmem:[%s300 + $0x70] sm:$0xff]
      %v319 = vld [vmem:[%s300 + $0x78] sm:$0x3]
      %v320 = vld [vmem:[%s300 + $0x80] sm:$0xff]
      %v321 = vld [vmem:[%s300 + $0x88] sm:$0x3]
      %v322 = vld [vmem:[%s1] sm:$0xff]
      %v323 = vld [vmem:[%s1 + $0x8] sm:$0x3]
      %v324 = vld [vmem:[%s2] sm:$0xff]
      %v325 = vld [vmem:[%s2 + $0x8] sm:$0xff]
      %v326 = vld [vmem:[%s2 + $0x10] sm:$0xff]
      %v327 = vld [vmem:[%s2 + $0x18] sm:$0xff]
      %v328 = vld [vmem:[%s3] sm:$0x1]
      %v329 = vld [vmem:[%s4] sm:$0x7]
      %v330 = vld [vmem:[%s4 + $0x4] sm:$0x7]
      %v331 = vld [vmem:[%s4 + $0x8] sm:$0x7]
      %v332 = vld [vmem:[%s5] sm:$0x1]
      %v333 = vld [vmem:[%s6] sm:$0xff]
      %v334 = vld [vmem:[%s6 + $0x8] sm:$0xff]
      %v335 = vld [vmem:[%s6 + $0x10] sm:$0xff]
      %v336 = vld [vmem:[%s6 + $0x18] sm:$0xff]
      %v337 = vld [vmem:[%s6 + $0x20] sm:$0xff]
      %v338 = vld [vmem:[%s6 + $0x28] sm:$0xff]
      %v339 = vld [vmem:[%s6 + $0x30] sm:$0xff]
      %v340 = vld [vmem:[%s6 + $0x38] sm:$0xff]
      %v341 = vld [vmem:[%s7] sm:$0x1]
      %v343 = vlaneseq
      %v344 = vshrl.u32 %v343, 7
      %v345 = vsub.s32 0, %v344
      %v346 = vrot.slane %v328, %v345
      %vm348 = vcmask 261120
      %v350 = vsel %vm348, %v306, 0
      %v353 = vsel %vm348, %v307, 0
      %355 = vmatprep.subr.mxu0 0.0
      %356 = vmatpush1.msra.mxu0 0.0
      %357 = vmatprep.subr.mxu0 0.0
      %358 = vmatpush1.msra.mxu0 0.0
      %359 = vmatprep.subr.mxu0 0.0
      %360 = vmatpush1.msra.mxu0 0.0
      %361 = vmatprep.subr.mxu0 0.0
      %362 = vmatpush1.msra.mxu0 0.0
      %363 = vmatprep.subr.mxu0 0.0
      %364 = vmatpush1.msra.mxu0 0.0
      %365 = vmatprep.subr.mxu0 0.0
      %366 = vmatpush1.msra.mxu0 0.0
      %367 = vmatprep.subr.mxu0 0.0
      %368 = vmatpush1.msra.mxu0 0.0
      %369 = vmatprep.subr.mxu0 0.0
      %370 = vmatpush1.msra.mxu0 0.0
      %371 = vmatprep.subr.mxu0 0.0
      %372 = vmatpush1.msra.mxu0 0.0
      %373 = vmatprep.subr.mxu0 0.0
      %374 = vmatpush1.msra.mxu0 0.0
      %375 = vmatprep.subr.mxu0 0.0
      %376 = vmatpush1.msra.mxu0 0.0
      %377 = vmatprep.subr.mxu0 0.0
      %378 = vmatpush1.msra.mxu0 0.0
      %379 = vmatprep.subr.mxu0 0.0
      %380 = vmatpush1.msra.mxu0 %v327
      %381 = vmatprep.subr.mxu0 0.0
      %382 = vmatpush1.msra.mxu0 %v326
      %383 = vmatprep.subr.mxu0 0.0
      %384 = vmatpush1.msra.mxu0 %v325
      %385 = vmatprep.subr.mxu0 0.0
      %386 = vmatpush1.msra.mxu0 %v324
      %387 = vmatprep.subr.mxu0 0.0
      %388 = vmatpush2.msra.mxu0 0.0
      %389 = vmatprep.subr.mxu0 0.0
      %390 = vmatpush2.msra.mxu0 0.0
      %391 = vmatprep.subr.mxu0 0.0
      %392 = vmatpush2.msra.mxu0 0.0
      %393 = vmatprep.subr.mxu0 0.0
      %394 = vmatpush2.msra.mxu0 0.0
      %395 = vmatprep.subr.mxu0 0.0
      %396 = vmatpush2.msra.mxu0 0.0
      %397 = vmatprep.subr.mxu0 0.0
      %398 = vmatpush2.msra.mxu0 0.0
      %399 = vmatprep.subr.mxu0 0.0
      %400 = vmatpush2.msra.mxu0 0.0
      %401 = vmatprep.subr.mxu0 0.0
      %402 = vmatpush2.msra.mxu0 0.0
      %403 = vmatprep.subr.mxu0 0.0
      %404 = vmatpush2.msra.mxu0 0.0
      %405 = vmatprep.subr.mxu0 0.0
      %406 = vmatpush2.msra.mxu0 0.0
      %407 = vmatprep.subr.mxu0 0.0
      %408 = vmatpush2.msra.mxu0 0.0
      %409 = vmatprep.subr.mxu0 0.0
      %410 = vmatpush2.msra.mxu0 0.0
      %411 = vmatprep.subr.mxu0 0.0
      %412 = vmatpush2.msra.mxu0 0.0
      %413 = vmatprep.subr.mxu0 0.0
      %414 = vmatpush2.msra.mxu0 0.0
      %415 = vmatprep.subr.mxu0 0.0
      %416 = vmatpush2.msra.mxu0 0.0
      %417 = vmatprep.subr.mxu0 0.0
      %418 = vmatpush2.msra.mxu0 0.0
      %419 = vmatprep.mubr.f32.mxu0 0.0
      %420 = vmatmul.mubr.f32.gmra.mxu0 %v350
      %v421 = vpop.f32.mrf.mxu0
      %v422 = vadd.f32 %v346, %v421
      %v423 = vpop.f32.mrf.mxu0
      %424 = vmatprep.mubr.f32.mxu0 0.0
      %425 = vmatmul.mubr.f32.gmra.mxu0 %v353
      %v426 = vpop.f32.mrf.mxu0
      %v427 = vadd.f32 %v346, %v426
      %v428 = vpop.f32.mrf.mxu0
      %429 = vdwg.mxu0
      %431 = vset.pattern.permute.xlu0 0
      %432 = vperm.xlu0 %431, %v322
      %v433 = vpop.permute.xlu0 %432
      %436 = vset.pattern.permute.xlu0 0
      %437 = vperm.xlu0 %436, %v323
      %v438 = vpop.permute.xlu0 %437
      %v440 = vmul.f32 %v422, %v433
      %v441 = vmul.f32 %v427, %v438
      %v443 = vsel %vm348, %v308, 0
      %v446 = vsel %vm348, %v309, 0
      %448 = vmatprep.subr.mxu0 0.0
      %449 = vmatpush1.msra.mxu0 0.0
      %450 = vmatprep.subr.mxu0 0.0
      %451 = vmatpush1.msra.mxu0 0.0
      %452 = vmatprep.subr.mxu0 0.0
      %453 = vmatpush1.msra.mxu0 0.0
      %454 = vmatprep.subr.mxu0 0.0
      %455 = vmatpush1.msra.mxu0 0.0
      %456 = vmatprep.subr.mxu0 0.0
      %457 = vmatpush1.msra.mxu0 0.0
      %458 = vmatprep.subr.mxu0 0.0
      %459 = vmatpush1.msra.mxu0 0.0
      %460 = vmatprep.subr.mxu0 0.0
      %461 = vmatpush1.msra.mxu0 0.0
      %462 = vmatprep.subr.mxu0 0.0
      %463 = vmatpush1.msra.mxu0 0.0
      %464 = vmatprep.subr.mxu0 0.0
      %465 = vmatpush1.msra.mxu0 0.0
      %466 = vmatprep.subr.mxu0 0.0
      %467 = vmatpush1.msra.mxu0 0.0
      %468 = vmatprep.subr.mxu0 0.0
      %469 = vmatpush1.msra.mxu0 0.0
      %470 = vmatprep.subr.mxu0 0.0
      %471 = vmatpush1.msra.mxu0 0.0
      %472 = vmatprep.subr.mxu0 0.0
      %473 = vmatpush1.msra.mxu0 %v327
      %474 = vmatprep.subr.mxu0 0.0
      %475 = vmatpush1.msra.mxu0 %v326
      %476 = vmatprep.subr.mxu0 0.0
      %477 = vmatpush1.msra.mxu0 %v325
      %478 = vmatprep.subr.mxu0 0.0
      %479 = vmatpush1.msra.mxu0 %v324
      %480 = vmatprep.subr.mxu0 0.0
      %481 = vmatpush2.msra.mxu0 0.0
      %482 = vmatprep.subr.mxu0 0.0
      %483 = vmatpush2.msra.mxu0 0.0
      %484 = vmatprep.subr.mxu0 0.0
      %485 = vmatpush2.msra.mxu0 0.0
      %486 = vmatprep.subr.mxu0 0.0
      %487 = vmatpush2.msra.mxu0 0.0
      %488 = vmatprep.subr.mxu0 0.0
      %489 = vmatpush2.msra.mxu0 0.0
      %490 = vmatprep.subr.mxu0 0.0
      %491 = vmatpush2.msra.mxu0 0.0
      %492 = vmatprep.subr.mxu0 0.0
      %493 = vmatpush2.msra.mxu0 0.0
      %494 = vmatprep.subr.mxu0 0.0
      %495 = vmatpush2.msra.mxu0 0.0
      %496 = vmatprep.subr.mxu0 0.0
      %497 = vmatpush2.msra.mxu0 0.0
      %498 = vmatprep.subr.mxu0 0.0
      %499 = vmatpush2.msra.mxu0 0.0
      %500 = vmatprep.subr.mxu0 0.0
      %501 = vmatpush2.msra.mxu0 0.0
      %502 = vmatprep.subr.mxu0 0.0
      %503 = vmatpush2.msra.mxu0 0.0
      %504 = vmatprep.subr.mxu0 0.0
      %505 = vmatpush2.msra.mxu0 0.0
      %506 = vmatprep.subr.mxu0 0.0
      %507 = vmatpush2.msra.mxu0 0.0
      %508 = vmatprep.subr.mxu0 0.0
      %509 = vmatpush2.msra.mxu0 0.0
      %510 = vmatprep.subr.mxu0 0.0
      %511 = vmatpush2.msra.mxu0 0.0
      %512 = vmatprep.mubr.f32.mxu0 0.0
      %513 = vmatmul.mubr.f32.gmra.mxu0 %v443
      %v514 = vpop.f32.mrf.mxu0
      %v515 = vadd.f32 %v346, %v514
      %v516 = vpop.f32.mrf.mxu0
      %517 = vmatprep.mubr.f32.mxu0 0.0
      %518 = vmatmul.mubr.f32.gmra.mxu0 %v446
      %v519 = vpop.f32.mrf.mxu0
      %v520 = vadd.f32 %v346, %v519
      %v521 = vpop.f32.mrf.mxu0
      %522 = vdwg.mxu0
      %v523 = vmul.f32 %v515, %v433
      %v524 = vmul.f32 %v520, %v438
      %v526 = vsel %vm348, %v310, 0
      %v529 = vsel %vm348, %v311, 0
      %531 = vmatprep.subr.mxu0 0.0
      %532 = vmatpush1.msra.mxu0 0.0
      %533 = vmatprep.subr.mxu0 0.0
      %534 = vmatpush1.msra.mxu0 0.0
      %535 = vmatprep.subr.mxu0 0.0
      %536 = vmatpush1.msra.mxu0 0.0
      %537 = vmatprep.subr.mxu0 0.0
      %538 = vmatpush1.msra.mxu0 0.0
      %539 = vmatprep.subr.mxu0 0.0
      %540 = vmatpush1.msra.mxu0 0.0
      %541 = vmatprep.subr.mxu0 0.0
      %542 = vmatpush1.msra.mxu0 0.0
      %543 = vmatprep.subr.mxu0 0.0
      %544 = vmatpush1.msra.mxu0 0.0
      %545 = vmatprep.subr.mxu0 0.0
      %546 = vmatpush1.msra.mxu0 0.0
      %547 = vmatprep.subr.mxu0 0.0
      %548 = vmatpush1.msra.mxu0 0.0
      %549 = vmatprep.subr.mxu0 0.0
      %550 = vmatpush1.msra.mxu0 0.0
      %551 = vmatprep.subr.mxu0 0.0
      %552 = vmatpush1.msra.mxu0 0.0
      %553 = vmatprep.subr.mxu0 0.0
      %554 = vmatpush1.msra.mxu0 0.0
      %555 = vmatprep.subr.mxu0 0.0
      %556 = vmatpush1.msra.mxu0 %v327
      %557 = vmatprep.subr.mxu0 0.0
      %558 = vmatpush1.msra.mxu0 %v326
      %559 = vmatprep.subr.mxu0 0.0
      %560 = vmatpush1.msra.mxu0 %v325
      %561 = vmatprep.subr.mxu0 0.0
      %562 = vmatpush1.msra.mxu0 %v324
      %563 = vmatprep.subr.mxu0 0.0
      %564 = vmatpush2.msra.mxu0 0.0
      %565 = vmatprep.subr.mxu0 0.0
      %566 = vmatpush2.msra.mxu0 0.0
      %567 = vmatprep.subr.mxu0 0.0
      %568 = vmatpush2.msra.mxu0 0.0
      %569 = vmatprep.subr.mxu0 0.0
      %570 = vmatpush2.msra.mxu0 0.0
      %571 = vmatprep.subr.mxu0 0.0
      %572 = vmatpush2.msra.mxu0 0.0
      %573 = vmatprep.subr.mxu0 0.0
      %574 = vmatpush2.msra.mxu0 0.0
      %575 = vmatprep.subr.mxu0 0.0
      %576 = vmatpush2.msra.mxu0 0.0
      %577 = vmatprep.subr.mxu0 0.0
      %578 = vmatpush2.msra.mxu0 0.0
      %579 = vmatprep.subr.mxu0 0.0
      %580 = vmatpush2.msra.mxu0 0.0
      %581 = vmatprep.subr.mxu0 0.0
      %582 = vmatpush2.msra.mxu0 0.0
      %583 = vmatprep.subr.mxu0 0.0
      %584 = vmatpush2.msra.mxu0 0.0
      %585 = vmatprep.subr.mxu0 0.0
      %586 = vmatpush2.msra.mxu0 0.0
      %587 = vmatprep.subr.mxu0 0.0
      %588 = vmatpush2.msra.mxu0 0.0
      %589 = vmatprep.subr.mxu0 0.0
      %590 = vmatpush2.msra.mxu0 0.0
      %591 = vmatprep.subr.mxu0 0.0
      %592 = vmatpush2.msra.mxu0 0.0
      %593 = vmatprep.subr.mxu0 0.0
      %594 = vmatpush2.msra.mxu0 0.0
      %595 = vmatprep.mubr.f32.mxu0 0.0
      %596 = vmatmul.mubr.f32.gmra.mxu0 %v526
      %v597 = vpop.f32.mrf.mxu0
      %v598 = vadd.f32 %v346, %v597
      %v599 = vpop.f32.mrf.mxu0
      %600 = vmatprep.mubr.f32.mxu0 0.0
      %601 = vmatmul.mubr.f32.gmra.mxu0 %v529
      %v602 = vpop.f32.mrf.mxu0
      %v603 = vadd.f32 %v346, %v602
      %v604 = vpop.f32.mrf.mxu0
      %605 = vdwg.mxu0
      %v606 = vmul.f32 %v598, %v433
      %v607 = vmul.f32 %v603, %v438
      %v609 = vsel %vm348, %v312, 0
      %v612 = vsel %vm348, %v313, 0
      %614 = vmatprep.subr.mxu0 0.0
      %615 = vmatpush1.msra.mxu0 0.0
      %616 = vmatprep.subr.mxu0 0.0
      %617 = vmatpush1.msra.mxu0 0.0
      %618 = vmatprep.subr.mxu0 0.0
      %619 = vmatpush1.msra.mxu0 0.0
      %620 = vmatprep.subr.mxu0 0.0
      %621 = vmatpush1.msra.mxu0 0.0
      %622 = vmatprep.subr.mxu0 0.0
      %623 = vmatpush1.msra.mxu0 0.0
      %624 = vmatprep.subr.mxu0 0.0
      %625 = vmatpush1.msra.mxu0 0.0
      %626 = vmatprep.subr.mxu0 0.0
      %627 = vmatpush1.msra.mxu0 0.0
      %628 = vmatprep.subr.mxu0 0.0
      %629 = vmatpush1.msra.mxu0 0.0
      %630 = vmatprep.subr.mxu0 0.0
      %631 = vmatpush1.msra.mxu0 0.0
      %632 = vmatprep.subr.mxu0 0.0
      %633 = vmatpush1.msra.mxu0 0.0
      %634 = vmatprep.subr.mxu0 0.0
      %635 = vmatpush1.msra.mxu0 0.0
      %636 = vmatprep.subr.mxu0 0.0
      %637 = vmatpush1.msra.mxu0 0.0
      %638 = vmatprep.subr.mxu0 0.0
      %639 = vmatpush1.msra.mxu0 %v327
      %640 = vmatprep.subr.mxu0 0.0
      %641 = vmatpush1.msra.mxu0 %v326
      %642 = vmatprep.subr.mxu0 0.0
      %643 = vmatpush1.msra.mxu0 %v325
      %644 = vmatprep.subr.mxu0 0.0
      %645 = vmatpush1.msra.mxu0 %v324
      %646 = vmatprep.subr.mxu0 0.0
      %647 = vmatpush2.msra.mxu0 0.0
      %648 = vmatprep.subr.mxu0 0.0
      %649 = vmatpush2.msra.mxu0 0.0
      %650 = vmatprep.subr.mxu0 0.0
      %651 = vmatpush2.msra.mxu0 0.0
      %652 = vmatprep.subr.mxu0 0.0
      %653 = vmatpush2.msra.mxu0 0.0
      %654 = vmatprep.subr.mxu0 0.0
      %655 = vmatpush2.msra.mxu0 0.0
      %656 = vmatprep.subr.mxu0 0.0
      %657 = vmatpush2.msra.mxu0 0.0
      %658 = vmatprep.subr.mxu0 0.0
      %659 = vmatpush2.msra.mxu0 0.0
      %660 = vmatprep.subr.mxu0 0.0
      %661 = vmatpush2.msra.mxu0 0.0
      %662 = vmatprep.subr.mxu0 0.0
      %663 = vmatpush2.msra.mxu0 0.0
      %664 = vmatprep.subr.mxu0 0.0
      %665 = vmatpush2.msra.mxu0 0.0
      %666 = vmatprep.subr.mxu0 0.0
      %667 = vmatpush2.msra.mxu0 0.0
      %668 = vmatprep.subr.mxu0 0.0
      %669 = vmatpush2.msra.mxu0 0.0
      %670 = vmatprep.subr.mxu0 0.0
      %671 = vmatpush2.msra.mxu0 0.0
      %672 = vmatprep.subr.mxu0 0.0
      %673 = vmatpush2.msra.mxu0 0.0
      %674 = vmatprep.subr.mxu0 0.0
      %675 = vmatpush2.msra.mxu0 0.0
      %676 = vmatprep.subr.mxu0 0.0
      %677 = vmatpush2.msra.mxu0 0.0
      %678 = vmatprep.mubr.f32.mxu0 0.0
      %679 = vmatmul.mubr.f32.gmra.mxu0 %v609
      %v680 = vpop.f32.mrf.mxu0
      %v681 = vadd.f32 %v346, %v680
      %v682 = vpop.f32.mrf.mxu0
      %683 = vmatprep.mubr.f32.mxu0 0.0
      %684 = vmatmul.mubr.f32.gmra.mxu0 %v612
      %v685 = vpop.f32.mrf.mxu0
      %v686 = vadd.f32 %v346, %v685
      %v687 = vpop.f32.mrf.mxu0
      %688 = vdwg.mxu0
      %v689 = vmul.f32 %v681, %v433
      %v690 = vmul.f32 %v686, %v438
      %v692 = vsel %vm348, %v314, 0
      %v695 = vsel %vm348, %v315, 0
      %697 = vmatprep.subr.mxu0 0.0
      %698 = vmatpush1.msra.mxu0 0.0
      %699 = vmatprep.subr.mxu0 0.0
      %700 = vmatpush1.msra.mxu0 0.0
      %701 = vmatprep.subr.mxu0 0.0
      %702 = vmatpush1.msra.mxu0 0.0
      %703 = vmatprep.subr.mxu0 0.0
      %704 = vmatpush1.msra.mxu0 0.0
      %705 = vmatprep.subr.mxu0 0.0
      %706 = vmatpush1.msra.mxu0 0.0
      %707 = vmatprep.subr.mxu0 0.0
      %708 = vmatpush1.msra.mxu0 0.0
      %709 = vmatprep.subr.mxu0 0.0
      %710 = vmatpush1.msra.mxu0 0.0
      %711 = vmatprep.subr.mxu0 0.0
      %712 = vmatpush1.msra.mxu0 0.0
      %713 = vmatprep.subr.mxu0 0.0
      %714 = vmatpush1.msra.mxu0 0.0
      %715 = vmatprep.subr.mxu0 0.0
      %716 = vmatpush1.msra.mxu0 0.0
      %717 = vmatprep.subr.mxu0 0.0
      %718 = vmatpush1.msra.mxu0 0.0
      %719 = vmatprep.subr.mxu0 0.0
      %720 = vmatpush1.msra.mxu0 0.0
      %721 = vmatprep.subr.mxu0 0.0
      %722 = vmatpush1.msra.mxu0 %v327
      %723 = vmatprep.subr.mxu0 0.0
      %724 = vmatpush1.msra.mxu0 %v326
      %725 = vmatprep.subr.mxu0 0.0
      %726 = vmatpush1.msra.mxu0 %v325
      %727 = vmatprep.subr.mxu0 0.0
      %728 = vmatpush1.msra.mxu0 %v324
      %729 = vmatprep.subr.mxu0 0.0
      %730 = vmatpush2.msra.mxu0 0.0
      %731 = vmatprep.subr.mxu0 0.0
      %732 = vmatpush2.msra.mxu0 0.0
      %733 = vmatprep.subr.mxu0 0.0
      %734 = vmatpush2.msra.mxu0 0.0
      %735 = vmatprep.subr.mxu0 0.0
      %736 = vmatpush2.msra.mxu0 0.0
      %737 = vmatprep.subr.mxu0 0.0
      %738 = vmatpush2.msra.mxu0 0.0
      %739 = vmatprep.subr.mxu0 0.0
      %740 = vmatpush2.msra.mxu0 0.0
      %741 = vmatprep.subr.mxu0 0.0
      %742 = vmatpush2.msra.mxu0 0.0
      %743 = vmatprep.subr.mxu0 0.0
      %744 = vmatpush2.msra.mxu0 0.0
      %745 = vmatprep.subr.mxu0 0.0
      %746 = vmatpush2.msra.mxu0 0.0
      %747 = vmatprep.subr.mxu0 0.0
      %748 = vmatpush2.msra.mxu0 0.0
      %749 = vmatprep.subr.mxu0 0.0
      %750 = vmatpush2.msra.mxu0 0.0
      %751 = vmatprep.subr.mxu0 0.0
      %752 = vmatpush2.msra.mxu0 0.0
      %753 = vmatprep.subr.mxu0 0.0
      %754 = vmatpush2.msra.mxu0 0.0
      %755 = vmatprep.subr.mxu0 0.0
      %756 = vmatpush2.msra.mxu0 0.0
      %757 = vmatprep.subr.mxu0 0.0
      %758 = vmatpush2.msra.mxu0 0.0
      %759 = vmatprep.subr.mxu0 0.0
      %760 = vmatpush2.msra.mxu0 0.0
      %761 = vmatprep.mubr.f32.mxu0 0.0
      %762 = vmatmul.mubr.f32.gmra.mxu0 %v692
      %v763 = vpop.f32.mrf.mxu0
      %v764 = vadd.f32 %v346, %v763
      %v765 = vpop.f32.mrf.mxu0
      %766 = vmatprep.mubr.f32.mxu0 0.0
      %767 = vmatmul.mubr.f32.gmra.mxu0 %v695
      %v768 = vpop.f32.mrf.mxu0
      %v769 = vadd.f32 %v346, %v768
      %v770 = vpop.f32.mrf.mxu0
      %771 = vdwg.mxu0
      %v772 = vmul.f32 %v764, %v433
      %v773 = vmul.f32 %v769, %v438
      %v775 = vsel %vm348, %v316, 0
      %v778 = vsel %vm348, %v317, 0
      %780 = vmatprep.subr.mxu0 0.0
      %781 = vmatpush1.msra.mxu0 0.0
      %782 = vmatprep.subr.mxu0 0.0
      %783 = vmatpush1.msra.mxu0 0.0
      %784 = vmatprep.subr.mxu0 0.0
      %785 = vmatpush1.msra.mxu0 0.0
      %786 = vmatprep.subr.mxu0 0.0
      %787 = vmatpush1.msra.mxu0 0.0
      %788 = vmatprep.subr.mxu0 0.0
      %789 = vmatpush1.msra.mxu0 0.0
      %790 = vmatprep.subr.mxu0 0.0
      %791 = vmatpush1.msra.mxu0 0.0
      %792 = vmatprep.subr.mxu0 0.0
      %793 = vmatpush1.msra.mxu0 0.0
      %794 = vmatprep.subr.mxu0 0.0
      %795 = vmatpush1.msra.mxu0 0.0
      %796 = vmatprep.subr.mxu0 0.0
      %797 = vmatpush1.msra.mxu0 0.0
      %798 = vmatprep.subr.mxu0 0.0
      %799 = vmatpush1.msra.mxu0 0.0
      %800 = vmatprep.subr.mxu0 0.0
      %801 = vmatpush1.msra.mxu0 0.0
      %802 = vmatprep.subr.mxu0 0.0
      %803 = vmatpush1.msra.mxu0 0.0
      %804 = vmatprep.subr.mxu0 0.0
      %805 = vmatpush1.msra.mxu0 %v327
      %806 = vmatprep.subr.mxu0 0.0
      %807 = vmatpush1.msra.mxu0 %v326
      %808 = vmatprep.subr.mxu0 0.0
      %809 = vmatpush1.msra.mxu0 %v325
      %810 = vmatprep.subr.mxu0 0.0
      %811 = vmatpush1.msra.mxu0 %v324
      %812 = vmatprep.subr.mxu0 0.0
      %813 = vmatpush2.msra.mxu0 0.0
      %814 = vmatprep.subr.mxu0 0.0
      %815 = vmatpush2.msra.mxu0 0.0
      %816 = vmatprep.subr.mxu0 0.0
      %817 = vmatpush2.msra.mxu0 0.0
      %818 = vmatprep.subr.mxu0 0.0
      %819 = vmatpush2.msra.mxu0 0.0
      %820 = vmatprep.subr.mxu0 0.0
      %821 = vmatpush2.msra.mxu0 0.0
      %822 = vmatprep.subr.mxu0 0.0
      %823 = vmatpush2.msra.mxu0 0.0
      %824 = vmatprep.subr.mxu0 0.0
      %825 = vmatpush2.msra.mxu0 0.0
      %826 = vmatprep.subr.mxu0 0.0
      %827 = vmatpush2.msra.mxu0 0.0
      %828 = vmatprep.subr.mxu0 0.0
      %829 = vmatpush2.msra.mxu0 0.0
      %830 = vmatprep.subr.mxu0 0.0
      %831 = vmatpush2.msra.mxu0 0.0
      %832 = vmatprep.subr.mxu0 0.0
      %833 = vmatpush2.msra.mxu0 0.0
      %834 = vmatprep.subr.mxu0 0.0
      %835 = vmatpush2.msra.mxu0 0.0
      %836 = vmatprep.subr.mxu0 0.0
      %837 = vmatpush2.msra.mxu0 0.0
      %838 = vmatprep.subr.mxu0 0.0
      %839 = vmatpush2.msra.mxu0 0.0
      %840 = vmatprep.subr.mxu0 0.0
      %841 = vmatpush2.msra.mxu0 0.0
      %842 = vmatprep.subr.mxu0 0.0
      %843 = vmatpush2.msra.mxu0 0.0
      %844 = vmatprep.mubr.f32.mxu0 0.0
      %845 = vmatmul.mubr.f32.gmra.mxu0 %v775
      %v846 = vpop.f32.mrf.mxu0
      %v847 = vadd.f32 %v346, %v846
      %v848 = vpop.f32.mrf.mxu0
      %849 = vmatprep.mubr.f32.mxu0 0.0
      %850 = vmatmul.mubr.f32.gmra.mxu0 %v778
      %v851 = vpop.f32.mrf.mxu0
      %v852 = vadd.f32 %v346, %v851
      %v853 = vpop.f32.mrf.mxu0
      %854 = vdwg.mxu0
      %v855 = vmul.f32 %v847, %v433
      %v856 = vmul.f32 %v852, %v438
      %v858 = vsel %vm348, %v318, 0
      %v861 = vsel %vm348, %v319, 0
      %863 = vmatprep.subr.mxu0 0.0
      %864 = vmatpush1.msra.mxu0 0.0
      %865 = vmatprep.subr.mxu0 0.0
      %866 = vmatpush1.msra.mxu0 0.0
      %867 = vmatprep.subr.mxu0 0.0
      %868 = vmatpush1.msra.mxu0 0.0
      %869 = vmatprep.subr.mxu0 0.0
      %870 = vmatpush1.msra.mxu0 0.0
      %871 = vmatprep.subr.mxu0 0.0
      %872 = vmatpush1.msra.mxu0 0.0
      %873 = vmatprep.subr.mxu0 0.0
      %874 = vmatpush1.msra.mxu0 0.0
      %875 = vmatprep.subr.mxu0 0.0
      %876 = vmatpush1.msra.mxu0 0.0
      %877 = vmatprep.subr.mxu0 0.0
      %878 = vmatpush1.msra.mxu0 0.0
      %879 = vmatprep.subr.mxu0 0.0
      %880 = vmatpush1.msra.mxu0 0.0
      %881 = vmatprep.subr.mxu0 0.0
      %882 = vmatpush1.msra.mxu0 0.0
      %883 = vmatprep.subr.mxu0 0.0
      %884 = vmatpush1.msra.mxu0 0.0
      %885 = vmatprep.subr.mxu0 0.0
      %886 = vmatpush1.msra.mxu0 0.0
      %887 = vmatprep.subr.mxu0 0.0
      %888 = vmatpush1.msra.mxu0 %v327
      %889 = vmatprep.subr.mxu0 0.0
      %890 = vmatpush1.msra.mxu0 %v326
      %891 = vmatprep.subr.mxu0 0.0
      %892 = vmatpush1.msra.mxu0 %v325
      %893 = vmatprep.subr.mxu0 0.0
      %894 = vmatpush1.msra.mxu0 %v324
      %895 = vmatprep.subr.mxu0 0.0
      %896 = vmatpush2.msra.mxu0 0.0
      %897 = vmatprep.subr.mxu0 0.0
      %898 = vmatpush2.msra.mxu0 0.0
      %899 = vmatprep.subr.mxu0 0.0
      %900 = vmatpush2.msra.mxu0 0.0
      %901 = vmatprep.subr.mxu0 0.0
      %902 = vmatpush2.msra.mxu0 0.0
      %903 = vmatprep.subr.mxu0 0.0
      %904 = vmatpush2.msra.mxu0 0.0
      %905 = vmatprep.subr.mxu0 0.0
      %906 = vmatpush2.msra.mxu0 0.0
      %907 = vmatprep.subr.mxu0 0.0
      %908 = vmatpush2.msra.mxu0 0.0
      %909 = vmatprep.subr.mxu0 0.0
      %910 = vmatpush2.msra.mxu0 0.0
      %911 = vmatprep.subr.mxu0 0.0
      %912 = vmatpush2.msra.mxu0 0.0
      %913 = vmatprep.subr.mxu0 0.0
      %914 = vmatpush2.msra.mxu0 0.0
      %915 = vmatprep.subr.mxu0 0.0
      %916 = vmatpush2.msra.mxu0 0.0
      %917 = vmatprep.subr.mxu0 0.0
      %918 = vmatpush2.msra.mxu0 0.0
      %919 = vmatprep.subr.mxu0 0.0
      %920 = vmatpush2.msra.mxu0 0.0
      %921 = vmatprep.subr.mxu0 0.0
      %922 = vmatpush2.msra.mxu0 0.0
      %923 = vmatprep.subr.mxu0 0.0
      %924 = vmatpush2.msra.mxu0 0.0
      %925 = vmatprep.subr.mxu0 0.0
      %926 = vmatpush2.msra.mxu0 0.0
      %927 = vmatprep.mubr.f32.mxu0 0.0
      %928 = vmatmul.mubr.f32.gmra.mxu0 %v858
      %v929 = vpop.f32.mrf.mxu0
      %v930 = vadd.f32 %v346, %v929
      %v931 = vpop.f32.mrf.mxu0
      %932 = vmatprep.mubr.f32.mxu0 0.0
      %933 = vmatmul.mubr.f32.gmra.mxu0 %v861
      %v934 = vpop.f32.mrf.mxu0
      %v935 = vadd.f32 %v346, %v934
      %v936 = vpop.f32.mrf.mxu0
      %937 = vdwg.mxu0
      %v938 = vmul.f32 %v930, %v433
      %v939 = vmul.f32 %v935, %v438
      %v941 = vsel %vm348, %v320, 0
      %v944 = vsel %vm348, %v321, 0
      %946 = vmatprep.subr.mxu0 0.0
      %947 = vmatpush1.msra.mxu0 0.0
      %948 = vmatprep.subr.mxu0 0.0
      %949 = vmatpush1.msra.mxu0 0.0
      %950 = vmatprep.subr.mxu0 0.0
      %951 = vmatpush1.msra.mxu0 0.0
      %952 = vmatprep.subr.mxu0 0.0
      %953 = vmatpush1.msra.mxu0 0.0
      %954 = vmatprep.subr.mxu0 0.0
      %955 = vmatpush1.msra.mxu0 0.0
      %956 = vmatprep.subr.mxu0 0.0
      %957 = vmatpush1.msra.mxu0 0.0
      %958 = vmatprep.subr.mxu0 0.0
      %959 = vmatpush1.msra.mxu0 0.0
      %960 = vmatprep.subr.mxu0 0.0
      %961 = vmatpush1.msra.mxu0 0.0
      %962 = vmatprep.subr.mxu0 0.0
      %963 = vmatpush1.msra.mxu0 0.0
      %964 = vmatprep.subr.mxu0 0.0
      %965 = vmatpush1.msra.mxu0 0.0
      %966 = vmatprep.subr.mxu0 0.0
      %967 = vmatpush1.msra.mxu0 0.0
      %968 = vmatprep.subr.mxu0 0.0
      %969 = vmatpush1.msra.mxu0 0.0
      %970 = vmatprep.subr.mxu0 0.0
      %971 = vmatpush1.msra.mxu0 %v327
      %972 = vmatprep.subr.mxu0 0.0
      %973 = vmatpush1.msra.mxu0 %v326
      %974 = vmatprep.subr.mxu0 0.0
      %975 = vmatpush1.msra.mxu0 %v325
      %976 = vmatprep.subr.mxu0 0.0
      %977 = vmatpush1.msra.mxu0 %v324
      %978 = vmatprep.subr.mxu0 0.0
      %979 = vmatpush2.msra.mxu0 0.0
      %980 = vmatprep.subr.mxu0 0.0
      %981 = vmatpush2.msra.mxu0 0.0
      %982 = vmatprep.subr.mxu0 0.0
      %983 = vmatpush2.msra.mxu0 0.0
      %984 = vmatprep.subr.mxu0 0.0
      %985 = vmatpush2.msra.mxu0 0.0
      %986 = vmatprep.subr.mxu0 0.0
      %987 = vmatpush2.msra.mxu0 0.0
      %988 = vmatprep.subr.mxu0 0.0
      %989 = vmatpush2.msra.mxu0 0.0
      %990 = vmatprep.subr.mxu0 0.0
      %991 = vmatpush2.msra.mxu0 0.0
      %992 = vmatprep.subr.mxu0 0.0
      %993 = vmatpush2.msra.mxu0 0.0
      %994 = vmatprep.subr.mxu0 0.0
      %995 = vmatpush2.msra.mxu0 0.0
      %996 = vmatprep.subr.mxu0 0.0
      %997 = vmatpush2.msra.mxu0 0.0
      %998 = vmatprep.subr.mxu0 0.0
      %999 = vmatpush2.msra.mxu0 0.0
      %1000 = vmatprep.subr.mxu0 0.0
      %1001 = vmatpush2.msra.mxu0 0.0
      %1002 = vmatprep.subr.mxu0 0.0
      %1003 = vmatpush2.msra.mxu0 0.0
      %1004 = vmatprep.subr.mxu0 0.0
      %1005 = vmatpush2.msra.mxu0 0.0
      %1006 = vmatprep.subr.mxu0 0.0
      %1007 = vmatpush2.msra.mxu0 0.0
      %1008 = vmatprep.subr.mxu0 0.0
      %1009 = vmatpush2.msra.mxu0 0.0
      %1010 = vmatprep.mubr.f32.mxu0 0.0
      %1011 = vmatmul.mubr.f32.gmra.mxu0 %v941
      %v1012 = vpop.f32.mrf.mxu0
      %v1013 = vadd.f32 %v346, %v1012
      %v1014 = vpop.f32.mrf.mxu0
      %1015 = vmatprep.mubr.f32.mxu0 0.0
      %1016 = vmatmul.mubr.f32.gmra.mxu0 %v944
      %v1017 = vpop.f32.mrf.mxu0
      %v1018 = vadd.f32 %v346, %v1017
      %v1019 = vpop.f32.mrf.mxu0
      %1020 = vdwg.mxu0
      %v1021 = vmul.f32 %v1013, %v433
      %v1022 = vmul.f32 %v1018, %v438
      %v1023 = vlaneseq
      %v1024 = vshrl.u32 %v1023, 7
      %v1025 = vsub.s32 0, %v1024
      %v1026 = vrot.slane %v329, %v1025
      %v1027 = vmul.f32 %v1026, 0.0
      %v1028 = vadd.f32 %v1027, 0.0
      %v1029 = vlaneseq
      %v1030 = vshrl.u32 %v1029, 7
      %v1031 = vsub.s32 1, %v1030
      %v1032 = vrot.slane %v329, %v1031
      %v1033 = vmul.f32 %v1032, 0.0
      %v1034 = vadd.f32 %v1028, %v1033
      %v1035 = vlaneseq
      %v1036 = vshrl.u32 %v1035, 7
      %v1037 = vsub.s32 2, %v1036
      %v1038 = vrot.slane %v329, %v1037
      %v1039 = vmul.f32 %v1038, 0.0
      %v1040 = vadd.f32 %v1034, %v1039
      %v1041 = vlaneseq
      %v1042 = vshrl.u32 %v1041, 7
      %v1043 = vsub.s32 0, %v1042
      %v1044 = vrot.slane %v330, %v1043
      %v1045 = vmul.f32 %v440, %v1044
      %v1046 = vadd.f32 %v1040, %v1045
      %v1047 = vlaneseq
      %v1048 = vshrl.u32 %v1047, 7
      %v1049 = vsub.s32 1, %v1048
      %v1050 = vrot.slane %v330, %v1049
      %v1051 = vmul.f32 %v440, %v1050
      %v1052 = vmul.f32 %v441, %v1050
      %vm1055 = vcmask 1046528
      %v1056 = vrot.slane %v1051, 1
      %v1057 = vrot.slane %v1052, 1
      %v1058 = vsel %vm1055, %v1056, %v1057
      %v1060 = vadd.f32 %v1046, %v1058
      %v1061 = vlaneseq
      %v1062 = vshrl.u32 %v1061, 7
      %v1063 = vsub.s32 2, %v1062
      %v1064 = vrot.slane %v330, %v1063
      %v1065 = vmul.f32 %v440, %v1064
      %v1066 = vmul.f32 %v441, %v1064
      %vm1069 = vcmask 1045504
      %v1070 = vrot.slane %v1065, 2
      %v1071 = vrot.slane %v1066, 2
      %v1072 = vsel %vm1069, %v1070, %v1071
      %v1074 = vadd.f32 %v1060, %v1072
      %v1075 = vlaneseq
      %v1076 = vshrl.u32 %v1075, 7
      %v1077 = vsub.s32 0, %v1076
      %v1078 = vrot.slane %v331, %v1077
      %v1079 = vmul.f32 %v523, %v1078
      %v1080 = vadd.f32 %v1074, %v1079
      %v1081 = vlaneseq
      %v1082 = vshrl.u32 %v1081, 7
      %v1083 = vsub.s32 1, %v1082
      %v1084 = vrot.slane %v331, %v1083
      %v1085 = vmul.f32 %v523, %v1084
      %v1086 = vmul.f32 %v524, %v1084
      %v1089 = vrot.slane %v1085, 1
      %v1090 = vrot.slane %v1086, 1
      %v1091 = vsel %vm1055, %v1089, %v1090
      %v1093 = vadd.f32 %v1080, %v1091
      %v1094 = vlaneseq
      %v1095 = vshrl.u32 %v1094, 7
      %v1096 = vsub.s32 2, %v1095
      %v1097 = vrot.slane %v331, %v1096
      %v1098 = vmul.f32 %v523, %v1097
      %v1099 = vmul.f32 %v524, %v1097
      %v1102 = vrot.slane %v1098, 2
      %v1103 = vrot.slane %v1099, 2
      %v1104 = vsel %vm1069, %v1102, %v1103
      %v1106 = vadd.f32 %v1093, %v1104
      %v1108 = vlaneseq
      %v1109 = vshrl.u32 %v1108, 7
      %v1110 = vsub.s32 0, %v1109
      %v1111 = vrot.slane %v332, %v1110
      %v1113 = vadd.f32 %v1106, %v1111
      %v1114 = vmax.f32 %v1113, 0.0
      %vm1115 = vcmask 523264
      %v1117 = vsel %vm1115, %v1114, 0
      %1119 = vmatprep.subr.mxu0 0.0
      %1120 = vmatpush1.msra.mxu0 0.0
      %1121 = vmatprep.subr.mxu0 0.0
      %1122 = vmatpush1.msra.mxu0 0.0
      %1123 = vmatprep.subr.mxu0 0.0
      %1124 = vmatpush1.msra.mxu0 0.0
      %1125 = vmatprep.subr.mxu0 0.0
      %1126 = vmatpush1.msra.mxu0 0.0
      %1127 = vmatprep.subr.mxu0 0.0
      %1128 = vmatpush1.msra.mxu0 0.0
      %1129 = vmatprep.subr.mxu0 0.0
      %1130 = vmatpush1.msra.mxu0 0.0
      %1131 = vmatprep.subr.mxu0 0.0
      %1132 = vmatpush1.msra.mxu0 0.0
      %1133 = vmatprep.subr.mxu0 0.0
      %1134 = vmatpush1.msra.mxu0 0.0
      %1135 = vmatprep.subr.mxu0 0.0
      %1136 = vmatpush1.msra.mxu0 %v340
      %1137 = vmatprep.subr.mxu0 0.0
      %1138 = vmatpush1.msra.mxu0 %v339
      %1139 = vmatprep.subr.mxu0 0.0
      %1140 = vmatpush1.msra.mxu0 %v338
      %1141 = vmatprep.subr.mxu0 0.0
      %1142 = vmatpush1.msra.mxu0 %v337
      %1143 = vmatprep.subr.mxu0 0.0
      %1144 = vmatpush1.msra.mxu0 %v336
      %1145 = vmatprep.subr.mxu0 0.0
      %1146 = vmatpush1.msra.mxu0 %v335
      %1147 = vmatprep.subr.mxu0 0.0
      %1148 = vmatpush1.msra.mxu0 %v334
      %1149 = vmatprep.subr.mxu0 0.0
      %1150 = vmatpush1.msra.mxu0 %v333
      %1151 = vmatprep.subr.mxu0 0.0
      %1152 = vmatpush2.msra.mxu0 0.0
      %1153 = vmatprep.subr.mxu0 0.0
      %1154 = vmatpush2.msra.mxu0 0.0
      %1155 = vmatprep.subr.mxu0 0.0
      %1156 = vmatpush2.msra.mxu0 0.0
      %1157 = vmatprep.subr.mxu0 0.0
      %1158 = vmatpush2.msra.mxu0 0.0
      %1159 = vmatprep.subr.mxu0 0.0
      %1160 = vmatpush2.msra.mxu0 0.0
      %1161 = vmatprep.subr.mxu0 0.0
      %1162 = vmatpush2.msra.mxu0 0.0
      %1163 = vmatprep.subr.mxu0 0.0
      %1164 = vmatpush2.msra.mxu0 0.0
      %1165 = vmatprep.subr.mxu0 0.0
      %1166 = vmatpush2.msra.mxu0 0.0
      %1167 = vmatprep.subr.mxu0 0.0
      %1168 = vmatpush2.msra.mxu0 0.0
      %1169 = vmatprep.subr.mxu0 0.0
      %1170 = vmatpush2.msra.mxu0 0.0
      %1171 = vmatprep.subr.mxu0 0.0
      %1172 = vmatpush2.msra.mxu0 0.0
      %1173 = vmatprep.subr.mxu0 0.0
      %1174 = vmatpush2.msra.mxu0 0.0
      %1175 = vmatprep.subr.mxu0 0.0
      %1176 = vmatpush2.msra.mxu0 0.0
      %1177 = vmatprep.subr.mxu0 0.0
      %1178 = vmatpush2.msra.mxu0 0.0
      %1179 = vmatprep.subr.mxu0 0.0
      %1180 = vmatpush2.msra.mxu0 0.0
      %1181 = vmatprep.subr.mxu0 0.0
      %1182 = vmatpush2.msra.mxu0 0.0
      %1183 = vmatprep.mubr.f32.mxu0 0.0
      %1184 = vmatmul.mubr.f32.gmra.mxu0 %v1117
      %v1185 = vpop.f32.mrf.mxu0
      %v1186 = vadd.f32 0.0, %v1185
      %v1187 = vpop.f32.mrf.mxu0
      %1188 = vdwg.mxu0
      %v1190 = vrot.slane %v1186, 7
      %v1192 = vadd.f32 %v306, %v1190
      %v1193 = vadd.f32 %v307, %v1190
      %v1195 = vlaneseq
      %v1196 = vshrl.u32 %v1195, 7
      %v1197 = vsub.s32 0, %v1196
      %v1198 = vrot.slane %v341, %v1197
      %v1200 = vadd.f32 %v1192, %v1198
      %v1201 = vadd.f32 %v1193, %v1198
      %vm1202 = vcmask 261121
      %1203 = vst.msk [vmem:[%s305 - $0x1] sm:$0xfe] %vm1202, %v1200
      %vm1204 = vcmask 253952
      %1205 = vst.msk [vmem:[%s305 + $0x7] sm:$0x1] %vm1204, %v1201
      %v1206 = vmul.f32 %v440, %v1026
      %v1207 = vadd.f32 %v1206, 0.0
      %v1208 = vmul.f32 %v440, %v1032
      %v1209 = vmul.f32 %v441, %v1032
      %v1212 = vrot.slane %v1208, 1
      %v1213 = vrot.slane %v1209, 1
      %v1214 = vsel %vm1055, %v1212, %v1213
      %v1216 = vadd.f32 %v1207, %v1214
      %v1217 = vmul.f32 %v440, %v1038
      %v1218 = vmul.f32 %v441, %v1038
      %v1221 = vrot.slane %v1217, 2
      %v1222 = vrot.slane %v1218, 2
      %v1223 = vsel %vm1069, %v1221, %v1222
      %v1225 = vadd.f32 %v1216, %v1223
      %v1226 = vmul.f32 %v523, %v1044
      %v1227 = vadd.f32 %v1225, %v1226
      %v1228 = vmul.f32 %v523, %v1050
      %v1229 = vmul.f32 %v524, %v1050
      %v1232 = vrot.slane %v1228, 1
      %v1233 = vrot.slane %v1229, 1
      %v1234 = vsel %vm1055, %v1232, %v1233
      %v1236 = vadd.f32 %v1227, %v1234
      %v1237 = vmul.f32 %v523, %v1064
      %v1238 = vmul.f32 %v524, %v1064
      %v1241 = vrot.slane %v1237, 2
      %v1242 = vrot.slane %v1238, 2
      %v1243 = vsel %vm1069, %v1241, %v1242
      %v1245 = vadd.f32 %v1236, %v1243
      %v1246 = vmul.f32 %v606, %v1078
      %v1247 = vadd.f32 %v1245, %v1246
      %v1248 = vmul.f32 %v606, %v1084
      %v1249 = vmul.f32 %v607, %v1084
      %v1252 = vrot.slane %v1248, 1
      %v1253 = vrot.slane %v1249, 1
      %v1254 = vsel %vm1055, %v1252, %v1253
      %v1256 = vadd.f32 %v1247, %v1254
      %v1257 = vmul.f32 %v606, %v1097
      %v1258 = vmul.f32 %v607, %v1097
      %v1261 = vrot.slane %v1257, 2
      %v1262 = vrot.slane %v1258, 2
      %v1263 = vsel %vm1069, %v1261, %v1262
      %v1265 = vadd.f32 %v1256, %v1263
      %v1266 = vadd.f32 %v1265, %v1111
      %v1267 = vmax.f32 %v1266, 0.0
      %v1269 = vsel %vm1115, %v1267, 0
      %1271 = vmatprep.subr.mxu0 0.0
      %1272 = vmatpush1.msra.mxu0 0.0
      %1273 = vmatprep.subr.mxu0 0.0
      %1274 = vmatpush1.msra.mxu0 0.0
      %1275 = vmatprep.subr.mxu0 0.0
      %1276 = vmatpush1.msra.mxu0 0.0
      %1277 = vmatprep.subr.mxu0 0.0
      %1278 = vmatpush1.msra.mxu0 0.0
      %1279 = vmatprep.subr.mxu0 0.0
      %1280 = vmatpush1.msra.mxu0 0.0
      %1281 = vmatprep.subr.mxu0 0.0
      %1282 = vmatpush1.msra.mxu0 0.0
      %1283 = vmatprep.subr.mxu0 0.0
      %1284 = vmatpush1.msra.mxu0 0.0
      %1285 = vmatprep.subr.mxu0 0.0
      %1286 = vmatpush1.msra.mxu0 0.0
      %1287 = vmatprep.subr.mxu0 0.0
      %1288 = vmatpush1.msra.mxu0 %v340
      %1289 = vmatprep.subr.mxu0 0.0
      %1290 = vmatpush1.msra.mxu0 %v339
      %1291 = vmatprep.subr.mxu0 0.0
      %1292 = vmatpush1.msra.mxu0 %v338
      %1293 = vmatprep.subr.mxu0 0.0
      %1294 = vmatpush1.msra.mxu0 %v337
      %1295 = vmatprep.subr.mxu0 0.0
      %1296 = vmatpush1.msra.mxu0 %v336
      %1297 = vmatprep.subr.mxu0 0.0
      %1298 = vmatpush1.msra.mxu0 %v335
      %1299 = vmatprep.subr.mxu0 0.0
      %1300 = vmatpush1.msra.mxu0 %v334
      %1301 = vmatprep.subr.mxu0 0.0
      %1302 = vmatpush1.msra.mxu0 %v333
      %1303 = vmatprep.subr.mxu0 0.0
      %1304 = vmatpush2.msra.mxu0 0.0
      %1305 = vmatprep.subr.mxu0 0.0
      %1306 = vmatpush2.msra.mxu0 0.0
      %1307 = vmatprep.subr.mxu0 0.0
      %1308 = vmatpush2.msra.mxu0 0.0
      %1309 = vmatprep.subr.mxu0 0.0
      %1310 = vmatpush2.msra.mxu0 0.0
      %1311 = vmatprep.subr.mxu0 0.0
      %1312 = vmatpush2.msra.mxu0 0.0
      %1313 = vmatprep.subr.mxu0 0.0
      %1314 = vmatpush2.msra.mxu0 0.0
      %1315 = vmatprep.subr.mxu0 0.0
      %1316 = vmatpush2.msra.mxu0 0.0
      %1317 = vmatprep.subr.mxu0 0.0
      %1318 = vmatpush2.msra.mxu0 0.0
      %1319 = vmatprep.subr.mxu0 0.0
      %1320 = vmatpush2.msra.mxu0 0.0
      %1321 = vmatprep.subr.mxu0 0.0
      %1322 = vmatpush2.msra.mxu0 0.0
      %1323 = vmatprep.subr.mxu0 0.0
      %1324 = vmatpush2.msra.mxu0 0.0
      %1325 = vmatprep.subr.mxu0 0.0
      %1326 = vmatpush2.msra.mxu0 0.0
      %1327 = vmatprep.subr.mxu0 0.0
      %1328 = vmatpush2.msra.mxu0 0.0
      %1329 = vmatprep.subr.mxu0 0.0
      %1330 = vmatpush2.msra.mxu0 0.0
      %1331 = vmatprep.subr.mxu0 0.0
      %1332 = vmatpush2.msra.mxu0 0.0
      %1333 = vmatprep.subr.mxu0 0.0
      %1334 = vmatpush2.msra.mxu0 0.0
      %1335 = vmatprep.mubr.f32.mxu0 0.0
      %1336 = vmatmul.mubr.f32.gmra.mxu0 %v1269
      %v1337 = vpop.f32.mrf.mxu0
      %v1338 = vadd.f32 0.0, %v1337
      %v1339 = vpop.f32.mrf.mxu0
      %1340 = vdwg.mxu0
      %v1342 = vrot.slane %v1338, 7
      %v1344 = vadd.f32 %v308, %v1342
      %v1345 = vadd.f32 %v309, %v1342
      %v1346 = vadd.f32 %v1344, %v1198
      %v1347 = vadd.f32 %v1345, %v1198
      %s1348 = scalar_lea.vmem %s305, 8
      %1349 = vst.msk [vmem:[%s1348 - $0x1] sm:$0xfe] %vm1202, %v1346
      %1350 = vst.msk [vmem:[%s1348 + $0x7] sm:$0x1] %vm1204, %v1347
      %v1351 = vmul.f32 %v523, %v1026
      %v1352 = vadd.f32 %v1351, 0.0
      %v1353 = vmul.f32 %v523, %v1032
      %v1354 = vmul.f32 %v524, %v1032
      %v1357 = vrot.slane %v1353, 1
      %v1358 = vrot.slane %v1354, 1
      %v1359 = vsel %vm1055, %v1357, %v1358
      %v1361 = vadd.f32 %v1352, %v1359
      %v1362 = vmul.f32 %v523, %v1038
      %v1363 = vmul.f32 %v524, %v1038
      %v1366 = vrot.slane %v1362, 2
      %v1367 = vrot.slane %v1363, 2
      %v1368 = vsel %vm1069, %v1366, %v1367
      %v1370 = vadd.f32 %v1361, %v1368
      %v1371 = vmul.f32 %v606, %v1044
      %v1372 = vadd.f32 %v1370, %v1371
      %v1373 = vmul.f32 %v606, %v1050
      %v1374 = vmul.f32 %v607, %v1050
      %v1377 = vrot.slane %v1373, 1
      %v1378 = vrot.slane %v1374, 1
      %v1379 = vsel %vm1055, %v1377, %v1378
      %v1381 = vadd.f32 %v1372, %v1379
      %v1382 = vmul.f32 %v606, %v1064
      %v1383 = vmul.f32 %v607, %v1064
      %v1386 = vrot.slane %v1382, 2
      %v1387 = vrot.slane %v1383, 2
      %v1388 = vsel %vm1069, %v1386, %v1387
      %v1390 = vadd.f32 %v1381, %v1388
      %v1391 = vmul.f32 %v689, %v1078
      %v1392 = vadd.f32 %v1390, %v1391
      %v1393 = vmul.f32 %v689, %v1084
      %v1394 = vmul.f32 %v690, %v1084
      %v1397 = vrot.slane %v1393, 1
      %v1398 = vrot.slane %v1394, 1
      %v1399 = vsel %vm1055, %v1397, %v1398
      %v1401 = vadd.f32 %v1392, %v1399
      %v1402 = vmul.f32 %v689, %v1097
      %v1403 = vmul.f32 %v690, %v1097
      %v1406 = vrot.slane %v1402, 2
      %v1407 = vrot.slane %v1403, 2
      %v1408 = vsel %vm1069, %v1406, %v1407
      %v1410 = vadd.f32 %v1401, %v1408
      %v1411 = vadd.f32 %v1410, %v1111
      %v1412 = vmax.f32 %v1411, 0.0
      %v1414 = vsel %vm1115, %v1412, 0
      %1416 = vmatprep.subr.mxu0 0.0
      %1417 = vmatpush1.msra.mxu0 0.0
      %1418 = vmatprep.subr.mxu0 0.0
      %1419 = vmatpush1.msra.mxu0 0.0
      %1420 = vmatprep.subr.mxu0 0.0
      %1421 = vmatpush1.msra.mxu0 0.0
      %1422 = vmatprep.subr.mxu0 0.0
      %1423 = vmatpush1.msra.mxu0 0.0
      %1424 = vmatprep.subr.mxu0 0.0
      %1425 = vmatpush1.msra.mxu0 0.0
      %1426 = vmatprep.subr.mxu0 0.0
      %1427 = vmatpush1.msra.mxu0 0.0
      %1428 = vmatprep.subr.mxu0 0.0
      %1429 = vmatpush1.msra.mxu0 0.0
      %1430 = vmatprep.subr.mxu0 0.0
      %1431 = vmatpush1.msra.mxu0 0.0
      %1432 = vmatprep.subr.mxu0 0.0
      %1433 = vmatpush1.msra.mxu0 %v340
      %1434 = vmatprep.subr.mxu0 0.0
      %1435 = vmatpush1.msra.mxu0 %v339
      %1436 = vmatprep.subr.mxu0 0.0
      %1437 = vmatpush1.msra.mxu0 %v338
      %1438 = vmatprep.subr.mxu0 0.0
      %1439 = vmatpush1.msra.mxu0 %v337
      %1440 = vmatprep.subr.mxu0 0.0
      %1441 = vmatpush1.msra.mxu0 %v336
      %1442 = vmatprep.subr.mxu0 0.0
      %1443 = vmatpush1.msra.mxu0 %v335
      %1444 = vmatprep.subr.mxu0 0.0
      %1445 = vmatpush1.msra.mxu0 %v334
      %1446 = vmatprep.subr.mxu0 0.0
      %1447 = vmatpush1.msra.mxu0 %v333
      %1448 = vmatprep.subr.mxu0 0.0
      %1449 = vmatpush2.msra.mxu0 0.0
      %1450 = vmatprep.subr.mxu0 0.0
      %1451 = vmatpush2.msra.mxu0 0.0
      %1452 = vmatprep.subr.mxu0 0.0
      %1453 = vmatpush2.msra.mxu0 0.0
      %1454 = vmatprep.subr.mxu0 0.0
      %1455 = vmatpush2.msra.mxu0 0.0
      %1456 = vmatprep.subr.mxu0 0.0
      %1457 = vmatpush2.msra.mxu0 0.0
      %1458 = vmatprep.subr.mxu0 0.0
      %1459 = vmatpush2.msra.mxu0 0.0
      %1460 = vmatprep.subr.mxu0 0.0
      %1461 = vmatpush2.msra.mxu0 0.0
      %1462 = vmatprep.subr.mxu0 0.0
      %1463 = vmatpush2.msra.mxu0 0.0
      %1464 = vmatprep.subr.mxu0 0.0
      %1465 = vmatpush2.msra.mxu0 0.0
      %1466 = vmatprep.subr.mxu0 0.0
      %1467 = vmatpush2.msra.mxu0 0.0
      %1468 = vmatprep.subr.mxu0 0.0
      %1469 = vmatpush2.msra.mxu0 0.0
      %1470 = vmatprep.subr.mxu0 0.0
      %1471 = vmatpush2.msra.mxu0 0.0
      %1472 = vmatprep.subr.mxu0 0.0
      %1473 = vmatpush2.msra.mxu0 0.0
      %1474 = vmatprep.subr.mxu0 0.0
      %1475 = vmatpush2.msra.mxu0 0.0
      %1476 = vmatprep.subr.mxu0 0.0
      %1477 = vmatpush2.msra.mxu0 0.0
      %1478 = vmatprep.subr.mxu0 0.0
      %1479 = vmatpush2.msra.mxu0 0.0
      %1480 = vmatprep.mubr.f32.mxu0 0.0
      %1481 = vmatmul.mubr.f32.gmra.mxu0 %v1414
      %v1482 = vpop.f32.mrf.mxu0
      %v1483 = vadd.f32 0.0, %v1482
      %v1484 = vpop.f32.mrf.mxu0
      %1485 = vdwg.mxu0
      %v1487 = vrot.slane %v1483, 7
      %v1489 = vadd.f32 %v310, %v1487
      %v1490 = vadd.f32 %v311, %v1487
      %v1491 = vadd.f32 %v1489, %v1198
      %v1492 = vadd.f32 %v1490, %v1198
      %s1493 = scalar_lea.vmem %s305, 16
      %1494 = vst.msk [vmem:[%s1493 - $0x1] sm:$0xfe] %vm1202, %v1491
      %1495 = vst.msk [vmem:[%s1493 + $0x7] sm:$0x1] %vm1204, %v1492
      %v1496 = vmul.f32 %v606, %v1026
      %v1497 = vadd.f32 %v1496, 0.0
      %v1498 = vmul.f32 %v606, %v1032
      %v1499 = vmul.f32 %v607, %v1032
      %v1502 = vrot.slane %v1498, 1
      %v1503 = vrot.slane %v1499, 1
      %v1504 = vsel %vm1055, %v1502, %v1503
      %v1506 = vadd.f32 %v1497, %v1504
      %v1507 = vmul.f32 %v606, %v1038
      %v1508 = vmul.f32 %v607, %v1038
      %v1511 = vrot.slane %v1507, 2
      %v1512 = vrot.slane %v1508, 2
      %v1513 = vsel %vm1069, %v1511, %v1512
      %v1515 = vadd.f32 %v1506, %v1513
      %v1516 = vmul.f32 %v689, %v1044
      %v1517 = vadd.f32 %v1515, %v1516
      %v1518 = vmul.f32 %v689, %v1050
      %v1519 = vmul.f32 %v690, %v1050
      %v1522 = vrot.slane %v1518, 1
      %v1523 = vrot.slane %v1519, 1
      %v1524 = vsel %vm1055, %v1522, %v1523
      %v1526 = vadd.f32 %v1517, %v1524
      %v1527 = vmul.f32 %v689, %v1064
      %v1528 = vmul.f32 %v690, %v1064
      %v1531 = vrot.slane %v1527, 2
      %v1532 = vrot.slane %v1528, 2
      %v1533 = vsel %vm1069, %v1531, %v1532
      %v1535 = vadd.f32 %v1526, %v1533
      %v1536 = vmul.f32 %v772, %v1078
      %v1537 = vadd.f32 %v1535, %v1536
      %v1538 = vmul.f32 %v772, %v1084
      %v1539 = vmul.f32 %v773, %v1084
      %v1542 = vrot.slane %v1538, 1
      %v1543 = vrot.slane %v1539, 1
      %v1544 = vsel %vm1055, %v1542, %v1543
      %v1546 = vadd.f32 %v1537, %v1544
      %v1547 = vmul.f32 %v772, %v1097
      %v1548 = vmul.f32 %v773, %v1097
      %v1551 = vrot.slane %v1547, 2
      %v1552 = vrot.slane %v1548, 2
      %v1553 = vsel %vm1069, %v1551, %v1552
      %v1555 = vadd.f32 %v1546, %v1553
      %v1556 = vadd.f32 %v1555, %v1111
      %v1557 = vmax.f32 %v1556, 0.0
      %v1559 = vsel %vm1115, %v1557, 0
      %1561 = vmatprep.subr.mxu0 0.0
      %1562 = vmatpush1.msra.mxu0 0.0
      %1563 = vmatprep.subr.mxu0 0.0
      %1564 = vmatpush1.msra.mxu0 0.0
      %1565 = vmatprep.subr.mxu0 0.0
      %1566 = vmatpush1.msra.mxu0 0.0
      %1567 = vmatprep.subr.mxu0 0.0
      %1568 = vmatpush1.msra.mxu0 0.0
      %1569 = vmatprep.subr.mxu0 0.0
      %1570 = vmatpush1.msra.mxu0 0.0
      %1571 = vmatprep.subr.mxu0 0.0
      %1572 = vmatpush1.msra.mxu0 0.0
      %1573 = vmatprep.subr.mxu0 0.0
      %1574 = vmatpush1.msra.mxu0 0.0
      %1575 = vmatprep.subr.mxu0 0.0
      %1576 = vmatpush1.msra.mxu0 0.0
      %1577 = vmatprep.subr.mxu0 0.0
      %1578 = vmatpush1.msra.mxu0 %v340
      %1579 = vmatprep.subr.mxu0 0.0
      %1580 = vmatpush1.msra.mxu0 %v339
      %1581 = vmatprep.subr.mxu0 0.0
      %1582 = vmatpush1.msra.mxu0 %v338
      %1583 = vmatprep.subr.mxu0 0.0
      %1584 = vmatpush1.msra.mxu0 %v337
      %1585 = vmatprep.subr.mxu0 0.0
      %1586 = vmatpush1.msra.mxu0 %v336
      %1587 = vmatprep.subr.mxu0 0.0
      %1588 = vmatpush1.msra.mxu0 %v335
      %1589 = vmatprep.subr.mxu0 0.0
      %1590 = vmatpush1.msra.mxu0 %v334
      %1591 = vmatprep.subr.mxu0 0.0
      %1592 = vmatpush1.msra.mxu0 %v333
      %1593 = vmatprep.subr.mxu0 0.0
      %1594 = vmatpush2.msra.mxu0 0.0
      %1595 = vmatprep.subr.mxu0 0.0
      %1596 = vmatpush2.msra.mxu0 0.0
      %1597 = vmatprep.subr.mxu0 0.0
      %1598 = vmatpush2.msra.mxu0 0.0
      %1599 = vmatprep.subr.mxu0 0.0
      %1600 = vmatpush2.msra.mxu0 0.0
      %1601 = vmatprep.subr.mxu0 0.0
      %1602 = vmatpush2.msra.mxu0 0.0
      %1603 = vmatprep.subr.mxu0 0.0
      %1604 = vmatpush2.msra.mxu0 0.0
      %1605 = vmatprep.subr.mxu0 0.0
      %1606 = vmatpush2.msra.mxu0 0.0
      %1607 = vmatprep.subr.mxu0 0.0
      %1608 = vmatpush2.msra.mxu0 0.0
      %1609 = vmatprep.subr.mxu0 0.0
      %1610 = vmatpush2.msra.mxu0 0.0
      %1611 = vmatprep.subr.mxu0 0.0
      %1612 = vmatpush2.msra.mxu0 0.0
      %1613 = vmatprep.subr.mxu0 0.0
      %1614 = vmatpush2.msra.mxu0 0.0
      %1615 = vmatprep.subr.mxu0 0.0
      %1616 = vmatpush2.msra.mxu0 0.0
      %1617 = vmatprep.subr.mxu0 0.0
      %1618 = vmatpush2.msra.mxu0 0.0
      %1619 = vmatprep.subr.mxu0 0.0
      %1620 = vmatpush2.msra.mxu0 0.0
      %1621 = vmatprep.subr.mxu0 0.0
      %1622 = vmatpush2.msra.mxu0 0.0
      %1623 = vmatprep.subr.mxu0 0.0
      %1624 = vmatpush2.msra.mxu0 0.0
      %1625 = vmatprep.mubr.f32.mxu0 0.0
      %1626 = vmatmul.mubr.f32.gmra.mxu0 %v1559
      %v1627 = vpop.f32.mrf.mxu0
      %v1628 = vadd.f32 0.0, %v1627
      %v1629 = vpop.f32.mrf.mxu0
      %1630 = vdwg.mxu0
      %v1632 = vrot.slane %v1628, 7
      %v1634 = vadd.f32 %v312, %v1632
      %v1635 = vadd.f32 %v313, %v1632
      %v1636 = vadd.f32 %v1634, %v1198
      %v1637 = vadd.f32 %v1635, %v1198
      %s1638 = scalar_lea.vmem %s305, 24
      %1639 = vst.msk [vmem:[%s1638 - $0x1] sm:$0xfe] %vm1202, %v1636
      %1640 = vst.msk [vmem:[%s1638 + $0x7] sm:$0x1] %vm1204, %v1637
      %v1641 = vmul.f32 %v689, %v1026
      %v1642 = vadd.f32 %v1641, 0.0
      %v1643 = vmul.f32 %v689, %v1032
      %v1644 = vmul.f32 %v690, %v1032
      %v1647 = vrot.slane %v1643, 1
      %v1648 = vrot.slane %v1644, 1
      %v1649 = vsel %vm1055, %v1647, %v1648
      %v1651 = vadd.f32 %v1642, %v1649
      %v1652 = vmul.f32 %v689, %v1038
      %v1653 = vmul.f32 %v690, %v1038
      %v1656 = vrot.slane %v1652, 2
      %v1657 = vrot.slane %v1653, 2
      %v1658 = vsel %vm1069, %v1656, %v1657
      %v1660 = vadd.f32 %v1651, %v1658
      %v1661 = vmul.f32 %v772, %v1044
      %v1662 = vadd.f32 %v1660, %v1661
      %v1663 = vmul.f32 %v772, %v1050
      %v1664 = vmul.f32 %v773, %v1050
      %v1667 = vrot.slane %v1663, 1
      %v1668 = vrot.slane %v1664, 1
      %v1669 = vsel %vm1055, %v1667, %v1668
      %v1671 = vadd.f32 %v1662, %v1669
      %v1672 = vmul.f32 %v772, %v1064
      %v1673 = vmul.f32 %v773, %v1064
      %v1676 = vrot.slane %v1672, 2
      %v1677 = vrot.slane %v1673, 2
      %v1678 = vsel %vm1069, %v1676, %v1677
      %v1680 = vadd.f32 %v1671, %v1678
      %v1681 = vmul.f32 %v855, %v1078
      %v1682 = vadd.f32 %v1680, %v1681
      %v1683 = vmul.f32 %v855, %v1084
      %v1684 = vmul.f32 %v856, %v1084
      %v1687 = vrot.slane %v1683, 1
      %v1688 = vrot.slane %v1684, 1
      %v1689 = vsel %vm1055, %v1687, %v1688
      %v1691 = vadd.f32 %v1682, %v1689
      %v1692 = vmul.f32 %v855, %v1097
      %v1693 = vmul.f32 %v856, %v1097
      %v1696 = vrot.slane %v1692, 2
      %v1697 = vrot.slane %v1693, 2
      %v1698 = vsel %vm1069, %v1696, %v1697
      %v1700 = vadd.f32 %v1691, %v1698
      %v1701 = vadd.f32 %v1700, %v1111
      %v1702 = vmax.f32 %v1701, 0.0
      %v1704 = vsel %vm1115, %v1702, 0
      %1706 = vmatprep.subr.mxu0 0.0
      %1707 = vmatpush1.msra.mxu0 0.0
      %1708 = vmatprep.subr.mxu0 0.0
      %1709 = vmatpush1.msra.mxu0 0.0
      %1710 = vmatprep.subr.mxu0 0.0
      %1711 = vmatpush1.msra.mxu0 0.0
      %1712 = vmatprep.subr.mxu0 0.0
      %1713 = vmatpush1.msra.mxu0 0.0
      %1714 = vmatprep.subr.mxu0 0.0
      %1715 = vmatpush1.msra.mxu0 0.0
      %1716 = vmatprep.subr.mxu0 0.0
      %1717 = vmatpush1.msra.mxu0 0.0
      %1718 = vmatprep.subr.mxu0 0.0
      %1719 = vmatpush1.msra.mxu0 0.0
      %1720 = vmatprep.subr.mxu0 0.0
      %1721 = vmatpush1.msra.mxu0 0.0
      %1722 = vmatprep.subr.mxu0 0.0
      %1723 = vmatpush1.msra.mxu0 %v340
      %1724 = vmatprep.subr.mxu0 0.0
      %1725 = vmatpush1.msra.mxu0 %v339
      %1726 = vmatprep.subr.mxu0 0.0
      %1727 = vmatpush1.msra.mxu0 %v338
      %1728 = vmatprep.subr.mxu0 0.0
      %1729 = vmatpush1.msra.mxu0 %v337
      %1730 = vmatprep.subr.mxu0 0.0
      %1731 = vmatpush1.msra.mxu0 %v336
      %1732 = vmatprep.subr.mxu0 0.0
      %1733 = vmatpush1.msra.mxu0 %v335
      %1734 = vmatprep.subr.mxu0 0.0
      %1735 = vmatpush1.msra.mxu0 %v334
      %1736 = vmatprep.subr.mxu0 0.0
      %1737 = vmatpush1.msra.mxu0 %v333
      %1738 = vmatprep.subr.mxu0 0.0
      %1739 = vmatpush2.msra.mxu0 0.0
      %1740 = vmatprep.subr.mxu0 0.0
      %1741 = vmatpush2.msra.mxu0 0.0
      %1742 = vmatprep.subr.mxu0 0.0
      %1743 = vmatpush2.msra.mxu0 0.0
      %1744 = vmatprep.subr.mxu0 0.0
      %1745 = vmatpush2.msra.mxu0 0.0
      %1746 = vmatprep.subr.mxu0 0.0
      %1747 = vmatpush2.msra.mxu0 0.0
      %1748 = vmatprep.subr.mxu0 0.0
      %1749 = vmatpush2.msra.mxu0 0.0
      %1750 = vmatprep.subr.mxu0 0.0
      %1751 = vmatpush2.msra.mxu0 0.0
      %1752 = vmatprep.subr.mxu0 0.0
      %1753 = vmatpush2.msra.mxu0 0.0
      %1754 = vmatprep.subr.mxu0 0.0
      %1755 = vmatpush2.msra.mxu0 0.0
      %1756 = vmatprep.subr.mxu0 0.0
      %1757 = vmatpush2.msra.mxu0 0.0
      %1758 = vmatprep.subr.mxu0 0.0
      %1759 = vmatpush2.msra.mxu0 0.0
      %1760 = vmatprep.subr.mxu0 0.0
      %1761 = vmatpush2.msra.mxu0 0.0
      %1762 = vmatprep.subr.mxu0 0.0
      %1763 = vmatpush2.msra.mxu0 0.0
      %1764 = vmatprep.subr.mxu0 0.0
      %1765 = vmatpush2.msra.mxu0 0.0
      %1766 = vmatprep.subr.mxu0 0.0
      %1767 = vmatpush2.msra.mxu0 0.0
      %1768 = vmatprep.subr.mxu0 0.0
      %1769 = vmatpush2.msra.mxu0 0.0
      %1770 = vmatprep.mubr.f32.mxu0 0.0
      %1771 = vmatmul.mubr.f32.gmra.mxu0 %v1704
      %v1772 = vpop.f32.mrf.mxu0
      %v1773 = vadd.f32 0.0, %v1772
      %v1774 = vpop.f32.mrf.mxu0
      %1775 = vdwg.mxu0
      %v1777 = vrot.slane %v1773, 7
      %v1779 = vadd.f32 %v314, %v1777
      %v1780 = vadd.f32 %v315, %v1777
      %v1781 = vadd.f32 %v1779, %v1198
      %v1782 = vadd.f32 %v1780, %v1198
      %s1783 = scalar_lea.vmem %s305, 32
      %1784 = vst.msk [vmem:[%s1783 - $0x1] sm:$0xfe] %vm1202, %v1781
      %1785 = vst.msk [vmem:[%s1783 + $0x7] sm:$0x1] %vm1204, %v1782
      %v1786 = vmul.f32 %v772, %v1026
      %v1787 = vadd.f32 %v1786, 0.0
      %v1788 = vmul.f32 %v772, %v1032
      %v1789 = vmul.f32 %v773, %v1032
      %v1792 = vrot.slane %v1788, 1
      %v1793 = vrot.slane %v1789, 1
      %v1794 = vsel %vm1055, %v1792, %v1793
      %v1796 = vadd.f32 %v1787, %v1794
      %v1797 = vmul.f32 %v772, %v1038
      %v1798 = vmul.f32 %v773, %v1038
      %v1801 = vrot.slane %v1797, 2
      %v1802 = vrot.slane %v1798, 2
      %v1803 = vsel %vm1069, %v1801, %v1802
      %v1805 = vadd.f32 %v1796, %v1803
      %v1806 = vmul.f32 %v855, %v1044
      %v1807 = vadd.f32 %v1805, %v1806
      %v1808 = vmul.f32 %v855, %v1050
      %v1809 = vmul.f32 %v856, %v1050
      %v1812 = vrot.slane %v1808, 1
      %v1813 = vrot.slane %v1809, 1
      %v1814 = vsel %vm1055, %v1812, %v1813
      %v1816 = vadd.f32 %v1807, %v1814
      %v1817 = vmul.f32 %v855, %v1064
      %v1818 = vmul.f32 %v856, %v1064
      %v1821 = vrot.slane %v1817, 2
      %v1822 = vrot.slane %v1818, 2
      %v1823 = vsel %vm1069, %v1821, %v1822
      %v1825 = vadd.f32 %v1816, %v1823
      %v1826 = vmul.f32 %v938, %v1078
      %v1827 = vadd.f32 %v1825, %v1826
      %v1828 = vmul.f32 %v938, %v1084
      %v1829 = vmul.f32 %v939, %v1084
      %v1832 = vrot.slane %v1828, 1
      %v1833 = vrot.slane %v1829, 1
      %v1834 = vsel %vm1055, %v1832, %v1833
      %v1836 = vadd.f32 %v1827, %v1834
      %v1837 = vmul.f32 %v938, %v1097
      %v1838 = vmul.f32 %v939, %v1097
      %v1841 = vrot.slane %v1837, 2
      %v1842 = vrot.slane %v1838, 2
      %v1843 = vsel %vm1069, %v1841, %v1842
      %v1845 = vadd.f32 %v1836, %v1843
      %v1846 = vadd.f32 %v1845, %v1111
      %v1847 = vmax.f32 %v1846, 0.0
      %v1849 = vsel %vm1115, %v1847, 0
      %1851 = vmatprep.subr.mxu0 0.0
      %1852 = vmatpush1.msra.mxu0 0.0
      %1853 = vmatprep.subr.mxu0 0.0
      %1854 = vmatpush1.msra.mxu0 0.0
      %1855 = vmatprep.subr.mxu0 0.0
      %1856 = vmatpush1.msra.mxu0 0.0
      %1857 = vmatprep.subr.mxu0 0.0
      %1858 = vmatpush1.msra.mxu0 0.0
      %1859 = vmatprep.subr.mxu0 0.0
      %1860 = vmatpush1.msra.mxu0 0.0
      %1861 = vmatprep.subr.mxu0 0.0
      %1862 = vmatpush1.msra.mxu0 0.0
      %1863 = vmatprep.subr.mxu0 0.0
      %1864 = vmatpush1.msra.mxu0 0.0
      %1865 = vmatprep.subr.mxu0 0.0
      %1866 = vmatpush1.msra.mxu0 0.0
      %1867 = vmatprep.subr.mxu0 0.0
      %1868 = vmatpush1.msra.mxu0 %v340
      %1869 = vmatprep.subr.mxu0 0.0
      %1870 = vmatpush1.msra.mxu0 %v339
      %1871 = vmatprep.subr.mxu0 0.0
      %1872 = vmatpush1.msra.mxu0 %v338
      %1873 = vmatprep.subr.mxu0 0.0
      %1874 = vmatpush1.msra.mxu0 %v337
      %1875 = vmatprep.subr.mxu0 0.0
      %1876 = vmatpush1.msra.mxu0 %v336
      %1877 = vmatprep.subr.mxu0 0.0
      %1878 = vmatpush1.msra.mxu0 %v335
      %1879 = vmatprep.subr.mxu0 0.0
      %1880 = vmatpush1.msra.mxu0 %v334
      %1881 = vmatprep.subr.mxu0 0.0
      %1882 = vmatpush1.msra.mxu0 %v333
      %1883 = vmatprep.subr.mxu0 0.0
      %1884 = vmatpush2.msra.mxu0 0.0
      %1885 = vmatprep.subr.mxu0 0.0
      %1886 = vmatpush2.msra.mxu0 0.0
      %1887 = vmatprep.subr.mxu0 0.0
      %1888 = vmatpush2.msra.mxu0 0.0
      %1889 = vmatprep.subr.mxu0 0.0
      %1890 = vmatpush2.msra.mxu0 0.0
      %1891 = vmatprep.subr.mxu0 0.0
      %1892 = vmatpush2.msra.mxu0 0.0
      %1893 = vmatprep.subr.mxu0 0.0
      %1894 = vmatpush2.msra.mxu0 0.0
      %1895 = vmatprep.subr.mxu0 0.0
      %1896 = vmatpush2.msra.mxu0 0.0
      %1897 = vmatprep.subr.mxu0 0.0
      %1898 = vmatpush2.msra.mxu0 0.0
      %1899 = vmatprep.subr.mxu0 0.0
      %1900 = vmatpush2.msra.mxu0 0.0
      %1901 = vmatprep.subr.mxu0 0.0
      %1902 = vmatpush2.msra.mxu0 0.0
      %1903 = vmatprep.subr.mxu0 0.0
      %1904 = vmatpush2.msra.mxu0 0.0
      %1905 = vmatprep.subr.mxu0 0.0
      %1906 = vmatpush2.msra.mxu0 0.0
      %1907 = vmatprep.subr.mxu0 0.0
      %1908 = vmatpush2.msra.mxu0 0.0
      %1909 = vmatprep.subr.mxu0 0.0
      %1910 = vmatpush2.msra.mxu0 0.0
      %1911 = vmatprep.subr.mxu0 0.0
      %1912 = vmatpush2.msra.mxu0 0.0
      %1913 = vmatprep.subr.mxu0 0.0
      %1914 = vmatpush2.msra.mxu0 0.0
      %1915 = vmatprep.mubr.f32.mxu0 0.0
      %1916 = vmatmul.mubr.f32.gmra.mxu0 %v1849
      %v1917 = vpop.f32.mrf.mxu0
      %v1918 = vadd.f32 0.0, %v1917
      %v1919 = vpop.f32.mrf.mxu0
      %1920 = vdwg.mxu0
      %v1922 = vrot.slane %v1918, 7
      %v1924 = vadd.f32 %v316, %v1922
      %v1925 = vadd.f32 %v317, %v1922
      %v1926 = vadd.f32 %v1924, %v1198
      %v1927 = vadd.f32 %v1925, %v1198
      %s1928 = scalar_lea.vmem %s305, 40
      %1929 = vst.msk [vmem:[%s1928 - $0x1] sm:$0xfe] %vm1202, %v1926
      %1930 = vst.msk [vmem:[%s1928 + $0x7] sm:$0x1] %vm1204, %v1927
      %v1931 = vmul.f32 %v855, %v1026
      %v1932 = vadd.f32 %v1931, 0.0
      %v1933 = vmul.f32 %v855, %v1032
      %v1934 = vmul.f32 %v856, %v1032
      %v1937 = vrot.slane %v1933, 1
      %v1938 = vrot.slane %v1934, 1
      %v1939 = vsel %vm1055, %v1937, %v1938
      %v1941 = vadd.f32 %v1932, %v1939
      %v1942 = vmul.f32 %v855, %v1038
      %v1943 = vmul.f32 %v856, %v1038
      %v1946 = vrot.slane %v1942, 2
      %v1947 = vrot.slane %v1943, 2
      %v1948 = vsel %vm1069, %v1946, %v1947
      %v1950 = vadd.f32 %v1941, %v1948
      %v1951 = vmul.f32 %v938, %v1044
      %v1952 = vadd.f32 %v1950, %v1951
      %v1953 = vmul.f32 %v938, %v1050
      %v1954 = vmul.f32 %v939, %v1050
      %v1957 = vrot.slane %v1953, 1
      %v1958 = vrot.slane %v1954, 1
      %v1959 = vsel %vm1055, %v1957, %v1958
      %v1961 = vadd.f32 %v1952, %v1959
      %v1962 = vmul.f32 %v938, %v1064
      %v1963 = vmul.f32 %v939, %v1064
      %v1966 = vrot.slane %v1962, 2
      %v1967 = vrot.slane %v1963, 2
      %v1968 = vsel %vm1069, %v1966, %v1967
      %v1970 = vadd.f32 %v1961, %v1968
      %v1971 = vmul.f32 %v1021, %v1078
      %v1972 = vadd.f32 %v1970, %v1971
      %v1973 = vmul.f32 %v1021, %v1084
      %v1974 = vmul.f32 %v1022, %v1084
      %v1977 = vrot.slane %v1973, 1
      %v1978 = vrot.slane %v1974, 1
      %v1979 = vsel %vm1055, %v1977, %v1978
      %v1981 = vadd.f32 %v1972, %v1979
      %v1982 = vmul.f32 %v1021, %v1097
      %v1983 = vmul.f32 %v1022, %v1097
      %v1986 = vrot.slane %v1982, 2
      %v1987 = vrot.slane %v1983, 2
      %v1988 = vsel %vm1069, %v1986, %v1987
      %v1990 = vadd.f32 %v1981, %v1988
      %v1991 = vadd.f32 %v1990, %v1111
      %v1992 = vmax.f32 %v1991, 0.0
      %v1994 = vsel %vm1115, %v1992, 0
      %1996 = vmatprep.subr.mxu0 0.0
      %1997 = vmatpush1.msra.mxu0 0.0
      %1998 = vmatprep.subr.mxu0 0.0
      %1999 = vmatpush1.msra.mxu0 0.0
      %2000 = vmatprep.subr.mxu0 0.0
      %2001 = vmatpush1.msra.mxu0 0.0
      %2002 = vmatprep.subr.mxu0 0.0
      %2003 = vmatpush1.msra.mxu0 0.0
      %2004 = vmatprep.subr.mxu0 0.0
      %2005 = vmatpush1.msra.mxu0 0.0
      %2006 = vmatprep.subr.mxu0 0.0
      %2007 = vmatpush1.msra.mxu0 0.0
      %2008 = vmatprep.subr.mxu0 0.0
      %2009 = vmatpush1.msra.mxu0 0.0
      %2010 = vmatprep.subr.mxu0 0.0
      %2011 = vmatpush1.msra.mxu0 0.0
      %2012 = vmatprep.subr.mxu0 0.0
      %2013 = vmatpush1.msra.mxu0 %v340
      %2014 = vmatprep.subr.mxu0 0.0
      %2015 = vmatpush1.msra.mxu0 %v339
      %2016 = vmatprep.subr.mxu0 0.0
      %2017 = vmatpush1.msra.mxu0 %v338
      %2018 = vmatprep.subr.mxu0 0.0
      %2019 = vmatpush1.msra.mxu0 %v337
      %2020 = vmatprep.subr.mxu0 0.0
      %2021 = vmatpush1.msra.mxu0 %v336
      %2022 = vmatprep.subr.mxu0 0.0
      %2023 = vmatpush1.msra.mxu0 %v335
      %2024 = vmatprep.subr.mxu0 0.0
      %2025 = vmatpush1.msra.mxu0 %v334
      %2026 = vmatprep.subr.mxu0 0.0
      %2027 = vmatpush1.msra.mxu0 %v333
      %2028 = vmatprep.subr.mxu0 0.0
      %2029 = vmatpush2.msra.mxu0 0.0
      %2030 = vmatprep.subr.mxu0 0.0
      %2031 = vmatpush2.msra.mxu0 0.0
      %2032 = vmatprep.subr.mxu0 0.0
      %2033 = vmatpush2.msra.mxu0 0.0
      %2034 = vmatprep.subr.mxu0 0.0
      %2035 = vmatpush2.msra.mxu0 0.0
      %2036 = vmatprep.subr.mxu0 0.0
      %2037 = vmatpush2.msra.mxu0 0.0
      %2038 = vmatprep.subr.mxu0 0.0
      %2039 = vmatpush2.msra.mxu0 0.0
      %2040 = vmatprep.subr.mxu0 0.0
      %2041 = vmatpush2.msra.mxu0 0.0
      %2042 = vmatprep.subr.mxu0 0.0
      %2043 = vmatpush2.msra.mxu0 0.0
      %2044 = vmatprep.subr.mxu0 0.0
      %2045 = vmatpush2.msra.mxu0 0.0
      %2046 = vmatprep.subr.mxu0 0.0
      %2047 = vmatpush2.msra.mxu0 0.0
      %2048 = vmatprep.subr.mxu0 0.0
      %2049 = vmatpush2.msra.mxu0 0.0
      %2050 = vmatprep.subr.mxu0 0.0
      %2051 = vmatpush2.msra.mxu0 0.0
      %2052 = vmatprep.subr.mxu0 0.0
      %2053 = vmatpush2.msra.mxu0 0.0
      %2054 = vmatprep.subr.mxu0 0.0
      %2055 = vmatpush2.msra.mxu0 0.0
      %2056 = vmatprep.subr.mxu0 0.0
      %2057 = vmatpush2.msra.mxu0 0.0
      %2058 = vmatprep.subr.mxu0 0.0
      %2059 = vmatpush2.msra.mxu0 0.0
      %2060 = vmatprep.mubr.f32.mxu0 0.0
      %2061 = vmatmul.mubr.f32.gmra.mxu0 %v1994
      %v2062 = vpop.f32.mrf.mxu0
      %v2063 = vadd.f32 0.0, %v2062
      %v2064 = vpop.f32.mrf.mxu0
      %2065 = vdwg.mxu0
      %v2067 = vrot.slane %v2063, 7
      %v2069 = vadd.f32 %v318, %v2067
      %v2070 = vadd.f32 %v319, %v2067
      %v2071 = vadd.f32 %v2069, %v1198
      %v2072 = vadd.f32 %v2070, %v1198
      %s2073 = scalar_lea.vmem %s305, 48
      %2074 = vst.msk [vmem:[%s2073 - $0x1] sm:$0xfe] %vm1202, %v2071
      %2075 = vst.msk [vmem:[%s2073 + $0x7] sm:$0x1] %vm1204, %v2072
      %v2076 = vmul.f32 %v938, %v1026
      %v2077 = vadd.f32 %v2076, 0.0
      %v2078 = vmul.f32 %v938, %v1032
      %v2079 = vmul.f32 %v939, %v1032
      %v2082 = vrot.slane %v2078, 1
      %v2083 = vrot.slane %v2079, 1
      %v2084 = vsel %vm1055, %v2082, %v2083
      %v2086 = vadd.f32 %v2077, %v2084
      %v2087 = vmul.f32 %v938, %v1038
      %v2088 = vmul.f32 %v939, %v1038
      %v2091 = vrot.slane %v2087, 2
      %v2092 = vrot.slane %v2088, 2
      %v2093 = vsel %vm1069, %v2091, %v2092
      %v2095 = vadd.f32 %v2086, %v2093
      %v2096 = vmul.f32 %v1021, %v1044
      %v2097 = vadd.f32 %v2095, %v2096
      %v2098 = vmul.f32 %v1021, %v1050
      %v2099 = vmul.f32 %v1022, %v1050
      %v2102 = vrot.slane %v2098, 1
      %v2103 = vrot.slane %v2099, 1
      %v2104 = vsel %vm1055, %v2102, %v2103
      %v2106 = vadd.f32 %v2097, %v2104
      %v2107 = vmul.f32 %v1021, %v1064
      %v2108 = vmul.f32 %v1022, %v1064
      %v2111 = vrot.slane %v2107, 2
      %v2112 = vrot.slane %v2108, 2
      %v2113 = vsel %vm1069, %v2111, %v2112
      %v2115 = vadd.f32 %v2106, %v2113
      %v2116 = vmul.f32 %v1078, 0.0
      %v2117 = vadd.f32 %v2115, %v2116
      %v2118 = vmul.f32 %v1084, 0.0
      %v2119 = vadd.f32 %v2117, %v2118
      %v2120 = vmul.f32 %v1097, 0.0
      %v2121 = vadd.f32 %v2119, %v2120
      %v2122 = vadd.f32 %v2121, %v1111
      %v2123 = vmax.f32 %v2122, 0.0
      %v2125 = vsel %vm1115, %v2123, 0
      %2127 = vmatprep.subr.mxu0 0.0
      %2128 = vmatpush1.msra.mxu0 0.0
      %2129 = vmatprep.subr.mxu0 0.0
      %2130 = vmatpush1.msra.mxu0 0.0
      %2131 = vmatprep.subr.mxu0 0.0
      %2132 = vmatpush1.msra.mxu0 0.0
      %2133 = vmatprep.subr.mxu0 0.0
      %2134 = vmatpush1.msra.mxu0 0.0
      %2135 = vmatprep.subr.mxu0 0.0
      %2136 = vmatpush1.msra.mxu0 0.0
      %2137 = vmatprep.subr.mxu0 0.0
      %2138 = vmatpush1.msra.mxu0 0.0
      %2139 = vmatprep.subr.mxu0 0.0
      %2140 = vmatpush1.msra.mxu0 0.0
      %2141 = vmatprep.subr.mxu0 0.0
      %2142 = vmatpush1.msra.mxu0 0.0
      %2143 = vmatprep.subr.mxu0 0.0
      %2144 = vmatpush1.msra.mxu0 %v340
      %2145 = vmatprep.subr.mxu0 0.0
      %2146 = vmatpush1.msra.mxu0 %v339
      %2147 = vmatprep.subr.mxu0 0.0
      %2148 = vmatpush1.msra.mxu0 %v338
      %2149 = vmatprep.subr.mxu0 0.0
      %2150 = vmatpush1.msra.mxu0 %v337
      %2151 = vmatprep.subr.mxu0 0.0
      %2152 = vmatpush1.msra.mxu0 %v336
      %2153 = vmatprep.subr.mxu0 0.0
      %2154 = vmatpush1.msra.mxu0 %v335
      %2155 = vmatprep.subr.mxu0 0.0
      %2156 = vmatpush1.msra.mxu0 %v334
      %2157 = vmatprep.subr.mxu0 0.0
      %2158 = vmatpush1.msra.mxu0 %v333
      %2159 = vmatprep.subr.mxu0 0.0
      %2160 = vmatpush2.msra.mxu0 0.0
      %2161 = vmatprep.subr.mxu0 0.0
      %2162 = vmatpush2.msra.mxu0 0.0
      %2163 = vmatprep.subr.mxu0 0.0
      %2164 = vmatpush2.msra.mxu0 0.0
      %2165 = vmatprep.subr.mxu0 0.0
      %2166 = vmatpush2.msra.mxu0 0.0
      %2167 = vmatprep.subr.mxu0 0.0
      %2168 = vmatpush2.msra.mxu0 0.0
      %2169 = vmatprep.subr.mxu0 0.0
      %2170 = vmatpush2.msra.mxu0 0.0
      %2171 = vmatprep.subr.mxu0 0.0
      %2172 = vmatpush2.msra.mxu0 0.0
      %2173 = vmatprep.subr.mxu0 0.0
      %2174 = vmatpush2.msra.mxu0 0.0
      %2175 = vmatprep.subr.mxu0 0.0
      %2176 = vmatpush2.msra.mxu0 0.0
      %2177 = vmatprep.subr.mxu0 0.0
      %2178 = vmatpush2.msra.mxu0 0.0
      %2179 = vmatprep.subr.mxu0 0.0
      %2180 = vmatpush2.msra.mxu0 0.0
      %2181 = vmatprep.subr.mxu0 0.0
      %2182 = vmatpush2.msra.mxu0 0.0
      %2183 = vmatprep.subr.mxu0 0.0
      %2184 = vmatpush2.msra.mxu0 0.0
      %2185 = vmatprep.subr.mxu0 0.0
      %2186 = vmatpush2.msra.mxu0 0.0
      %2187 = vmatprep.subr.mxu0 0.0
      %2188 = vmatpush2.msra.mxu0 0.0
      %2189 = vmatprep.subr.mxu0 0.0
      %2190 = vmatpush2.msra.mxu0 0.0
      %2191 = vmatprep.mubr.f32.mxu0 0.0
      %2192 = vmatmul.mubr.f32.gmra.mxu0 %v2125
      %v2193 = vpop.f32.mrf.mxu0
      %v2194 = vadd.f32 0.0, %v2193
      %v2195 = vpop.f32.mrf.mxu0
      %2196 = vdwg.mxu0
      %v2198 = vrot.slane %v2194, 7
      %v2200 = vadd.f32 %v320, %v2198
      %v2201 = vadd.f32 %v321, %v2198
      %v2202 = vadd.f32 %v2200, %v1198
      %v2203 = vadd.f32 %v2201, %v1198
      %s2204 = scalar_lea.vmem %s305, 56
      %2205 = vst.msk [vmem:[%s2204 - $0x1] sm:$0xfe] %vm1202, %v2202
      %2206 = vst.msk [vmem:[%s2204 + $0x7] sm:$0x1] %vm1204, %v2203
      %p2207 = scmp.lt.s32.totalorder %s19, 1
      %s2208 = scalar_select %p2207, %s19, 1
      %s2209 = smul.addr %s2208, 8
      %s2210 = smul.addr %s2209, 8
      %s2211 = scalar_lea.vmem %s8, %s2210
      // Predicated region
      $region53: #{semantics_extractor_forward.5} parent=51 // pred_check
        %p2212 = pneg %p210
      $region54: #{semantics_extractor_forward.5} parent=51 // pred_check_branch
        %2214 = sbr.rel (%p2212) target = $region56
      $region55: #{semantics_extractor_forward.5} parent=51 // pred_region
        _
      $region56: #{semantics_extractor_forward.5} parent=51 // pred_fallthru
        _
    $region52: #{semantics_extractor_forward.5} parent=5 // pred_fallthru
      _
    %p2215 = scmp.le.s32.totalorder 2, %s14
    // Predicated region
    $region57: #{semantics_extractor_forward.5} parent=5 // pred_check
      %p2216 = pneg %p2215
    $region58: #{semantics_extractor_forward.5} parent=5 // pred_check_branch
      %2218 = sbr.rel (%p2216) target = $region60
    $region59: #{semantics_extractor_forward.5} parent=5 // pred_region
      %s2219 = ssub.s32 %s14, 2
      // Predicated region
      $region61: #{semantics_extractor_forward.5} parent=59 // pred_check
        %p2220 = pneg %p216
      $region62: #{semantics_extractor_forward.5} parent=59 // pred_check_branch
        %2222 = sbr.rel (%p2220) target = $region64
      $region63: #{semantics_extractor_forward.5} parent=59 // pred_region
        %p2223 = scmp.lt.s32.totalorder %s20, 1
        %s2224 = scalar_select %p2223, %s20, 1
        %s2225 = smul.addr %s2224, 8
        %s2226 = smul.addr %s2225, 8
        %s2227 = scalar_lea.vmem %s8, %s2226
      $region64: #{semantics_extractor_forward.5} parent=59 // pred_fallthru
        _
    $region60: #{semantics_extractor_forward.5} parent=5 // pred_fallthru
      _
  $region6: #{semantics_extractor_forward.5} parent=0 // loop_footer
    %s18 = sadd.s32 1, %s14
  $region7: #{semantics_extractor_forward.5} parent=0 // loop_footer_branch
    %13 = sbr.rel target = $region3
  $region8: #{semantics_extractor_forward.5} parent=0 // loop_exit
    _

// kernel: semantics_extractor_forward.7
$region0: #{semantics_extractor_forward.7}
  #allocation0 [shape = 'u32[]', space=smem, size = 0x4, offset = 0x4, fixed_abs, tag = 'smem constant byte address 0x4 - core index']
  #allocation1 [shape = 'u32[144,128]{1,0:T(1,128)}', space=vmem, size = 0x12000, scoped, tag = 'internal scratch']
  %s0 = inlined_call_operand.vmem [shape: f32[2,10,10,32], index: 0, kind: input, shape index: {}]
  %s1 = inlined_call_operand.vmem [shape: f32[10,1], index: 1, kind: input, shape index: {}]
  %s2 = inlined_call_operand.vmem [shape: f32[32,64], index: 2, kind: input, shape index: {}]
  %s3 = inlined_call_operand.vmem [shape: f32[1,64], index: 3, kind: input, shape index: {}]
  %s4 = inlined_call_operand.vmem [shape: f32[3,3,64], index: 4, kind: input, shape index: {}]
  %s5 = inlined_call_operand.vmem [shape: f32[1,64], index: 5, kind: input, shape index: {}]
  %s6 = inlined_call_operand.vmem [shape: f32[64,32], index: 6, kind: input, shape index: {}]
  %s7 = inlined_call_operand.vmem [shape: f32[1,32], index: 7, kind: input, shape index: {}]
  %s8 = inlined_call_operand.hbm [shape: f32[2,8,8,32], index: 8, kind: output, shape index: {}]
  %s9 = sld [smem:[#allocation0]]
  $region65: #{semantics_extractor_forward.7} parent=0
    _
  %s11 = ssub.s32 1, %s9
  %s12 = scalar_select 0, %s11, %s9
  $region1: #{semantics_extractor_forward.7} parent=0
    #allocation2 [shape = 'u8[65536]{0}', space=vmem, size = 0x10000, scoped, tag = 'output window, operand 0']
    #allocation3 [shape = 's32[2]{0}', space=sflag, size = 0x8, scoped, tag = 'scoped memory for semantics_extractor_forward.7']
    %13 = vsyncpa [#allocation3], 0
    %s14 = scalar_lea.sflag [#allocation3], 1
    %15 = vsyncpa %s14, 0
    loop: start=0, step=1, limit=4
    $region2: #{semantics_extractor_forward.7} parent=1 // loop_pre_header
      _
    $region3: #{semantics_extractor_forward.7} parent=1 // loop_header
      %s17 = sphi 0, %s21
      %p18 = scmp.ge.s32.totalorder %s17, 4
      %s27 = sphi 0, %s29
      %s30 = sphi 0, %s27
      %s31 = sphi 0, %s30
      %s47 = sphi 0, %s31
      %s51 = sphi 0, %s51
      %s53 = sphi 0, %s51
      %s54 = sphi 0, %s53
      %s68 = sphi 0, %s54
      %s72 = sphi 0, %s72
      %s74 = sphi 0, %s72
      %s75 = sphi 0, %s74
      %s89 = sphi 0, %s75
      %s93 = sphi 0, %s93
      %s95 = sphi 0, %s93
      %s96 = sphi 0, %s95
      %s110 = sphi 0, %s96
      %s114 = sphi 0, %s114
      %s116 = sphi 0, %s114
      %s117 = sphi 0, %s116
      %s131 = sphi 0, %s117
      %s135 = sphi 0, %s135
      %s137 = sphi 0, %s135
      %s138 = sphi 0, %s137
      %s152 = sphi 0, %s138
      %s156 = sphi 0, %s156
      %s158 = sphi 0, %s156
      %s159 = sphi 0, %s158
      %s173 = sphi 0, %s159
      %s177 = sphi 0, %s177
      %s179 = sphi 0, %s177
      %s180 = sphi 0, %s179
      %s194 = sphi 0, %s180
      %s200 = sphi 0, %s202
      %s203 = sphi 0, %s200
      %s204 = sphi 0, %s203
      %s220 = sphi 0, %s204
    $region4: #{semantics_extractor_forward.7} parent=1 // loop_header_branch
      %20 = sbr.rel (%p18) target = $region8
    $region5: #{semantics_extractor_forward.7} parent=1 // loop_body
      %s22 = ssub.s32 %s17, 1
      %s23 = ssub.s32 %s17, 2
      %s24 = sadd.s32 %s17, 1
      %s25 = ssub.s32 %s17, %s24
      %p26 = scmp.eq.s32.totalorder %s25, 0
      %s28 = sadd.s32 %s27, 1
      %s29 = scalar_select %p26, %s27, %s28
      %p32 = pneg %p26
      %p33 = scmp.eq.s32.totalorder %s17, 1
      %p34 = por %p32, %p33
      %p35 = scmp.ne.s32.totalorder %s27, %s30
      %p36 = scmp.eq.s32.totalorder %s17, 0
      %p37 = por %p35, %p36
      %p38 = scmp.ne.s32.totalorder %s27, %s30
      %p39 = scmp.eq.s32.totalorder %s22, 1
      %p40 = por %p38, %p39
      %p41 = scmp.ne.s32.totalorder %s30, %s31
      %p42 = scmp.eq.s32.totalorder %s22, 0
      %p43 = por %p41, %p42
      %p44 = scmp.ne.s32.totalorder %s30, %s31
      %p45 = scmp.eq.s32.totalorder %s23, 1
      %p46 = por %p44, %p45
      %p48 = scmp.ne.s32.totalorder %s31, %s47
      %p49 = scmp.eq.s32.totalorder %s23, 0
      %p50 = por %p48, %p49
      %s52 = sadd.s32 %s51, 1
      %p55 = scmp.eq.s32.totalorder %s17, 1
      %p56 = scmp.ne.s32.totalorder %s51, %s53
      %p57 = scmp.eq.s32.totalorder %s17, 0
      %p58 = por %p56, %p57
      %p59 = scmp.ne.s32.totalorder %s51, %s53
      %p60 = scmp.eq.s32.totalorder %s22, 1
      %p61 = por %p59, %p60
      %p62 = scmp.ne.s32.totalorder %s53, %s54
      %p63 = scmp.eq.s32.totalorder %s22, 0
      %p64 = por %p62, %p63
      %p65 = scmp.ne.s32.totalorder %s53, %s54
      %p66 = scmp.eq.s32.totalorder %s23, 1
      %p67 = por %p65, %p66
      %p69 = scmp.ne.s32.totalorder %s54, %s68
      %p70 = scmp.eq.s32.totalorder %s23, 0
      %p71 = por %p69, %p70
      %s73 = sadd.s32 %s72, 1
      %p76 = scmp.eq.s32.totalorder %s17, 1
      %p77 = scmp.ne.s32.totalorder %s72, %s74
      %p78 = scmp.eq.s32.totalorder %s17, 0
      %p79 = por %p77, %p78
      %p80 = scmp.ne.s32.totalorder %s72, %s74
      %p81 = scmp.eq.s32.totalorder %s22, 1
      %p82 = por %p80, %p81
      %p83 = scmp.ne.s32.totalorder %s74, %s75
      %p84 = scmp.eq.s32.totalorder %s22, 0
      %p85 = por %p83, %p84
      %p86 = scmp.ne.s32.totalorder %s74, %s75
      %p87 = scmp.eq.s32.totalorder %s23, 1
      %p88 = por %p86, %p87
      %p90 = scmp.ne.s32.totalorder %s75, %s89
      %p91 = scmp.eq.s32.totalorder %s23, 0
      %p92 = por %p90, %p91
      %s94 = sadd.s32 %s93, 1
      %p97 = scmp.eq.s32.totalorder %s17, 1
      %p98 = scmp.ne.s32.totalorder %s93, %s95
      %p99 = scmp.eq.s32.totalorder %s17, 0
      %p100 = por %p98, %p99
      %p101 = scmp.ne.s32.totalorder %s93, %s95
      %p102 = scmp.eq.s32.totalorder %s22, 1
      %p103 = por %p101, %p102
      %p104 = scmp.ne.s32.totalorder %s95, %s96
      %p105 = scmp.eq.s32.totalorder %s22, 0
      %p106 = por %p104, %p105
      %p107 = scmp.ne.s32.totalorder %s95, %s96
      %p108 = scmp.eq.s32.totalorder %s23, 1
      %p109 = por %p107, %p108
      %p111 = scmp.ne.s32.totalorder %s96, %s110
      %p112 = scmp.eq.s32.totalorder %s23, 0
      %p113 = por %p111, %p112
      %s115 = sadd.s32 %s114, 1
      %p118 = scmp.eq.s32.totalorder %s17, 1
      %p119 = scmp.ne.s32.totalorder %s114, %s116
      %p120 = scmp.eq.s32.totalorder %s17, 0
      %p121 = por %p119, %p120
      %p122 = scmp.ne.s32.totalorder %s114, %s116
      %p123 = scmp.eq.s32.totalorder %s22, 1
      %p124 = por %p122, %p123
      %p125 = scmp.ne.s32.totalorder %s116, %s117
      %p126 = scmp.eq.s32.totalorder %s22, 0
      %p127 = por %p125, %p126
      %p128 = scmp.ne.s32.totalorder %s116, %s117
      %p129 = scmp.eq.s32.totalorder %s23, 1
      %p130 = por %p128, %p129
      %p132 = scmp.ne.s32.totalorder %s117, %s131
      %p133 = scmp.eq.s32.totalorder %s23, 0
      %p134 = por %p132, %p133
      %s136 = sadd.s32 %s135, 1
      %p139 = scmp.eq.s32.totalorder %s17, 1
      %p140 = scmp.ne.s32.totalorder %s135, %s137
      %p141 = scmp.eq.s32.totalorder %s17, 0
      %p142 = por %p140, %p141
      %p143 = scmp.ne.s32.totalorder %s135, %s137
      %p144 = scmp.eq.s32.totalorder %s22, 1
      %p145 = por %p143, %p144
      %p146 = scmp.ne.s32.totalorder %s137, %s138
      %p147 = scmp.eq.s32.totalorder %s22, 0
      %p148 = por %p146, %p147
      %p149 = scmp.ne.s32.totalorder %s137, %s138
      %p150 = scmp.eq.s32.totalorder %s23, 1
      %p151 = por %p149, %p150
      %p153 = scmp.ne.s32.totalorder %s138, %s152
      %p154 = scmp.eq.s32.totalorder %s23, 0
      %p155 = por %p153, %p154
      %s157 = sadd.s32 %s156, 1
      %p160 = scmp.eq.s32.totalorder %s17, 1
      %p161 = scmp.ne.s32.totalorder %s156, %s158
      %p162 = scmp.eq.s32.totalorder %s17, 0
      %p163 = por %p161, %p162
      %p164 = scmp.ne.s32.totalorder %s156, %s158
      %p165 = scmp.eq.s32.totalorder %s22, 1
      %p166 = por %p164, %p165
      %p167 = scmp.ne.s32.totalorder %s158, %s159
      %p168 = scmp.eq.s32.totalorder %s22, 0
      %p169 = por %p167, %p168
      %p170 = scmp.ne.s32.totalorder %s158, %s159
      %p171 = scmp.eq.s32.totalorder %s23, 1
      %p172 = por %p170, %p171
      %p174 = scmp.ne.s32.totalorder %s159, %s173
      %p175 = scmp.eq.s32.totalorder %s23, 0
      %p176 = por %p174, %p175
      %s178 = sadd.s32 %s177, 1
      %p181 = scmp.eq.s32.totalorder %s17, 1
      %p182 = scmp.ne.s32.totalorder %s177, %s179
      %p183 = scmp.eq.s32.totalorder %s17, 0
      %p184 = por %p182, %p183
      %p185 = scmp.ne.s32.totalorder %s177, %s179
      %p186 = scmp.eq.s32.totalorder %s22, 1
      %p187 = por %p185, %p186
      %p188 = scmp.ne.s32.totalorder %s179, %s180
      %p189 = scmp.eq.s32.totalorder %s22, 0
      %p190 = por %p188, %p189
      %p191 = scmp.ne.s32.totalorder %s179, %s180
      %p192 = scmp.eq.s32.totalorder %s23, 1
      %p193 = por %p191, %p192
      %p195 = scmp.ne.s32.totalorder %s180, %s194
      %p196 = scmp.eq.s32.totalorder %s23, 0
      %p197 = por %p195, %p196
      %s198 = ssub.s32 %s17, %s24
      %p199 = scmp.eq.s32.totalorder %s198, 0
      %s201 = sadd.s32 %s200, 1
      %s202 = scalar_select %p199, %s200, %s201
      %p205 = pneg %p199
      %p206 = scmp.eq.s32.totalorder %s17, 1
      %p207 = por %p205, %p206
      %p208 = scmp.ne.s32.totalorder %s200, %s203
      %p209 = scmp.eq.s32.totalorder %s17, 0
      %p210 = por %p208, %p209
      %p211 = scmp.ne.s32.totalorder %s200, %s203
      %p212 = scmp.eq.s32.totalorder %s22, 1
      %p213 = por %p211, %p212
      %p214 = scmp.ne.s32.totalorder %s203, %s204
      %p215 = scmp.eq.s32.totalorder %s22, 0
      %p216 = por %p214, %p215
      %p217 = scmp.ne.s32.totalorder %s203, %s204
      %p218 = scmp.eq.s32.totalorder %s23, 1
      %p219 = por %p217, %p218
      %p221 = scmp.ne.s32.totalorder %s204, %s220
      %p222 = scmp.eq.s32.totalorder %s23, 0
      %p223 = por %p221, %p222
      %p224 = scmp.le.s32.totalorder 1, %s17
      %p225 = scmp.lt.s32.totalorder %s17, 3
      %p226 = pnand %p224, %p225
      %p227 = pneg %p226
      // Predicated region
      $region9: #{semantics_extractor_forward.7} parent=5 // pred_check
        _
      $region10: #{semantics_extractor_forward.7} parent=5 // pred_check_branch
        %229 = sbr.rel (%p226) target = $region12
      $region11: #{semantics_extractor_forward.7} parent=5 // pred_region
        %s230 = ssub.s32 %s17, 1
        // Predicated region
        $region13: #{semantics_extractor_forward.7} parent=11 // pred_check
          %p231 = pneg %p64
        $region14: #{semantics_extractor_forward.7} parent=11 // pred_check_branch
          %233 = sbr.rel (%p231) target = $region16
        $region15: #{semantics_extractor_forward.7} parent=11 // pred_region
          _
        $region16: #{semantics_extractor_forward.7} parent=11 // pred_fallthru
          _
        // Predicated region
        $region17: #{semantics_extractor_forward.7} parent=11 // pred_check
          %p234 = pneg %p85
        $region18: #{semantics_extractor_forward.7} parent=11 // pred_check_branch
          %236 = sbr.rel (%p234) target = $region20
        $region19: #{semantics_extractor_forward.7} parent=11 // pred_region
          _
        $region20: #{semantics_extractor_forward.7} parent=11 // pred_fallthru
          _
        // Predicated region
        $region21: #{semantics_extractor_forward.7} parent=11 // pred_check
          %p237 = pneg %p106
        $region22: #{semantics_extractor_forward.7} parent=11 // pred_check_branch
          %239 = sbr.rel (%p237) target = $region24
        $region23: #{semantics_extractor_forward.7} parent=11 // pred_region
          _
        $region24: #{semantics_extractor_forward.7} parent=11 // pred_fallthru
          _
        // Predicated region
        $region25: #{semantics_extractor_forward.7} parent=11 // pred_check
          %p240 = pneg %p127
        $region26: #{semantics_extractor_forward.7} parent=11 // pred_check_branch
          %242 = sbr.rel (%p240) target = $region28
        $region27: #{semantics_extractor_forward.7} parent=11 // pred_region
          _
        $region28: #{semantics_extractor_forward.7} parent=11 // pred_fallthru
          _
        // Predicated region
        $region29: #{semantics_extractor_forward.7} parent=11 // pred_check
          %p243 = pneg %p148
        $region30: #{semantics_extractor_forward.7} parent=11 // pred_check_branch
          %245 = sbr.rel (%p243) target = $region32
        $region31: #{semantics_extractor_forward.7} parent=11 // pred_region
          _
        $region32: #{semantics_extractor_forward.7} parent=11 // pred_fallthru
          _
        // Predicated region
        $region33: #{semantics_extractor_forward.7} parent=11 // pred_check
          %p246 = pneg %p169
        $region34: #{semantics_extractor_forward.7} parent=11 // pred_check_branch
          %248 = sbr.rel (%p246) target = $region36
        $region35: #{semantics_extractor_forward.7} parent=11 // pred_region
          _
        $region36: #{semantics_extractor_forward.7} parent=11 // pred_fallthru
          _
        // Predicated region
        $region37: #{semantics_extractor_forward.7} parent=11 // pred_check
          %p249 = pneg %p190
        $region38: #{semantics_extractor_forward.7} parent=11 // pred_check_branch
          %251 = sbr.rel (%p249) target = $region40
        $region39: #{semantics_extractor_forward.7} parent=11 // pred_region
          _
        $region40: #{semantics_extractor_forward.7} parent=11 // pred_fallthru
          _
      $region12: #{semantics_extractor_forward.7} parent=5 // pred_fallthru
        _
      %p252 = scmp.lt.s32.totalorder %s17, 2
      // Predicated region
      $region41: #{semantics_extractor_forward.7} parent=5 // pred_check
        %p253 = pneg %p252
      $region42: #{semantics_extractor_forward.7} parent=5 // pred_check_branch
        %255 = sbr.rel (%p253) target = $region44
      $region43: #{semantics_extractor_forward.7} parent=5 // pred_region
        // Predicated region
        $region45: #{semantics_extractor_forward.7} parent=43 // pred_check
          %p256 = pneg %p37
        $region46: #{semantics_extractor_forward.7} parent=43 // pred_check_branch
          %258 = sbr.rel (%p256) target = $region48
        $region47: #{semantics_extractor_forward.7} parent=43 // pred_region
          %p259 = scmp.lt.s32.totalorder %s17, 1
          %s260 = scalar_select %p259, %s17, 1
          %s261 = smul.addr %s260, 20
          %s262 = smul.addr %s261, 8
          %s263 = scalar_lea.vmem %s0, %s262
        $region48: #{semantics_extractor_forward.7} parent=43 // pred_fallthru
          _
      $region44: #{semantics_extractor_forward.7} parent=5 // pred_fallthru
        _
      %p264 = scmp.le.s32.totalorder 1, %s17
      %p265 = scmp.lt.s32.totalorder %s17, 3
      %p266 = pnand %p264, %p265
      %p267 = pneg %p266
      // Predicated region
      $region49: #{semantics_extractor_forward.7} parent=5 // pred_check
        _
      $region50: #{semantics_extractor_forward.7} parent=5 // pred_check_branch
        %269 = sbr.rel (%p266) target = $region52
      $region51: #{semantics_extractor_forward.7} parent=5 // pred_region
        %s270 = ssub.s32 %s17, 1
        %p271 = scmp.lt.s32.totalorder %s22, 1
        %s272 = scalar_select %p271, %s22, 1
        %s273 = smul.addr %s272, 20
        %s274 = smul.addr %s273, 8
        %s275 = scalar_lea.vmem %s0, %s274
        %p276 = pneg %p43
        %p277 = pneg %p40
        %p278 = pneg %p64
        %p279 = pneg %p61
        %p280 = pneg %p85
        %p281 = pneg %p82
        %p282 = pneg %p106
        %p283 = pneg %p103
        %p284 = pneg %p127
        %p285 = pneg %p124
        %p286 = pneg %p148
        %p287 = pneg %p145
        %p288 = pneg %p169
        %p289 = pneg %p166
        %p290 = pneg %p190
        %p291 = pneg %p187
        %p292 = pneg %p216
        %p293 = pneg %p213
        %s294 = sand.u32 %s203, 1
        %s295 = scalar_lea.sflag [#allocation3], %s294
        %s296 = sand.u32 %s203, 1
        %s297 = smul.addr %s296, 64
        %s298 = scalar_lea.vmem [#allocation2], %s297
        %p299 = scmp.lt.s32.totalorder %s22, 1
        %s300 = scalar_select %p299, %s22, 1
        %s301 = smul.addr %s300, 20
        %s302 = smul.addr %s301, 8
        %s303 = scalar_lea.vmem %s0, %s302
        %v304 = vld [vmem:[%s303 + $0x10] sm:$0xff]
        %v305 = vld [vmem:[%s303 + $0x18] sm:$0x3]
        %v306 = vld [vmem:[%s303 + $0x20] sm:$0xff]
        %v307 = vld [vmem:[%s303 + $0x28] sm:$0x3]
        %v308 = vld [vmem:[%s303 + $0x30] sm:$0xff]
        %v309 = vld [vmem:[%s303 + $0x38] sm:$0x3]
        %v310 = vld [vmem:[%s303 + $0x40] sm:$0xff]
        %v311 = vld [vmem:[%s303 + $0x48] sm:$0x3]
        %v312 = vld [vmem:[%s303 + $0x50] sm:$0xff]
        %v313 = vld [vmem:[%s303 + $0x58] sm:$0x3]
        %v314 = vld [vmem:[%s303 + $0x60] sm:$0xff]
        %v315 = vld [vmem:[%s303 + $0x68] sm:$0x3]
        %v316 = vld [vmem:[%s303 + $0x70] sm:$0xff]
        %v317 = vld [vmem:[%s303 + $0x78] sm:$0x3]
        %v318 = vld [vmem:[%s303 + $0x80] sm:$0xff]
        %v319 = vld [vmem:[%s303 + $0x88] sm:$0x3]
        %v320 = vld [vmem:[%s1] sm:$0xff]
        %v321 = vld [vmem:[%s1 + $0x8] sm:$0x3]
        %v322 = vld [vmem:[%s2] sm:$0xff]
        %v323 = vld [vmem:[%s2 + $0x8] sm:$0xff]
        %v324 = vld [vmem:[%s2 + $0x10] sm:$0xff]
        %v325 = vld [vmem:[%s2 + $0x18] sm:$0xff]
        %v326 = vld [vmem:[%s3] sm:$0x1]
        %v327 = vld [vmem:[%s4] sm:$0x7]
        %v328 = vld [vmem:[%s4 + $0x4] sm:$0x7]
        %v329 = vld [vmem:[%s4 + $0x8] sm:$0x7]
        %v330 = vld [vmem:[%s5] sm:$0x1]
        %v331 = vld [vmem:[%s6] sm:$0xff]
        %v332 = vld [vmem:[%s6 + $0x8] sm:$0xff]
        %v333 = vld [vmem:[%s6 + $0x10] sm:$0xff]
        %v334 = vld [vmem:[%s6 + $0x18] sm:$0xff]
        %v335 = vld [vmem:[%s6 + $0x20] sm:$0xff]
        %v336 = vld [vmem:[%s6 + $0x28] sm:$0xff]
        %v337 = vld [vmem:[%s6 + $0x30] sm:$0xff]
        %v338 = vld [vmem:[%s6 + $0x38] sm:$0xff]
        %v339 = vld [vmem:[%s7] sm:$0x1]
        %v341 = vlaneseq
        %v342 = vshrl.u32 %v341, 7
        %v343 = vsub.s32 0, %v342
        %v344 = vrot.slane %v326, %v343
        %vm346 = vcmask 261120
        %v348 = vsel %vm346, %v304, 0
        %v351 = vsel %vm346, %v305, 0
        %353 = vmatprep.subr.mxu0 0.0
        %354 = vmatpush1.msra.mxu0 0.0
        %355 = vmatprep.subr.mxu0 0.0
        %356 = vmatpush1.msra.mxu0 0.0
        %357 = vmatprep.subr.mxu0 0.0
        %358 = vmatpush1.msra.mxu0 0.0
        %359 = vmatprep.subr.mxu0 0.0
        %360 = vmatpush1.msra.mxu0 0.0
        %361 = vmatprep.subr.mxu0 0.0
        %362 = vmatpush1.msra.mxu0 0.0
        %363 = vmatprep.subr.mxu0 0.0
        %364 = vmatpush1.msra.mxu0 0.0
        %365 = vmatprep.subr.mxu0 0.0
        %366 = vmatpush1.msra.mxu0 0.0
        %367 = vmatprep.subr.mxu0 0.0
        %368 = vmatpush1.msra.mxu0 0.0
        %369 = vmatprep.subr.mxu0 0.0
        %370 = vmatpush1.msra.mxu0 0.0
        %371 = vmatprep.subr.mxu0 0.0
        %372 = vmatpush1.msra.mxu0 0.0
        %373 = vmatprep.subr.mxu0 0.0
        %374 = vmatpush1.msra.mxu0 0.0
        %375 = vmatprep.subr.mxu0 0.0
        %376 = vmatpush1.msra.mxu0 0.0
        %377 = vmatprep.subr.mxu0 0.0
        %378 = vmatpush1.msra.mxu0 %v325
        %379 = vmatprep.subr.mxu0 0.0
        %380 = vmatpush1.msra.mxu0 %v324
        %381 = vmatprep.subr.mxu0 0.0
        %382 = vmatpush1.msra.mxu0 %v323
        %383 = vmatprep.subr.mxu0 0.0
        %384 = vmatpush1.msra.mxu0 %v322
        %385 = vmatprep.subr.mxu0 0.0
        %386 = vmatpush2.msra.mxu0 0.0
        %387 = vmatprep.subr.mxu0 0.0
        %388 = vmatpush2.msra.mxu0 0.0
        %389 = vmatprep.subr.mxu0 0.0
        %390 = vmatpush2.msra.mxu0 0.0
        %391 = vmatprep.subr.mxu0 0.0
        %392 = vmatpush2.msra.mxu0 0.0
        %393 = vmatprep.subr.mxu0 0.0
        %394 = vmatpush2.msra.mxu0 0.0
        %395 = vmatprep.subr.mxu0 0.0
        %396 = vmatpush2.msra.mxu0 0.0
        %397 = vmatprep.subr.mxu0 0.0
        %398 = vmatpush2.msra.mxu0 0.0
        %399 = vmatprep.subr.mxu0 0.0
        %400 = vmatpush2.msra.mxu0 0.0
        %401 = vmatprep.subr.mxu0 0.0
        %402 = vmatpush2.msra.mxu0 0.0
        %403 = vmatprep.subr.mxu0 0.0
        %404 = vmatpush2.msra.mxu0 0.0
        %405 = vmatprep.subr.mxu0 0.0
        %406 = vmatpush2.msra.mxu0 0.0
        %407 = vmatprep.subr.mxu0 0.0
        %408 = vmatpush2.msra.mxu0 0.0
        %409 = vmatprep.subr.mxu0 0.0
        %410 = vmatpush2.msra.mxu0 0.0
        %411 = vmatprep.subr.mxu0 0.0
        %412 = vmatpush2.msra.mxu0 0.0
        %413 = vmatprep.subr.mxu0 0.0
        %414 = vmatpush2.msra.mxu0 0.0
        %415 = vmatprep.subr.mxu0 0.0
        %416 = vmatpush2.msra.mxu0 0.0
        %417 = vmatprep.mubr.f32.mxu0 0.0
        %418 = vmatmul.mubr.f32.gmra.mxu0 %v348
        %v419 = vpop.f32.mrf.mxu0
        %v420 = vadd.f32 %v344, %v419
        %v421 = vpop.f32.mrf.mxu0
        %422 = vmatprep.mubr.f32.mxu0 0.0
        %423 = vmatmul.mubr.f32.gmra.mxu0 %v351
        %v424 = vpop.f32.mrf.mxu0
        %v425 = vadd.f32 %v344, %v424
        %v426 = vpop.f32.mrf.mxu0
        %427 = vdwg.mxu0
        %429 = vset.pattern.permute.xlu0 0
        %430 = vperm.xlu0 %429, %v320
        %v431 = vpop.permute.xlu0 %430
        %434 = vset.pattern.permute.xlu0 0
        %435 = vperm.xlu0 %434, %v321
        %v436 = vpop.permute.xlu0 %435
        %v438 = vmul.f32 %v420, %v431
        %v439 = vmul.f32 %v425, %v436
        %v441 = vsel %vm346, %v306, 0
        %v444 = vsel %vm346, %v307, 0
        %446 = vmatprep.subr.mxu0 0.0
        %447 = vmatpush1.msra.mxu0 0.0
        %448 = vmatprep.subr.mxu0 0.0
        %449 = vmatpush1.msra.mxu0 0.0
        %450 = vmatprep.subr.mxu0 0.0
        %451 = vmatpush1.msra.mxu0 0.0
        %452 = vmatprep.subr.mxu0 0.0
        %453 = vmatpush1.msra.mxu0 0.0
        %454 = vmatprep.subr.mxu0 0.0
        %455 = vmatpush1.msra.mxu0 0.0
        %456 = vmatprep.subr.mxu0 0.0
        %457 = vmatpush1.msra.mxu0 0.0
        %458 = vmatprep.subr.mxu0 0.0
        %459 = vmatpush1.msra.mxu0 0.0
        %460 = vmatprep.subr.mxu0 0.0
        %461 = vmatpush1.msra.mxu0 0.0
        %462 = vmatprep.subr.mxu0 0.0
        %463 = vmatpush1.msra.mxu0 0.0
        %464 = vmatprep.subr.mxu0 0.0
        %465 = vmatpush1.msra.mxu0 0.0
        %466 = vmatprep.subr.mxu0 0.0
        %467 = vmatpush1.msra.mxu0 0.0
        %468 = vmatprep.subr.mxu0 0.0
        %469 = vmatpush1.msra.mxu0 0.0
        %470 = vmatprep.subr.mxu0 0.0
        %471 = vmatpush1.msra.mxu0 %v325
        %472 = vmatprep.subr.mxu0 0.0
        %473 = vmatpush1.msra.mxu0 %v324
        %474 = vmatprep.subr.mxu0 0.0
        %475 = vmatpush1.msra.mxu0 %v323
        %476 = vmatprep.subr.mxu0 0.0
        %477 = vmatpush1.msra.mxu0 %v322
        %478 = vmatprep.subr.mxu0 0.0
        %479 = vmatpush2.msra.mxu0 0.0
        %480 = vmatprep.subr.mxu0 0.0
        %481 = vmatpush2.msra.mxu0 0.0
        %482 = vmatprep.subr.mxu0 0.0
        %483 = vmatpush2.msra.mxu0 0.0
        %484 = vmatprep.subr.mxu0 0.0
        %485 = vmatpush2.msra.mxu0 0.0
        %486 = vmatprep.subr.mxu0 0.0
        %487 = vmatpush2.msra.mxu0 0.0
        %488 = vmatprep.subr.mxu0 0.0
        %489 = vmatpush2.msra.mxu0 0.0
        %490 = vmatprep.subr.mxu0 0.0
        %491 = vmatpush2.msra.mxu0 0.0
        %492 = vmatprep.subr.mxu0 0.0
        %493 = vmatpush2.msra.mxu0 0.0
        %494 = vmatprep.subr.mxu0 0.0
        %495 = vmatpush2.msra.mxu0 0.0
        %496 = vmatprep.subr.mxu0 0.0
        %497 = vmatpush2.msra.mxu0 0.0
        %498 = vmatprep.subr.mxu0 0.0
        %499 = vmatpush2.msra.mxu0 0.0
        %500 = vmatprep.subr.mxu0 0.0
        %501 = vmatpush2.msra.mxu0 0.0
        %502 = vmatprep.subr.mxu0 0.0
        %503 = vmatpush2.msra.mxu0 0.0
        %504 = vmatprep.subr.mxu0 0.0
        %505 = vmatpush2.msra.mxu0 0.0
        %506 = vmatprep.subr.mxu0 0.0
        %507 = vmatpush2.msra.mxu0 0.0
        %508 = vmatprep.subr.mxu0 0.0
        %509 = vmatpush2.msra.mxu0 0.0
        %510 = vmatprep.mubr.f32.mxu0 0.0
        %511 = vmatmul.mubr.f32.gmra.mxu0 %v441
        %v512 = vpop.f32.mrf.mxu0
        %v513 = vadd.f32 %v344, %v512
        %v514 = vpop.f32.mrf.mxu0
        %515 = vmatprep.mubr.f32.mxu0 0.0
        %516 = vmatmul.mubr.f32.gmra.mxu0 %v444
        %v517 = vpop.f32.mrf.mxu0
        %v518 = vadd.f32 %v344, %v517
        %v519 = vpop.f32.mrf.mxu0
        %520 = vdwg.mxu0
        %v521 = vmul.f32 %v513, %v431
        %v522 = vmul.f32 %v518, %v436
        %v524 = vsel %vm346, %v308, 0
        %v527 = vsel %vm346, %v309, 0
        %529 = vmatprep.subr.mxu0 0.0
        %530 = vmatpush1.msra.mxu0 0.0
        %531 = vmatprep.subr.mxu0 0.0
        %532 = vmatpush1.msra.mxu0 0.0
        %533 = vmatprep.subr.mxu0 0.0
        %534 = vmatpush1.msra.mxu0 0.0
        %535 = vmatprep.subr.mxu0 0.0
        %536 = vmatpush1.msra.mxu0 0.0
        %537 = vmatprep.subr.mxu0 0.0
        %538 = vmatpush1.msra.mxu0 0.0
        %539 = vmatprep.subr.mxu0 0.0
        %540 = vmatpush1.msra.mxu0 0.0
        %541 = vmatprep.subr.mxu0 0.0
        %542 = vmatpush1.msra.mxu0 0.0
        %543 = vmatprep.subr.mxu0 0.0
        %544 = vmatpush1.msra.mxu0 0.0
        %545 = vmatprep.subr.mxu0 0.0
        %546 = vmatpush1.msra.mxu0 0.0
        %547 = vmatprep.subr.mxu0 0.0
        %548 = vmatpush1.msra.mxu0 0.0
        %549 = vmatprep.subr.mxu0 0.0
        %550 = vmatpush1.msra.mxu0 0.0
        %551 = vmatprep.subr.mxu0 0.0
        %552 = vmatpush1.msra.mxu0 0.0
        %553 = vmatprep.subr.mxu0 0.0
        %554 = vmatpush1.msra.mxu0 %v325
        %555 = vmatprep.subr.mxu0 0.0
        %556 = vmatpush1.msra.mxu0 %v324
        %557 = vmatprep.subr.mxu0 0.0
        %558 = vmatpush1.msra.mxu0 %v323
        %559 = vmatprep.subr.mxu0 0.0
        %560 = vmatpush1.msra.mxu0 %v322
        %561 = vmatprep.subr.mxu0 0.0
        %562 = vmatpush2.msra.mxu0 0.0
        %563 = vmatprep.subr.mxu0 0.0
        %564 = vmatpush2.msra.mxu0 0.0
        %565 = vmatprep.subr.mxu0 0.0
        %566 = vmatpush2.msra.mxu0 0.0
        %567 = vmatprep.subr.mxu0 0.0
        %568 = vmatpush2.msra.mxu0 0.0
        %569 = vmatprep.subr.mxu0 0.0
        %570 = vmatpush2.msra.mxu0 0.0
        %571 = vmatprep.subr.mxu0 0.0
        %572 = vmatpush2.msra.mxu0 0.0
        %573 = vmatprep.subr.mxu0 0.0
        %574 = vmatpush2.msra.mxu0 0.0
        %575 = vmatprep.subr.mxu0 0.0
        %576 = vmatpush2.msra.mxu0 0.0
        %577 = vmatprep.subr.mxu0 0.0
        %578 = vmatpush2.msra.mxu0 0.0
        %579 = vmatprep.subr.mxu0 0.0
        %580 = vmatpush2.msra.mxu0 0.0
        %581 = vmatprep.subr.mxu0 0.0
        %582 = vmatpush2.msra.mxu0 0.0
        %583 = vmatprep.subr.mxu0 0.0
        %584 = vmatpush2.msra.mxu0 0.0
        %585 = vmatprep.subr.mxu0 0.0
        %586 = vmatpush2.msra.mxu0 0.0
        %587 = vmatprep.subr.mxu0 0.0
        %588 = vmatpush2.msra.mxu0 0.0
        %589 = vmatprep.subr.mxu0 0.0
        %590 = vmatpush2.msra.mxu0 0.0
        %591 = vmatprep.subr.mxu0 0.0
        %592 = vmatpush2.msra.mxu0 0.0
        %593 = vmatprep.mubr.f32.mxu0 0.0
        %594 = vmatmul.mubr.f32.gmra.mxu0 %v524
        %v595 = vpop.f32.mrf.mxu0
        %v596 = vadd.f32 %v344, %v595
        %v597 = vpop.f32.mrf.mxu0
        %598 = vmatprep.mubr.f32.mxu0 0.0
        %599 = vmatmul.mubr.f32.gmra.mxu0 %v527
        %v600 = vpop.f32.mrf.mxu0
        %v601 = vadd.f32 %v344, %v600
        %v602 = vpop.f32.mrf.mxu0
        %603 = vdwg.mxu0
        %v604 = vmul.f32 %v596, %v431
        %v605 = vmul.f32 %v601, %v436
        %v607 = vsel %vm346, %v310, 0
        %v610 = vsel %vm346, %v311, 0
        %612 = vmatprep.subr.mxu0 0.0
        %613 = vmatpush1.msra.mxu0 0.0
        %614 = vmatprep.subr.mxu0 0.0
        %615 = vmatpush1.msra.mxu0 0.0
        %616 = vmatprep.subr.mxu0 0.0
        %617 = vmatpush1.msra.mxu0 0.0
        %618 = vmatprep.subr.mxu0 0.0
        %619 = vmatpush1.msra.mxu0 0.0
        %620 = vmatprep.subr.mxu0 0.0
        %621 = vmatpush1.msra.mxu0 0.0
        %622 = vmatprep.subr.mxu0 0.0
        %623 = vmatpush1.msra.mxu0 0.0
        %624 = vmatprep.subr.mxu0 0.0
        %625 = vmatpush1.msra.mxu0 0.0
        %626 = vmatprep.subr.mxu0 0.0
        %627 = vmatpush1.msra.mxu0 0.0
        %628 = vmatprep.subr.mxu0 0.0
        %629 = vmatpush1.msra.mxu0 0.0
        %630 = vmatprep.subr.mxu0 0.0
        %631 = vmatpush1.msra.mxu0 0.0
        %632 = vmatprep.subr.mxu0 0.0
        %633 = vmatpush1.msra.mxu0 0.0
        %634 = vmatprep.subr.mxu0 0.0
        %635 = vmatpush1.msra.mxu0 0.0
        %636 = vmatprep.subr.mxu0 0.0
        %637 = vmatpush1.msra.mxu0 %v325
        %638 = vmatprep.subr.mxu0 0.0
        %639 = vmatpush1.msra.mxu0 %v324
        %640 = vmatprep.subr.mxu0 0.0
        %641 = vmatpush1.msra.mxu0 %v323
        %642 = vmatprep.subr.mxu0 0.0
        %643 = vmatpush1.msra.mxu0 %v322
        %644 = vmatprep.subr.mxu0 0.0
        %645 = vmatpush2.msra.mxu0 0.0
        %646 = vmatprep.subr.mxu0 0.0
        %647 = vmatpush2.msra.mxu0 0.0
        %648 = vmatprep.subr.mxu0 0.0
        %649 = vmatpush2.msra.mxu0 0.0
        %650 = vmatprep.subr.mxu0 0.0
        %651 = vmatpush2.msra.mxu0 0.0
        %652 = vmatprep.subr.mxu0 0.0
        %653 = vmatpush2.msra.mxu0 0.0
        %654 = vmatprep.subr.mxu0 0.0
        %655 = vmatpush2.msra.mxu0 0.0
        %656 = vmatprep.subr.mxu0 0.0
        %657 = vmatpush2.msra.mxu0 0.0
        %658 = vmatprep.subr.mxu0 0.0
        %659 = vmatpush2.msra.mxu0 0.0
        %660 = vmatprep.subr.mxu0 0.0
        %661 = vmatpush2.msra.mxu0 0.0
        %662 = vmatprep.subr.mxu0 0.0
        %663 = vmatpush2.msra.mxu0 0.0
        %664 = vmatprep.subr.mxu0 0.0
        %665 = vmatpush2.msra.mxu0 0.0
        %666 = vmatprep.subr.mxu0 0.0
        %667 = vmatpush2.msra.mxu0 0.0
        %668 = vmatprep.subr.mxu0 0.0
        %669 = vmatpush2.msra.mxu0 0.0
        %670 = vmatprep.subr.mxu0 0.0
        %671 = vmatpush2.msra.mxu0 0.0
        %672 = vmatprep.subr.mxu0 0.0
        %673 = vmatpush2.msra.mxu0 0.0
        %674 = vmatprep.subr.mxu0 0.0
        %675 = vmatpush2.msra.mxu0 0.0
        %676 = vmatprep.mubr.f32.mxu0 0.0
        %677 = vmatmul.mubr.f32.gmra.mxu0 %v607
        %v678 = vpop.f32.mrf.mxu0
        %v679 = vadd.f32 %v344, %v678
        %v680 = vpop.f32.mrf.mxu0
        %681 = vmatprep.mubr.f32.mxu0 0.0
        %682 = vmatmul.mubr.f32.gmra.mxu0 %v610
        %v683 = vpop.f32.mrf.mxu0
        %v684 = vadd.f32 %v344, %v683
        %v685 = vpop.f32.mrf.mxu0
        %686 = vdwg.mxu0
        %v687 = vmul.f32 %v679, %v431
        %v688 = vmul.f32 %v684, %v436
        %v690 = vsel %vm346, %v312, 0
        %v693 = vsel %vm346, %v313, 0
        %695 = vmatprep.subr.mxu0 0.0
        %696 = vmatpush1.msra.mxu0 0.0
        %697 = vmatprep.subr.mxu0 0.0
        %698 = vmatpush1.msra.mxu0 0.0
        %699 = vmatprep.subr.mxu0 0.0
        %700 = vmatpush1.msra.mxu0 0.0
        %701 = vmatprep.subr.mxu0 0.0
        %702 = vmatpush1.msra.mxu0 0.0
        %703 = vmatprep.subr.mxu0 0.0
        %704 = vmatpush1.msra.mxu0 0.0
        %705 = vmatprep.subr.mxu0 0.0
        %706 = vmatpush1.msra.mxu0 0.0
        %707 = vmatprep.subr.mxu0 0.0
        %708 = vmatpush1.msra.mxu0 0.0
        %709 = vmatprep.subr.mxu0 0.0
        %710 = vmatpush1.msra.mxu0 0.0
        %711 = vmatprep.subr.mxu0 0.0
        %712 = vmatpush1.msra.mxu0 0.0
        %713 = vmatprep.subr.mxu0 0.0
        %714 = vmatpush1.msra.mxu0 0.0
        %715 = vmatprep.subr.mxu0 0.0
        %716 = vmatpush1.msra.mxu0 0.0
        %717 = vmatprep.subr.mxu0 0.0
        %718 = vmatpush1.msra.mxu0 0.0
        %719 = vmatprep.subr.mxu0 0.0
        %720 = vmatpush1.msra.mxu0 %v325
        %721 = vmatprep.subr.mxu0 0.0
        %722 = vmatpush1.msra.mxu0 %v324
        %723 = vmatprep.subr.mxu0 0.0
        %724 = vmatpush1.msra.mxu0 %v323
        %725 = vmatprep.subr.mxu0 0.0
        %726 = vmatpush1.msra.mxu0 %v322
        %727 = vmatprep.subr.mxu0 0.0
        %728 = vmatpush2.msra.mxu0 0.0
        %729 = vmatprep.subr.mxu0 0.0
        %730 = vmatpush2.msra.mxu0 0.0
        %731 = vmatprep.subr.mxu0 0.0
        %732 = vmatpush2.msra.mxu0 0.0
        %733 = vmatprep.subr.mxu0 0.0
        %734 = vmatpush2.msra.mxu0 0.0
        %735 = vmatprep.subr.mxu0 0.0
        %736 = vmatpush2.msra.mxu0 0.0
        %737 = vmatprep.subr.mxu0 0.0
        %738 = vmatpush2.msra.mxu0 0.0
        %739 = vmatprep.subr.mxu0 0.0
        %740 = vmatpush2.msra.mxu0 0.0
        %741 = vmatprep.subr.mxu0 0.0
        %742 = vmatpush2.msra.mxu0 0.0
        %743 = vmatprep.subr.mxu0 0.0
        %744 = vmatpush2.msra.mxu0 0.0
        %745 = vmatprep.subr.mxu0 0.0
        %746 = vmatpush2.msra.mxu0 0.0
        %747 = vmatprep.subr.mxu0 0.0
        %748 = vmatpush2.msra.mxu0 0.0
        %749 = vmatprep.subr.mxu0 0.0
        %750 = vmatpush2.msra.mxu0 0.0
        %751 = vmatprep.subr.mxu0 0.0
        %752 = vmatpush2.msra.mxu0 0.0
        %753 = vmatprep.subr.mxu0 0.0
        %754 = vmatpush2.msra.mxu0 0.0
        %755 = vmatprep.subr.mxu0 0.0
        %756 = vmatpush2.msra.mxu0 0.0
        %757 = vmatprep.subr.mxu0 0.0
        %758 = vmatpush2.msra.mxu0 0.0
        %759 = vmatprep.mubr.f32.mxu0 0.0
        %760 = vmatmul.mubr.f32.gmra.mxu0 %v690
        %v761 = vpop.f32.mrf.mxu0
        %v762 = vadd.f32 %v344, %v761
        %v763 = vpop.f32.mrf.mxu0
        %764 = vmatprep.mubr.f32.mxu0 0.0
        %765 = vmatmul.mubr.f32.gmra.mxu0 %v693
        %v766 = vpop.f32.mrf.mxu0
        %v767 = vadd.f32 %v344, %v766
        %v768 = vpop.f32.mrf.mxu0
        %769 = vdwg.mxu0
        %v770 = vmul.f32 %v762, %v431
        %v771 = vmul.f32 %v767, %v436
        %v773 = vsel %vm346, %v314, 0
        %v776 = vsel %vm346, %v315, 0
        %778 = vmatprep.subr.mxu0 0.0
        %779 = vmatpush1.msra.mxu0 0.0
        %780 = vmatprep.subr.mxu0 0.0
        %781 = vmatpush1.msra.mxu0 0.0
        %782 = vmatprep.subr.mxu0 0.0
        %783 = vmatpush1.msra.mxu0 0.0
        %784 = vmatprep.subr.mxu0 0.0
        %785 = vmatpush1.msra.mxu0 0.0
        %786 = vmatprep.subr.mxu0 0.0
        %787 = vmatpush1.msra.mxu0 0.0
        %788 = vmatprep.subr.mxu0 0.0
        %789 = vmatpush1.msra.mxu0 0.0
        %790 = vmatprep.subr.mxu0 0.0
        %791 = vmatpush1.msra.mxu0 0.0
        %792 = vmatprep.subr.mxu0 0.0
        %793 = vmatpush1.msra.mxu0 0.0
        %794 = vmatprep.subr.mxu0 0.0
        %795 = vmatpush1.msra.mxu0 0.0
        %796 = vmatprep.subr.mxu0 0.0
        %797 = vmatpush1.msra.mxu0 0.0
        %798 = vmatprep.subr.mxu0 0.0
        %799 = vmatpush1.msra.mxu0 0.0
        %800 = vmatprep.subr.mxu0 0.0
        %801 = vmatpush1.msra.mxu0 0.0
        %802 = vmatprep.subr.mxu0 0.0
        %803 = vmatpush1.msra.mxu0 %v325
        %804 = vmatprep.subr.mxu0 0.0
        %805 = vmatpush1.msra.mxu0 %v324
        %806 = vmatprep.subr.mxu0 0.0
        %807 = vmatpush1.msra.mxu0 %v323
        %808 = vmatprep.subr.mxu0 0.0
        %809 = vmatpush1.msra.mxu0 %v322
        %810 = vmatprep.subr.mxu0 0.0
        %811 = vmatpush2.msra.mxu0 0.0
        %812 = vmatprep.subr.mxu0 0.0
        %813 = vmatpush2.msra.mxu0 0.0
        %814 = vmatprep.subr.mxu0 0.0
        %815 = vmatpush2.msra.mxu0 0.0
        %816 = vmatprep.subr.mxu0 0.0
        %817 = vmatpush2.msra.mxu0 0.0
        %818 = vmatprep.subr.mxu0 0.0
        %819 = vmatpush2.msra.mxu0 0.0
        %820 = vmatprep.subr.mxu0 0.0
        %821 = vmatpush2.msra.mxu0 0.0
        %822 = vmatprep.subr.mxu0 0.0
        %823 = vmatpush2.msra.mxu0 0.0
        %824 = vmatprep.subr.mxu0 0.0
        %825 = vmatpush2.msra.mxu0 0.0
        %826 = vmatprep.subr.mxu0 0.0
        %827 = vmatpush2.msra.mxu0 0.0
        %828 = vmatprep.subr.mxu0 0.0
        %829 = vmatpush2.msra.mxu0 0.0
        %830 = vmatprep.subr.mxu0 0.0
        %831 = vmatpush2.msra.mxu0 0.0
        %832 = vmatprep.subr.mxu0 0.0
        %833 = vmatpush2.msra.mxu0 0.0
        %834 = vmatprep.subr.mxu0 0.0
        %835 = vmatpush2.msra.mxu0 0.0
        %836 = vmatprep.subr.mxu0 0.0
        %837 = vmatpush2.msra.mxu0 0.0
        %838 = vmatprep.subr.mxu0 0.0
        %839 = vmatpush2.msra.mxu0 0.0
        %840 = vmatprep.subr.mxu0 0.0
        %841 = vmatpush2.msra.mxu0 0.0
        %842 = vmatprep.mubr.f32.mxu0 0.0
        %843 = vmatmul.mubr.f32.gmra.mxu0 %v773
        %v844 = vpop.f32.mrf.mxu0
        %v845 = vadd.f32 %v344, %v844
        %v846 = vpop.f32.mrf.mxu0
        %847 = vmatprep.mubr.f32.mxu0 0.0
        %848 = vmatmul.mubr.f32.gmra.mxu0 %v776
        %v849 = vpop.f32.mrf.mxu0
        %v850 = vadd.f32 %v344, %v849
        %v851 = vpop.f32.mrf.mxu0
        %852 = vdwg.mxu0
        %v853 = vmul.f32 %v845, %v431
        %v854 = vmul.f32 %v850, %v436
        %v856 = vsel %vm346, %v316, 0
        %v859 = vsel %vm346, %v317, 0
        %861 = vmatprep.subr.mxu0 0.0
        %862 = vmatpush1.msra.mxu0 0.0
        %863 = vmatprep.subr.mxu0 0.0
        %864 = vmatpush1.msra.mxu0 0.0
        %865 = vmatprep.subr.mxu0 0.0
        %866 = vmatpush1.msra.mxu0 0.0
        %867 = vmatprep.subr.mxu0 0.0
        %868 = vmatpush1.msra.mxu0 0.0
        %869 = vmatprep.subr.mxu0 0.0
        %870 = vmatpush1.msra.mxu0 0.0
        %871 = vmatprep.subr.mxu0 0.0
        %872 = vmatpush1.msra.mxu0 0.0
        %873 = vmatprep.subr.mxu0 0.0
        %874 = vmatpush1.msra.mxu0 0.0
        %875 = vmatprep.subr.mxu0 0.0
        %876 = vmatpush1.msra.mxu0 0.0
        %877 = vmatprep.subr.mxu0 0.0
        %878 = vmatpush1.msra.mxu0 0.0
        %879 = vmatprep.subr.mxu0 0.0
        %880 = vmatpush1.msra.mxu0 0.0
        %881 = vmatprep.subr.mxu0 0.0
        %882 = vmatpush1.msra.mxu0 0.0
        %883 = vmatprep.subr.mxu0 0.0
        %884 = vmatpush1.msra.mxu0 0.0
        %885 = vmatprep.subr.mxu0 0.0
        %886 = vmatpush1.msra.mxu0 %v325
        %887 = vmatprep.subr.mxu0 0.0
        %888 = vmatpush1.msra.mxu0 %v324
        %889 = vmatprep.subr.mxu0 0.0
        %890 = vmatpush1.msra.mxu0 %v323
        %891 = vmatprep.subr.mxu0 0.0
        %892 = vmatpush1.msra.mxu0 %v322
        %893 = vmatprep.subr.mxu0 0.0
        %894 = vmatpush2.msra.mxu0 0.0
        %895 = vmatprep.subr.mxu0 0.0
        %896 = vmatpush2.msra.mxu0 0.0
        %897 = vmatprep.subr.mxu0 0.0
        %898 = vmatpush2.msra.mxu0 0.0
        %899 = vmatprep.subr.mxu0 0.0
        %900 = vmatpush2.msra.mxu0 0.0
        %901 = vmatprep.subr.mxu0 0.0
        %902 = vmatpush2.msra.mxu0 0.0
        %903 = vmatprep.subr.mxu0 0.0
        %904 = vmatpush2.msra.mxu0 0.0
        %905 = vmatprep.subr.mxu0 0.0
        %906 = vmatpush2.msra.mxu0 0.0
        %907 = vmatprep.subr.mxu0 0.0
        %908 = vmatpush2.msra.mxu0 0.0
        %909 = vmatprep.subr.mxu0 0.0
        %910 = vmatpush2.msra.mxu0 0.0
        %911 = vmatprep.subr.mxu0 0.0
        %912 = vmatpush2.msra.mxu0 0.0
        %913 = vmatprep.subr.mxu0 0.0
        %914 = vmatpush2.msra.mxu0 0.0
        %915 = vmatprep.subr.mxu0 0.0
        %916 = vmatpush2.msra.mxu0 0.0
        %917 = vmatprep.subr.mxu0 0.0
        %918 = vmatpush2.msra.mxu0 0.0
        %919 = vmatprep.subr.mxu0 0.0
        %920 = vmatpush2.msra.mxu0 0.0
        %921 = vmatprep.subr.mxu0 0.0
        %922 = vmatpush2.msra.mxu0 0.0
        %923 = vmatprep.subr.mxu0 0.0
        %924 = vmatpush2.msra.mxu0 0.0
        %925 = vmatprep.mubr.f32.mxu0 0.0
        %926 = vmatmul.mubr.f32.gmra.mxu0 %v856
        %v927 = vpop.f32.mrf.mxu0
        %v928 = vadd.f32 %v344, %v927
        %v929 = vpop.f32.mrf.mxu0
        %930 = vmatprep.mubr.f32.mxu0 0.0
        %931 = vmatmul.mubr.f32.gmra.mxu0 %v859
        %v932 = vpop.f32.mrf.mxu0
        %v933 = vadd.f32 %v344, %v932
        %v934 = vpop.f32.mrf.mxu0
        %935 = vdwg.mxu0
        %v936 = vmul.f32 %v928, %v431
        %v937 = vmul.f32 %v933, %v436
        %v939 = vsel %vm346, %v318, 0
        %v942 = vsel %vm346, %v319, 0
        %944 = vmatprep.subr.mxu0 0.0
        %945 = vmatpush1.msra.mxu0 0.0
        %946 = vmatprep.subr.mxu0 0.0
        %947 = vmatpush1.msra.mxu0 0.0
        %948 = vmatprep.subr.mxu0 0.0
        %949 = vmatpush1.msra.mxu0 0.0
        %950 = vmatprep.subr.mxu0 0.0
        %951 = vmatpush1.msra.mxu0 0.0
        %952 = vmatprep.subr.mxu0 0.0
        %953 = vmatpush1.msra.mxu0 0.0
        %954 = vmatprep.subr.mxu0 0.0
        %955 = vmatpush1.msra.mxu0 0.0
        %956 = vmatprep.subr.mxu0 0.0
        %957 = vmatpush1.msra.mxu0 0.0
        %958 = vmatprep.subr.mxu0 0.0
        %959 = vmatpush1.msra.mxu0 0.0
        %960 = vmatprep.subr.mxu0 0.0
        %961 = vmatpush1.msra.mxu0 0.0
        %962 = vmatprep.subr.mxu0 0.0
        %963 = vmatpush1.msra.mxu0 0.0
        %964 = vmatprep.subr.mxu0 0.0
        %965 = vmatpush1.msra.mxu0 0.0
        %966 = vmatprep.subr.mxu0 0.0
        %967 = vmatpush1.msra.mxu0 0.0
        %968 = vmatprep.subr.mxu0 0.0
        %969 = vmatpush1.msra.mxu0 %v325
        %970 = vmatprep.subr.mxu0 0.0
        %971 = vmatpush1.msra.mxu0 %v324
        %972 = vmatprep.subr.mxu0 0.0
        %973 = vmatpush1.msra.mxu0 %v323
        %974 = vmatprep.subr.mxu0 0.0
        %975 = vmatpush1.msra.mxu0 %v322
        %976 = vmatprep.subr.mxu0 0.0
        %977 = vmatpush2.msra.mxu0 0.0
        %978 = vmatprep.subr.mxu0 0.0
        %979 = vmatpush2.msra.mxu0 0.0
        %980 = vmatprep.subr.mxu0 0.0
        %981 = vmatpush2.msra.mxu0 0.0
        %982 = vmatprep.subr.mxu0 0.0
        %983 = vmatpush2.msra.mxu0 0.0
        %984 = vmatprep.subr.mxu0 0.0
        %985 = vmatpush2.msra.mxu0 0.0
        %986 = vmatprep.subr.mxu0 0.0
        %987 = vmatpush2.msra.mxu0 0.0
        %988 = vmatprep.subr.mxu0 0.0
        %989 = vmatpush2.msra.mxu0 0.0
        %990 = vmatprep.subr.mxu0 0.0
        %991 = vmatpush2.msra.mxu0 0.0
        %992 = vmatprep.subr.mxu0 0.0
        %993 = vmatpush2.msra.mxu0 0.0
        %994 = vmatprep.subr.mxu0 0.0
        %995 = vmatpush2.msra.mxu0 0.0
        %996 = vmatprep.subr.mxu0 0.0
        %997 = vmatpush2.msra.mxu0 0.0
        %998 = vmatprep.subr.mxu0 0.0
        %999 = vmatpush2.msra.mxu0 0.0
        %1000 = vmatprep.subr.mxu0 0.0
        %1001 = vmatpush2.msra.mxu0 0.0
        %1002 = vmatprep.subr.mxu0 0.0
        %1003 = vmatpush2.msra.mxu0 0.0
        %1004 = vmatprep.subr.mxu0 0.0
        %1005 = vmatpush2.msra.mxu0 0.0
        %1006 = vmatprep.subr.mxu0 0.0
        %1007 = vmatpush2.msra.mxu0 0.0
        %1008 = vmatprep.mubr.f32.mxu0 0.0
        %1009 = vmatmul.mubr.f32.gmra.mxu0 %v939
        %v1010 = vpop.f32.mrf.mxu0
        %v1011 = vadd.f32 %v344, %v1010
        %v1012 = vpop.f32.mrf.mxu0
        %1013 = vmatprep.mubr.f32.mxu0 0.0
        %1014 = vmatmul.mubr.f32.gmra.mxu0 %v942
        %v1015 = vpop.f32.mrf.mxu0
        %v1016 = vadd.f32 %v344, %v1015
        %v1017 = vpop.f32.mrf.mxu0
        %1018 = vdwg.mxu0
        %v1019 = vmul.f32 %v1011, %v431
        %v1020 = vmul.f32 %v1016, %v436
        %v1021 = vlaneseq
        %v1022 = vshrl.u32 %v1021, 7
        %v1023 = vsub.s32 0, %v1022
        %v1024 = vrot.slane %v327, %v1023
        %v1025 = vmul.f32 %v1024, 0.0
        %v1026 = vadd.f32 %v1025, 0.0
        %v1027 = vlaneseq
        %v1028 = vshrl.u32 %v1027, 7
        %v1029 = vsub.s32 1, %v1028
        %v1030 = vrot.slane %v327, %v1029
        %v1031 = vmul.f32 %v1030, 0.0
        %v1032 = vadd.f32 %v1026, %v1031
        %v1033 = vlaneseq
        %v1034 = vshrl.u32 %v1033, 7
        %v1035 = vsub.s32 2, %v1034
        %v1036 = vrot.slane %v327, %v1035
        %v1037 = vmul.f32 %v1036, 0.0
        %v1038 = vadd.f32 %v1032, %v1037
        %v1039 = vlaneseq
        %v1040 = vshrl.u32 %v1039, 7
        %v1041 = vsub.s32 0, %v1040
        %v1042 = vrot.slane %v328, %v1041
        %v1043 = vmul.f32 %v438, %v1042
        %v1044 = vadd.f32 %v1038, %v1043
        %v1045 = vlaneseq
        %v1046 = vshrl.u32 %v1045, 7
        %v1047 = vsub.s32 1, %v1046
        %v1048 = vrot.slane %v328, %v1047
        %v1049 = vmul.f32 %v438, %v1048
        %v1050 = vmul.f32 %v439, %v1048
        %vm1053 = vcmask 1046528
        %v1054 = vrot.slane %v1049, 1
        %v1055 = vrot.slane %v1050, 1
        %v1056 = vsel %vm1053, %v1054, %v1055
        %v1058 = vadd.f32 %v1044, %v1056
        %v1059 = vlaneseq
        %v1060 = vshrl.u32 %v1059, 7
        %v1061 = vsub.s32 2, %v1060
        %v1062 = vrot.slane %v328, %v1061
        %v1063 = vmul.f32 %v438, %v1062
        %v1064 = vmul.f32 %v439, %v1062
        %vm1067 = vcmask 1045504
        %v1068 = vrot.slane %v1063, 2
        %v1069 = vrot.slane %v1064, 2
        %v1070 = vsel %vm1067, %v1068, %v1069
        %v1072 = vadd.f32 %v1058, %v1070
        %v1073 = vlaneseq
        %v1074 = vshrl.u32 %v1073, 7
        %v1075 = vsub.s32 0, %v1074
        %v1076 = vrot.slane %v329, %v1075
        %v1077 = vmul.f32 %v521, %v1076
        %v1078 = vadd.f32 %v1072, %v1077
        %v1079 = vlaneseq
        %v1080 = vshrl.u32 %v1079, 7
        %v1081 = vsub.s32 1, %v1080
        %v1082 = vrot.slane %v329, %v1081
        %v1083 = vmul.f32 %v521, %v1082
        %v1084 = vmul.f32 %v522, %v1082
        %v1087 = vrot.slane %v1083, 1
        %v1088 = vrot.slane %v1084, 1
        %v1089 = vsel %vm1053, %v1087, %v1088
        %v1091 = vadd.f32 %v1078, %v1089
        %v1092 = vlaneseq
        %v1093 = vshrl.u32 %v1092, 7
        %v1094 = vsub.s32 2, %v1093
        %v1095 = vrot.slane %v329, %v1094
        %v1096 = vmul.f32 %v521, %v1095
        %v1097 = vmul.f32 %v522, %v1095
        %v1100 = vrot.slane %v1096, 2
        %v1101 = vrot.slane %v1097, 2
        %v1102 = vsel %vm1067, %v1100, %v1101
        %v1104 = vadd.f32 %v1091, %v1102
        %v1106 = vlaneseq
        %v1107 = vshrl.u32 %v1106, 7
        %v1108 = vsub.s32 0, %v1107
        %v1109 = vrot.slane %v330, %v1108
        %v1111 = vadd.f32 %v1104, %v1109
        %v1112 = vmax.f32 %v1111, 0.0
        %vm1113 = vcmask 523264
        %v1115 = vsel %vm1113, %v1112, 0
        %1117 = vmatprep.subr.mxu0 0.0
        %1118 = vmatpush1.msra.mxu0 0.0
        %1119 = vmatprep.subr.mxu0 0.0
        %1120 = vmatpush1.msra.mxu0 0.0
        %1121 = vmatprep.subr.mxu0 0.0
        %1122 = vmatpush1.msra.mxu0 0.0
        %1123 = vmatprep.subr.mxu0 0.0
        %1124 = vmatpush1.msra.mxu0 0.0
        %1125 = vmatprep.subr.mxu0 0.0
        %1126 = vmatpush1.msra.mxu0 0.0
        %1127 = vmatprep.subr.mxu0 0.0
        %1128 = vmatpush1.msra.mxu0 0.0
        %1129 = vmatprep.subr.mxu0 0.0
        %1130 = vmatpush1.msra.mxu0 0.0
        %1131 = vmatprep.subr.mxu0 0.0
        %1132 = vmatpush1.msra.mxu0 0.0
        %1133 = vmatprep.subr.mxu0 0.0
        %1134 = vmatpush1.msra.mxu0 %v338
        %1135 = vmatprep.subr.mxu0 0.0
        %1136 = vmatpush1.msra.mxu0 %v337
        %1137 = vmatprep.subr.mxu0 0.0
        %1138 = vmatpush1.msra.mxu0 %v336
        %1139 = vmatprep.subr.mxu0 0.0
        %1140 = vmatpush1.msra.mxu0 %v335
        %1141 = vmatprep.subr.mxu0 0.0
        %1142 = vmatpush1.msra.mxu0 %v334
        %1143 = vmatprep.subr.mxu0 0.0
        %1144 = vmatpush1.msra.mxu0 %v333
        %1145 = vmatprep.subr.mxu0 0.0
        %1146 = vmatpush1.msra.mxu0 %v332
        %1147 = vmatprep.subr.mxu0 0.0
        %1148 = vmatpush1.msra.mxu0 %v331
        %1149 = vmatprep.subr.mxu0 0.0
        %1150 = vmatpush2.msra.mxu0 0.0
        %1151 = vmatprep.subr.mxu0 0.0
        %1152 = vmatpush2.msra.mxu0 0.0
        %1153 = vmatprep.subr.mxu0 0.0
        %1154 = vmatpush2.msra.mxu0 0.0
        %1155 = vmatprep.subr.mxu0 0.0
        %1156 = vmatpush2.msra.mxu0 0.0
        %1157 = vmatprep.subr.mxu0 0.0
        %1158 = vmatpush2.msra.mxu0 0.0
        %1159 = vmatprep.subr.mxu0 0.0
        %1160 = vmatpush2.msra.mxu0 0.0
        %1161 = vmatprep.subr.mxu0 0.0
        %1162 = vmatpush2.msra.mxu0 0.0
        %1163 = vmatprep.subr.mxu0 0.0
        %1164 = vmatpush2.msra.mxu0 0.0
        %1165 = vmatprep.subr.mxu0 0.0
        %1166 = vmatpush2.msra.mxu0 0.0
        %1167 = vmatprep.subr.mxu0 0.0
        %1168 = vmatpush2.msra.mxu0 0.0
        %1169 = vmatprep.subr.mxu0 0.0
        %1170 = vmatpush2.msra.mxu0 0.0
        %1171 = vmatprep.subr.mxu0 0.0
        %1172 = vmatpush2.msra.mxu0 0.0
        %1173 = vmatprep.subr.mxu0 0.0
        %1174 = vmatpush2.msra.mxu0 0.0
        %1175 = vmatprep.subr.mxu0 0.0
        %1176 = vmatpush2.msra.mxu0 0.0
        %1177 = vmatprep.subr.mxu0 0.0
        %1178 = vmatpush2.msra.mxu0 0.0
        %1179 = vmatprep.subr.mxu0 0.0
        %1180 = vmatpush2.msra.mxu0 0.0
        %1181 = vmatprep.mubr.f32.mxu0 0.0
        %1182 = vmatmul.mubr.f32.gmra.mxu0 %v1115
        %v1183 = vpop.f32.mrf.mxu0
        %v1184 = vadd.f32 0.0, %v1183
        %v1185 = vpop.f32.mrf.mxu0
        %1186 = vdwg.mxu0
        %v1188 = vrot.slane %v1184, 7
        %v1190 = vadd.f32 %v304, %v1188
        %v1191 = vadd.f32 %v305, %v1188
        %v1193 = vlaneseq
        %v1194 = vshrl.u32 %v1193, 7
        %v1195 = vsub.s32 0, %v1194
        %v1196 = vrot.slane %v339, %v1195
        %v1198 = vadd.f32 %v1190, %v1196
        %v1199 = vadd.f32 %v1191, %v1196
        %vm1200 = vcmask 261121
        %1201 = vst.msk [vmem:[%s298 - $0x1] sm:$0xfe] %vm1200, %v1198
        %vm1202 = vcmask 253952
        %1203 = vst.msk [vmem:[%s298 + $0x7] sm:$0x1] %vm1202, %v1199
        %v1204 = vmul.f32 %v438, %v1024
        %v1205 = vadd.f32 %v1204, 0.0
        %v1206 = vmul.f32 %v438, %v1030
        %v1207 = vmul.f32 %v439, %v1030
        %v1210 = vrot.slane %v1206, 1
        %v1211 = vrot.slane %v1207, 1
        %v1212 = vsel %vm1053, %v1210, %v1211
        %v1214 = vadd.f32 %v1205, %v1212
        %v1215 = vmul.f32 %v438, %v1036
        %v1216 = vmul.f32 %v439, %v1036
        %v1219 = vrot.slane %v1215, 2
        %v1220 = vrot.slane %v1216, 2
        %v1221 = vsel %vm1067, %v1219, %v1220
        %v1223 = vadd.f32 %v1214, %v1221
        %v1224 = vmul.f32 %v521, %v1042
        %v1225 = vadd.f32 %v1223, %v1224
        %v1226 = vmul.f32 %v521, %v1048
        %v1227 = vmul.f32 %v522, %v1048
        %v1230 = vrot.slane %v1226, 1
        %v1231 = vrot.slane %v1227, 1
        %v1232 = vsel %vm1053, %v1230, %v1231
        %v1234 = vadd.f32 %v1225, %v1232
        %v1235 = vmul.f32 %v521, %v1062
        %v1236 = vmul.f32 %v522, %v1062
        %v1239 = vrot.slane %v1235, 2
        %v1240 = vrot.slane %v1236, 2
        %v1241 = vsel %vm1067, %v1239, %v1240
        %v1243 = vadd.f32 %v1234, %v1241
        %v1244 = vmul.f32 %v604, %v1076
        %v1245 = vadd.f32 %v1243, %v1244
        %v1246 = vmul.f32 %v604, %v1082
        %v1247 = vmul.f32 %v605, %v1082
        %v1250 = vrot.slane %v1246, 1
        %v1251 = vrot.slane %v1247, 1
        %v1252 = vsel %vm1053, %v1250, %v1251
        %v1254 = vadd.f32 %v1245, %v1252
        %v1255 = vmul.f32 %v604, %v1095
        %v1256 = vmul.f32 %v605, %v1095
        %v1259 = vrot.slane %v1255, 2
        %v1260 = vrot.slane %v1256, 2
        %v1261 = vsel %vm1067, %v1259, %v1260
        %v1263 = vadd.f32 %v1254, %v1261
        %v1264 = vadd.f32 %v1263, %v1109
        %v1265 = vmax.f32 %v1264, 0.0
        %v1267 = vsel %vm1113, %v1265, 0
        %1269 = vmatprep.subr.mxu0 0.0
        %1270 = vmatpush1.msra.mxu0 0.0
        %1271 = vmatprep.subr.mxu0 0.0
        %1272 = vmatpush1.msra.mxu0 0.0
        %1273 = vmatprep.subr.mxu0 0.0
        %1274 = vmatpush1.msra.mxu0 0.0
        %1275 = vmatprep.subr.mxu0 0.0
        %1276 = vmatpush1.msra.mxu0 0.0
        %1277 = vmatprep.subr.mxu0 0.0
        %1278 = vmatpush1.msra.mxu0 0.0
        %1279 = vmatprep.subr.mxu0 0.0
        %1280 = vmatpush1.msra.mxu0 0.0
        %1281 = vmatprep.subr.mxu0 0.0
        %1282 = vmatpush1.msra.mxu0 0.0
        %1283 = vmatprep.subr.mxu0 0.0
        %1284 = vmatpush1.msra.mxu0 0.0
        %1285 = vmatprep.subr.mxu0 0.0
        %1286 = vmatpush1.msra.mxu0 %v338
        %1287 = vmatprep.subr.mxu0 0.0
        %1288 = vmatpush1.msra.mxu0 %v337
        %1289 = vmatprep.subr.mxu0 0.0
        %1290 = vmatpush1.msra.mxu0 %v336
        %1291 = vmatprep.subr.mxu0 0.0
        %1292 = vmatpush1.msra.mxu0 %v335
        %1293 = vmatprep.subr.mxu0 0.0
        %1294 = vmatpush1.msra.mxu0 %v334
        %1295 = vmatprep.subr.mxu0 0.0
        %1296 = vmatpush1.msra.mxu0 %v333
        %1297 = vmatprep.subr.mxu0 0.0
        %1298 = vmatpush1.msra.mxu0 %v332
        %1299 = vmatprep.subr.mxu0 0.0
        %1300 = vmatpush1.msra.mxu0 %v331
        %1301 = vmatprep.subr.mxu0 0.0
        %1302 = vmatpush2.msra.mxu0 0.0
        %1303 = vmatprep.subr.mxu0 0.0
        %1304 = vmatpush2.msra.mxu0 0.0
        %1305 = vmatprep.subr.mxu0 0.0
        %1306 = vmatpush2.msra.mxu0 0.0
        %1307 = vmatprep.subr.mxu0 0.0
        %1308 = vmatpush2.msra.mxu0 0.0
        %1309 = vmatprep.subr.mxu0 0.0
        %1310 = vmatpush2.msra.mxu0 0.0
        %1311 = vmatprep.subr.mxu0 0.0
        %1312 = vmatpush2.msra.mxu0 0.0
        %1313 = vmatprep.subr.mxu0 0.0
        %1314 = vmatpush2.msra.mxu0 0.0
        %1315 = vmatprep.subr.mxu0 0.0
        %1316 = vmatpush2.msra.mxu0 0.0
        %1317 = vmatprep.subr.mxu0 0.0
        %1318 = vmatpush2.msra.mxu0 0.0
        %1319 = vmatprep.subr.mxu0 0.0
        %1320 = vmatpush2.msra.mxu0 0.0
        %1321 = vmatprep.subr.mxu0 0.0
        %1322 = vmatpush2.msra.mxu0 0.0
        %1323 = vmatprep.subr.mxu0 0.0
        %1324 = vmatpush2.msra.mxu0 0.0
        %1325 = vmatprep.subr.mxu0 0.0
        %1326 = vmatpush2.msra.mxu0 0.0
        %1327 = vmatprep.subr.mxu0 0.0
        %1328 = vmatpush2.msra.mxu0 0.0
        %1329 = vmatprep.subr.mxu0 0.0
        %1330 = vmatpush2.msra.mxu0 0.0
        %1331 = vmatprep.subr.mxu0 0.0
        %1332 = vmatpush2.msra.mxu0 0.0
        %1333 = vmatprep.mubr.f32.mxu0 0.0
        %1334 = vmatmul.mubr.f32.gmra.mxu0 %v1267
        %v1335 = vpop.f32.mrf.mxu0
        %v1336 = vadd.f32 0.0, %v1335
        %v1337 = vpop.f32.mrf.mxu0
        %1338 = vdwg.mxu0
        %v1340 = vrot.slane %v1336, 7
        %v1342 = vadd.f32 %v306, %v1340
        %v1343 = vadd.f32 %v307, %v1340
        %v1344 = vadd.f32 %v1342, %v1196
        %v1345 = vadd.f32 %v1343, %v1196
        %s1346 = scalar_lea.vmem %s298, 8 [#allocation2]
        %1347 = vst.msk [vmem:[%s1346 - $0x1] sm:$0xfe] %vm1200, %v1344
        %1348 = vst.msk [vmem:[%s1346 + $0x7] sm:$0x1] %vm1202, %v1345
        %v1349 = vmul.f32 %v521, %v1024
        %v1350 = vadd.f32 %v1349, 0.0
        %v1351 = vmul.f32 %v521, %v1030
        %v1352 = vmul.f32 %v522, %v1030
        %v1355 = vrot.slane %v1351, 1
        %v1356 = vrot.slane %v1352, 1
        %v1357 = vsel %vm1053, %v1355, %v1356
        %v1359 = vadd.f32 %v1350, %v1357
        %v1360 = vmul.f32 %v521, %v1036
        %v1361 = vmul.f32 %v522, %v1036
        %v1364 = vrot.slane %v1360, 2
        %v1365 = vrot.slane %v1361, 2
        %v1366 = vsel %vm1067, %v1364, %v1365
        %v1368 = vadd.f32 %v1359, %v1366
        %v1369 = vmul.f32 %v604, %v1042
        %v1370 = vadd.f32 %v1368, %v1369
        %v1371 = vmul.f32 %v604, %v1048
        %v1372 = vmul.f32 %v605, %v1048
        %v1375 = vrot.slane %v1371, 1
        %v1376 = vrot.slane %v1372, 1
        %v1377 = vsel %vm1053, %v1375, %v1376
        %v1379 = vadd.f32 %v1370, %v1377
        %v1380 = vmul.f32 %v604, %v1062
        %v1381 = vmul.f32 %v605, %v1062
        %v1384 = vrot.slane %v1380, 2
        %v1385 = vrot.slane %v1381, 2
        %v1386 = vsel %vm1067, %v1384, %v1385
        %v1388 = vadd.f32 %v1379, %v1386
        %v1389 = vmul.f32 %v687, %v1076
        %v1390 = vadd.f32 %v1388, %v1389
        %v1391 = vmul.f32 %v687, %v1082
        %v1392 = vmul.f32 %v688, %v1082
        %v1395 = vrot.slane %v1391, 1
        %v1396 = vrot.slane %v1392, 1
        %v1397 = vsel %vm1053, %v1395, %v1396
        %v1399 = vadd.f32 %v1390, %v1397
        %v1400 = vmul.f32 %v687, %v1095
        %v1401 = vmul.f32 %v688, %v1095
        %v1404 = vrot.slane %v1400, 2
        %v1405 = vrot.slane %v1401, 2
        %v1406 = vsel %vm1067, %v1404, %v1405
        %v1408 = vadd.f32 %v1399, %v1406
        %v1409 = vadd.f32 %v1408, %v1109
        %v1410 = vmax.f32 %v1409, 0.0
        %v1412 = vsel %vm1113, %v1410, 0
        %1414 = vmatprep.subr.mxu0 0.0
        %1415 = vmatpush1.msra.mxu0 0.0
        %1416 = vmatprep.subr.mxu0 0.0
        %1417 = vmatpush1.msra.mxu0 0.0
        %1418 = vmatprep.subr.mxu0 0.0
        %1419 = vmatpush1.msra.mxu0 0.0
        %1420 = vmatprep.subr.mxu0 0.0
        %1421 = vmatpush1.msra.mxu0 0.0
        %1422 = vmatprep.subr.mxu0 0.0
        %1423 = vmatpush1.msra.mxu0 0.0
        %1424 = vmatprep.subr.mxu0 0.0
        %1425 = vmatpush1.msra.mxu0 0.0
        %1426 = vmatprep.subr.mxu0 0.0
        %1427 = vmatpush1.msra.mxu0 0.0
        %1428 = vmatprep.subr.mxu0 0.0
        %1429 = vmatpush1.msra.mxu0 0.0
        %1430 = vmatprep.subr.mxu0 0.0
        %1431 = vmatpush1.msra.mxu0 %v338
        %1432 = vmatprep.subr.mxu0 0.0
        %1433 = vmatpush1.msra.mxu0 %v337
        %1434 = vmatprep.subr.mxu0 0.0
        %1435 = vmatpush1.msra.mxu0 %v336
        %1436 = vmatprep.subr.mxu0 0.0
        %1437 = vmatpush1.msra.mxu0 %v335
        %1438 = vmatprep.subr.mxu0 0.0
        %1439 = vmatpush1.msra.mxu0 %v334
        %1440 = vmatprep.subr.mxu0 0.0
        %1441 = vmatpush1.msra.mxu0 %v333
        %1442 = vmatprep.subr.mxu0 0.0
        %1443 = vmatpush1.msra.mxu0 %v332
        %1444 = vmatprep.subr.mxu0 0.0
        %1445 = vmatpush1.msra.mxu0 %v331
        %1446 = vmatprep.subr.mxu0 0.0
        %1447 = vmatpush2.msra.mxu0 0.0
        %1448 = vmatprep.subr.mxu0 0.0
        %1449 = vmatpush2.msra.mxu0 0.0
        %1450 = vmatprep.subr.mxu0 0.0
        %1451 = vmatpush2.msra.mxu0 0.0
        %1452 = vmatprep.subr.mxu0 0.0
        %1453 = vmatpush2.msra.mxu0 0.0
        %1454 = vmatprep.subr.mxu0 0.0
        %1455 = vmatpush2.msra.mxu0 0.0
        %1456 = vmatprep.subr.mxu0 0.0
        %1457 = vmatpush2.msra.mxu0 0.0
        %1458 = vmatprep.subr.mxu0 0.0
        %1459 = vmatpush2.msra.mxu0 0.0
        %1460 = vmatprep.subr.mxu0 0.0
        %1461 = vmatpush2.msra.mxu0 0.0
        %1462 = vmatprep.subr.mxu0 0.0
        %1463 = vmatpush2.msra.mxu0 0.0
        %1464 = vmatprep.subr.mxu0 0.0
        %1465 = vmatpush2.msra.mxu0 0.0
        %1466 = vmatprep.subr.mxu0 0.0
        %1467 = vmatpush2.msra.mxu0 0.0
        %1468 = vmatprep.subr.mxu0 0.0
        %1469 = vmatpush2.msra.mxu0 0.0
        %1470 = vmatprep.subr.mxu0 0.0
        %1471 = vmatpush2.msra.mxu0 0.0
        %1472 = vmatprep.subr.mxu0 0.0
        %1473 = vmatpush2.msra.mxu0 0.0
        %1474 = vmatprep.subr.mxu0 0.0
        %1475 = vmatpush2.msra.mxu0 0.0
        %1476 = vmatprep.subr.mxu0 0.0
        %1477 = vmatpush2.msra.mxu0 0.0
        %1478 = vmatprep.mubr.f32.mxu0 0.0
        %1479 = vmatmul.mubr.f32.gmra.mxu0 %v1412
        %v1480 = vpop.f32.mrf.mxu0
        %v1481 = vadd.f32 0.0, %v1480
        %v1482 = vpop.f32.mrf.mxu0
        %1483 = vdwg.mxu0
        %v1485 = vrot.slane %v1481, 7
        %v1487 = vadd.f32 %v308, %v1485
        %v1488 = vadd.f32 %v309, %v1485
        %v1489 = vadd.f32 %v1487, %v1196
        %v1490 = vadd.f32 %v1488, %v1196
        %s1491 = scalar_lea.vmem %s298, 16 [#allocation2]
        %1492 = vst.msk [vmem:[%s1491 - $0x1] sm:$0xfe] %vm1200, %v1489
        %1493 = vst.msk [vmem:[%s1491 + $0x7] sm:$0x1] %vm1202, %v1490
        %v1494 = vmul.f32 %v604, %v1024
        %v1495 = vadd.f32 %v1494, 0.0
        %v1496 = vmul.f32 %v604, %v1030
        %v1497 = vmul.f32 %v605, %v1030
        %v1500 = vrot.slane %v1496, 1
        %v1501 = vrot.slane %v1497, 1
        %v1502 = vsel %vm1053, %v1500, %v1501
        %v1504 = vadd.f32 %v1495, %v1502
        %v1505 = vmul.f32 %v604, %v1036
        %v1506 = vmul.f32 %v605, %v1036
        %v1509 = vrot.slane %v1505, 2
        %v1510 = vrot.slane %v1506, 2
        %v1511 = vsel %vm1067, %v1509, %v1510
        %v1513 = vadd.f32 %v1504, %v1511
        %v1514 = vmul.f32 %v687, %v1042
        %v1515 = vadd.f32 %v1513, %v1514
        %v1516 = vmul.f32 %v687, %v1048
        %v1517 = vmul.f32 %v688, %v1048
        %v1520 = vrot.slane %v1516, 1
        %v1521 = vrot.slane %v1517, 1
        %v1522 = vsel %vm1053, %v1520, %v1521
        %v1524 = vadd.f32 %v1515, %v1522
        %v1525 = vmul.f32 %v687, %v1062
        %v1526 = vmul.f32 %v688, %v1062
        %v1529 = vrot.slane %v1525, 2
        %v1530 = vrot.slane %v1526, 2
        %v1531 = vsel %vm1067, %v1529, %v1530
        %v1533 = vadd.f32 %v1524, %v1531
        %v1534 = vmul.f32 %v770, %v1076
        %v1535 = vadd.f32 %v1533, %v1534
        %v1536 = vmul.f32 %v770, %v1082
        %v1537 = vmul.f32 %v771, %v1082
        %v1540 = vrot.slane %v1536, 1
        %v1541 = vrot.slane %v1537, 1
        %v1542 = vsel %vm1053, %v1540, %v1541
        %v1544 = vadd.f32 %v1535, %v1542
        %v1545 = vmul.f32 %v770, %v1095
        %v1546 = vmul.f32 %v771, %v1095
        %v1549 = vrot.slane %v1545, 2
        %v1550 = vrot.slane %v1546, 2
        %v1551 = vsel %vm1067, %v1549, %v1550
        %v1553 = vadd.f32 %v1544, %v1551
        %v1554 = vadd.f32 %v1553, %v1109
        %v1555 = vmax.f32 %v1554, 0.0
        %v1557 = vsel %vm1113, %v1555, 0
        %1559 = vmatprep.subr.mxu0 0.0
        %1560 = vmatpush1.msra.mxu0 0.0
        %1561 = vmatprep.subr.mxu0 0.0
        %1562 = vmatpush1.msra.mxu0 0.0
        %1563 = vmatprep.subr.mxu0 0.0
        %1564 = vmatpush1.msra.mxu0 0.0
        %1565 = vmatprep.subr.mxu0 0.0
        %1566 = vmatpush1.msra.mxu0 0.0
        %1567 = vmatprep.subr.mxu0 0.0
        %1568 = vmatpush1.msra.mxu0 0.0
        %1569 = vmatprep.subr.mxu0 0.0
        %1570 = vmatpush1.msra.mxu0 0.0
        %1571 = vmatprep.subr.mxu0 0.0
        %1572 = vmatpush1.msra.mxu0 0.0
        %1573 = vmatprep.subr.mxu0 0.0
        %1574 = vmatpush1.msra.mxu0 0.0
        %1575 = vmatprep.subr.mxu0 0.0
        %1576 = vmatpush1.msra.mxu0 %v338
        %1577 = vmatprep.subr.mxu0 0.0
        %1578 = vmatpush1.msra.mxu0 %v337
        %1579 = vmatprep.subr.mxu0 0.0
        %1580 = vmatpush1.msra.mxu0 %v336
        %1581 = vmatprep.subr.mxu0 0.0
        %1582 = vmatpush1.msra.mxu0 %v335
        %1583 = vmatprep.subr.mxu0 0.0
        %1584 = vmatpush1.msra.mxu0 %v334
        %1585 = vmatprep.subr.mxu0 0.0
        %1586 = vmatpush1.msra.mxu0 %v333
        %1587 = vmatprep.subr.mxu0 0.0
        %1588 = vmatpush1.msra.mxu0 %v332
        %1589 = vmatprep.subr.mxu0 0.0
        %1590 = vmatpush1.msra.mxu0 %v331
        %1591 = vmatprep.subr.mxu0 0.0
        %1592 = vmatpush2.msra.mxu0 0.0
        %1593 = vmatprep.subr.mxu0 0.0
        %1594 = vmatpush2.msra.mxu0 0.0
        %1595 = vmatprep.subr.mxu0 0.0
        %1596 = vmatpush2.msra.mxu0 0.0
        %1597 = vmatprep.subr.mxu0 0.0
        %1598 = vmatpush2.msra.mxu0 0.0
        %1599 = vmatprep.subr.mxu0 0.0
        %1600 = vmatpush2.msra.mxu0 0.0
        %1601 = vmatprep.subr.mxu0 0.0
        %1602 = vmatpush2.msra.mxu0 0.0
        %1603 = vmatprep.subr.mxu0 0.0
        %1604 = vmatpush2.msra.mxu0 0.0
        %1605 = vmatprep.subr.mxu0 0.0
        %1606 = vmatpush2.msra.mxu0 0.0
        %1607 = vmatprep.subr.mxu0 0.0
        %1608 = vmatpush2.msra.mxu0 0.0
        %1609 = vmatprep.subr.mxu0 0.0
        %1610 = vmatpush2.msra.mxu0 0.0
        %1611 = vmatprep.subr.mxu0 0.0
        %1612 = vmatpush2.msra.mxu0 0.0
        %1613 = vmatprep.subr.mxu0 0.0
        %1614 = vmatpush2.msra.mxu0 0.0
        %1615 = vmatprep.subr.mxu0 0.0
        %1616 = vmatpush2.msra.mxu0 0.0
        %1617 = vmatprep.subr.mxu0 0.0
        %1618 = vmatpush2.msra.mxu0 0.0
        %1619 = vmatprep.subr.mxu0 0.0
        %1620 = vmatpush2.msra.mxu0 0.0
        %1621 = vmatprep.subr.mxu0 0.0
        %1622 = vmatpush2.msra.mxu0 0.0
        %1623 = vmatprep.mubr.f32.mxu0 0.0
        %1624 = vmatmul.mubr.f32.gmra.mxu0 %v1557
        %v1625 = vpop.f32.mrf.mxu0
        %v1626 = vadd.f32 0.0, %v1625
        %v1627 = vpop.f32.mrf.mxu0
        %1628 = vdwg.mxu0
        %v1630 = vrot.slane %v1626, 7
        %v1632 = vadd.f32 %v310, %v1630
        %v1633 = vadd.f32 %v311, %v1630
        %v1634 = vadd.f32 %v1632, %v1196
        %v1635 = vadd.f32 %v1633, %v1196
        %s1636 = scalar_lea.vmem %s298, 24 [#allocation2]
        %1637 = vst.msk [vmem:[%s1636 - $0x1] sm:$0xfe] %vm1200, %v1634
        %1638 = vst.msk [vmem:[%s1636 + $0x7] sm:$0x1] %vm1202, %v1635
        %v1639 = vmul.f32 %v687, %v1024
        %v1640 = vadd.f32 %v1639, 0.0
        %v1641 = vmul.f32 %v687, %v1030
        %v1642 = vmul.f32 %v688, %v1030
        %v1645 = vrot.slane %v1641, 1
        %v1646 = vrot.slane %v1642, 1
        %v1647 = vsel %vm1053, %v1645, %v1646
        %v1649 = vadd.f32 %v1640, %v1647
        %v1650 = vmul.f32 %v687, %v1036
        %v1651 = vmul.f32 %v688, %v1036
        %v1654 = vrot.slane %v1650, 2
        %v1655 = vrot.slane %v1651, 2
        %v1656 = vsel %vm1067, %v1654, %v1655
        %v1658 = vadd.f32 %v1649, %v1656
        %v1659 = vmul.f32 %v770, %v1042
        %v1660 = vadd.f32 %v1658, %v1659
        %v1661 = vmul.f32 %v770, %v1048
        %v1662 = vmul.f32 %v771, %v1048
        %v1665 = vrot.slane %v1661, 1
        %v1666 = vrot.slane %v1662, 1
        %v1667 = vsel %vm1053, %v1665, %v1666
        %v1669 = vadd.f32 %v1660, %v1667
        %v1670 = vmul.f32 %v770, %v1062
        %v1671 = vmul.f32 %v771, %v1062
        %v1674 = vrot.slane %v1670, 2
        %v1675 = vrot.slane %v1671, 2
        %v1676 = vsel %vm1067, %v1674, %v1675
        %v1678 = vadd.f32 %v1669, %v1676
        %v1679 = vmul.f32 %v853, %v1076
        %v1680 = vadd.f32 %v1678, %v1679
        %v1681 = vmul.f32 %v853, %v1082
        %v1682 = vmul.f32 %v854, %v1082
        %v1685 = vrot.slane %v1681, 1
        %v1686 = vrot.slane %v1682, 1
        %v1687 = vsel %vm1053, %v1685, %v1686
        %v1689 = vadd.f32 %v1680, %v1687
        %v1690 = vmul.f32 %v853, %v1095
        %v1691 = vmul.f32 %v854, %v1095
        %v1694 = vrot.slane %v1690, 2
        %v1695 = vrot.slane %v1691, 2
        %v1696 = vsel %vm1067, %v1694, %v1695
        %v1698 = vadd.f32 %v1689, %v1696
        %v1699 = vadd.f32 %v1698, %v1109
        %v1700 = vmax.f32 %v1699, 0.0
        %v1702 = vsel %vm1113, %v1700, 0
        %1704 = vmatprep.subr.mxu0 0.0
        %1705 = vmatpush1.msra.mxu0 0.0
        %1706 = vmatprep.subr.mxu0 0.0
        %1707 = vmatpush1.msra.mxu0 0.0
        %1708 = vmatprep.subr.mxu0 0.0
        %1709 = vmatpush1.msra.mxu0 0.0
        %1710 = vmatprep.subr.mxu0 0.0
        %1711 = vmatpush1.msra.mxu0 0.0
        %1712 = vmatprep.subr.mxu0 0.0
        %1713 = vmatpush1.msra.mxu0 0.0
        %1714 = vmatprep.subr.mxu0 0.0
        %1715 = vmatpush1.msra.mxu0 0.0
        %1716 = vmatprep.subr.mxu0 0.0
        %1717 = vmatpush1.msra.mxu0 0.0
        %1718 = vmatprep.subr.mxu0 0.0
        %1719 = vmatpush1.msra.mxu0 0.0
        %1720 = vmatprep.subr.mxu0 0.0
        %1721 = vmatpush1.msra.mxu0 %v338
        %1722 = vmatprep.subr.mxu0 0.0
        %1723 = vmatpush1.msra.mxu0 %v337
        %1724 = vmatprep.subr.mxu0 0.0
        %1725 = vmatpush1.msra.mxu0 %v336
        %1726 = vmatprep.subr.mxu0 0.0
        %1727 = vmatpush1.msra.mxu0 %v335
        %1728 = vmatprep.subr.mxu0 0.0
        %1729 = vmatpush1.msra.mxu0 %v334
        %1730 = vmatprep.subr.mxu0 0.0
        %1731 = vmatpush1.msra.mxu0 %v333
        %1732 = vmatprep.subr.mxu0 0.0
        %1733 = vmatpush1.msra.mxu0 %v332
        %1734 = vmatprep.subr.mxu0 0.0
        %1735 = vmatpush1.msra.mxu0 %v331
        %1736 = vmatprep.subr.mxu0 0.0
        %1737 = vmatpush2.msra.mxu0 0.0
        %1738 = vmatprep.subr.mxu0 0.0
        %1739 = vmatpush2.msra.mxu0 0.0
        %1740 = vmatprep.subr.mxu0 0.0
        %1741 = vmatpush2.msra.mxu0 0.0
        %1742 = vmatprep.subr.mxu0 0.0
        %1743 = vmatpush2.msra.mxu0 0.0
        %1744 = vmatprep.subr.mxu0 0.0
        %1745 = vmatpush2.msra.mxu0 0.0
        %1746 = vmatprep.subr.mxu0 0.0
        %1747 = vmatpush2.msra.mxu0 0.0
        %1748 = vmatprep.subr.mxu0 0.0
        %1749 = vmatpush2.msra.mxu0 0.0
        %1750 = vmatprep.subr.mxu0 0.0
        %1751 = vmatpush2.msra.mxu0 0.0
        %1752 = vmatprep.subr.mxu0 0.0
        %1753 = vmatpush2.msra.mxu0 0.0
        %1754 = vmatprep.subr.mxu0 0.0
        %1755 = vmatpush2.msra.mxu0 0.0
        %1756 = vmatprep.subr.mxu0 0.0
        %1757 = vmatpush2.msra.mxu0 0.0
        %1758 = vmatprep.subr.mxu0 0.0
        %1759 = vmatpush2.msra.mxu0 0.0
        %1760 = vmatprep.subr.mxu0 0.0
        %1761 = vmatpush2.msra.mxu0 0.0
        %1762 = vmatprep.subr.mxu0 0.0
        %1763 = vmatpush2.msra.mxu0 0.0
        %1764 = vmatprep.subr.mxu0 0.0
        %1765 = vmatpush2.msra.mxu0 0.0
        %1766 = vmatprep.subr.mxu0 0.0
        %1767 = vmatpush2.msra.mxu0 0.0
        %1768 = vmatprep.mubr.f32.mxu0 0.0
        %1769 = vmatmul.mubr.f32.gmra.mxu0 %v1702
        %v1770 = vpop.f32.mrf.mxu0
        %v1771 = vadd.f32 0.0, %v1770
        %v1772 = vpop.f32.mrf.mxu0
        %1773 = vdwg.mxu0
        %v1775 = vrot.slane %v1771, 7
        %v1777 = vadd.f32 %v312, %v1775
        %v1778 = vadd.f32 %v313, %v1775
        %v1779 = vadd.f32 %v1777, %v1196
        %v1780 = vadd.f32 %v1778, %v1196
        %s1781 = scalar_lea.vmem %s298, 32 [#allocation2]
        %1782 = vst.msk [vmem:[%s1781 - $0x1] sm:$0xfe] %vm1200, %v1779
        %1783 = vst.msk [vmem:[%s1781 + $0x7] sm:$0x1] %vm1202, %v1780
        %v1784 = vmul.f32 %v770, %v1024
        %v1785 = vadd.f32 %v1784, 0.0
        %v1786 = vmul.f32 %v770, %v1030
        %v1787 = vmul.f32 %v771, %v1030
        %v1790 = vrot.slane %v1786, 1
        %v1791 = vrot.slane %v1787, 1
        %v1792 = vsel %vm1053, %v1790, %v1791
        %v1794 = vadd.f32 %v1785, %v1792
        %v1795 = vmul.f32 %v770, %v1036
        %v1796 = vmul.f32 %v771, %v1036
        %v1799 = vrot.slane %v1795, 2
        %v1800 = vrot.slane %v1796, 2
        %v1801 = vsel %vm1067, %v1799, %v1800
        %v1803 = vadd.f32 %v1794, %v1801
        %v1804 = vmul.f32 %v853, %v1042
        %v1805 = vadd.f32 %v1803, %v1804
        %v1806 = vmul.f32 %v853, %v1048
        %v1807 = vmul.f32 %v854, %v1048
        %v1810 = vrot.slane %v1806, 1
        %v1811 = vrot.slane %v1807, 1
        %v1812 = vsel %vm1053, %v1810, %v1811
        %v1814 = vadd.f32 %v1805, %v1812
        %v1815 = vmul.f32 %v853, %v1062
        %v1816 = vmul.f32 %v854, %v1062
        %v1819 = vrot.slane %v1815, 2
        %v1820 = vrot.slane %v1816, 2
        %v1821 = vsel %vm1067, %v1819, %v1820
        %v1823 = vadd.f32 %v1814, %v1821
        %v1824 = vmul.f32 %v936, %v1076
        %v1825 = vadd.f32 %v1823, %v1824
        %v1826 = vmul.f32 %v936, %v1082
        %v1827 = vmul.f32 %v937, %v1082
        %v1830 = vrot.slane %v1826, 1
        %v1831 = vrot.slane %v1827, 1
        %v1832 = vsel %vm1053, %v1830, %v1831
        %v1834 = vadd.f32 %v1825, %v1832
        %v1835 = vmul.f32 %v936, %v1095
        %v1836 = vmul.f32 %v937, %v1095
        %v1839 = vrot.slane %v1835, 2
        %v1840 = vrot.slane %v1836, 2
        %v1841 = vsel %vm1067, %v1839, %v1840
        %v1843 = vadd.f32 %v1834, %v1841
        %v1844 = vadd.f32 %v1843, %v1109
        %v1845 = vmax.f32 %v1844, 0.0
        %v1847 = vsel %vm1113, %v1845, 0
        %1849 = vmatprep.subr.mxu0 0.0
        %1850 = vmatpush1.msra.mxu0 0.0
        %1851 = vmatprep.subr.mxu0 0.0
        %1852 = vmatpush1.msra.mxu0 0.0
        %1853 = vmatprep.subr.mxu0 0.0
        %1854 = vmatpush1.msra.mxu0 0.0
        %1855 = vmatprep.subr.mxu0 0.0
        %1856 = vmatpush1.msra.mxu0 0.0
        %1857 = vmatprep.subr.mxu0 0.0
        %1858 = vmatpush1.msra.mxu0 0.0
        %1859 = vmatprep.subr.mxu0 0.0
        %1860 = vmatpush1.msra.mxu0 0.0
        %1861 = vmatprep.subr.mxu0 0.0
        %1862 = vmatpush1.msra.mxu0 0.0
        %1863 = vmatprep.subr.mxu0 0.0
        %1864 = vmatpush1.msra.mxu0 0.0
        %1865 = vmatprep.subr.mxu0 0.0
        %1866 = vmatpush1.msra.mxu0 %v338
        %1867 = vmatprep.subr.mxu0 0.0
        %1868 = vmatpush1.msra.mxu0 %v337
        %1869 = vmatprep.subr.mxu0 0.0
        %1870 = vmatpush1.msra.mxu0 %v336
        %1871 = vmatprep.subr.mxu0 0.0
        %1872 = vmatpush1.msra.mxu0 %v335
        %1873 = vmatprep.subr.mxu0 0.0
        %1874 = vmatpush1.msra.mxu0 %v334
        %1875 = vmatprep.subr.mxu0 0.0
        %1876 = vmatpush1.msra.mxu0 %v333
        %1877 = vmatprep.subr.mxu0 0.0
        %1878 = vmatpush1.msra.mxu0 %v332
        %1879 = vmatprep.subr.mxu0 0.0
        %1880 = vmatpush1.msra.mxu0 %v331
        %1881 = vmatprep.subr.mxu0 0.0
        %1882 = vmatpush2.msra.mxu0 0.0
        %1883 = vmatprep.subr.mxu0 0.0
        %1884 = vmatpush2.msra.mxu0 0.0
        %1885 = vmatprep.subr.mxu0 0.0
        %1886 = vmatpush2.msra.mxu0 0.0
        %1887 = vmatprep.subr.mxu0 0.0
        %1888 = vmatpush2.msra.mxu0 0.0
        %1889 = vmatprep.subr.mxu0 0.0
        %1890 = vmatpush2.msra.mxu0 0.0
        %1891 = vmatprep.subr.mxu0 0.0
        %1892 = vmatpush2.msra.mxu0 0.0
        %1893 = vmatprep.subr.mxu0 0.0
        %1894 = vmatpush2.msra.mxu0 0.0
        %1895 = vmatprep.subr.mxu0 0.0
        %1896 = vmatpush2.msra.mxu0 0.0
        %1897 = vmatprep.subr.mxu0 0.0
        %1898 = vmatpush2.msra.mxu0 0.0
        %1899 = vmatprep.subr.mxu0 0.0
        %1900 = vmatpush2.msra.mxu0 0.0
        %1901 = vmatprep.subr.mxu0 0.0
        %1902 = vmatpush2.msra.mxu0 0.0
        %1903 = vmatprep.subr.mxu0 0.0
        %1904 = vmatpush2.msra.mxu0 0.0
        %1905 = vmatprep.subr.mxu0 0.0
        %1906 = vmatpush2.msra.mxu0 0.0
        %1907 = vmatprep.subr.mxu0 0.0
        %1908 = vmatpush2.msra.mxu0 0.0
        %1909 = vmatprep.subr.mxu0 0.0
        %1910 = vmatpush2.msra.mxu0 0.0
        %1911 = vmatprep.subr.mxu0 0.0
        %1912 = vmatpush2.msra.mxu0 0.0
        %1913 = vmatprep.mubr.f32.mxu0 0.0
        %1914 = vmatmul.mubr.f32.gmra.mxu0 %v1847
        %v1915 = vpop.f32.mrf.mxu0
        %v1916 = vadd.f32 0.0, %v1915
        %v1917 = vpop.f32.mrf.mxu0
        %1918 = vdwg.mxu0
        %v1920 = vrot.slane %v1916, 7
        %v1922 = vadd.f32 %v314, %v1920
        %v1923 = vadd.f32 %v315, %v1920
        %v1924 = vadd.f32 %v1922, %v1196
        %v1925 = vadd.f32 %v1923, %v1196
        %s1926 = scalar_lea.vmem %s298, 40 [#allocation2]
        %1927 = vst.msk [vmem:[%s1926 - $0x1] sm:$0xfe] %vm1200, %v1924
        %1928 = vst.msk [vmem:[%s1926 + $0x7] sm:$0x1] %vm1202, %v1925
        %v1929 = vmul.f32 %v853, %v1024
        %v1930 = vadd.f32 %v1929, 0.0
        %v1931 = vmul.f32 %v853, %v1030
        %v1932 = vmul.f32 %v854, %v1030
        %v1935 = vrot.slane %v1931, 1
        %v1936 = vrot.slane %v1932, 1
        %v1937 = vsel %vm1053, %v1935, %v1936
        %v1939 = vadd.f32 %v1930, %v1937
        %v1940 = vmul.f32 %v853, %v1036
        %v1941 = vmul.f32 %v854, %v1036
        %v1944 = vrot.slane %v1940, 2
        %v1945 = vrot.slane %v1941, 2
        %v1946 = vsel %vm1067, %v1944, %v1945
        %v1948 = vadd.f32 %v1939, %v1946
        %v1949 = vmul.f32 %v936, %v1042
        %v1950 = vadd.f32 %v1948, %v1949
        %v1951 = vmul.f32 %v936, %v1048
        %v1952 = vmul.f32 %v937, %v1048
        %v1955 = vrot.slane %v1951, 1
        %v1956 = vrot.slane %v1952, 1
        %v1957 = vsel %vm1053, %v1955, %v1956
        %v1959 = vadd.f32 %v1950, %v1957
        %v1960 = vmul.f32 %v936, %v1062
        %v1961 = vmul.f32 %v937, %v1062
        %v1964 = vrot.slane %v1960, 2
        %v1965 = vrot.slane %v1961, 2
        %v1966 = vsel %vm1067, %v1964, %v1965
        %v1968 = vadd.f32 %v1959, %v1966
        %v1969 = vmul.f32 %v1019, %v1076
        %v1970 = vadd.f32 %v1968, %v1969
        %v1971 = vmul.f32 %v1019, %v1082
        %v1972 = vmul.f32 %v1020, %v1082
        %v1975 = vrot.slane %v1971, 1
        %v1976 = vrot.slane %v1972, 1
        %v1977 = vsel %vm1053, %v1975, %v1976
        %v1979 = vadd.f32 %v1970, %v1977
        %v1980 = vmul.f32 %v1019, %v1095
        %v1981 = vmul.f32 %v1020, %v1095
        %v1984 = vrot.slane %v1980, 2
        %v1985 = vrot.slane %v1981, 2
        %v1986 = vsel %vm1067, %v1984, %v1985
        %v1988 = vadd.f32 %v1979, %v1986
        %v1989 = vadd.f32 %v1988, %v1109
        %v1990 = vmax.f32 %v1989, 0.0
        %v1992 = vsel %vm1113, %v1990, 0
        %1994 = vmatprep.subr.mxu0 0.0
        %1995 = vmatpush1.msra.mxu0 0.0
        %1996 = vmatprep.subr.mxu0 0.0
        %1997 = vmatpush1.msra.mxu0 0.0
        %1998 = vmatprep.subr.mxu0 0.0
        %1999 = vmatpush1.msra.mxu0 0.0
        %2000 = vmatprep.subr.mxu0 0.0
        %2001 = vmatpush1.msra.mxu0 0.0
        %2002 = vmatprep.subr.mxu0 0.0
        %2003 = vmatpush1.msra.mxu0 0.0
        %2004 = vmatprep.subr.mxu0 0.0
        %2005 = vmatpush1.msra.mxu0 0.0
        %2006 = vmatprep.subr.mxu0 0.0
        %2007 = vmatpush1.msra.mxu0 0.0
        %2008 = vmatprep.subr.mxu0 0.0
        %2009 = vmatpush1.msra.mxu0 0.0
        %2010 = vmatprep.subr.mxu0 0.0
        %2011 = vmatpush1.msra.mxu0 %v338
        %2012 = vmatprep.subr.mxu0 0.0
        %2013 = vmatpush1.msra.mxu0 %v337
        %2014 = vmatprep.subr.mxu0 0.0
        %2015 = vmatpush1.msra.mxu0 %v336
        %2016 = vmatprep.subr.mxu0 0.0
        %2017 = vmatpush1.msra.mxu0 %v335
        %2018 = vmatprep.subr.mxu0 0.0
        %2019 = vmatpush1.msra.mxu0 %v334
        %2020 = vmatprep.subr.mxu0 0.0
        %2021 = vmatpush1.msra.mxu0 %v333
        %2022 = vmatprep.subr.mxu0 0.0
        %2023 = vmatpush1.msra.mxu0 %v332
        %2024 = vmatprep.subr.mxu0 0.0
        %2025 = vmatpush1.msra.mxu0 %v331
        %2026 = vmatprep.subr.mxu0 0.0
        %2027 = vmatpush2.msra.mxu0 0.0
        %2028 = vmatprep.subr.mxu0 0.0
        %2029 = vmatpush2.msra.mxu0 0.0
        %2030 = vmatprep.subr.mxu0 0.0
        %2031 = vmatpush2.msra.mxu0 0.0
        %2032 = vmatprep.subr.mxu0 0.0
        %2033 = vmatpush2.msra.mxu0 0.0
        %2034 = vmatprep.subr.mxu0 0.0
        %2035 = vmatpush2.msra.mxu0 0.0
        %2036 = vmatprep.subr.mxu0 0.0
        %2037 = vmatpush2.msra.mxu0 0.0
        %2038 = vmatprep.subr.mxu0 0.0
        %2039 = vmatpush2.msra.mxu0 0.0
        %2040 = vmatprep.subr.mxu0 0.0
        %2041 = vmatpush2.msra.mxu0 0.0
        %2042 = vmatprep.subr.mxu0 0.0
        %2043 = vmatpush2.msra.mxu0 0.0
        %2044 = vmatprep.subr.mxu0 0.0
        %2045 = vmatpush2.msra.mxu0 0.0
        %2046 = vmatprep.subr.mxu0 0.0
        %2047 = vmatpush2.msra.mxu0 0.0
        %2048 = vmatprep.subr.mxu0 0.0
        %2049 = vmatpush2.msra.mxu0 0.0
        %2050 = vmatprep.subr.mxu0 0.0
        %2051 = vmatpush2.msra.mxu0 0.0
        %2052 = vmatprep.subr.mxu0 0.0
        %2053 = vmatpush2.msra.mxu0 0.0
        %2054 = vmatprep.subr.mxu0 0.0
        %2055 = vmatpush2.msra.mxu0 0.0
        %2056 = vmatprep.subr.mxu0 0.0
        %2057 = vmatpush2.msra.mxu0 0.0
        %2058 = vmatprep.mubr.f32.mxu0 0.0
        %2059 = vmatmul.mubr.f32.gmra.mxu0 %v1992
        %v2060 = vpop.f32.mrf.mxu0
        %v2061 = vadd.f32 0.0, %v2060
        %v2062 = vpop.f32.mrf.mxu0
        %2063 = vdwg.mxu0
        %v2065 = vrot.slane %v2061, 7
        %v2067 = vadd.f32 %v316, %v2065
        %v2068 = vadd.f32 %v317, %v2065
        %v2069 = vadd.f32 %v2067, %v1196
        %v2070 = vadd.f32 %v2068, %v1196
        %s2071 = scalar_lea.vmem %s298, 48 [#allocation2]
        %2072 = vst.msk [vmem:[%s2071 - $0x1] sm:$0xfe] %vm1200, %v2069
        %2073 = vst.msk [vmem:[%s2071 + $0x7] sm:$0x1] %vm1202, %v2070
        %v2074 = vmul.f32 %v936, %v1024
        %v2075 = vadd.f32 %v2074, 0.0
        %v2076 = vmul.f32 %v936, %v1030
        %v2077 = vmul.f32 %v937, %v1030
        %v2080 = vrot.slane %v2076, 1
        %v2081 = vrot.slane %v2077, 1
        %v2082 = vsel %vm1053, %v2080, %v2081
        %v2084 = vadd.f32 %v2075, %v2082
        %v2085 = vmul.f32 %v936, %v1036
        %v2086 = vmul.f32 %v937, %v1036
        %v2089 = vrot.slane %v2085, 2
        %v2090 = vrot.slane %v2086, 2
        %v2091 = vsel %vm1067, %v2089, %v2090
        %v2093 = vadd.f32 %v2084, %v2091
        %v2094 = vmul.f32 %v1019, %v1042
        %v2095 = vadd.f32 %v2093, %v2094
        %v2096 = vmul.f32 %v1019, %v1048
        %v2097 = vmul.f32 %v1020, %v1048
        %v2100 = vrot.slane %v2096, 1
        %v2101 = vrot.slane %v2097, 1
        %v2102 = vsel %vm1053, %v2100, %v2101
        %v2104 = vadd.f32 %v2095, %v2102
        %v2105 = vmul.f32 %v1019, %v1062
        %v2106 = vmul.f32 %v1020, %v1062
        %v2109 = vrot.slane %v2105, 2
        %v2110 = vrot.slane %v2106, 2
        %v2111 = vsel %vm1067, %v2109, %v2110
        %v2113 = vadd.f32 %v2104, %v2111
        %v2114 = vmul.f32 %v1076, 0.0
        %v2115 = vadd.f32 %v2113, %v2114
        %v2116 = vmul.f32 %v1082, 0.0
        %v2117 = vadd.f32 %v2115, %v2116
        %v2118 = vmul.f32 %v1095, 0.0
        %v2119 = vadd.f32 %v2117, %v2118
        %v2120 = vadd.f32 %v2119, %v1109
        %v2121 = vmax.f32 %v2120, 0.0
        %v2123 = vsel %vm1113, %v2121, 0
        %2125 = vmatprep.subr.mxu0 0.0
        %2126 = vmatpush1.msra.mxu0 0.0
        %2127 = vmatprep.subr.mxu0 0.0
        %2128 = vmatpush1.msra.mxu0 0.0
        %2129 = vmatprep.subr.mxu0 0.0
        %2130 = vmatpush1.msra.mxu0 0.0
        %2131 = vmatprep.subr.mxu0 0.0
        %2132 = vmatpush1.msra.mxu0 0.0
        %2133 = vmatprep.subr.mxu0 0.0
        %2134 = vmatpush1.msra.mxu0 0.0
        %2135 = vmatprep.subr.mxu0 0.0
        %2136 = vmatpush1.msra.mxu0 0.0
        %2137 = vmatprep.subr.mxu0 0.0
        %2138 = vmatpush1.msra.mxu0 0.0
        %2139 = vmatprep.subr.mxu0 0.0
        %2140 = vmatpush1.msra.mxu0 0.0
        %2141 = vmatprep.subr.mxu0 0.0
        %2142 = vmatpush1.msra.mxu0 %v338
        %2143 = vmatprep.subr.mxu0 0.0
        %2144 = vmatpush1.msra.mxu0 %v337
        %2145 = vmatprep.subr.mxu0 0.0
        %2146 = vmatpush1.msra.mxu0 %v336
        %2147 = vmatprep.subr.mxu0 0.0
        %2148 = vmatpush1.msra.mxu0 %v335
        %2149 = vmatprep.subr.mxu0 0.0
        %2150 = vmatpush1.msra.mxu0 %v334
        %2151 = vmatprep.subr.mxu0 0.0
        %2152 = vmatpush1.msra.mxu0 %v333
        %2153 = vmatprep.subr.mxu0 0.0
        %2154 = vmatpush1.msra.mxu0 %v332
        %2155 = vmatprep.subr.mxu0 0.0
        %2156 = vmatpush1.msra.mxu0 %v331
        %2157 = vmatprep.subr.mxu0 0.0
        %2158 = vmatpush2.msra.mxu0 0.0
        %2159 = vmatprep.subr.mxu0 0.0
        %2160 = vmatpush2.msra.mxu0 0.0
        %2161 = vmatprep.subr.mxu0 0.0
        %2162 = vmatpush2.msra.mxu0 0.0
        %2163 = vmatprep.subr.mxu0 0.0
        %2164 = vmatpush2.msra.mxu0 0.0
        %2165 = vmatprep.subr.mxu0 0.0
        %2166 = vmatpush2.msra.mxu0 0.0
        %2167 = vmatprep.subr.mxu0 0.0
        %2168 = vmatpush2.msra.mxu0 0.0
        %2169 = vmatprep.subr.mxu0 0.0
        %2170 = vmatpush2.msra.mxu0 0.0
        %2171 = vmatprep.subr.mxu0 0.0
        %2172 = vmatpush2.msra.mxu0 0.0
        %2173 = vmatprep.subr.mxu0 0.0
        %2174 = vmatpush2.msra.mxu0 0.0
        %2175 = vmatprep.subr.mxu0 0.0
        %2176 = vmatpush2.msra.mxu0 0.0
        %2177 = vmatprep.subr.mxu0 0.0
        %2178 = vmatpush2.msra.mxu0 0.0
        %2179 = vmatprep.subr.mxu0 0.0
        %2180 = vmatpush2.msra.mxu0 0.0
        %2181 = vmatprep.subr.mxu0 0.0
        %2182 = vmatpush2.msra.mxu0 0.0
        %2183 = vmatprep.subr.mxu0 0.0
        %2184 = vmatpush2.msra.mxu0 0.0
        %2185 = vmatprep.subr.mxu0 0.0
        %2186 = vmatpush2.msra.mxu0 0.0
        %2187 = vmatprep.subr.mxu0 0.0
        %2188 = vmatpush2.msra.mxu0 0.0
        %2189 = vmatprep.mubr.f32.mxu0 0.0
        %2190 = vmatmul.mubr.f32.gmra.mxu0 %v2123
        %v2191 = vpop.f32.mrf.mxu0
        %v2192 = vadd.f32 0.0, %v2191
        %v2193 = vpop.f32.mrf.mxu0
        %2194 = vdwg.mxu0
        %v2196 = vrot.slane %v2192, 7
        %v2198 = vadd.f32 %v318, %v2196
        %v2199 = vadd.f32 %v319, %v2196
        %v2200 = vadd.f32 %v2198, %v1196
        %v2201 = vadd.f32 %v2199, %v1196
        %s2202 = scalar_lea.vmem %s298, 56 [#allocation2]
        %2203 = vst.msk [vmem:[%s2202 - $0x1] sm:$0xfe] %vm1200, %v2200
        %2204 = vst.msk [vmem:[%s2202 + $0x7] sm:$0x1] %vm1202, %v2201
        %s2205 = sand.u32 %s203, 1
        %s2206 = scalar_lea.sflag [#allocation3], %s2205
        %s2207 = sand.u32 %s203, 1
        %s2208 = smul.addr %s2207, 64
        %s2209 = scalar_lea.vmem [#allocation2], %s2208
        // Predicated region
        $region53: #{semantics_extractor_forward.7} parent=51 // pred_check
          %p2210 = pneg %p213
        $region54: #{semantics_extractor_forward.7} parent=51 // pred_check_branch
          %2212 = sbr.rel (%p2210) target = $region56
        $region55: #{semantics_extractor_forward.7} parent=51 // pred_region
          %s2214 = ssub.s32 1024, 1024
          %2215 = vsyncadd %s2206, %s2214
          %s2216 = smul.addr %s22, 8
          %s2217 = smul.addr %s2216, 128
          %s2218 = scalar_lea.hbm %s8, %s2217
          %s2219 = sshll.u32 %s2209, 4
          %s2220 = int_to_ptr.vmem [resolvable:$true] %s2219
          %2225 = dma.vmem_to_hbm [thread:$0]  %s2220, 1024, %s2218, %s2206, 128, 128, 8
        $region56: #{semantics_extractor_forward.7} parent=51 // pred_fallthru
          _
      $region52: #{semantics_extractor_forward.7} parent=5 // pred_fallthru
        _
      %p2226 = scmp.le.s32.totalorder 2, %s17
      // Predicated region
      $region57: #{semantics_extractor_forward.7} parent=5 // pred_check
        %p2227 = pneg %p2226
      $region58: #{semantics_extractor_forward.7} parent=5 // pred_check_branch
        %2229 = sbr.rel (%p2227) target = $region60
      $region59: #{semantics_extractor_forward.7} parent=5 // pred_region
        %s2230 = ssub.s32 %s17, 2
        // Predicated region
        $region61: #{semantics_extractor_forward.7} parent=59 // pred_check
          %p2231 = pneg %p219
        $region62: #{semantics_extractor_forward.7} parent=59 // pred_check_branch
          %2233 = sbr.rel (%p2231) target = $region64
        $region63: #{semantics_extractor_forward.7} parent=59 // pred_region
          %s2234 = sand.u32 %s204, 1
          %s2235 = scalar_lea.sflag [#allocation3], %s2234
          %s2236 = sand.u32 %s204, 1
          %s2237 = smul.addr %s2236, 64
          %s2238 = scalar_lea.vmem [#allocation2], %s2237
          %2239 = dma.done %s2235, 1024
        $region64: #{semantics_extractor_forward.7} parent=59 // pred_fallthru
          _
      $region60: #{semantics_extractor_forward.7} parent=5 // pred_fallthru
        _
    $region6: #{semantics_extractor_forward.7} parent=1 // loop_footer
      %s21 = sadd.s32 1, %s17
    $region7: #{semantics_extractor_forward.7} parent=1 // loop_footer_branch
      %16 = sbr.rel target = $region3
    $region8: #{semantics_extractor_forward.7} parent=1 // loop_exit
      _
    %2240 = vsyncpa [#allocation3], 1
    %s2241 = scalar_lea.sflag [#allocation3], 1
    %2242 = vsyncpa %s2241, 1

</llo_original>
